<compile_context>
chip_gen: v7x
topology: tpu7x:2x2x1
jax: 0.10.0
libtpu: 0.0.40
codegen_flags: <defaults>
</compile_context>

<pallas_src>
import functools

import numpy as np
import jax
import jax.numpy as jnp
from jax.experimental import pallas as pl
from jax.experimental.pallas import tpu as pltpu

EPS = 1e-5                               # PyTorch BatchNorm2d default eps
VMEM_BUDGET = 48 * 1024 * 1024           # fits v7x (64 MiB physical) and v5e/v6e


# ---------------------------------------------------------------------------
# Kernel 1: bilinear upsample (H+W) + skip 1x1 conv + concat + 3x3 conv + bias
#           + per-image BN1 statistics.   One image per grid step, "parallel".
# ---------------------------------------------------------------------------
def upconv_stage1_kernel(x_ref, s_ref, bm_ref, hidx_ref, hwt_ref, ws_ref, w1_ref,
                         b1_ref, y_ref, st_ref, xw_ref, pad_ref,
                         *, H, H2, W2, Cin, Cs, Cmid):
    C2 = 2 * Cin
    npix = H2 * W2

    # ---- W-axis bilinear interp: one (W2,W) @ (W,Cin) matmul per input row ----
    bm = bm_ref[...]                                            # (W2, W), hoisted

    @pl.loop(0, H)
    def _w_interp(h):
        xw_ref[h] = jnp.dot(bm, x_ref[h], preferred_element_type=jnp.float32)

    # ---- zero only the 1-pixel halo border (interior fully overwritten below) ----
    pad_ref[0:1] = jnp.zeros((1, W2 + 2, C2), jnp.float32)
    pad_ref[H2 + 1:H2 + 2] = jnp.zeros((1, W2 + 2, C2), jnp.float32)
    pad_ref[:, 0:1, :] = jnp.zeros((H2 + 2, 1, C2), jnp.float32)
    pad_ref[:, W2 + 1:W2 + 2, :] = jnp.zeros((H2 + 2, 1, C2), jnp.float32)

    # ---- H-axis bilinear interp: 2-tap blend of W-interpolated rows, written
    #      straight into the "upsample" channel half of the halo scratch ----
    @pl.loop(0, H2)
    def _h_interp(r):
        i0 = hidx_ref[r, 0]
        i1 = hidx_ref[r, 1]
        wa = hwt_ref[r, 0]
        wb = hwt_ref[r, 1]
        row = wa * xw_ref[i0] + wb * xw_ref[i1]                 # (W2, Cin)
        pad_ref[pl.ds(r + 1, 1), 1:W2 + 1, 0:Cin] = row[None]

    # ---- skip connection: 1x1 conv (one big matmul) into the second channel half ----
    sk = s_ref[...].reshape(npix, Cs)
    skc = jnp.dot(sk, ws_ref[...], preferred_element_type=jnp.float32)   # (npix, Cin)
    pad_ref[1:H2 + 1, 1:W2 + 1, Cin:C2] = skc.reshape(H2, W2, Cin)

    # ---- 3x3 conv over the (virtually concatenated) channels:
    #      9 shifted matmuls with merged contraction K = 2*Cin ----
    acc = jnp.broadcast_to(b1_ref[...], (npix, Cmid)).astype(jnp.float32)
    for dy in range(3):
        for dx in range(3):
            win = pad_ref[dy:dy + H2, dx:dx + W2, :].reshape(npix, C2)
            acc = acc + jnp.dot(win, w1_ref[dy * 3 + dx],
                                preferred_element_type=jnp.float32)

    # TODO(synk): store y lane-dense as (H2, W2*Cmid) once Mosaic minor-merging
    #             reshapes are verified; Cmid<128 keeps these stores masked.
    y_ref[...] = acc.reshape(H2, W2, Cmid)

    # ---- per-image BN statistics (combined across images on the host) ----
    s1 = jnp.sum(acc, axis=0, keepdims=True)                    # (1, Cmid)  sum
    mu = s1 * (1.0 / npix)
    d = acc - mu
    st_ref[0:1, :] = s1
    st_ref[1:2, :] = jnp.sum(d * d, axis=0, keepdims=True)      # sum of sq. deviations


# ---------------------------------------------------------------------------
# Kernel 2: BN1 apply + ReLU + second 3x3 conv + bias + per-image BN2 stats.
# ---------------------------------------------------------------------------
def upconv_stage2_kernel(y1_ref, sc_ref, sh_ref, w2_ref, b2_ref, y_ref, st_ref,
                         pad_ref, *, H2, W2, Cmid):
    npix = H2 * W2

    h1 = jnp.maximum(y1_ref[...] * sc_ref[...] + sh_ref[...], 0.0)   # (H2, W2, Cmid)

    # zero only the 1-pixel halo border
    pad_ref[0:1] = jnp.zeros((1, W2 + 2, Cmid), jnp.float32)
    pad_ref[H2 + 1:H2 + 2] = jnp.zeros((1, W2 + 2, Cmid), jnp.float32)
    pad_ref[:, 0:1, :] = jnp.zeros((H2 + 2, 1, Cmid), jnp.float32)
    pad_ref[:, W2 + 1:W2 + 2, :] = jnp.zeros((H2 + 2, 1, Cmid), jnp.float32)
    pad_ref[1:H2 + 1, 1:W2 + 1, :] = h1

    acc = jnp.broadcast_to(b2_ref[...], (npix, Cmid)).astype(jnp.float32)
    for dy in range(3):
        for dx in range(3):
            win = pad_ref[dy:dy + H2, dx:dx + W2, :].reshape(npix, Cmid)
            acc = acc + jnp.dot(win, w2_ref[dy * 3 + dx],
                                preferred_element_type=jnp.float32)

    y_ref[...] = acc.reshape(H2, W2, Cmid)

    s1 = jnp.sum(acc, axis=0, keepdims=True)
    mu = s1 * (1.0 / npix)
    d = acc - mu
    st_ref[0:1, :] = s1
    st_ref[1:2, :] = jnp.sum(d * d, axis=0, keepdims=True)


# ---------------------------------------------------------------------------
# Kernel 3: BN2 apply + ReLU on a lane-dense (rows, 2W*Cmid) layout.
# ---------------------------------------------------------------------------
def bn_relu_kernel(x_ref, sc_ref, sh_ref, o_ref):
    o_ref[...] = jnp.maximum(
        x_ref[...] * sc_ref[...] + sh_ref[...], 0.0).astype(o_ref.dtype)


# ---------------------------------------------------------------------------
# Host-side glue
# ---------------------------------------------------------------------------
def _interp_src(size):
    """align_corners=True, scale-factor-2 source coordinates / taps / weights."""
    out = 2 * size
    scale = float(size - 1) / float(out - 1)
    src = np.arange(out, dtype=np.float64) * scale
    i0 = np.clip(np.floor(src).astype(np.int64), 0, size - 1)
    i1 = np.minimum(i0 + 1, size - 1)
    a = (src - i0).astype(np.float32)
    return i0, i1, a


def interp_matrix(size):
    """(2*size, size) bilinear interpolation matrix (used for the W axis)."""
    out = 2 * size
    i0, i1, a = _interp_src(size)
    m = np.zeros((out, size), np.float32)
    m[np.arange(out), i0] += 1.0 - a
    m[np.arange(out), i1] += a
    return jnp.asarray(m)


def interp_tables(size):
    """(2*size, 2) int32 taps and (2*size, 2) f32 weights (used for the H axis)."""
    i0, i1, a = _interp_src(size)
    idx = np.stack([i0, i1], axis=1).astype(np.int32)
    wts = np.stack([1.0 - a, a], axis=1).astype(np.float32)
    return jnp.asarray(idx), jnp.asarray(wts)


def bn_scale_shift(stats, npix, gamma, beta):
    """Combine per-image (sum, sum-of-squared-deviations) -> BN scale/shift."""
    n_img = stats.shape[0]
    total = float(n_img * npix)
    s1 = stats[:, 0, :]                                   # (N, C)
    m2_i = stats[:, 1, :]                                 # (N, C)
    mean_i = s1 / float(npix)
    mean = jnp.sum(s1, axis=0) / total
    # Chan's parallel-variance combination (numerically stable across images).
    m2 = jnp.sum(m2_i, axis=0) + float(npix) * jnp.sum((mean_i - mean) ** 2, axis=0)
    var = m2 / total                                      # biased, as PyTorch uses in fwd
    scale = gamma * jax.lax.rsqrt(var + EPS)
    shift = beta - mean * scale
    return scale, shift


def _pick_row_tile(total_rows, lane_width, max_rows=512, max_bytes=4 * 1024 * 1024):
    """Largest multiple-of-8 divisor of total_rows that fits the byte budget."""
    best = None
    limit = min(total_rows, max_rows)
    for r in range(8, limit + 1, 8):
        if total_rows % r == 0 and r * lane_width * 4 <= max_bytes:
            best = r
    if best is None:
        best = total_rows          # single-block fallback (small / odd row counts)
    return best


def up_conv(x, skip_x, params):
    """x: (N, Cin, H, W), skip_x: (N, Cs, 2H, 2W)  ->  (N, Cmid, 2H, 2W)   (NCHW)."""
    N, Cin, H, W = x.shape
    _, Cs, H2, W2 = skip_x.shape
    assert H2 == 2 * H and W2 == 2 * W
    Cmid = params["w2"].shape[-1]
    C2 = 2 * Cin
    npix = H2 * W2

    bm = interp_matrix(W)                 # (2W, W)  W-axis interpolation matrix
    hidx, hwt = interp_tables(H)          # (2H, 2)  H-axis taps / weights (SMEM)

    # NCHW -> NHWC at the module boundary; kernels run channel-minor internally.
    x_nhwc = jnp.transpose(x, (0, 2, 3, 1))
    skip_nhwc = jnp.transpose(skip_x, (0, 2, 3, 1))

    # ---- Stage 1: upsample + skip 1x1 + concat + conv1(+bias) + BN1 stats ----
    y1, st1 = pl.pallas_call(
        functools.partial(upconv_stage1_kernel, H=H, H2=H2, W2=W2, Cin=Cin,
                          Cs=Cs, Cmid=Cmid),
        out_shape=(jax.ShapeDtypeStruct((N, H2, W2, Cmid), jnp.float32),
                   jax.ShapeDtypeStruct((N, 2, Cmid), jnp.float32)),
        grid=(N,),
        in_specs=[
            pl.BlockSpec((None, H, W, Cin), lambda n: (n, 0, 0, 0)),
            pl.BlockSpec((None, H2, W2, Cs), lambda n: (n, 0, 0, 0)),
            pl.BlockSpec((W2, W), lambda n: (0, 0)),
            pl.BlockSpec(memory_space=pltpu.MemorySpace.SMEM),   # H-interp taps
            pl.BlockSpec(memory_space=pltpu.MemorySpace.SMEM),   # H-interp weights
            pl.BlockSpec((Cs, Cin), lambda n: (0, 0)),
            pl.BlockSpec((9, C2, Cmid), lambda n: (0, 0, 0)),
            pl.BlockSpec((1, Cmid), lambda n: (0, 0)),
        ],
        out_specs=(pl.BlockSpec((None, H2, W2, Cmid), lambda n: (n, 0, 0, 0)),
                   pl.BlockSpec((None, 2, Cmid), lambda n: (n, 0, 0))),
        scratch_shapes=[pltpu.VMEM((H, W2, Cin), jnp.float32),          # W-interp rows
                        pltpu.VMEM((H2 + 2, W2 + 2, C2), jnp.float32)], # merged halo
        compiler_params=pltpu.CompilerParams(
            dimension_semantics=("parallel",), vmem_limit_bytes=VMEM_BUDGET),
    )(x_nhwc, skip_nhwc, bm, hidx, hwt, params["w_skip"], params["w1"],
      params["b1"].reshape(1, Cmid))

    scale1, shift1 = bn_scale_shift(st1, npix, params["bn1_g"], params["bn1_b"])

    # ---- Stage 2: BN1 apply + ReLU + conv2(+bias) + BN2 stats ----
    y2, st2 = pl.pallas_call(
        functools.partial(upconv_stage2_kernel, H2=H2, W2=W2, Cmid=Cmid),
        out_shape=(jax.ShapeDtypeStruct((N, H2, W2, Cmid), jnp.float32),
                   jax.ShapeDtypeStruct((N, 2, Cmid), jnp.float32)),
        grid=(N,),
        in_specs=[
            pl.BlockSpec((None, H2, W2, Cmid), lambda n: (n, 0, 0, 0)),
            pl.BlockSpec((1, 1, Cmid), lambda n: (0, 0, 0)),
            pl.BlockSpec((1, 1, Cmid), lambda n: (0, 0, 0)),
            pl.BlockSpec((9, Cmid, Cmid), lambda n: (0, 0, 0)),
            pl.BlockSpec((1, Cmid), lambda n: (0, 0)),
        ],
        out_specs=(pl.BlockSpec((None, H2, W2, Cmid), lambda n: (n, 0, 0, 0)),
                   pl.BlockSpec((None, 2, Cmid), lambda n: (n, 0, 0))),
        scratch_shapes=[pltpu.VMEM((H2 + 2, W2 + 2, Cmid), jnp.float32)],
        compiler_params=pltpu.CompilerParams(
            dimension_semantics=("parallel",), vmem_limit_bytes=VMEM_BUDGET),
    )(y1, scale1.reshape(1, 1, Cmid), shift1.reshape(1, 1, Cmid),
      params["w2"], params["b2"].reshape(1, Cmid))

    scale2, shift2 = bn_scale_shift(st2, npix, params["bn2_g"], params["bn2_b"])

    # ---- Stage 3: BN2 apply + ReLU, lane-dense layout, large row tiles ----
    Lw = W2 * Cmid
    TR = N * H2
    BR = _pick_row_tile(TR, Lw)
    y2f = y2.reshape(TR, Lw)                       # contiguous -> free host reshape
    sc2 = jnp.tile(scale2.reshape(1, Cmid), (1, W2))
    sh2 = jnp.tile(shift2.reshape(1, Cmid), (1, W2))
    out_f = pl.pallas_call(
        bn_relu_kernel,
        out_shape=jax.ShapeDtypeStruct((TR, Lw), jnp.float32),
        grid=(TR // BR,),
        in_specs=[pl.BlockSpec((BR, Lw), lambda i: (i, 0)),
                  pl.BlockSpec((1, Lw), lambda i: (0, 0)),
                  pl.BlockSpec((1, Lw), lambda i: (0, 0))],
        out_specs=pl.BlockSpec((BR, Lw), lambda i: (i, 0)),
        input_output_aliases={0: 0},
        compiler_params=pltpu.CompilerParams(
            dimension_semantics=("parallel",), vmem_limit_bytes=VMEM_BUDGET),
    )(y2f, sc2, sh2)

    out = out_f.reshape(N, H2, W2, Cmid)
    return jnp.transpose(out, (0, 3, 1, 2))        # back to NCHW (module boundary)


# ---------------------------------------------------------------------------
# Parameter init (in the layouts the kernels consume; random, deterministic)
# ---------------------------------------------------------------------------
def init_params(key, in_plane, skip_plane, num_plane):
    ks = jax.random.split(key, 5)

    def rnd(k, shape, fan_in):
        return jax.random.normal(k, shape, jnp.float32) / jnp.sqrt(jnp.float32(fan_in))

    return {
        # skip_connect: Conv2d(skip_plane -> in_plane, 1x1, bias=False); (Cs, Cin)
        "w_skip": rnd(ks[0], (skip_plane, in_plane), skip_plane),
        # conv1: Conv2d(2*in_plane -> num_plane, 3x3); taps-major (9, 2*Cin, Cmid),
        # input channels ordered [upsample half, skip half] to match the concat.
        "w1": rnd(ks[1], (9, 2 * in_plane, num_plane), 9 * 2 * in_plane),
        "b1": rnd(ks[2], (num_plane,), 9 * 2 * in_plane),
        "bn1_g": jnp.ones((num_plane,), jnp.float32),
        "bn1_b": jnp.zeros((num_plane,), jnp.float32),
        # conv2: Conv2d(num_plane -> num_plane, 3x3); (9, Cmid, Cmid)
        "w2": rnd(ks[3], (9, num_plane, num_plane), 9 * num_plane),
        "b2": rnd(ks[4], (num_plane,), 9 * num_plane),
        "bn2_g": jnp.ones((num_plane,), jnp.float32),
        "bn2_b": jnp.zeros((num_plane,), jnp.float32),
    }


# ---------------------------------------------------------------------------
# main
# ---------------------------------------------------------------------------
if __name__ == "__main__":
    key = jax.random.PRNGKey(0)
    kx, ksx, kp = jax.random.split(key, 3)

    N, in_plane, skip_plane, num_plane = 2, 8, 16, 16
    H = W = 8                                    # x is (N, in_plane, 8, 8)  NCHW

    x = jax.random.normal(kx, (N, in_plane, H, W), jnp.float32)
    skip_x = jax.random.normal(ksx, (N, skip_plane, 2 * H, 2 * W), jnp.float32)
    params = init_params(kp, in_plane, skip_plane, num_plane)

    out = jax.block_until_ready(jax.jit(up_conv)(x, skip_x, params))
    assert out.shape == (N, num_plane, 2 * H, 2 * W)
    assert bool(jnp.all(jnp.isfinite(out)))
    print("KERNEL_OK")
</pallas_src>

<mosaic_0001>
module attributes {stable_mosaic.version = 11 : i64} {
  func.func @upconv_stage1_kernel(%arg0: i32, %arg1: memref<1x8x8x8xf32, #tpu.memory_space<vmem>>, %arg2: memref<1x16x16x16xf32, #tpu.memory_space<vmem>>, %arg3: memref<16x8xf32, #tpu.memory_space<vmem>>, %arg4: memref<16x2xi32, #tpu.memory_space<smem>>, %arg5: memref<16x2xf32, #tpu.memory_space<smem>>, %arg6: memref<16x8xf32, #tpu.memory_space<vmem>>, %arg7: memref<9x16x16xf32, #tpu.memory_space<vmem>>, %arg8: memref<1x16xf32, #tpu.memory_space<vmem>>, %arg9: memref<1x16x16x16xf32, #tpu.memory_space<vmem>>, %arg10: memref<1x2x16xf32, #tpu.memory_space<vmem>>, %arg11: memref<8x16x8xf32, #tpu.memory_space<vmem>>, %arg12: memref<18x18x16xf32, #tpu.memory_space<vmem>>) attributes {dimension_semantics = [#tpu.dimension_semantics<parallel>], iteration_bounds = array<i64: 2>, scalar_prefetch = 0 : i64, scratch_operands = 2 : i64, tpu.core_type = #tpu.core_type<tc>, window_params = [{transform_indices = @transform_0, window_bounds = array<i64: 1, 8, 8, 8>}, {transform_indices = @transform_1, window_bounds = array<i64: 1, 16, 16, 16>}, {pipeline_mode = #tpu.pipeline_mode<synchronous>, transform_indices = @transform_2, window_bounds = array<i64: 16, 8>}, {transform_indices = @transform_3, window_bounds = array<i64: 16, 2>}, {transform_indices = @transform_4, window_bounds = array<i64: 16, 2>}, {pipeline_mode = #tpu.pipeline_mode<synchronous>, transform_indices = @transform_5, window_bounds = array<i64: 16, 8>}, {pipeline_mode = #tpu.pipeline_mode<synchronous>, transform_indices = @transform_6, window_bounds = array<i64: 9, 16, 16>}, {pipeline_mode = #tpu.pipeline_mode<synchronous>, transform_indices = @transform_7, window_bounds = array<i64: 1, 16>}, {transform_indices = @transform_8, window_bounds = array<i64: 1, 16, 16, 16>}, {transform_indices = @transform_9, window_bounds = array<i64: 1, 2, 16>}]} {
    %c0 = arith.constant 0 : index
    %c0_0 = arith.constant 0 : index
    %0 = vector.load %arg3[%c0, %c0_0] : memref<16x8xf32, #tpu.memory_space<vmem>>, vector<16x8xf32>
    %c0_i32 = arith.constant 0 : i32
    %c8_i32 = arith.constant 8 : i32
    %1 = arith.addi %c0_i32, %c8_i32 : i32
    %c1_i32 = arith.constant 1 : i32
    scf.for %arg13 = %c0_i32 to %1 step %c1_i32  : i32 {
      %c1_i32_99 = arith.constant 1 : i32
      %94 = arith.muli %arg13, %c1_i32_99 : i32
      %c0_i32_100 = arith.constant 0 : i32
      %95 = arith.addi %c0_i32_100, %94 : i32
      %c0_101 = arith.constant 0 : index
      %96 = arith.index_cast %95 : i32 to index
      %c0_102 = arith.constant 0 : index
      %c0_103 = arith.constant 0 : index
      %97 = vector.load %arg1[%c0_101, %96, %c0_102, %c0_103] : memref<1x8x8x8xf32, #tpu.memory_space<vmem>>, vector<1x1x8x8xf32>
      %98 = vector.shape_cast %97 : vector<1x1x8x8xf32> to vector<8x8xf32>
      %cst_104 = arith.constant dense<0.000000e+00> : vector<16x8xf32>
      %99 = tpu.matmul %0, %98, %cst_104 {dimension_numbers = #tpu.dot_dimension_numbers<[1], [0], [0], [1], [0, 0, 1, 1], [], []>} : vector<16x8xf32>, vector<8x8xf32>, vector<16x8xf32> -> vector<16x8xf32>
      %100 = arith.index_cast %95 : i32 to index
      %c0_105 = arith.constant 0 : index
      %c0_106 = arith.constant 0 : index
      %101 = vector.load %arg11[%100, %c0_105, %c0_106] : memref<8x16x8xf32, #tpu.memory_space<vmem>>, vector<1x16x8xf32>
      %102 = vector.shape_cast %101 : vector<1x16x8xf32> to vector<16x8xf32>
      %103 = vector.shape_cast %99 : vector<16x8xf32> to vector<1x16x8xf32>
      tpu.vector_store %arg11[%100, %c0_105, %c0_106], %103 {strides = array<i32>} : memref<8x16x8xf32, #tpu.memory_space<vmem>>, vector<1x16x8xf32>,
    }
    %c8_i32_1 = arith.constant 8 : i32
    %cst = arith.constant 0.000000e+00 : f32
    %2 = vector.broadcast %cst : f32 to vector<1x18x16xf32>
    %c0_2 = arith.constant 0 : index
    %c0_3 = arith.constant 0 : index
    %c0_4 = arith.constant 0 : index
    %3 = vector.load %arg12[%c0_2, %c0_3, %c0_4] : memref<18x18x16xf32, #tpu.memory_space<vmem>>, vector<1x18x16xf32>
    tpu.vector_store %arg12[%c0_2, %c0_3, %c0_4], %2 {strides = array<i32>} : memref<18x18x16xf32, #tpu.memory_space<vmem>>, vector<1x18x16xf32>,
    %cst_5 = arith.constant 0.000000e+00 : f32
    %4 = vector.broadcast %cst_5 : f32 to vector<1x18x16xf32>
    %c17 = arith.constant 17 : index
    %c0_6 = arith.constant 0 : index
    %c0_7 = arith.constant 0 : index
    %5 = vector.load %arg12[%c17, %c0_6, %c0_7] : memref<18x18x16xf32, #tpu.memory_space<vmem>>, vector<1x18x16xf32>
    tpu.vector_store %arg12[%c17, %c0_6, %c0_7], %4 {strides = array<i32>} : memref<18x18x16xf32, #tpu.memory_space<vmem>>, vector<1x18x16xf32>,
    %cst_8 = arith.constant 0.000000e+00 : f32
    %6 = vector.broadcast %cst_8 : f32 to vector<18x1x16xf32>
    %c0_9 = arith.constant 0 : index
    %c0_10 = arith.constant 0 : index
    %c0_11 = arith.constant 0 : index
    %7 = vector.load %arg12[%c0_9, %c0_10, %c0_11] : memref<18x18x16xf32, #tpu.memory_space<vmem>>, vector<18x1x16xf32>
    tpu.vector_store %arg12[%c0_9, %c0_10, %c0_11], %6 {strides = array<i32>} : memref<18x18x16xf32, #tpu.memory_space<vmem>>, vector<18x1x16xf32>,
    %cst_12 = arith.constant 0.000000e+00 : f32
    %8 = vector.broadcast %cst_12 : f32 to vector<18x1x16xf32>
    %c0_13 = arith.constant 0 : index
    %c17_14 = arith.constant 17 : index
    %c0_15 = arith.constant 0 : index
    %9 = vector.load %arg12[%c0_13, %c17_14, %c0_15] : memref<18x18x16xf32, #tpu.memory_space<vmem>>, vector<18x1x16xf32>
    tpu.vector_store %arg12[%c0_13, %c17_14, %c0_15], %8 {strides = array<i32>} : memref<18x18x16xf32, #tpu.memory_space<vmem>>, vector<18x1x16xf32>,
    %c0_i32_16 = arith.constant 0 : i32
    %c16_i32 = arith.constant 16 : i32
    %10 = arith.addi %c0_i32_16, %c16_i32 : i32
    %c1_i32_17 = arith.constant 1 : i32
    scf.for %arg13 = %c0_i32_16 to %10 step %c1_i32_17  : i32 {
      %c1_i32_99 = arith.constant 1 : i32
      %94 = arith.muli %arg13, %c1_i32_99 : i32
      %c0_i32_100 = arith.constant 0 : i32
      %95 = arith.addi %c0_i32_100, %94 : i32
      %96 = arith.index_cast %95 : i32 to index
      %c0_101 = arith.constant 0 : index
      %97 = memref.load %arg4[%96, %c0_101] : memref<16x2xi32, #tpu.memory_space<smem>>
      %98 = arith.index_cast %95 : i32 to index
      %c1_102 = arith.constant 1 : index
      %99 = memref.load %arg4[%98, %c1_102] : memref<16x2xi32, #tpu.memory_space<smem>>
      %100 = arith.index_cast %95 : i32 to index
      %c0_103 = arith.constant 0 : index
      %101 = memref.load %arg5[%100, %c0_103] : memref<16x2xf32, #tpu.memory_space<smem>>
      %102 = arith.index_cast %95 : i32 to index
      %c1_104 = arith.constant 1 : index
      %103 = memref.load %arg5[%102, %c1_104] : memref<16x2xf32, #tpu.memory_space<smem>>
      %104 = arith.index_cast %97 : i32 to index
      %c0_105 = arith.constant 0 : index
      %c0_106 = arith.constant 0 : index
      %105 = vector.load %arg11[%104, %c0_105, %c0_106] : memref<8x16x8xf32, #tpu.memory_space<vmem>>, vector<1x16x8xf32>
      %106 = vector.shape_cast %105 : vector<1x16x8xf32> to vector<16x8xf32>
      %107 = vector.broadcast %101 : f32 to vector<16x8xf32>
      %108 = arith.mulf %107, %106 : vector<16x8xf32>
      %109 = arith.index_cast %99 : i32 to index
      %c0_107 = arith.constant 0 : index
      %c0_108 = arith.constant 0 : index
      %110 = vector.load %arg11[%109, %c0_107, %c0_108] : memref<8x16x8xf32, #tpu.memory_space<vmem>>, vector<1x16x8xf32>
      %111 = vector.shape_cast %110 : vector<1x16x8xf32> to vector<16x8xf32>
      %112 = vector.broadcast %103 : f32 to vector<16x8xf32>
      %113 = arith.mulf %112, %111 : vector<16x8xf32>
      %114 = arith.addf %108, %113 : vector<16x8xf32>
      %115 = vector.shape_cast %114 : vector<16x8xf32> to vector<1x16x8xf32>
      %c1_i32_109 = arith.constant 1 : i32
      %116 = arith.addi %95, %c1_i32_109 : i32
      %117 = arith.index_cast %116 : i32 to index
      %c1_110 = arith.constant 1 : index
      %c0_111 = arith.constant 0 : index
      %118 = vector.load %arg12[%117, %c1_110, %c0_111] : memref<18x18x16xf32, #tpu.memory_space<vmem>>, vector<1x16x8xf32>
      tpu.vector_store %arg12[%117, %c1_110, %c0_111], %115 {strides = array<i32>} : memref<18x18x16xf32, #tpu.memory_space<vmem>>, vector<1x16x8xf32>,
    }
    %c16_i32_18 = arith.constant 16 : i32
    %c0_19 = arith.constant 0 : index
    %c0_20 = arith.constant 0 : index
    %c0_21 = arith.constant 0 : index
    %c0_22 = arith.constant 0 : index
    %11 = vector.load %arg2[%c0_19, %c0_20, %c0_21, %c0_22] : memref<1x16x16x16xf32, #tpu.memory_space<vmem>>, vector<1x16x16x16xf32>
    %12 = vector.shape_cast %11 : vector<1x16x16x16xf32> to vector<16x16x16xf32>
    %13 = vector.shape_cast %12 : vector<16x16x16xf32> to vector<256x16xf32>
    %c0_23 = arith.constant 0 : index
    %c0_24 = arith.constant 0 : index
    %14 = vector.load %arg6[%c0_23, %c0_24] : memref<16x8xf32, #tpu.memory_space<vmem>>, vector<16x8xf32>
    %cst_25 = arith.constant dense<0.000000e+00> : vector<256x8xf32>
    %15 = tpu.matmul %13, %14, %cst_25 {dimension_numbers = #tpu.dot_dimension_numbers<[1], [0], [0], [1], [0, 0, 1, 1], [], []>} : vector<256x16xf32>, vector<16x8xf32>, vector<256x8xf32> -> vector<256x8xf32>
    %16 = vector.shape_cast %15 : vector<256x8xf32> to vector<16x16x8xf32>
    %c1 = arith.constant 1 : index
    %c1_26 = arith.constant 1 : index
    %c8 = arith.constant 8 : index
    %17 = vector.load %arg12[%c1, %c1_26, %c8] : memref<18x18x16xf32, #tpu.memory_space<vmem>>, vector<16x16x8xf32>
    tpu.vector_store %arg12[%c1, %c1_26, %c8], %16 {strides = array<i32>} : memref<18x18x16xf32, #tpu.memory_space<vmem>>, vector<16x16x8xf32>,
    %c0_27 = arith.constant 0 : index
    %c0_28 = arith.constant 0 : index
    %18 = vector.load %arg8[%c0_27, %c0_28] : memref<1x16xf32, #tpu.memory_space<vmem>>, vector<1x16xf32>
    %19 = vector.shape_cast %18 : vector<1x16xf32> to vector<1x16xf32>
    %20 = vector.broadcast %19 : vector<1x16xf32> to vector<256x16xf32>
    %c0_29 = arith.constant 0 : index
    %c0_30 = arith.constant 0 : index
    %c0_31 = arith.constant 0 : index
    %21 = vector.load %arg12[%c0_29, %c0_30, %c0_31] : memref<18x18x16xf32, #tpu.memory_space<vmem>>, vector<16x16x16xf32>
    %22 = vector.shape_cast %21 : vector<16x16x16xf32> to vector<256x16xf32>
    %c0_32 = arith.constant 0 : index
    %c0_33 = arith.constant 0 : index
    %c0_34 = arith.constant 0 : index
    %23 = vector.load %arg7[%c0_32, %c0_33, %c0_34] : memref<9x16x16xf32, #tpu.memory_space<vmem>>, vector<1x16x16xf32>
    %24 = vector.shape_cast %23 : vector<1x16x16xf32> to vector<16x16xf32>
    %cst_35 = arith.constant dense<0.000000e+00> : vector<256x16xf32>
    %25 = tpu.matmul %22, %24, %cst_35 {dimension_numbers = #tpu.dot_dimension_numbers<[1], [0], [0], [1], [0, 0, 1, 1], [], []>} : vector<256x16xf32>, vector<16x16xf32>, vector<256x16xf32> -> vector<256x16xf32>
    %26 = arith.addf %20, %25 : vector<256x16xf32>
    %c0_36 = arith.constant 0 : index
    %c1_37 = arith.constant 1 : index
    %c0_38 = arith.constant 0 : index
    %27 = vector.load %arg12[%c0_36, %c1_37, %c0_38] : memref<18x18x16xf32, #tpu.memory_space<vmem>>, vector<16x16x16xf32>
    %28 = vector.shape_cast %27 : vector<16x16x16xf32> to vector<256x16xf32>
    %c1_39 = arith.constant 1 : index
    %c0_40 = arith.constant 0 : index
    %c0_41 = arith.constant 0 : index
    %29 = vector.load %arg7[%c1_39, %c0_40, %c0_41] : memref<9x16x16xf32, #tpu.memory_space<vmem>>, vector<1x16x16xf32>
    %30 = vector.shape_cast %29 : vector<1x16x16xf32> to vector<16x16xf32>
    %cst_42 = arith.constant dense<0.000000e+00> : vector<256x16xf32>
    %31 = tpu.matmul %28, %30, %cst_42 {dimension_numbers = #tpu.dot_dimension_numbers<[1], [0], [0], [1], [0, 0, 1, 1], [], []>} : vector<256x16xf32>, vector<16x16xf32>, vector<256x16xf32> -> vector<256x16xf32>
    %32 = arith.addf %26, %31 : vector<256x16xf32>
    %c0_43 = arith.constant 0 : index
    %c2 = arith.constant 2 : index
    %c0_44 = arith.constant 0 : index
    %33 = vector.load %arg12[%c0_43, %c2, %c0_44] : memref<18x18x16xf32, #tpu.memory_space<vmem>>, vector<16x16x16xf32>
    %34 = vector.shape_cast %33 : vector<16x16x16xf32> to vector<256x16xf32>
    %c2_45 = arith.constant 2 : index
    %c0_46 = arith.constant 0 : index
    %c0_47 = arith.constant 0 : index
    %35 = vector.load %arg7[%c2_45, %c0_46, %c0_47] : memref<9x16x16xf32, #tpu.memory_space<vmem>>, vector<1x16x16xf32>
    %36 = vector.shape_cast %35 : vector<1x16x16xf32> to vector<16x16xf32>
    %cst_48 = arith.constant dense<0.000000e+00> : vector<256x16xf32>
    %37 = tpu.matmul %34, %36, %cst_48 {dimension_numbers = #tpu.dot_dimension_numbers<[1], [0], [0], [1], [0, 0, 1, 1], [], []>} : vector<256x16xf32>, vector<16x16xf32>, vector<256x16xf32> -> vector<256x16xf32>
    %38 = arith.addf %32, %37 : vector<256x16xf32>
    %c1_49 = arith.constant 1 : index
    %c0_50 = arith.constant 0 : index
    %c0_51 = arith.constant 0 : index
    %39 = vector.load %arg12[%c1_49, %c0_50, %c0_51] : memref<18x18x16xf32, #tpu.memory_space<vmem>>, vector<16x16x16xf32>
    %40 = vector.shape_cast %39 : vector<16x16x16xf32> to vector<256x16xf32>
    %c3 = arith.constant 3 : index
    %c0_52 = arith.constant 0 : index
    %c0_53 = arith.constant 0 : index
    %41 = vector.load %arg7[%c3, %c0_52, %c0_53] : memref<9x16x16xf32, #tpu.memory_space<vmem>>, vector<1x16x16xf32>
    %42 = vector.shape_cast %41 : vector<1x16x16xf32> to vector<16x16xf32>
    %cst_54 = arith.constant dense<0.000000e+00> : vector<256x16xf32>
    %43 = tpu.matmul %40, %42, %cst_54 {dimension_numbers = #tpu.dot_dimension_numbers<[1], [0], [0], [1], [0, 0, 1, 1], [], []>} : vector<256x16xf32>, vector<16x16xf32>, vector<256x16xf32> -> vector<256x16xf32>
    %44 = arith.addf %38, %43 : vector<256x16xf32>
    %c1_55 = arith.constant 1 : index
    %c1_56 = arith.constant 1 : index
    %c0_57 = arith.constant 0 : index
    %45 = vector.load %arg12[%c1_55, %c1_56, %c0_57] : memref<18x18x16xf32, #tpu.memory_space<vmem>>, vector<16x16x16xf32>
    %46 = vector.shape_cast %45 : vector<16x16x16xf32> to vector<256x16xf32>
    %c4 = arith.constant 4 : index
    %c0_58 = arith.constant 0 : index
    %c0_59 = arith.constant 0 : index
    %47 = vector.load %arg7[%c4, %c0_58, %c0_59] : memref<9x16x16xf32, #tpu.memory_space<vmem>>, vector<1x16x16xf32>
    %48 = vector.shape_cast %47 : vector<1x16x16xf32> to vector<16x16xf32>
    %cst_60 = arith.constant dense<0.000000e+00> : vector<256x16xf32>
    %49 = tpu.matmul %46, %48, %cst_60 {dimension_numbers = #tpu.dot_dimension_numbers<[1], [0], [0], [1], [0, 0, 1, 1], [], []>} : vector<256x16xf32>, vector<16x16xf32>, vector<256x16xf32> -> vector<256x16xf32>
    %50 = arith.addf %44, %49 : vector<256x16xf32>
    %c1_61 = arith.constant 1 : index
    %c2_62 = arith.constant 2 : index
    %c0_63 = arith.constant 0 : index
    %51 = vector.load %arg12[%c1_61, %c2_62, %c0_63] : memref<18x18x16xf32, #tpu.memory_space<vmem>>, vector<16x16x16xf32>
    %52 = vector.shape_cast %51 : vector<16x16x16xf32> to vector<256x16xf32>
    %c5 = arith.constant 5 : index
    %c0_64 = arith.constant 0 : index
    %c0_65 = arith.constant 0 : index
    %53 = vector.load %arg7[%c5, %c0_64, %c0_65] : memref<9x16x16xf32, #tpu.memory_space<vmem>>, vector<1x16x16xf32>
    %54 = vector.shape_cast %53 : vector<1x16x16xf32> to vector<16x16xf32>
    %cst_66 = arith.constant dense<0.000000e+00> : vector<256x16xf32>
    %55 = tpu.matmul %52, %54, %cst_66 {dimension_numbers = #tpu.dot_dimension_numbers<[1], [0], [0], [1], [0, 0, 1, 1], [], []>} : vector<256x16xf32>, vector<16x16xf32>, vector<256x16xf32> -> vector<256x16xf32>
    %56 = arith.addf %50, %55 : vector<256x16xf32>
    %c2_67 = arith.constant 2 : index
    %c0_68 = arith.constant 0 : index
    %c0_69 = arith.constant 0 : index
    %57 = vector.load %arg12[%c2_67, %c0_68, %c0_69] : memref<18x18x16xf32, #tpu.memory_space<vmem>>, vector<16x16x16xf32>
    %58 = vector.shape_cast %57 : vector<16x16x16xf32> to vector<256x16xf32>
    %c6 = arith.constant 6 : index
    %c0_70 = arith.constant 0 : index
    %c0_71 = arith.constant 0 : index
    %59 = vector.load %arg7[%c6, %c0_70, %c0_71] : memref<9x16x16xf32, #tpu.memory_space<vmem>>, vector<1x16x16xf32>
    %60 = vector.shape_cast %59 : vector<1x16x16xf32> to vector<16x16xf32>
    %cst_72 = arith.constant dense<0.000000e+00> : vector<256x16xf32>
    %61 = tpu.matmul %58, %60, %cst_72 {dimension_numbers = #tpu.dot_dimension_numbers<[1], [0], [0], [1], [0, 0, 1, 1], [], []>} : vector<256x16xf32>, vector<16x16xf32>, vector<256x16xf32> -> vector<256x16xf32>
    %62 = arith.addf %56, %61 : vector<256x16xf32>
    %c2_73 = arith.constant 2 : index
    %c1_74 = arith.constant 1 : index
    %c0_75 = arith.constant 0 : index
    %63 = vector.load %arg12[%c2_73, %c1_74, %c0_75] : memref<18x18x16xf32, #tpu.memory_space<vmem>>, vector<16x16x16xf32>
    %64 = vector.shape_cast %63 : vector<16x16x16xf32> to vector<256x16xf32>
    %c7 = arith.constant 7 : index
    %c0_76 = arith.constant 0 : index
    %c0_77 = arith.constant 0 : index
    %65 = vector.load %arg7[%c7, %c0_76, %c0_77] : memref<9x16x16xf32, #tpu.memory_space<vmem>>, vector<1x16x16xf32>
    %66 = vector.shape_cast %65 : vector<1x16x16xf32> to vector<16x16xf32>
    %cst_78 = arith.constant dense<0.000000e+00> : vector<256x16xf32>
    %67 = tpu.matmul %64, %66, %cst_78 {dimension_numbers = #tpu.dot_dimension_numbers<[1], [0], [0], [1], [0, 0, 1, 1], [], []>} : vector<256x16xf32>, vector<16x16xf32>, vector<256x16xf32> -> vector<256x16xf32>
    %68 = arith.addf %62, %67 : vector<256x16xf32>
    %c2_79 = arith.constant 2 : index
    %c2_80 = arith.constant 2 : index
    %c0_81 = arith.constant 0 : index
    %69 = vector.load %arg12[%c2_79, %c2_80, %c0_81] : memref<18x18x16xf32, #tpu.memory_space<vmem>>, vector<16x16x16xf32>
    %70 = vector.shape_cast %69 : vector<16x16x16xf32> to vector<256x16xf32>
    %c8_82 = arith.constant 8 : index
    %c0_83 = arith.constant 0 : index
    %c0_84 = arith.constant 0 : index
    %71 = vector.load %arg7[%c8_82, %c0_83, %c0_84] : memref<9x16x16xf32, #tpu.memory_space<vmem>>, vector<1x16x16xf32>
    %72 = vector.shape_cast %71 : vector<1x16x16xf32> to vector<16x16xf32>
    %cst_85 = arith.constant dense<0.000000e+00> : vector<256x16xf32>
    %73 = tpu.matmul %70, %72, %cst_85 {dimension_numbers = #tpu.dot_dimension_numbers<[1], [0], [0], [1], [0, 0, 1, 1], [], []>} : vector<256x16xf32>, vector<16x16xf32>, vector<256x16xf32> -> vector<256x16xf32>
    %74 = arith.addf %68, %73 : vector<256x16xf32>
    %75 = vector.shape_cast %74 : vector<256x16xf32> to vector<16x16x16xf32>
    %c0_86 = arith.constant 0 : index
    %c0_87 = arith.constant 0 : index
    %c0_88 = arith.constant 0 : index
    %c0_89 = arith.constant 0 : index
    %76 = vector.load %arg9[%c0_86, %c0_87, %c0_88, %c0_89] : memref<1x16x16x16xf32, #tpu.memory_space<vmem>>, vector<1x16x16x16xf32>
    %77 = vector.shape_cast %76 : vector<1x16x16x16xf32> to vector<16x16x16xf32>
    %78 = vector.shape_cast %75 : vector<16x16x16xf32> to vector<1x16x16x16xf32>
    tpu.vector_store %arg9[%c0_86, %c0_87, %c0_88, %c0_89], %78 {strides = array<i32>} : memref<1x16x16x16xf32, #tpu.memory_space<vmem>>, vector<1x16x16x16xf32>,
    %cst_90 = arith.constant dense<0.000000e+00> : vector<16xf32>
    %79 = vector.multi_reduction <add>, %74, %cst_90 [0] : vector<256x16xf32> to vector<16xf32>
    %80 = vector.shape_cast %79 : vector<16xf32> to vector<1x16xf32>
    %cst_91 = arith.constant 3.906250e-03 : f32
    %81 = vector.broadcast %cst_91 : f32 to vector<1x16xf32>
    %82 = arith.mulf %80, %81 : vector<1x16xf32>
    %83 = vector.broadcast %82 : vector<1x16xf32> to vector<256x16xf32>
    %84 = arith.subf %74, %83 : vector<256x16xf32>
    %c0_92 = arith.constant 0 : index
    %c0_93 = arith.constant 0 : index
    %c0_94 = arith.constant 0 : index
    %85 = vector.load %arg10[%c0_92, %c0_93, %c0_94] : memref<1x2x16xf32, #tpu.memory_space<vmem>>, vector<1x1x16xf32>
    %86 = vector.shape_cast %85 : vector<1x1x16xf32> to vector<1x16xf32>
    %87 = vector.shape_cast %80 : vector<1x16xf32> to vector<1x1x16xf32>
    tpu.vector_store %arg10[%c0_92, %c0_93, %c0_94], %87 {strides = array<i32>} : memref<1x2x16xf32, #tpu.memory_space<vmem>>, vector<1x1x16xf32>,
    %88 = arith.mulf %84, %84 : vector<256x16xf32>
    %cst_95 = arith.constant dense<0.000000e+00> : vector<16xf32>
    %89 = vector.multi_reduction <add>, %88, %cst_95 [0] : vector<256x16xf32> to vector<16xf32>
    %90 = vector.shape_cast %89 : vector<16xf32> to vector<1x16xf32>
    %c0_96 = arith.constant 0 : index
    %c1_97 = arith.constant 1 : index
    %c0_98 = arith.constant 0 : index
    %91 = vector.load %arg10[%c0_96, %c1_97, %c0_98] : memref<1x2x16xf32, #tpu.memory_space<vmem>>, vector<1x1x16xf32>
    %92 = vector.shape_cast %91 : vector<1x1x16xf32> to vector<1x16xf32>
    %93 = vector.shape_cast %90 : vector<1x16xf32> to vector<1x1x16xf32>
    tpu.vector_store %arg10[%c0_96, %c1_97, %c0_98], %93 {strides = array<i32>} : memref<1x2x16xf32, #tpu.memory_space<vmem>>, vector<1x1x16xf32>,
    return
  }
  func.func @transform_0(%arg0: i32) -> (i32, i32, i32, i32) {
    %c0_i32 = arith.constant 0 : i32
    %c0_i32_0 = arith.constant 0 : i32
    %c0_i32_1 = arith.constant 0 : i32
    %c0_i32_2 = arith.constant 0 : i32
    return %arg0, %c0_i32, %c0_i32_0, %c0_i32_1 : i32, i32, i32, i32
  }
  func.func @transform_1(%arg0: i32) -> (i32, i32, i32, i32) {
    %c0_i32 = arith.constant 0 : i32
    %c0_i32_0 = arith.constant 0 : i32
    %c0_i32_1 = arith.constant 0 : i32
    %c0_i32_2 = arith.constant 0 : i32
    return %arg0, %c0_i32, %c0_i32_0, %c0_i32_1 : i32, i32, i32, i32
  }
  func.func @transform_2(%arg0: i32) -> (i32, i32) {
    %c0_i32 = arith.constant 0 : i32
    %c0_i32_0 = arith.constant 0 : i32
    %c0_i32_1 = arith.constant 0 : i32
    return %c0_i32, %c0_i32_0 : i32, i32
  }
  func.func @transform_3(%arg0: i32) -> (i32, i32) {
    %c0_i32 = arith.constant 0 : i32
    %c0_i32_0 = arith.constant 0 : i32
    %c0_i32_1 = arith.constant 0 : i32
    return %c0_i32, %c0_i32_0 : i32, i32
  }
  func.func @transform_4(%arg0: i32) -> (i32, i32) {
    %c0_i32 = arith.constant 0 : i32
    %c0_i32_0 = arith.constant 0 : i32
    %c0_i32_1 = arith.constant 0 : i32
    return %c0_i32, %c0_i32_0 : i32, i32
  }
  func.func @transform_5(%arg0: i32) -> (i32, i32) {
    %c0_i32 = arith.constant 0 : i32
    %c0_i32_0 = arith.constant 0 : i32
    %c0_i32_1 = arith.constant 0 : i32
    return %c0_i32, %c0_i32_0 : i32, i32
  }
  func.func @transform_6(%arg0: i32) -> (i32, i32, i32) {
    %c0_i32 = arith.constant 0 : i32
    %c0_i32_0 = arith.constant 0 : i32
    %c0_i32_1 = arith.constant 0 : i32
    %c0_i32_2 = arith.constant 0 : i32
    return %c0_i32, %c0_i32_0, %c0_i32_1 : i32, i32, i32
  }
  func.func @transform_7(%arg0: i32) -> (i32, i32) {
    %c0_i32 = arith.constant 0 : i32
    %c0_i32_0 = arith.constant 0 : i32
    %c0_i32_1 = arith.constant 0 : i32
    return %c0_i32, %c0_i32_0 : i32, i32
  }
  func.func @transform_8(%arg0: i32) -> (i32, i32, i32, i32) {
    %c0_i32 = arith.constant 0 : i32
    %c0_i32_0 = arith.constant 0 : i32
    %c0_i32_1 = arith.constant 0 : i32
    %c0_i32_2 = arith.constant 0 : i32
    return %arg0, %c0_i32, %c0_i32_0, %c0_i32_1 : i32, i32, i32, i32
  }
  func.func @transform_9(%arg0: i32) -> (i32, i32, i32) {
    %c0_i32 = arith.constant 0 : i32
    %c0_i32_0 = arith.constant 0 : i32
    %c0_i32_1 = arith.constant 0 : i32
    return %arg0, %c0_i32, %c0_i32_0 : i32, i32, i32
  }
}

module attributes {stable_mosaic.version = 11 : i64} {
  func.func @upconv_stage2_kernel(%arg0: i32, %arg1: memref<1x16x16x16xf32, #tpu.memory_space<vmem>>, %arg2: memref<1x1x16xf32, #tpu.memory_space<vmem>>, %arg3: memref<1x1x16xf32, #tpu.memory_space<vmem>>, %arg4: memref<9x16x16xf32, #tpu.memory_space<vmem>>, %arg5: memref<1x16xf32, #tpu.memory_space<vmem>>, %arg6: memref<1x16x16x16xf32, #tpu.memory_space<vmem>>, %arg7: memref<1x2x16xf32, #tpu.memory_space<vmem>>, %arg8: memref<18x18x16xf32, #tpu.memory_space<vmem>>) attributes {dimension_semantics = [#tpu.dimension_semantics<parallel>], iteration_bounds = array<i64: 2>, scalar_prefetch = 0 : i64, scratch_operands = 1 : i64, tpu.core_type = #tpu.core_type<tc>, window_params = [{transform_indices = @transform_0, window_bounds = array<i64: 1, 16, 16, 16>}, {pipeline_mode = #tpu.pipeline_mode<synchronous>, transform_indices = @transform_1, window_bounds = array<i64: 1, 1, 16>}, {pipeline_mode = #tpu.pipeline_mode<synchronous>, transform_indices = @transform_2, window_bounds = array<i64: 1, 1, 16>}, {pipeline_mode = #tpu.pipeline_mode<synchronous>, transform_indices = @transform_3, window_bounds = array<i64: 9, 16, 16>}, {pipeline_mode = #tpu.pipeline_mode<synchronous>, transform_indices = @transform_4, window_bounds = array<i64: 1, 16>}, {transform_indices = @transform_5, window_bounds = array<i64: 1, 16, 16, 16>}, {transform_indices = @transform_6, window_bounds = array<i64: 1, 2, 16>}]} {
    %c0 = arith.constant 0 : index
    %c0_0 = arith.constant 0 : index
    %c0_1 = arith.constant 0 : index
    %c0_2 = arith.constant 0 : index
    %0 = vector.load %arg1[%c0, %c0_0, %c0_1, %c0_2] : memref<1x16x16x16xf32, #tpu.memory_space<vmem>>, vector<1x16x16x16xf32>
    %1 = vector.shape_cast %0 : vector<1x16x16x16xf32> to vector<16x16x16xf32>
    %c0_3 = arith.constant 0 : index
    %c0_4 = arith.constant 0 : index
    %c0_5 = arith.constant 0 : index
    %2 = vector.load %arg2[%c0_3, %c0_4, %c0_5] : memref<1x1x16xf32, #tpu.memory_space<vmem>>, vector<1x1x16xf32>
    %3 = vector.broadcast %2 : vector<1x1x16xf32> to vector<16x16x16xf32>
    %4 = arith.mulf %1, %3 : vector<16x16x16xf32>
    %c0_6 = arith.constant 0 : index
    %c0_7 = arith.constant 0 : index
    %c0_8 = arith.constant 0 : index
    %5 = vector.load %arg3[%c0_6, %c0_7, %c0_8] : memref<1x1x16xf32, #tpu.memory_space<vmem>>, vector<1x1x16xf32>
    %6 = vector.broadcast %5 : vector<1x1x16xf32> to vector<16x16x16xf32>
    %7 = arith.addf %4, %6 : vector<16x16x16xf32>
    %cst = arith.constant 0.000000e+00 : f32
    %8 = vector.broadcast %cst : f32 to vector<16x16x16xf32>
    %9 = arith.maximumf %7, %8 : vector<16x16x16xf32>
    %cst_9 = arith.constant 0.000000e+00 : f32
    %10 = vector.broadcast %cst_9 : f32 to vector<1x18x16xf32>
    %c0_10 = arith.constant 0 : index
    %c0_11 = arith.constant 0 : index
    %c0_12 = arith.constant 0 : index
    %11 = vector.load %arg8[%c0_10, %c0_11, %c0_12] : memref<18x18x16xf32, #tpu.memory_space<vmem>>, vector<1x18x16xf32>
    tpu.vector_store %arg8[%c0_10, %c0_11, %c0_12], %10 {strides = array<i32>} : memref<18x18x16xf32, #tpu.memory_space<vmem>>, vector<1x18x16xf32>,
    %cst_13 = arith.constant 0.000000e+00 : f32
    %12 = vector.broadcast %cst_13 : f32 to vector<1x18x16xf32>
    %c17 = arith.constant 17 : index
    %c0_14 = arith.constant 0 : index
    %c0_15 = arith.constant 0 : index
    %13 = vector.load %arg8[%c17, %c0_14, %c0_15] : memref<18x18x16xf32, #tpu.memory_space<vmem>>, vector<1x18x16xf32>
    tpu.vector_store %arg8[%c17, %c0_14, %c0_15], %12 {strides = array<i32>} : memref<18x18x16xf32, #tpu.memory_space<vmem>>, vector<1x18x16xf32>,
    %cst_16 = arith.constant 0.000000e+00 : f32
    %14 = vector.broadcast %cst_16 : f32 to vector<18x1x16xf32>
    %c0_17 = arith.constant 0 : index
    %c0_18 = arith.constant 0 : index
    %c0_19 = arith.constant 0 : index
    %15 = vector.load %arg8[%c0_17, %c0_18, %c0_19] : memref<18x18x16xf32, #tpu.memory_space<vmem>>, vector<18x1x16xf32>
    tpu.vector_store %arg8[%c0_17, %c0_18, %c0_19], %14 {strides = array<i32>} : memref<18x18x16xf32, #tpu.memory_space<vmem>>, vector<18x1x16xf32>,
    %cst_20 = arith.constant 0.000000e+00 : f32
    %16 = vector.broadcast %cst_20 : f32 to vector<18x1x16xf32>
    %c0_21 = arith.constant 0 : index
    %c17_22 = arith.constant 17 : index
    %c0_23 = arith.constant 0 : index
    %17 = vector.load %arg8[%c0_21, %c17_22, %c0_23] : memref<18x18x16xf32, #tpu.memory_space<vmem>>, vector<18x1x16xf32>
    tpu.vector_store %arg8[%c0_21, %c17_22, %c0_23], %16 {strides = array<i32>} : memref<18x18x16xf32, #tpu.memory_space<vmem>>, vector<18x1x16xf32>,
    %c1 = arith.constant 1 : index
    %c1_24 = arith.constant 1 : index
    %c0_25 = arith.constant 0 : index
    %18 = vector.load %arg8[%c1, %c1_24, %c0_25] : memref<18x18x16xf32, #tpu.memory_space<vmem>>, vector<16x16x16xf32>
    tpu.vector_store %arg8[%c1, %c1_24, %c0_25], %9 {strides = array<i32>} : memref<18x18x16xf32, #tpu.memory_space<vmem>>, vector<16x16x16xf32>,
    %c0_26 = arith.constant 0 : index
    %c0_27 = arith.constant 0 : index
    %19 = vector.load %arg5[%c0_26, %c0_27] : memref<1x16xf32, #tpu.memory_space<vmem>>, vector<1x16xf32>
    %20 = vector.shape_cast %19 : vector<1x16xf32> to vector<1x16xf32>
    %21 = vector.broadcast %20 : vector<1x16xf32> to vector<256x16xf32>
    %c0_28 = arith.constant 0 : index
    %c0_29 = arith.constant 0 : index
    %c0_30 = arith.constant 0 : index
    %22 = vector.load %arg8[%c0_28, %c0_29, %c0_30] : memref<18x18x16xf32, #tpu.memory_space<vmem>>, vector<16x16x16xf32>
    %23 = vector.shape_cast %22 : vector<16x16x16xf32> to vector<256x16xf32>
    %c0_31 = arith.constant 0 : index
    %c0_32 = arith.constant 0 : index
    %c0_33 = arith.constant 0 : index
    %24 = vector.load %arg4[%c0_31, %c0_32, %c0_33] : memref<9x16x16xf32, #tpu.memory_space<vmem>>, vector<1x16x16xf32>
    %25 = vector.shape_cast %24 : vector<1x16x16xf32> to vector<16x16xf32>
    %cst_34 = arith.constant dense<0.000000e+00> : vector<256x16xf32>
    %26 = tpu.matmul %23, %25, %cst_34 {dimension_numbers = #tpu.dot_dimension_numbers<[1], [0], [0], [1], [0, 0, 1, 1], [], []>} : vector<256x16xf32>, vector<16x16xf32>, vector<256x16xf32> -> vector<256x16xf32>
    %27 = arith.addf %21, %26 : vector<256x16xf32>
    %c0_35 = arith.constant 0 : index
    %c1_36 = arith.constant 1 : index
    %c0_37 = arith.constant 0 : index
    %28 = vector.load %arg8[%c0_35, %c1_36, %c0_37] : memref<18x18x16xf32, #tpu.memory_space<vmem>>, vector<16x16x16xf32>
    %29 = vector.shape_cast %28 : vector<16x16x16xf32> to vector<256x16xf32>
    %c1_38 = arith.constant 1 : index
    %c0_39 = arith.constant 0 : index
    %c0_40 = arith.constant 0 : index
    %30 = vector.load %arg4[%c1_38, %c0_39, %c0_40] : memref<9x16x16xf32, #tpu.memory_space<vmem>>, vector<1x16x16xf32>
    %31 = vector.shape_cast %30 : vector<1x16x16xf32> to vector<16x16xf32>
    %cst_41 = arith.constant dense<0.000000e+00> : vector<256x16xf32>
    %32 = tpu.matmul %29, %31, %cst_41 {dimension_numbers = #tpu.dot_dimension_numbers<[1], [0], [0], [1], [0, 0, 1, 1], [], []>} : vector<256x16xf32>, vector<16x16xf32>, vector<256x16xf32> -> vector<256x16xf32>
    %33 = arith.addf %27, %32 : vector<256x16xf32>
    %c0_42 = arith.constant 0 : index
    %c2 = arith.constant 2 : index
    %c0_43 = arith.constant 0 : index
    %34 = vector.load %arg8[%c0_42, %c2, %c0_43] : memref<18x18x16xf32, #tpu.memory_space<vmem>>, vector<16x16x16xf32>
    %35 = vector.shape_cast %34 : vector<16x16x16xf32> to vector<256x16xf32>
    %c2_44 = arith.constant 2 : index
    %c0_45 = arith.constant 0 : index
    %c0_46 = arith.constant 0 : index
    %36 = vector.load %arg4[%c2_44, %c0_45, %c0_46] : memref<9x16x16xf32, #tpu.memory_space<vmem>>, vector<1x16x16xf32>
    %37 = vector.shape_cast %36 : vector<1x16x16xf32> to vector<16x16xf32>
    %cst_47 = arith.constant dense<0.000000e+00> : vector<256x16xf32>
    %38 = tpu.matmul %35, %37, %cst_47 {dimension_numbers = #tpu.dot_dimension_numbers<[1], [0], [0], [1], [0, 0, 1, 1], [], []>} : vector<256x16xf32>, vector<16x16xf32>, vector<256x16xf32> -> vector<256x16xf32>
    %39 = arith.addf %33, %38 : vector<256x16xf32>
    %c1_48 = arith.constant 1 : index
    %c0_49 = arith.constant 0 : index
    %c0_50 = arith.constant 0 : index
    %40 = vector.load %arg8[%c1_48, %c0_49, %c0_50] : memref<18x18x16xf32, #tpu.memory_space<vmem>>, vector<16x16x16xf32>
    %41 = vector.shape_cast %40 : vector<16x16x16xf32> to vector<256x16xf32>
    %c3 = arith.constant 3 : index
    %c0_51 = arith.constant 0 : index
    %c0_52 = arith.constant 0 : index
    %42 = vector.load %arg4[%c3, %c0_51, %c0_52] : memref<9x16x16xf32, #tpu.memory_space<vmem>>, vector<1x16x16xf32>
    %43 = vector.shape_cast %42 : vector<1x16x16xf32> to vector<16x16xf32>
    %cst_53 = arith.constant dense<0.000000e+00> : vector<256x16xf32>
    %44 = tpu.matmul %41, %43, %cst_53 {dimension_numbers = #tpu.dot_dimension_numbers<[1], [0], [0], [1], [0, 0, 1, 1], [], []>} : vector<256x16xf32>, vector<16x16xf32>, vector<256x16xf32> -> vector<256x16xf32>
    %45 = arith.addf %39, %44 : vector<256x16xf32>
    %c1_54 = arith.constant 1 : index
    %c1_55 = arith.constant 1 : index
    %c0_56 = arith.constant 0 : index
    %46 = vector.load %arg8[%c1_54, %c1_55, %c0_56] : memref<18x18x16xf32, #tpu.memory_space<vmem>>, vector<16x16x16xf32>
    %47 = vector.shape_cast %46 : vector<16x16x16xf32> to vector<256x16xf32>
    %c4 = arith.constant 4 : index
    %c0_57 = arith.constant 0 : index
    %c0_58 = arith.constant 0 : index
    %48 = vector.load %arg4[%c4, %c0_57, %c0_58] : memref<9x16x16xf32, #tpu.memory_space<vmem>>, vector<1x16x16xf32>
    %49 = vector.shape_cast %48 : vector<1x16x16xf32> to vector<16x16xf32>
    %cst_59 = arith.constant dense<0.000000e+00> : vector<256x16xf32>
    %50 = tpu.matmul %47, %49, %cst_59 {dimension_numbers = #tpu.dot_dimension_numbers<[1], [0], [0], [1], [0, 0, 1, 1], [], []>} : vector<256x16xf32>, vector<16x16xf32>, vector<256x16xf32> -> vector<256x16xf32>
    %51 = arith.addf %45, %50 : vector<256x16xf32>
    %c1_60 = arith.constant 1 : index
    %c2_61 = arith.constant 2 : index
    %c0_62 = arith.constant 0 : index
    %52 = vector.load %arg8[%c1_60, %c2_61, %c0_62] : memref<18x18x16xf32, #tpu.memory_space<vmem>>, vector<16x16x16xf32>
    %53 = vector.shape_cast %52 : vector<16x16x16xf32> to vector<256x16xf32>
    %c5 = arith.constant 5 : index
    %c0_63 = arith.constant 0 : index
    %c0_64 = arith.constant 0 : index
    %54 = vector.load %arg4[%c5, %c0_63, %c0_64] : memref<9x16x16xf32, #tpu.memory_space<vmem>>, vector<1x16x16xf32>
    %55 = vector.shape_cast %54 : vector<1x16x16xf32> to vector<16x16xf32>
    %cst_65 = arith.constant dense<0.000000e+00> : vector<256x16xf32>
    %56 = tpu.matmul %53, %55, %cst_65 {dimension_numbers = #tpu.dot_dimension_numbers<[1], [0], [0], [1], [0, 0, 1, 1], [], []>} : vector<256x16xf32>, vector<16x16xf32>, vector<256x16xf32> -> vector<256x16xf32>
    %57 = arith.addf %51, %56 : vector<256x16xf32>
    %c2_66 = arith.constant 2 : index
    %c0_67 = arith.constant 0 : index
    %c0_68 = arith.constant 0 : index
    %58 = vector.load %arg8[%c2_66, %c0_67, %c0_68] : memref<18x18x16xf32, #tpu.memory_space<vmem>>, vector<16x16x16xf32>
    %59 = vector.shape_cast %58 : vector<16x16x16xf32> to vector<256x16xf32>
    %c6 = arith.constant 6 : index
    %c0_69 = arith.constant 0 : index
    %c0_70 = arith.constant 0 : index
    %60 = vector.load %arg4[%c6, %c0_69, %c0_70] : memref<9x16x16xf32, #tpu.memory_space<vmem>>, vector<1x16x16xf32>
    %61 = vector.shape_cast %60 : vector<1x16x16xf32> to vector<16x16xf32>
    %cst_71 = arith.constant dense<0.000000e+00> : vector<256x16xf32>
    %62 = tpu.matmul %59, %61, %cst_71 {dimension_numbers = #tpu.dot_dimension_numbers<[1], [0], [0], [1], [0, 0, 1, 1], [], []>} : vector<256x16xf32>, vector<16x16xf32>, vector<256x16xf32> -> vector<256x16xf32>
    %63 = arith.addf %57, %62 : vector<256x16xf32>
    %c2_72 = arith.constant 2 : index
    %c1_73 = arith.constant 1 : index
    %c0_74 = arith.constant 0 : index
    %64 = vector.load %arg8[%c2_72, %c1_73, %c0_74] : memref<18x18x16xf32, #tpu.memory_space<vmem>>, vector<16x16x16xf32>
    %65 = vector.shape_cast %64 : vector<16x16x16xf32> to vector<256x16xf32>
    %c7 = arith.constant 7 : index
    %c0_75 = arith.constant 0 : index
    %c0_76 = arith.constant 0 : index
    %66 = vector.load %arg4[%c7, %c0_75, %c0_76] : memref<9x16x16xf32, #tpu.memory_space<vmem>>, vector<1x16x16xf32>
    %67 = vector.shape_cast %66 : vector<1x16x16xf32> to vector<16x16xf32>
    %cst_77 = arith.constant dense<0.000000e+00> : vector<256x16xf32>
    %68 = tpu.matmul %65, %67, %cst_77 {dimension_numbers = #tpu.dot_dimension_numbers<[1], [0], [0], [1], [0, 0, 1, 1], [], []>} : vector<256x16xf32>, vector<16x16xf32>, vector<256x16xf32> -> vector<256x16xf32>
    %69 = arith.addf %63, %68 : vector<256x16xf32>
    %c2_78 = arith.constant 2 : index
    %c2_79 = arith.constant 2 : index
    %c0_80 = arith.constant 0 : index
    %70 = vector.load %arg8[%c2_78, %c2_79, %c0_80] : memref<18x18x16xf32, #tpu.memory_space<vmem>>, vector<16x16x16xf32>
    %71 = vector.shape_cast %70 : vector<16x16x16xf32> to vector<256x16xf32>
    %c8 = arith.constant 8 : index
    %c0_81 = arith.constant 0 : index
    %c0_82 = arith.constant 0 : index
    %72 = vector.load %arg4[%c8, %c0_81, %c0_82] : memref<9x16x16xf32, #tpu.memory_space<vmem>>, vector<1x16x16xf32>
    %73 = vector.shape_cast %72 : vector<1x16x16xf32> to vector<16x16xf32>
    %cst_83 = arith.constant dense<0.000000e+00> : vector<256x16xf32>
    %74 = tpu.matmul %71, %73, %cst_83 {dimension_numbers = #tpu.dot_dimension_numbers<[1], [0], [0], [1], [0, 0, 1, 1], [], []>} : vector<256x16xf32>, vector<16x16xf32>, vector<256x16xf32> -> vector<256x16xf32>
    %75 = arith.addf %69, %74 : vector<256x16xf32>
    %76 = vector.shape_cast %75 : vector<256x16xf32> to vector<16x16x16xf32>
    %c0_84 = arith.constant 0 : index
    %c0_85 = arith.constant 0 : index
    %c0_86 = arith.constant 0 : index
    %c0_87 = arith.constant 0 : index
    %77 = vector.load %arg6[%c0_84, %c0_85, %c0_86, %c0_87] : memref<1x16x16x16xf32, #tpu.memory_space<vmem>>, vector<1x16x16x16xf32>
    %78 = vector.shape_cast %77 : vector<1x16x16x16xf32> to vector<16x16x16xf32>
    %79 = vector.shape_cast %76 : vector<16x16x16xf32> to vector<1x16x16x16xf32>
    tpu.vector_store %arg6[%c0_84, %c0_85, %c0_86, %c0_87], %79 {strides = array<i32>} : memref<1x16x16x16xf32, #tpu.memory_space<vmem>>, vector<1x16x16x16xf32>,
    %cst_88 = arith.constant dense<0.000000e+00> : vector<16xf32>
    %80 = vector.multi_reduction <add>, %75, %cst_88 [0] : vector<256x16xf32> to vector<16xf32>
    %81 = vector.shape_cast %80 : vector<16xf32> to vector<1x16xf32>
    %cst_89 = arith.constant 3.906250e-03 : f32
    %82 = vector.broadcast %cst_89 : f32 to vector<1x16xf32>
    %83 = arith.mulf %81, %82 : vector<1x16xf32>
    %84 = vector.broadcast %83 : vector<1x16xf32> to vector<256x16xf32>
    %85 = arith.subf %75, %84 : vector<256x16xf32>
    %c0_90 = arith.constant 0 : index
    %c0_91 = arith.constant 0 : index
    %c0_92 = arith.constant 0 : index
    %86 = vector.load %arg7[%c0_90, %c0_91, %c0_92] : memref<1x2x16xf32, #tpu.memory_space<vmem>>, vector<1x1x16xf32>
    %87 = vector.shape_cast %86 : vector<1x1x16xf32> to vector<1x16xf32>
    %88 = vector.shape_cast %81 : vector<1x16xf32> to vector<1x1x16xf32>
    tpu.vector_store %arg7[%c0_90, %c0_91, %c0_92], %88 {strides = array<i32>} : memref<1x2x16xf32, #tpu.memory_space<vmem>>, vector<1x1x16xf32>,
    %89 = arith.mulf %85, %85 : vector<256x16xf32>
    %cst_93 = arith.constant dense<0.000000e+00> : vector<16xf32>
    %90 = vector.multi_reduction <add>, %89, %cst_93 [0] : vector<256x16xf32> to vector<16xf32>
    %91 = vector.shape_cast %90 : vector<16xf32> to vector<1x16xf32>
    %c0_94 = arith.constant 0 : index
    %c1_95 = arith.constant 1 : index
    %c0_96 = arith.constant 0 : index
    %92 = vector.load %arg7[%c0_94, %c1_95, %c0_96] : memref<1x2x16xf32, #tpu.memory_space<vmem>>, vector<1x1x16xf32>
    %93 = vector.shape_cast %92 : vector<1x1x16xf32> to vector<1x16xf32>
    %94 = vector.shape_cast %91 : vector<1x16xf32> to vector<1x1x16xf32>
    tpu.vector_store %arg7[%c0_94, %c1_95, %c0_96], %94 {strides = array<i32>} : memref<1x2x16xf32, #tpu.memory_space<vmem>>, vector<1x1x16xf32>,
    return
  }
  func.func @transform_0(%arg0: i32) -> (i32, i32, i32, i32) {
    %c0_i32 = arith.constant 0 : i32
    %c0_i32_0 = arith.constant 0 : i32
    %c0_i32_1 = arith.constant 0 : i32
    %c0_i32_2 = arith.constant 0 : i32
    return %arg0, %c0_i32, %c0_i32_0, %c0_i32_1 : i32, i32, i32, i32
  }
  func.func @transform_1(%arg0: i32) -> (i32, i32, i32) {
    %c0_i32 = arith.constant 0 : i32
    %c0_i32_0 = arith.constant 0 : i32
    %c0_i32_1 = arith.constant 0 : i32
    %c0_i32_2 = arith.constant 0 : i32
    return %c0_i32, %c0_i32_0, %c0_i32_1 : i32, i32, i32
  }
  func.func @transform_2(%arg0: i32) -> (i32, i32, i32) {
    %c0_i32 = arith.constant 0 : i32
    %c0_i32_0 = arith.constant 0 : i32
    %c0_i32_1 = arith.constant 0 : i32
    %c0_i32_2 = arith.constant 0 : i32
    return %c0_i32, %c0_i32_0, %c0_i32_1 : i32, i32, i32
  }
  func.func @transform_3(%arg0: i32) -> (i32, i32, i32) {
    %c0_i32 = arith.constant 0 : i32
    %c0_i32_0 = arith.constant 0 : i32
    %c0_i32_1 = arith.constant 0 : i32
    %c0_i32_2 = arith.constant 0 : i32
    return %c0_i32, %c0_i32_0, %c0_i32_1 : i32, i32, i32
  }
  func.func @transform_4(%arg0: i32) -> (i32, i32) {
    %c0_i32 = arith.constant 0 : i32
    %c0_i32_0 = arith.constant 0 : i32
    %c0_i32_1 = arith.constant 0 : i32
    return %c0_i32, %c0_i32_0 : i32, i32
  }
  func.func @transform_5(%arg0: i32) -> (i32, i32, i32, i32) {
    %c0_i32 = arith.constant 0 : i32
    %c0_i32_0 = arith.constant 0 : i32
    %c0_i32_1 = arith.constant 0 : i32
    %c0_i32_2 = arith.constant 0 : i32
    return %arg0, %c0_i32, %c0_i32_0, %c0_i32_1 : i32, i32, i32, i32
  }
  func.func @transform_6(%arg0: i32) -> (i32, i32, i32) {
    %c0_i32 = arith.constant 0 : i32
    %c0_i32_0 = arith.constant 0 : i32
    %c0_i32_1 = arith.constant 0 : i32
    return %arg0, %c0_i32, %c0_i32_0 : i32, i32, i32
  }
}

module attributes {stable_mosaic.version = 11 : i64} {
  func.func @bn_relu_kernel(%arg0: i32, %arg1: memref<32x256xf32, #tpu.memory_space<vmem>>, %arg2: memref<1x256xf32, #tpu.memory_space<vmem>>, %arg3: memref<1x256xf32, #tpu.memory_space<vmem>>, %arg4: memref<32x256xf32, #tpu.memory_space<vmem>>) attributes {dimension_semantics = [#tpu.dimension_semantics<parallel>], iteration_bounds = array<i64: 1>, scalar_prefetch = 0 : i64, scratch_operands = 0 : i64, tpu.core_type = #tpu.core_type<tc>, window_params = [{transform_indices = @transform_0, window_bounds = array<i64: 32, 256>}, {pipeline_mode = #tpu.pipeline_mode<synchronous>, transform_indices = @transform_1, window_bounds = array<i64: 1, 256>}, {pipeline_mode = #tpu.pipeline_mode<synchronous>, transform_indices = @transform_2, window_bounds = array<i64: 1, 256>}, {transform_indices = @transform_3, window_bounds = array<i64: 32, 256>}]} {
    %c0 = arith.constant 0 : index
    %c0_0 = arith.constant 0 : index
    %0 = vector.load %arg1[%c0, %c0_0] : memref<32x256xf32, #tpu.memory_space<vmem>>, vector<32x256xf32>
    %c0_1 = arith.constant 0 : index
    %c0_2 = arith.constant 0 : index
    %1 = vector.load %arg2[%c0_1, %c0_2] : memref<1x256xf32, #tpu.memory_space<vmem>>, vector<1x256xf32>
    %2 = vector.broadcast %1 : vector<1x256xf32> to vector<32x256xf32>
    %3 = arith.mulf %0, %2 : vector<32x256xf32>
    %c0_3 = arith.constant 0 : index
    %c0_4 = arith.constant 0 : index
    %4 = vector.load %arg3[%c0_3, %c0_4] : memref<1x256xf32, #tpu.memory_space<vmem>>, vector<1x256xf32>
    %5 = vector.broadcast %4 : vector<1x256xf32> to vector<32x256xf32>
    %6 = arith.addf %3, %5 : vector<32x256xf32>
    %cst = arith.constant 0.000000e+00 : f32
    %7 = vector.broadcast %cst : f32 to vector<32x256xf32>
    %8 = arith.maximumf %6, %7 : vector<32x256xf32>
    %c0_5 = arith.constant 0 : index
    %c0_6 = arith.constant 0 : index
    %9 = vector.load %arg4[%c0_5, %c0_6] : memref<32x256xf32, #tpu.memory_space<vmem>>, vector<32x256xf32>
    tpu.vector_store %arg4[%c0_5, %c0_6], %8 {strides = array<i32>} : memref<32x256xf32, #tpu.memory_space<vmem>>, vector<32x256xf32>,
    return
  }
  func.func @transform_0(%arg0: i32) -> (i32, i32) {
    %c0_i32 = arith.constant 0 : i32
    %c0_i32_0 = arith.constant 0 : i32
    return %arg0, %c0_i32 : i32, i32
  }
  func.func @transform_1(%arg0: i32) -> (i32, i32) {
    %c0_i32 = arith.constant 0 : i32
    %c0_i32_0 = arith.constant 0 : i32
    %c0_i32_1 = arith.constant 0 : i32
    return %c0_i32, %c0_i32_0 : i32, i32
  }
  func.func @transform_2(%arg0: i32) -> (i32, i32) {
    %c0_i32 = arith.constant 0 : i32
    %c0_i32_0 = arith.constant 0 : i32
    %c0_i32_1 = arith.constant 0 : i32
    return %c0_i32, %c0_i32_0 : i32, i32
  }
  func.func @transform_3(%arg0: i32) -> (i32, i32) {
    %c0_i32 = arith.constant 0 : i32
    %c0_i32_0 = arith.constant 0 : i32
    return %arg0, %c0_i32 : i32, i32
  }
}

</mosaic_0001>

<llo_original>
// kernel: up_conv.5
$region0: #{up_conv.5}
  #allocation0 [shape = 'u32[]', space=smem, size = 0x4, offset = 0x4, fixed_abs, tag = 'smem constant byte address 0x4 - core index']
  #allocation1 [shape = 'u32[144,128]{1,0:T(1,128)}', space=vmem, size = 0x12000, scoped, tag = 'internal scratch']
  %s0 = inlined_call_operand.vmem [shape: f32[32,256], index: 0, kind: input, shape index: {}, may-alias: {0,3}]
  %s1 = inlined_call_operand.vmem [shape: f32[1,256], index: 1, kind: input, shape index: {}]
  %s2 = inlined_call_operand.vmem [shape: f32[1,256], index: 2, kind: input, shape index: {}]
  %s3 = inlined_call_operand.vmem [shape: f32[32,256], index: 3, kind: output, shape index: {}, may-alias: {0,3}]
  %s4 = sld [smem:[#allocation0]]
  $region22: #{up_conv.5} parent=0
    _
  %s6 = ssub.s32 1, %s4
  %s7 = scalar_select 0, %s6, %s4
  // Predicated region
  $region2: #{up_conv.5} parent=0 // pred_check
    _
  $region3: #{up_conv.5} parent=0 // pred_check_branch
    %9 = sbr.rel (0) target = $region5
  $region4: #{up_conv.5} parent=0 // pred_region
    _
  $region5: #{up_conv.5} parent=0 // pred_fallthru
    _
  // Predicated region
  $region6: #{up_conv.5} parent=0 // pred_check
    _
  $region7: #{up_conv.5} parent=0 // pred_check_branch
    %11 = sbr.rel (0) target = $region9
  $region8: #{up_conv.5} parent=0 // pred_region
    _
  $region9: #{up_conv.5} parent=0 // pred_fallthru
    _
  // Predicated region
  $region10: #{up_conv.5} parent=0 // pred_check
    _
  $region11: #{up_conv.5} parent=0 // pred_check_branch
    %13 = sbr.rel (0) target = $region13
  $region12: #{up_conv.5} parent=0 // pred_region
    _
  $region13: #{up_conv.5} parent=0 // pred_fallthru
    _
  %v14 = vld [vmem:[%s0] sm:$0xff]
  %v15 = vld [vmem:[%s0 + $0x8] sm:$0xff]
  %v16 = vld [vmem:[%s0 + $0x10] sm:$0xff]
  %v17 = vld [vmem:[%s0 + $0x18] sm:$0xff]
  %v18 = vld [vmem:[%s0 + $0x20] sm:$0xff]
  %v19 = vld [vmem:[%s0 + $0x28] sm:$0xff]
  %v20 = vld [vmem:[%s0 + $0x30] sm:$0xff]
  %v21 = vld [vmem:[%s0 + $0x38] sm:$0xff]
  %v22 = vld [vmem:[%s1] sm:$0x3]
  %v24 = vlaneseq
  %v25 = vshrl.u32 %v24, 7
  %v26 = vsub.s32 0, %v25
  %v27 = vrot.slane %v22, %v26
  %v28 = vlaneseq
  %v29 = vshrl.u32 %v28, 7
  %v30 = vsub.s32 1, %v29
  %v31 = vrot.slane %v22, %v30
  %v34 = vmul.f32 %v14, %v27
  %v35 = vmul.f32 %v15, %v31
  %v36 = vmul.f32 %v16, %v27
  %v37 = vmul.f32 %v17, %v31
  %v38 = vmul.f32 %v18, %v27
  %v39 = vmul.f32 %v19, %v31
  %v40 = vmul.f32 %v20, %v27
  %v41 = vmul.f32 %v21, %v31
  %v42 = vld [vmem:[%s2] sm:$0x3]
  %v44 = vlaneseq
  %v45 = vshrl.u32 %v44, 7
  %v46 = vsub.s32 0, %v45
  %v47 = vrot.slane %v42, %v46
  %v48 = vlaneseq
  %v49 = vshrl.u32 %v48, 7
  %v50 = vsub.s32 1, %v49
  %v51 = vrot.slane %v42, %v50
  %v54 = vadd.f32 %v34, %v47
  %v55 = vadd.f32 %v35, %v51
  %v56 = vadd.f32 %v36, %v47
  %v57 = vadd.f32 %v37, %v51
  %v58 = vadd.f32 %v38, %v47
  %v59 = vadd.f32 %v39, %v51
  %v60 = vadd.f32 %v40, %v47
  %v61 = vadd.f32 %v41, %v51
  %v62 = vmax.f32 %v54, 0.0
  %v63 = vmax.f32 %v55, 0.0
  %v64 = vmax.f32 %v56, 0.0
  %v65 = vmax.f32 %v57, 0.0
  %v66 = vmax.f32 %v58, 0.0
  %v67 = vmax.f32 %v59, 0.0
  %v68 = vmax.f32 %v60, 0.0
  %v69 = vmax.f32 %v61, 0.0
  %70 = vst [vmem:[%s3] sm:$0xff] %v62
  %71 = vst [vmem:[%s3 + $0x8] sm:$0xff] %v63
  %72 = vst [vmem:[%s3 + $0x10] sm:$0xff] %v64
  %73 = vst [vmem:[%s3 + $0x18] sm:$0xff] %v65
  %74 = vst [vmem:[%s3 + $0x20] sm:$0xff] %v66
  %75 = vst [vmem:[%s3 + $0x28] sm:$0xff] %v67
  %76 = vst [vmem:[%s3 + $0x30] sm:$0xff] %v68
  %77 = vst [vmem:[%s3 + $0x38] sm:$0xff] %v69
  // Predicated region
  $region14: #{up_conv.5} parent=0 // pred_check
    _
  $region15: #{up_conv.5} parent=0 // pred_check_branch
    %79 = sbr.rel (0) target = $region17
  $region16: #{up_conv.5} parent=0 // pred_region
    _
  $region17: #{up_conv.5} parent=0 // pred_fallthru
    _
  // Predicated region
  $region18: #{up_conv.5} parent=0 // pred_check
    _
  $region19: #{up_conv.5} parent=0 // pred_check_branch
    %81 = sbr.rel (0) target = $region21
  $region20: #{up_conv.5} parent=0 // pred_region
    _
  $region21: #{up_conv.5} parent=0 // pred_fallthru
    _

// kernel: up_conv.4
$region0: #{up_conv.4}
  #allocation0 [shape = 'u32[]', space=smem, size = 0x4, offset = 0x4, fixed_abs, tag = 'smem constant byte address 0x4 - core index']
  #allocation1 [shape = 'u32[144,128]{1,0:T(1,128)}', space=vmem, size = 0x12000, scoped, tag = 'internal scratch']
  #allocation2 [shape = 'f32[18,18,16]{2,1,0:T(8,128)}', space=vmem, size = 0x36000, scoped, tag = 'scratch operand']
  %s0 = inlined_call_operand.vmem [shape: f32[2,16,16,16], index: 0, kind: input, shape index: {}]
  %s1 = inlined_call_operand.vmem [shape: f32[1,1,16], index: 1, kind: input, shape index: {}]
  %s2 = inlined_call_operand.vmem [shape: f32[1,1,16], index: 2, kind: input, shape index: {}]
  %s3 = inlined_call_operand.vmem [shape: f32[9,16,16], index: 3, kind: input, shape index: {}]
  %s4 = inlined_call_operand.vmem [shape: f32[1,16], index: 4, kind: input, shape index: {}]
  %s5 = inlined_call_operand.vmem [shape: f32[2,16,16,16], index: 5, kind: output, shape index: {0}]
  %s6 = inlined_call_operand.vmem [shape: f32[2,2,16], index: 6, kind: output, shape index: {1}]
  %7 = xla_tuple %s5, %s6
  %s8 = sld [smem:[#allocation0]]
  $region61: #{up_conv.4} parent=0
    _
  %s10 = ssub.s32 1, %s8
  %s11 = scalar_select 0, %s10, %s8
  loop: start=0, step=1, limit=4
  $region2: #{up_conv.4} parent=0 // loop_pre_header
    _
  $region3: #{up_conv.4} parent=0 // loop_header
    %s13 = sphi 0, %s17
    %p14 = scmp.ge.s32.totalorder %s13, 4
    %s23 = sphi 0, %s25
    %s26 = sphi 0, %s23
    %s27 = sphi 0, %s26
    %s43 = sphi 0, %s27
    %s47 = sphi 0, %s47
    %s49 = sphi 0, %s47
    %s50 = sphi 0, %s49
    %s64 = sphi 0, %s50
    %s68 = sphi 0, %s68
    %s70 = sphi 0, %s68
    %s71 = sphi 0, %s70
    %s85 = sphi 0, %s71
    %s89 = sphi 0, %s89
    %s91 = sphi 0, %s89
    %s92 = sphi 0, %s91
    %s106 = sphi 0, %s92
    %s110 = sphi 0, %s110
    %s112 = sphi 0, %s110
    %s113 = sphi 0, %s112
    %s127 = sphi 0, %s113
    %s133 = sphi 0, %s135
    %s136 = sphi 0, %s133
    %s137 = sphi 0, %s136
    %s153 = sphi 0, %s137
    %s159 = sphi 0, %s161
    %s162 = sphi 0, %s159
    %s163 = sphi 0, %s162
    %s179 = sphi 0, %s163
  $region4: #{up_conv.4} parent=0 // loop_header_branch
    %16 = sbr.rel (%p14) target = $region8
  $region5: #{up_conv.4} parent=0 // loop_body
    %s18 = ssub.s32 %s13, 1
    %s19 = ssub.s32 %s13, 2
    %s20 = sadd.s32 %s13, 1
    %s21 = ssub.s32 %s13, %s20
    %p22 = scmp.eq.s32.totalorder %s21, 0
    %s24 = sadd.s32 %s23, 1
    %s25 = scalar_select %p22, %s23, %s24
    %p28 = pneg %p22
    %p29 = scmp.eq.s32.totalorder %s13, 1
    %p30 = por %p28, %p29
    %p31 = scmp.ne.s32.totalorder %s23, %s26
    %p32 = scmp.eq.s32.totalorder %s13, 0
    %p33 = por %p31, %p32
    %p34 = scmp.ne.s32.totalorder %s23, %s26
    %p35 = scmp.eq.s32.totalorder %s18, 1
    %p36 = por %p34, %p35
    %p37 = scmp.ne.s32.totalorder %s26, %s27
    %p38 = scmp.eq.s32.totalorder %s18, 0
    %p39 = por %p37, %p38
    %p40 = scmp.ne.s32.totalorder %s26, %s27
    %p41 = scmp.eq.s32.totalorder %s19, 1
    %p42 = por %p40, %p41
    %p44 = scmp.ne.s32.totalorder %s27, %s43
    %p45 = scmp.eq.s32.totalorder %s19, 0
    %p46 = por %p44, %p45
    %s48 = sadd.s32 %s47, 1
    %p51 = scmp.eq.s32.totalorder %s13, 1
    %p52 = scmp.ne.s32.totalorder %s47, %s49
    %p53 = scmp.eq.s32.totalorder %s13, 0
    %p54 = por %p52, %p53
    %p55 = scmp.ne.s32.totalorder %s47, %s49
    %p56 = scmp.eq.s32.totalorder %s18, 1
    %p57 = por %p55, %p56
    %p58 = scmp.ne.s32.totalorder %s49, %s50
    %p59 = scmp.eq.s32.totalorder %s18, 0
    %p60 = por %p58, %p59
    %p61 = scmp.ne.s32.totalorder %s49, %s50
    %p62 = scmp.eq.s32.totalorder %s19, 1
    %p63 = por %p61, %p62
    %p65 = scmp.ne.s32.totalorder %s50, %s64
    %p66 = scmp.eq.s32.totalorder %s19, 0
    %p67 = por %p65, %p66
    %s69 = sadd.s32 %s68, 1
    %p72 = scmp.eq.s32.totalorder %s13, 1
    %p73 = scmp.ne.s32.totalorder %s68, %s70
    %p74 = scmp.eq.s32.totalorder %s13, 0
    %p75 = por %p73, %p74
    %p76 = scmp.ne.s32.totalorder %s68, %s70
    %p77 = scmp.eq.s32.totalorder %s18, 1
    %p78 = por %p76, %p77
    %p79 = scmp.ne.s32.totalorder %s70, %s71
    %p80 = scmp.eq.s32.totalorder %s18, 0
    %p81 = por %p79, %p80
    %p82 = scmp.ne.s32.totalorder %s70, %s71
    %p83 = scmp.eq.s32.totalorder %s19, 1
    %p84 = por %p82, %p83
    %p86 = scmp.ne.s32.totalorder %s71, %s85
    %p87 = scmp.eq.s32.totalorder %s19, 0
    %p88 = por %p86, %p87
    %s90 = sadd.s32 %s89, 1
    %p93 = scmp.eq.s32.totalorder %s13, 1
    %p94 = scmp.ne.s32.totalorder %s89, %s91
    %p95 = scmp.eq.s32.totalorder %s13, 0
    %p96 = por %p94, %p95
    %p97 = scmp.ne.s32.totalorder %s89, %s91
    %p98 = scmp.eq.s32.totalorder %s18, 1
    %p99 = por %p97, %p98
    %p100 = scmp.ne.s32.totalorder %s91, %s92
    %p101 = scmp.eq.s32.totalorder %s18, 0
    %p102 = por %p100, %p101
    %p103 = scmp.ne.s32.totalorder %s91, %s92
    %p104 = scmp.eq.s32.totalorder %s19, 1
    %p105 = por %p103, %p104
    %p107 = scmp.ne.s32.totalorder %s92, %s106
    %p108 = scmp.eq.s32.totalorder %s19, 0
    %p109 = por %p107, %p108
    %s111 = sadd.s32 %s110, 1
    %p114 = scmp.eq.s32.totalorder %s13, 1
    %p115 = scmp.ne.s32.totalorder %s110, %s112
    %p116 = scmp.eq.s32.totalorder %s13, 0
    %p117 = por %p115, %p116
    %p118 = scmp.ne.s32.totalorder %s110, %s112
    %p119 = scmp.eq.s32.totalorder %s18, 1
    %p120 = por %p118, %p119
    %p121 = scmp.ne.s32.totalorder %s112, %s113
    %p122 = scmp.eq.s32.totalorder %s18, 0
    %p123 = por %p121, %p122
    %p124 = scmp.ne.s32.totalorder %s112, %s113
    %p125 = scmp.eq.s32.totalorder %s19, 1
    %p126 = por %p124, %p125
    %p128 = scmp.ne.s32.totalorder %s113, %s127
    %p129 = scmp.eq.s32.totalorder %s19, 0
    %p130 = por %p128, %p129
    %s131 = ssub.s32 %s13, %s20
    %p132 = scmp.eq.s32.totalorder %s131, 0
    %s134 = sadd.s32 %s133, 1
    %s135 = scalar_select %p132, %s133, %s134
    %p138 = pneg %p132
    %p139 = scmp.eq.s32.totalorder %s13, 1
    %p140 = por %p138, %p139
    %p141 = scmp.ne.s32.totalorder %s133, %s136
    %p142 = scmp.eq.s32.totalorder %s13, 0
    %p143 = por %p141, %p142
    %p144 = scmp.ne.s32.totalorder %s133, %s136
    %p145 = scmp.eq.s32.totalorder %s18, 1
    %p146 = por %p144, %p145
    %p147 = scmp.ne.s32.totalorder %s136, %s137
    %p148 = scmp.eq.s32.totalorder %s18, 0
    %p149 = por %p147, %p148
    %p150 = scmp.ne.s32.totalorder %s136, %s137
    %p151 = scmp.eq.s32.totalorder %s19, 1
    %p152 = por %p150, %p151
    %p154 = scmp.ne.s32.totalorder %s137, %s153
    %p155 = scmp.eq.s32.totalorder %s19, 0
    %p156 = por %p154, %p155
    %s157 = ssub.s32 %s13, %s20
    %p158 = scmp.eq.s32.totalorder %s157, 0
    %s160 = sadd.s32 %s159, 1
    %s161 = scalar_select %p158, %s159, %s160
    %p164 = pneg %p158
    %p165 = scmp.eq.s32.totalorder %s13, 1
    %p166 = por %p164, %p165
    %p167 = scmp.ne.s32.totalorder %s159, %s162
    %p168 = scmp.eq.s32.totalorder %s13, 0
    %p169 = por %p167, %p168
    %p170 = scmp.ne.s32.totalorder %s159, %s162
    %p171 = scmp.eq.s32.totalorder %s18, 1
    %p172 = por %p170, %p171
    %p173 = scmp.ne.s32.totalorder %s162, %s163
    %p174 = scmp.eq.s32.totalorder %s18, 0
    %p175 = por %p173, %p174
    %p176 = scmp.ne.s32.totalorder %s162, %s163
    %p177 = scmp.eq.s32.totalorder %s19, 1
    %p178 = por %p176, %p177
    %p180 = scmp.ne.s32.totalorder %s163, %s179
    %p181 = scmp.eq.s32.totalorder %s19, 0
    %p182 = por %p180, %p181
    %p183 = scmp.le.s32.totalorder 1, %s13
    %p184 = scmp.lt.s32.totalorder %s13, 3
    %p185 = pnand %p183, %p184
    %p186 = pneg %p185
    // Predicated region
    $region9: #{up_conv.4} parent=5 // pred_check
      _
    $region10: #{up_conv.4} parent=5 // pred_check_branch
      %188 = sbr.rel (%p185) target = $region12
    $region11: #{up_conv.4} parent=5 // pred_region
      %s189 = ssub.s32 %s13, 1
      // Predicated region
      $region13: #{up_conv.4} parent=11 // pred_check
        %p190 = pneg %p60
      $region14: #{up_conv.4} parent=11 // pred_check_branch
        %192 = sbr.rel (%p190) target = $region16
      $region15: #{up_conv.4} parent=11 // pred_region
        _
      $region16: #{up_conv.4} parent=11 // pred_fallthru
        _
      // Predicated region
      $region17: #{up_conv.4} parent=11 // pred_check
        %p193 = pneg %p81
      $region18: #{up_conv.4} parent=11 // pred_check_branch
        %195 = sbr.rel (%p193) target = $region20
      $region19: #{up_conv.4} parent=11 // pred_region
        _
      $region20: #{up_conv.4} parent=11 // pred_fallthru
        _
      // Predicated region
      $region21: #{up_conv.4} parent=11 // pred_check
        %p196 = pneg %p102
      $region22: #{up_conv.4} parent=11 // pred_check_branch
        %198 = sbr.rel (%p196) target = $region24
      $region23: #{up_conv.4} parent=11 // pred_region
        _
      $region24: #{up_conv.4} parent=11 // pred_fallthru
        _
      // Predicated region
      $region25: #{up_conv.4} parent=11 // pred_check
        %p199 = pneg %p123
      $region26: #{up_conv.4} parent=11 // pred_check_branch
        %201 = sbr.rel (%p199) target = $region28
      $region27: #{up_conv.4} parent=11 // pred_region
        _
      $region28: #{up_conv.4} parent=11 // pred_fallthru
        _
    $region12: #{up_conv.4} parent=5 // pred_fallthru
      _
    %p202 = scmp.lt.s32.totalorder %s13, 2
    // Predicated region
    $region29: #{up_conv.4} parent=5 // pred_check
      %p203 = pneg %p202
    $region30: #{up_conv.4} parent=5 // pred_check_branch
      %205 = sbr.rel (%p203) target = $region32
    $region31: #{up_conv.4} parent=5 // pred_region
      // Predicated region
      $region33: #{up_conv.4} parent=31 // pred_check
        %p206 = pneg %p33
      $region34: #{up_conv.4} parent=31 // pred_check_branch
        %208 = sbr.rel (%p206) target = $region36
      $region35: #{up_conv.4} parent=31 // pred_region
        %p209 = scmp.lt.s32.totalorder %s13, 1
        %s210 = scalar_select %p209, %s13, 1
        %s211 = smul.addr %s210, 32
        %s212 = smul.addr %s211, 8
        %s213 = scalar_lea.vmem %s0, %s212
      $region36: #{up_conv.4} parent=31 // pred_fallthru
        _
    $region32: #{up_conv.4} parent=5 // pred_fallthru
      _
    %p214 = scmp.le.s32.totalorder 1, %s13
    %p215 = scmp.lt.s32.totalorder %s13, 3
    %p216 = pnand %p214, %p215
    %p217 = pneg %p216
    // Predicated region
    $region37: #{up_conv.4} parent=5 // pred_check
      _
    $region38: #{up_conv.4} parent=5 // pred_check_branch
      %219 = sbr.rel (%p216) target = $region40
    $region39: #{up_conv.4} parent=5 // pred_region
      %s220 = ssub.s32 %s13, 1
      %p221 = scmp.lt.s32.totalorder %s18, 1
      %s222 = scalar_select %p221, %s18, 1
      %s223 = smul.addr %s222, 32
      %s224 = smul.addr %s223, 8
      %s225 = scalar_lea.vmem %s0, %s224
      %p226 = pneg %p39
      %p227 = pneg %p36
      %p228 = pneg %p60
      %p229 = pneg %p57
      %p230 = pneg %p81
      %p231 = pneg %p78
      %p232 = pneg %p102
      %p233 = pneg %p99
      %p234 = pneg %p123
      %p235 = pneg %p120
      %p236 = pneg %p149
      %p237 = pneg %p146
      %p238 = scmp.lt.s32.totalorder %s18, 1
      %s239 = scalar_select %p238, %s18, 1
      %s240 = smul.addr %s239, 32
      %s241 = smul.addr %s240, 8
      %s242 = scalar_lea.vmem %s5, %s241
      %p243 = pneg %p175
      %p244 = pneg %p172
      %p245 = scmp.lt.s32.totalorder %s18, 1
      %s246 = scalar_select %p245, %s18, 1
      %s247 = smul.addr %s246, 2
      %s248 = scalar_lea.vmem %s6, %s247
      %p249 = scmp.lt.s32.totalorder %s18, 1
      %s250 = scalar_select %p249, %s18, 1
      %s251 = smul.addr %s250, 32
      %s252 = smul.addr %s251, 8
      %s253 = scalar_lea.vmem %s0, %s252
      %p254 = scmp.lt.s32.totalorder %s18, 1
      %s255 = scalar_select %p254, %s18, 1
      %s256 = smul.addr %s255, 32
      %s257 = smul.addr %s256, 8
      %s258 = scalar_lea.vmem %s5, %s257
      %p259 = scmp.lt.s32.totalorder %s18, 1
      %s260 = scalar_select %p259, %s18, 1
      %s261 = smul.addr %s260, 2
      %s262 = scalar_lea.vmem %s6, %s261
      %v263 = vld [vmem:[%s253] sm:$0xff]
      %v264 = vld [vmem:[%s253 + $0x8] sm:$0xff]
      %v265 = vld [vmem:[%s253 + $0x10] sm:$0xff]
      %v266 = vld [vmem:[%s253 + $0x18] sm:$0xff]
      %v267 = vld [vmem:[%s253 + $0x20] sm:$0xff]
      %v268 = vld [vmem:[%s253 + $0x28] sm:$0xff]
      %v269 = vld [vmem:[%s253 + $0x30] sm:$0xff]
      %v270 = vld [vmem:[%s253 + $0x38] sm:$0xff]
      %v271 = vld [vmem:[%s253 + $0x40] sm:$0xff]
      %v272 = vld [vmem:[%s253 + $0x48] sm:$0xff]
      %v273 = vld [vmem:[%s253 + $0x50] sm:$0xff]
      %v274 = vld [vmem:[%s253 + $0x58] sm:$0xff]
      %v275 = vld [vmem:[%s253 + $0x60] sm:$0xff]
      %v276 = vld [vmem:[%s253 + $0x68] sm:$0xff]
      %v277 = vld [vmem:[%s253 + $0x70] sm:$0xff]
      %v278 = vld [vmem:[%s253 + $0x78] sm:$0xff]
      %v279 = vld [vmem:[%s253 + $0x80] sm:$0xff]
      %v280 = vld [vmem:[%s253 + $0x88] sm:$0xff]
      %v281 = vld [vmem:[%s253 + $0x90] sm:$0xff]
      %v282 = vld [vmem:[%s253 + $0x98] sm:$0xff]
      %v283 = vld [vmem:[%s253 + $0xa0] sm:$0xff]
      %v284 = vld [vmem:[%s253 + $0xa8] sm:$0xff]
      %v285 = vld [vmem:[%s253 + $0xb0] sm:$0xff]
      %v286 = vld [vmem:[%s253 + $0xb8] sm:$0xff]
      %v287 = vld [vmem:[%s253 + $0xc0] sm:$0xff]
      %v288 = vld [vmem:[%s253 + $0xc8] sm:$0xff]
      %v289 = vld [vmem:[%s253 + $0xd0] sm:$0xff]
      %v290 = vld [vmem:[%s253 + $0xd8] sm:$0xff]
      %v291 = vld [vmem:[%s253 + $0xe0] sm:$0xff]
      %v292 = vld [vmem:[%s253 + $0xe8] sm:$0xff]
      %v293 = vld [vmem:[%s253 + $0xf0] sm:$0xff]
      %v294 = vld [vmem:[%s253 + $0xf8] sm:$0xff]
      %v295 = vld [vmem:[%s1] sm:$0x1]
      %v297 = vlaneseq
      %v298 = vshrl.u32 %v297, 7
      %v299 = vsub.s32 0, %v298
      %v300 = vrot.slane %v295, %v299
      %v302 = vmul.f32 %v263, %v300
      %v303 = vmul.f32 %v264, %v300
      %v304 = vmul.f32 %v265, %v300
      %v305 = vmul.f32 %v266, %v300
      %v306 = vmul.f32 %v267, %v300
      %v307 = vmul.f32 %v268, %v300
      %v308 = vmul.f32 %v269, %v300
      %v309 = vmul.f32 %v270, %v300
      %v310 = vmul.f32 %v271, %v300
      %v311 = vmul.f32 %v272, %v300
      %v312 = vmul.f32 %v273, %v300
      %v313 = vmul.f32 %v274, %v300
      %v314 = vmul.f32 %v275, %v300
      %v315 = vmul.f32 %v276, %v300
      %v316 = vmul.f32 %v277, %v300
      %v317 = vmul.f32 %v278, %v300
      %v318 = vmul.f32 %v279, %v300
      %v319 = vmul.f32 %v280, %v300
      %v320 = vmul.f32 %v281, %v300
      %v321 = vmul.f32 %v282, %v300
      %v322 = vmul.f32 %v283, %v300
      %v323 = vmul.f32 %v284, %v300
      %v324 = vmul.f32 %v285, %v300
      %v325 = vmul.f32 %v286, %v300
      %v326 = vmul.f32 %v287, %v300
      %v327 = vmul.f32 %v288, %v300
      %v328 = vmul.f32 %v289, %v300
      %v329 = vmul.f32 %v290, %v300
      %v330 = vmul.f32 %v291, %v300
      %v331 = vmul.f32 %v292, %v300
      %v332 = vmul.f32 %v293, %v300
      %v333 = vmul.f32 %v294, %v300
      %v334 = vld [vmem:[%s2] sm:$0x1]
      %v336 = vlaneseq
      %v337 = vshrl.u32 %v336, 7
      %v338 = vsub.s32 0, %v337
      %v339 = vrot.slane %v334, %v338
      %v341 = vadd.f32 %v302, %v339
      %v342 = vadd.f32 %v303, %v339
      %v343 = vadd.f32 %v304, %v339
      %v344 = vadd.f32 %v305, %v339
      %v345 = vadd.f32 %v306, %v339
      %v346 = vadd.f32 %v307, %v339
      %v347 = vadd.f32 %v308, %v339
      %v348 = vadd.f32 %v309, %v339
      %v349 = vadd.f32 %v310, %v339
      %v350 = vadd.f32 %v311, %v339
      %v351 = vadd.f32 %v312, %v339
      %v352 = vadd.f32 %v313, %v339
      %v353 = vadd.f32 %v314, %v339
      %v354 = vadd.f32 %v315, %v339
      %v355 = vadd.f32 %v316, %v339
      %v356 = vadd.f32 %v317, %v339
      %v357 = vadd.f32 %v318, %v339
      %v358 = vadd.f32 %v319, %v339
      %v359 = vadd.f32 %v320, %v339
      %v360 = vadd.f32 %v321, %v339
      %v361 = vadd.f32 %v322, %v339
      %v362 = vadd.f32 %v323, %v339
      %v363 = vadd.f32 %v324, %v339
      %v364 = vadd.f32 %v325, %v339
      %v365 = vadd.f32 %v326, %v339
      %v366 = vadd.f32 %v327, %v339
      %v367 = vadd.f32 %v328, %v339
      %v368 = vadd.f32 %v329, %v339
      %v369 = vadd.f32 %v330, %v339
      %v370 = vadd.f32 %v331, %v339
      %v371 = vadd.f32 %v332, %v339
      %v372 = vadd.f32 %v333, %v339
      %v373 = vmax.f32 %v341, 0.0
      %v374 = vmax.f32 %v342, 0.0
      %v375 = vmax.f32 %v343, 0.0
      %v376 = vmax.f32 %v344, 0.0
      %v377 = vmax.f32 %v345, 0.0
      %v378 = vmax.f32 %v346, 0.0
      %v379 = vmax.f32 %v347, 0.0
      %v380 = vmax.f32 %v348, 0.0
      %v381 = vmax.f32 %v349, 0.0
      %v382 = vmax.f32 %v350, 0.0
      %v383 = vmax.f32 %v351, 0.0
      %v384 = vmax.f32 %v352, 0.0
      %v385 = vmax.f32 %v353, 0.0
      %v386 = vmax.f32 %v354, 0.0
      %v387 = vmax.f32 %v355, 0.0
      %v388 = vmax.f32 %v356, 0.0
      %v389 = vmax.f32 %v357, 0.0
      %v390 = vmax.f32 %v358, 0.0
      %v391 = vmax.f32 %v359, 0.0
      %v392 = vmax.f32 %v360, 0.0
      %v393 = vmax.f32 %v361, 0.0
      %v394 = vmax.f32 %v362, 0.0
      %v395 = vmax.f32 %v363, 0.0
      %v396 = vmax.f32 %v364, 0.0
      %v397 = vmax.f32 %v365, 0.0
      %v398 = vmax.f32 %v366, 0.0
      %v399 = vmax.f32 %v367, 0.0
      %v400 = vmax.f32 %v368, 0.0
      %v401 = vmax.f32 %v369, 0.0
      %v402 = vmax.f32 %v370, 0.0
      %v403 = vmax.f32 %v371, 0.0
      %v404 = vmax.f32 %v372, 0.0
      %vm405 = vcmask 130048
      %406 = vst.msk [vmem:[#allocation2] sm:$0xff] %vm405, 0.0
      %407 = vst.msk [vmem:[#allocation2 + $0x8] sm:$0xff] %vm405, 0.0
      %vm408 = vcmask 123904
      %409 = vst.msk [vmem:[#allocation2 + $0x10] sm:$0x3] %vm408, 0.0
      %s410 = scalar_lea.vmem [#allocation2], 408
      %411 = vst.msk [vmem:[%s410] sm:$0xff] %vm405, 0.0
      %412 = vst.msk [vmem:[%s410 + $0x8] sm:$0xff] %vm405, 0.0
      %413 = vst.msk [vmem:[%s410 + $0x10] sm:$0x3] %vm408, 0.0
      %vm414 = vcmask 122880
      %415 = vst.msk [vmem:[#allocation2] sm:$0x1] %vm414, 0.0
      %416 = vst.msk [vmem:[#allocation2 + $0x18] sm:$0x1] %vm414, 0.0
      %417 = vst.msk [vmem:[#allocation2 + $0x30] sm:$0x1] %vm414, 0.0
      %418 = vst.msk [vmem:[#allocation2 + $0x48] sm:$0x1] %vm414, 0.0
      %419 = vst.msk [vmem:[#allocation2 + $0x60] sm:$0x1] %vm414, 0.0
      %420 = vst.msk [vmem:[#allocation2 + $0x78] sm:$0x1] %vm414, 0.0
      %421 = vst.msk [vmem:[#allocation2 + $0x90] sm:$0x1] %vm414, 0.0
      %422 = vst.msk [vmem:[#allocation2 + $0xa8] sm:$0x1] %vm414, 0.0
      %423 = vst.msk [vmem:[#allocation2 + $0xc0] sm:$0x1] %vm414, 0.0
      %424 = vst.msk [vmem:[#allocation2 + $0xd8] sm:$0x1] %vm414, 0.0
      %425 = vst.msk [vmem:[#allocation2 + $0xf0] sm:$0x1] %vm414, 0.0
      %426 = vst.msk [vmem:[#allocation2 + $0x108] sm:$0x1] %vm414, 0.0
      %427 = vst.msk [vmem:[#allocation2 + $0x120] sm:$0x1] %vm414, 0.0
      %428 = vst.msk [vmem:[#allocation2 + $0x138] sm:$0x1] %vm414, 0.0
      %429 = vst.msk [vmem:[#allocation2 + $0x150] sm:$0x1] %vm414, 0.0
      %430 = vst.msk [vmem:[#allocation2 + $0x168] sm:$0x1] %vm414, 0.0
      %431 = vst.msk [vmem:[#allocation2 + $0x180] sm:$0x1] %vm414, 0.0
      %432 = vst.msk [vmem:[#allocation2 + $0x198] sm:$0x1] %vm414, 0.0
      %433 = vst.msk [vmem:[#allocation2 + $0x11] sm:$0x1] %vm414, 0.0
      %434 = vst.msk [vmem:[#allocation2 + $0x29] sm:$0x1] %vm414, 0.0
      %435 = vst.msk [vmem:[#allocation2 + $0x41] sm:$0x1] %vm414, 0.0
      %436 = vst.msk [vmem:[#allocation2 + $0x59] sm:$0x1] %vm414, 0.0
      %437 = vst.msk [vmem:[#allocation2 + $0x71] sm:$0x1] %vm414, 0.0
      %438 = vst.msk [vmem:[#allocation2 + $0x89] sm:$0x1] %vm414, 0.0
      %439 = vst.msk [vmem:[#allocation2 + $0xa1] sm:$0x1] %vm414, 0.0
      %440 = vst.msk [vmem:[#allocation2 + $0xb9] sm:$0x1] %vm414, 0.0
      %441 = vst.msk [vmem:[#allocation2 + $0xd1] sm:$0x1] %vm414, 0.0
      %442 = vst.msk [vmem:[#allocation2 + $0xe9] sm:$0x1] %vm414, 0.0
      %443 = vst.msk [vmem:[#allocation2 + $0x101] sm:$0x1] %vm414, 0.0
      %444 = vst.msk [vmem:[#allocation2 + $0x119] sm:$0x1] %vm414, 0.0
      %445 = vst.msk [vmem:[#allocation2 + $0x131] sm:$0x1] %vm414, 0.0
      %446 = vst.msk [vmem:[#allocation2 + $0x149] sm:$0x1] %vm414, 0.0
      %447 = vst.msk [vmem:[#allocation2 + $0x161] sm:$0x1] %vm414, 0.0
      %448 = vst.msk [vmem:[#allocation2 + $0x179] sm:$0x1] %vm414, 0.0
      %449 = vst.msk [vmem:[#allocation2 + $0x191] sm:$0x1] %vm414, 0.0
      %450 = vst.msk [vmem:[#allocation2 + $0x1a9] sm:$0x1] %vm414, 0.0
      %s451 = scalar_lea.vmem [#allocation2], 24
      %452 = vst.msk [vmem:[%s451 + $0x1] sm:$0xff] %vm405, %v373
      %453 = vst.msk [vmem:[%s451 + $0x9] sm:$0xff] %vm405, %v374
      %454 = vst.msk [vmem:[%s451 + $0x19] sm:$0xff] %vm405, %v375
      %455 = vst.msk [vmem:[%s451 + $0x21] sm:$0xff] %vm405, %v376
      %456 = vst.msk [vmem:[%s451 + $0x31] sm:$0xff] %vm405, %v377
      %457 = vst.msk [vmem:[%s451 + $0x39] sm:$0xff] %vm405, %v378
      %458 = vst.msk [vmem:[%s451 + $0x49] sm:$0xff] %vm405, %v379
      %459 = vst.msk [vmem:[%s451 + $0x51] sm:$0xff] %vm405, %v380
      %460 = vst.msk [vmem:[%s451 + $0x61] sm:$0xff] %vm405, %v381
      %461 = vst.msk [vmem:[%s451 + $0x69] sm:$0xff] %vm405, %v382
      %462 = vst.msk [vmem:[%s451 + $0x79] sm:$0xff] %vm405, %v383
      %463 = vst.msk [vmem:[%s451 + $0x81] sm:$0xff] %vm405, %v384
      %464 = vst.msk [vmem:[%s451 + $0x91] sm:$0xff] %vm405, %v385
      %465 = vst.msk [vmem:[%s451 + $0x99] sm:$0xff] %vm405, %v386
      %466 = vst.msk [vmem:[%s451 + $0xa9] sm:$0xff] %vm405, %v387
      %467 = vst.msk [vmem:[%s451 + $0xb1] sm:$0xff] %vm405, %v388
      %468 = vst.msk [vmem:[%s451 + $0xc1] sm:$0xff] %vm405, %v389
      %469 = vst.msk [vmem:[%s451 + $0xc9] sm:$0xff] %vm405, %v390
      %470 = vst.msk [vmem:[%s451 + $0xd9] sm:$0xff] %vm405, %v391
      %471 = vst.msk [vmem:[%s451 + $0xe1] sm:$0xff] %vm405, %v392
      %472 = vst.msk [vmem:[%s451 + $0xf1] sm:$0xff] %vm405, %v393
      %473 = vst.msk [vmem:[%s451 + $0xf9] sm:$0xff] %vm405, %v394
      %474 = vst.msk [vmem:[%s451 + $0x109] sm:$0xff] %vm405, %v395
      %475 = vst.msk [vmem:[%s451 + $0x111] sm:$0xff] %vm405, %v396
      %476 = vst.msk [vmem:[%s451 + $0x121] sm:$0xff] %vm405, %v397
      %477 = vst.msk [vmem:[%s451 + $0x129] sm:$0xff] %vm405, %v398
      %478 = vst.msk [vmem:[%s451 + $0x139] sm:$0xff] %vm405, %v399
      %479 = vst.msk [vmem:[%s451 + $0x141] sm:$0xff] %vm405, %v400
      %480 = vst.msk [vmem:[%s451 + $0x151] sm:$0xff] %vm405, %v401
      %481 = vst.msk [vmem:[%s451 + $0x159] sm:$0xff] %vm405, %v402
      %482 = vst.msk [vmem:[%s451 + $0x169] sm:$0xff] %vm405, %v403
      %483 = vst.msk [vmem:[%s451 + $0x171] sm:$0xff] %vm405, %v404
      %v484 = vld [vmem:[%s4] sm:$0x1]
      %v486 = vlaneseq
      %v487 = vshrl.u32 %v486, 7
      %v488 = vsub.s32 0, %v487
      %v489 = vrot.slane %v484, %v488
      %v491 = vld [vmem:[#allocation2] sm:$0xff]
      %v492 = vld [vmem:[#allocation2 + $0x8] sm:$0xff]
      %v493 = vld [vmem:[#allocation2 + $0x18] sm:$0xff]
      %v494 = vld [vmem:[#allocation2 + $0x20] sm:$0xff]
      %v495 = vld [vmem:[#allocation2 + $0x30] sm:$0xff]
      %v496 = vld [vmem:[#allocation2 + $0x38] sm:$0xff]
      %v497 = vld [vmem:[#allocation2 + $0x48] sm:$0xff]
      %v498 = vld [vmem:[#allocation2 + $0x50] sm:$0xff]
      %v499 = vld [vmem:[#allocation2 + $0x60] sm:$0xff]
      %v500 = vld [vmem:[#allocation2 + $0x68] sm:$0xff]
      %v501 = vld [vmem:[#allocation2 + $0x78] sm:$0xff]
      %v502 = vld [vmem:[#allocation2 + $0x80] sm:$0xff]
      %v503 = vld [vmem:[#allocation2 + $0x90] sm:$0xff]
      %v504 = vld [vmem:[#allocation2 + $0x98] sm:$0xff]
      %v505 = vld [vmem:[#allocation2 + $0xa8] sm:$0xff]
      %v506 = vld [vmem:[#allocation2 + $0xb0] sm:$0xff]
      %v507 = vld [vmem:[#allocation2 + $0xc0] sm:$0xff]
      %v508 = vld [vmem:[#allocation2 + $0xc8] sm:$0xff]
      %v509 = vld [vmem:[#allocation2 + $0xd8] sm:$0xff]
      %v510 = vld [vmem:[#allocation2 + $0xe0] sm:$0xff]
      %v511 = vld [vmem:[#allocation2 + $0xf0] sm:$0xff]
      %v512 = vld [vmem:[#allocation2 + $0xf8] sm:$0xff]
      %v513 = vld [vmem:[#allocation2 + $0x108] sm:$0xff]
      %v514 = vld [vmem:[#allocation2 + $0x110] sm:$0xff]
      %v515 = vld [vmem:[#allocation2 + $0x120] sm:$0xff]
      %v516 = vld [vmem:[#allocation2 + $0x128] sm:$0xff]
      %v517 = vld [vmem:[#allocation2 + $0x138] sm:$0xff]
      %v518 = vld [vmem:[#allocation2 + $0x140] sm:$0xff]
      %v519 = vld [vmem:[#allocation2 + $0x150] sm:$0xff]
      %v520 = vld [vmem:[#allocation2 + $0x158] sm:$0xff]
      %v521 = vld [vmem:[#allocation2 + $0x168] sm:$0xff]
      %v522 = vld [vmem:[#allocation2 + $0x170] sm:$0xff]
      %v523 = vld [vmem:[%s3] sm:$0xff]
      %v524 = vld [vmem:[%s3 + $0x8] sm:$0xff]
      %v526 = vsel %vm405, %v491, 0
      %v529 = vsel %vm405, %v492, 0
      %v532 = vsel %vm405, %v493, 0
      %v535 = vsel %vm405, %v494, 0
      %v538 = vsel %vm405, %v495, 0
      %v541 = vsel %vm405, %v496, 0
      %v544 = vsel %vm405, %v497, 0
      %v547 = vsel %vm405, %v498, 0
      %v550 = vsel %vm405, %v499, 0
      %v553 = vsel %vm405, %v500, 0
      %v556 = vsel %vm405, %v501, 0
      %v559 = vsel %vm405, %v502, 0
      %v562 = vsel %vm405, %v503, 0
      %v565 = vsel %vm405, %v504, 0
      %v568 = vsel %vm405, %v505, 0
      %v571 = vsel %vm405, %v506, 0
      %v574 = vsel %vm405, %v507, 0
      %v577 = vsel %vm405, %v508, 0
      %v580 = vsel %vm405, %v509, 0
      %v583 = vsel %vm405, %v510, 0
      %v586 = vsel %vm405, %v511, 0
      %v589 = vsel %vm405, %v512, 0
      %v592 = vsel %vm405, %v513, 0
      %v595 = vsel %vm405, %v514, 0
      %v598 = vsel %vm405, %v515, 0
      %v601 = vsel %vm405, %v516, 0
      %v604 = vsel %vm405, %v517, 0
      %v607 = vsel %vm405, %v518, 0
      %v610 = vsel %vm405, %v519, 0
      %v613 = vsel %vm405, %v520, 0
      %v616 = vsel %vm405, %v521, 0
      %v619 = vsel %vm405, %v522, 0
      %621 = vmatprep.subr.mxu0 0.0
      %622 = vmatpush1.msra.mxu0 %v523
      %623 = vmatprep.subr.mxu0 0.0
      %624 = vmatpush1.msra.mxu0 %v524
      %625 = vmatprep.subr.mxu0 0.0
      %626 = vmatpush1.msra.mxu0 0.0
      %627 = vmatprep.subr.mxu0 0.0
      %628 = vmatpush1.msra.mxu0 0.0
      %629 = vmatprep.subr.mxu0 0.0
      %630 = vmatpush1.msra.mxu0 0.0
      %631 = vmatprep.subr.mxu0 0.0
      %632 = vmatpush1.msra.mxu0 0.0
      %633 = vmatprep.subr.mxu0 0.0
      %634 = vmatpush1.msra.mxu0 0.0
      %635 = vmatprep.subr.mxu0 0.0
      %636 = vmatpush1.msra.mxu0 0.0
      %637 = vmatprep.subr.mxu0 0.0
      %638 = vmatpush1.msra.mxu0 0.0
      %639 = vmatprep.subr.mxu0 0.0
      %640 = vmatpush1.msra.mxu0 0.0
      %641 = vmatprep.subr.mxu0 0.0
      %642 = vmatpush1.msra.mxu0 0.0
      %643 = vmatprep.subr.mxu0 0.0
      %644 = vmatpush1.msra.mxu0 0.0
      %645 = vmatprep.subr.mxu0 0.0
      %646 = vmatpush1.msra.mxu0 0.0
      %647 = vmatprep.subr.mxu0 0.0
      %648 = vmatpush1.msra.mxu0 0.0
      %649 = vmatprep.subr.mxu0 0.0
      %650 = vmatpush1.msra.mxu0 0.0
      %651 = vmatprep.subr.mxu0 0.0
      %652 = vmatpush1.msra.mxu0 0.0
      %653 = vmatprep.subr.mxu0 0.0
      %654 = vmatpush1.msra.mxu0 0.0
      %655 = vmatprep.subr.mxu0 0.0
      %656 = vmatpush1.msra.mxu0 0.0
      %657 = vmatprep.subr.mxu0 0.0
      %658 = vmatpush1.msra.mxu0 0.0
      %659 = vmatprep.subr.mxu0 0.0
      %660 = vmatpush1.msra.mxu0 0.0
      %661 = vmatprep.subr.mxu0 0.0
      %662 = vmatpush1.msra.mxu0 0.0
      %663 = vmatprep.subr.mxu0 0.0
      %664 = vmatpush1.msra.mxu0 0.0
      %665 = vmatprep.subr.mxu0 0.0
      %666 = vmatpush1.msra.mxu0 0.0
      %667 = vmatprep.subr.mxu0 0.0
      %668 = vmatpush1.msra.mxu0 0.0
      %669 = vmatprep.subr.mxu0 0.0
      %670 = vmatpush1.msra.mxu0 0.0
      %671 = vmatprep.subr.mxu0 0.0
      %672 = vmatpush1.msra.mxu0 0.0
      %673 = vmatprep.subr.mxu0 0.0
      %674 = vmatpush1.msra.mxu0 0.0
      %675 = vmatprep.subr.mxu0 0.0
      %676 = vmatpush1.msra.mxu0 0.0
      %677 = vmatprep.subr.mxu0 0.0
      %678 = vmatpush1.msra.mxu0 0.0
      %679 = vmatprep.subr.mxu0 0.0
      %680 = vmatpush1.msra.mxu0 0.0
      %681 = vmatprep.subr.mxu0 0.0
      %682 = vmatpush1.msra.mxu0 0.0
      %683 = vmatprep.subr.mxu0 0.0
      %684 = vmatpush1.msra.mxu0 0.0
      %685 = vmatprep.mubr.f32.mxu0 0.0
      %686 = vmatmul.mubr.f32.gmra.mrb[0].mxu0 %v526
      %v687 = vpop.f32.mrb[0].mxu0
      %v688 = vadd.f32 0.0, %v687
      %v689 = vpop.f32.mrb[0].mxu0
      %690 = vmatprep.mubr.f32.mxu0 0.0
      %691 = vmatmul.mubr.f32.gmra.mrb[0].mxu0 %v529
      %v692 = vpop.f32.mrb[0].mxu0
      %v693 = vadd.f32 0.0, %v692
      %v694 = vpop.f32.mrb[0].mxu0
      %695 = vmatprep.mubr.f32.mxu0 0.0
      %696 = vmatmul.mubr.f32.gmra.mrb[0].mxu0 %v532
      %v697 = vpop.f32.mrb[0].mxu0
      %v698 = vadd.f32 0.0, %v697
      %v699 = vpop.f32.mrb[0].mxu0
      %700 = vmatprep.mubr.f32.mxu0 0.0
      %701 = vmatmul.mubr.f32.gmra.mrb[0].mxu0 %v535
      %v702 = vpop.f32.mrb[0].mxu0
      %v703 = vadd.f32 0.0, %v702
      %v704 = vpop.f32.mrb[0].mxu0
      %705 = vmatprep.mubr.f32.mxu0 0.0
      %706 = vmatmul.mubr.f32.gmra.mrb[0].mxu0 %v538
      %v707 = vpop.f32.mrb[0].mxu0
      %v708 = vadd.f32 0.0, %v707
      %v709 = vpop.f32.mrb[0].mxu0
      %710 = vmatprep.mubr.f32.mxu0 0.0
      %711 = vmatmul.mubr.f32.gmra.mrb[0].mxu0 %v541
      %v712 = vpop.f32.mrb[0].mxu0
      %v713 = vadd.f32 0.0, %v712
      %v714 = vpop.f32.mrb[0].mxu0
      %715 = vmatprep.mubr.f32.mxu0 0.0
      %716 = vmatmul.mubr.f32.gmra.mrb[0].mxu0 %v544
      %v717 = vpop.f32.mrb[0].mxu0
      %v718 = vadd.f32 0.0, %v717
      %v719 = vpop.f32.mrb[0].mxu0
      %720 = vmatprep.mubr.f32.mxu0 0.0
      %721 = vmatmul.mubr.f32.gmra.mrb[0].mxu0 %v547
      %v722 = vpop.f32.mrb[0].mxu0
      %v723 = vadd.f32 0.0, %v722
      %v724 = vpop.f32.mrb[0].mxu0
      %725 = vmatprep.mubr.f32.mxu0 0.0
      %726 = vmatmul.mubr.f32.gmra.mrb[0].mxu0 %v550
      %v727 = vpop.f32.mrb[0].mxu0
      %v728 = vadd.f32 0.0, %v727
      %v729 = vpop.f32.mrb[0].mxu0
      %730 = vmatprep.mubr.f32.mxu0 0.0
      %731 = vmatmul.mubr.f32.gmra.mrb[0].mxu0 %v553
      %v732 = vpop.f32.mrb[0].mxu0
      %v733 = vadd.f32 0.0, %v732
      %v734 = vpop.f32.mrb[0].mxu0
      %735 = vmatprep.mubr.f32.mxu0 0.0
      %736 = vmatmul.mubr.f32.gmra.mrb[0].mxu0 %v556
      %v737 = vpop.f32.mrb[0].mxu0
      %v738 = vadd.f32 0.0, %v737
      %v739 = vpop.f32.mrb[0].mxu0
      %740 = vmatprep.mubr.f32.mxu0 0.0
      %741 = vmatmul.mubr.f32.gmra.mrb[0].mxu0 %v559
      %v742 = vpop.f32.mrb[0].mxu0
      %v743 = vadd.f32 0.0, %v742
      %v744 = vpop.f32.mrb[0].mxu0
      %745 = vmatprep.mubr.f32.mxu0 0.0
      %746 = vmatmul.mubr.f32.gmra.mrb[0].mxu0 %v562
      %v747 = vpop.f32.mrb[0].mxu0
      %v748 = vadd.f32 0.0, %v747
      %v749 = vpop.f32.mrb[0].mxu0
      %750 = vmatprep.mubr.f32.mxu0 0.0
      %751 = vmatmul.mubr.f32.gmra.mrb[0].mxu0 %v565
      %v752 = vpop.f32.mrb[0].mxu0
      %v753 = vadd.f32 0.0, %v752
      %v754 = vpop.f32.mrb[0].mxu0
      %755 = vmatprep.mubr.f32.mxu0 0.0
      %756 = vmatmul.mubr.f32.gmra.mrb[0].mxu0 %v568
      %v757 = vpop.f32.mrb[0].mxu0
      %v758 = vadd.f32 0.0, %v757
      %v759 = vpop.f32.mrb[0].mxu0
      %760 = vmatprep.mubr.f32.mxu0 0.0
      %761 = vmatmul.mubr.f32.gmra.mrb[0].mxu0 %v571
      %v762 = vpop.f32.mrb[0].mxu0
      %v763 = vadd.f32 0.0, %v762
      %v764 = vpop.f32.mrb[0].mxu0
      %765 = vmatprep.mubr.f32.mxu0 0.0
      %766 = vmatmul.mubr.f32.gmra.mrb[0].mxu0 %v574
      %v767 = vpop.f32.mrb[0].mxu0
      %v768 = vadd.f32 0.0, %v767
      %v769 = vpop.f32.mrb[0].mxu0
      %770 = vmatprep.mubr.f32.mxu0 0.0
      %771 = vmatmul.mubr.f32.gmra.mrb[0].mxu0 %v577
      %v772 = vpop.f32.mrb[0].mxu0
      %v773 = vadd.f32 0.0, %v772
      %v774 = vpop.f32.mrb[0].mxu0
      %775 = vmatprep.mubr.f32.mxu0 0.0
      %776 = vmatmul.mubr.f32.gmra.mrb[0].mxu0 %v580
      %v777 = vpop.f32.mrb[0].mxu0
      %v778 = vadd.f32 0.0, %v777
      %v779 = vpop.f32.mrb[0].mxu0
      %780 = vmatprep.mubr.f32.mxu0 0.0
      %781 = vmatmul.mubr.f32.gmra.mrb[0].mxu0 %v583
      %v782 = vpop.f32.mrb[0].mxu0
      %v783 = vadd.f32 0.0, %v782
      %v784 = vpop.f32.mrb[0].mxu0
      %785 = vmatprep.mubr.f32.mxu0 0.0
      %786 = vmatmul.mubr.f32.gmra.mrb[0].mxu0 %v586
      %v787 = vpop.f32.mrb[0].mxu0
      %v788 = vadd.f32 0.0, %v787
      %v789 = vpop.f32.mrb[0].mxu0
      %790 = vmatprep.mubr.f32.mxu0 0.0
      %791 = vmatmul.mubr.f32.gmra.mrb[0].mxu0 %v589
      %v792 = vpop.f32.mrb[0].mxu0
      %v793 = vadd.f32 0.0, %v792
      %v794 = vpop.f32.mrb[0].mxu0
      %795 = vmatprep.mubr.f32.mxu0 0.0
      %796 = vmatmul.mubr.f32.gmra.mrb[0].mxu0 %v592
      %v797 = vpop.f32.mrb[0].mxu0
      %v798 = vadd.f32 0.0, %v797
      %v799 = vpop.f32.mrb[0].mxu0
      %800 = vmatprep.mubr.f32.mxu0 0.0
      %801 = vmatmul.mubr.f32.gmra.mrb[0].mxu0 %v595
      %v802 = vpop.f32.mrb[0].mxu0
      %v803 = vadd.f32 0.0, %v802
      %v804 = vpop.f32.mrb[0].mxu0
      %805 = vmatprep.mubr.f32.mxu0 0.0
      %806 = vmatmul.mubr.f32.gmra.mrb[0].mxu0 %v598
      %v807 = vpop.f32.mrb[0].mxu0
      %v808 = vadd.f32 0.0, %v807
      %v809 = vpop.f32.mrb[0].mxu0
      %810 = vmatprep.mubr.f32.mxu0 0.0
      %811 = vmatmul.mubr.f32.gmra.mrb[0].mxu0 %v601
      %v812 = vpop.f32.mrb[0].mxu0
      %v813 = vadd.f32 0.0, %v812
      %v814 = vpop.f32.mrb[0].mxu0
      %815 = vmatprep.mubr.f32.mxu0 0.0
      %816 = vmatmul.mubr.f32.gmra.mrb[0].mxu0 %v604
      %v817 = vpop.f32.mrb[0].mxu0
      %v818 = vadd.f32 0.0, %v817
      %v819 = vpop.f32.mrb[0].mxu0
      %820 = vmatprep.mubr.f32.mxu0 0.0
      %821 = vmatmul.mubr.f32.gmra.mrb[0].mxu0 %v607
      %v822 = vpop.f32.mrb[0].mxu0
      %v823 = vadd.f32 0.0, %v822
      %v824 = vpop.f32.mrb[0].mxu0
      %825 = vmatprep.mubr.f32.mxu0 0.0
      %826 = vmatmul.mubr.f32.gmra.mrb[0].mxu0 %v610
      %v827 = vpop.f32.mrb[0].mxu0
      %v828 = vadd.f32 0.0, %v827
      %v829 = vpop.f32.mrb[0].mxu0
      %830 = vmatprep.mubr.f32.mxu0 0.0
      %831 = vmatmul.mubr.f32.gmra.mrb[0].mxu0 %v613
      %v832 = vpop.f32.mrb[0].mxu0
      %v833 = vadd.f32 0.0, %v832
      %v834 = vpop.f32.mrb[0].mxu0
      %835 = vmatprep.mubr.f32.mxu0 0.0
      %836 = vmatmul.mubr.f32.gmra.mrb[0].mxu0 %v616
      %v837 = vpop.f32.mrb[0].mxu0
      %v838 = vadd.f32 0.0, %v837
      %v839 = vpop.f32.mrb[0].mxu0
      %840 = vmatprep.mubr.f32.mxu0 0.0
      %841 = vmatmul.mubr.f32.gmra.mrb[0].mxu0 %v619
      %v842 = vpop.f32.mrb[0].mxu0
      %v843 = vadd.f32 0.0, %v842
      %v844 = vpop.f32.mrb[0].mxu0
      %845 = vdwg.mxu0
      %v846 = vadd.f32 %v489, %v688
      %v847 = vadd.f32 %v489, %v693
      %v848 = vadd.f32 %v489, %v698
      %v849 = vadd.f32 %v489, %v703
      %v850 = vadd.f32 %v489, %v708
      %v851 = vadd.f32 %v489, %v713
      %v852 = vadd.f32 %v489, %v718
      %v853 = vadd.f32 %v489, %v723
      %v854 = vadd.f32 %v489, %v728
      %v855 = vadd.f32 %v489, %v733
      %v856 = vadd.f32 %v489, %v738
      %v857 = vadd.f32 %v489, %v743
      %v858 = vadd.f32 %v489, %v748
      %v859 = vadd.f32 %v489, %v753
      %v860 = vadd.f32 %v489, %v758
      %v861 = vadd.f32 %v489, %v763
      %v862 = vadd.f32 %v489, %v768
      %v863 = vadd.f32 %v489, %v773
      %v864 = vadd.f32 %v489, %v778
      %v865 = vadd.f32 %v489, %v783
      %v866 = vadd.f32 %v489, %v788
      %v867 = vadd.f32 %v489, %v793
      %v868 = vadd.f32 %v489, %v798
      %v869 = vadd.f32 %v489, %v803
      %v870 = vadd.f32 %v489, %v808
      %v871 = vadd.f32 %v489, %v813
      %v872 = vadd.f32 %v489, %v818
      %v873 = vadd.f32 %v489, %v823
      %v874 = vadd.f32 %v489, %v828
      %v875 = vadd.f32 %v489, %v833
      %v876 = vadd.f32 %v489, %v838
      %v877 = vadd.f32 %v489, %v843
      %v878 = vld [vmem:[#allocation2 + $0x1] sm:$0xff]
      %v879 = vld [vmem:[#allocation2 + $0x9] sm:$0xff]
      %v880 = vld [vmem:[#allocation2 + $0x19] sm:$0xff]
      %v881 = vld [vmem:[#allocation2 + $0x21] sm:$0xff]
      %v882 = vld [vmem:[#allocation2 + $0x31] sm:$0xff]
      %v883 = vld [vmem:[#allocation2 + $0x39] sm:$0xff]
      %v884 = vld [vmem:[#allocation2 + $0x49] sm:$0xff]
      %v885 = vld [vmem:[#allocation2 + $0x51] sm:$0xff]
      %v886 = vld [vmem:[#allocation2 + $0x61] sm:$0xff]
      %v887 = vld [vmem:[#allocation2 + $0x69] sm:$0xff]
      %v888 = vld [vmem:[#allocation2 + $0x79] sm:$0xff]
      %v889 = vld [vmem:[#allocation2 + $0x81] sm:$0xff]
      %v890 = vld [vmem:[#allocation2 + $0x91] sm:$0xff]
      %v891 = vld [vmem:[#allocation2 + $0x99] sm:$0xff]
      %v892 = vld [vmem:[#allocation2 + $0xa9] sm:$0xff]
      %v893 = vld [vmem:[#allocation2 + $0xb1] sm:$0xff]
      %v894 = vld [vmem:[#allocation2 + $0xc1] sm:$0xff]
      %v895 = vld [vmem:[#allocation2 + $0xc9] sm:$0xff]
      %v896 = vld [vmem:[#allocation2 + $0xd9] sm:$0xff]
      %v897 = vld [vmem:[#allocation2 + $0xe1] sm:$0xff]
      %v898 = vld [vmem:[#allocation2 + $0xf1] sm:$0xff]
      %v899 = vld [vmem:[#allocation2 + $0xf9] sm:$0xff]
      %v900 = vld [vmem:[#allocation2 + $0x109] sm:$0xff]
      %v901 = vld [vmem:[#allocation2 + $0x111] sm:$0xff]
      %v902 = vld [vmem:[#allocation2 + $0x121] sm:$0xff]
      %v903 = vld [vmem:[#allocation2 + $0x129] sm:$0xff]
      %v904 = vld [vmem:[#allocation2 + $0x139] sm:$0xff]
      %v905 = vld [vmem:[#allocation2 + $0x141] sm:$0xff]
      %v906 = vld [vmem:[#allocation2 + $0x151] sm:$0xff]
      %v907 = vld [vmem:[#allocation2 + $0x159] sm:$0xff]
      %v908 = vld [vmem:[#allocation2 + $0x169] sm:$0xff]
      %v909 = vld [vmem:[#allocation2 + $0x171] sm:$0xff]
      %s910 = scalar_lea.vmem %s3, 16
      %v911 = vld [vmem:[%s910] sm:$0xff]
      %v912 = vld [vmem:[%s910 + $0x8] sm:$0xff]
      %v914 = vsel %vm405, %v878, 0
      %v917 = vsel %vm405, %v879, 0
      %v920 = vsel %vm405, %v880, 0
      %v923 = vsel %vm405, %v881, 0
      %v926 = vsel %vm405, %v882, 0
      %v929 = vsel %vm405, %v883, 0
      %v932 = vsel %vm405, %v884, 0
      %v935 = vsel %vm405, %v885, 0
      %v938 = vsel %vm405, %v886, 0
      %v941 = vsel %vm405, %v887, 0
      %v944 = vsel %vm405, %v888, 0
      %v947 = vsel %vm405, %v889, 0
      %v950 = vsel %vm405, %v890, 0
      %v953 = vsel %vm405, %v891, 0
      %v956 = vsel %vm405, %v892, 0
      %v959 = vsel %vm405, %v893, 0
      %v962 = vsel %vm405, %v894, 0
      %v965 = vsel %vm405, %v895, 0
      %v968 = vsel %vm405, %v896, 0
      %v971 = vsel %vm405, %v897, 0
      %v974 = vsel %vm405, %v898, 0
      %v977 = vsel %vm405, %v899, 0
      %v980 = vsel %vm405, %v900, 0
      %v983 = vsel %vm405, %v901, 0
      %v986 = vsel %vm405, %v902, 0
      %v989 = vsel %vm405, %v903, 0
      %v992 = vsel %vm405, %v904, 0
      %v995 = vsel %vm405, %v905, 0
      %v998 = vsel %vm405, %v906, 0
      %v1001 = vsel %vm405, %v907, 0
      %v1004 = vsel %vm405, %v908, 0
      %v1007 = vsel %vm405, %v909, 0
      %1009 = vmatprep.subr.mxu0 0.0
      %1010 = vmatpush1.msra.mxu0 %v911
      %1011 = vmatprep.subr.mxu0 0.0
      %1012 = vmatpush1.msra.mxu0 %v912
      %1013 = vmatprep.subr.mxu0 0.0
      %1014 = vmatpush1.msra.mxu0 0.0
      %1015 = vmatprep.subr.mxu0 0.0
      %1016 = vmatpush1.msra.mxu0 0.0
      %1017 = vmatprep.subr.mxu0 0.0
      %1018 = vmatpush1.msra.mxu0 0.0
      %1019 = vmatprep.subr.mxu0 0.0
      %1020 = vmatpush1.msra.mxu0 0.0
      %1021 = vmatprep.subr.mxu0 0.0
      %1022 = vmatpush1.msra.mxu0 0.0
      %1023 = vmatprep.subr.mxu0 0.0
      %1024 = vmatpush1.msra.mxu0 0.0
      %1025 = vmatprep.subr.mxu0 0.0
      %1026 = vmatpush1.msra.mxu0 0.0
      %1027 = vmatprep.subr.mxu0 0.0
      %1028 = vmatpush1.msra.mxu0 0.0
      %1029 = vmatprep.subr.mxu0 0.0
      %1030 = vmatpush1.msra.mxu0 0.0
      %1031 = vmatprep.subr.mxu0 0.0
      %1032 = vmatpush1.msra.mxu0 0.0
      %1033 = vmatprep.subr.mxu0 0.0
      %1034 = vmatpush1.msra.mxu0 0.0
      %1035 = vmatprep.subr.mxu0 0.0
      %1036 = vmatpush1.msra.mxu0 0.0
      %1037 = vmatprep.subr.mxu0 0.0
      %1038 = vmatpush1.msra.mxu0 0.0
      %1039 = vmatprep.subr.mxu0 0.0
      %1040 = vmatpush1.msra.mxu0 0.0
      %1041 = vmatprep.subr.mxu0 0.0
      %1042 = vmatpush1.msra.mxu0 0.0
      %1043 = vmatprep.subr.mxu0 0.0
      %1044 = vmatpush1.msra.mxu0 0.0
      %1045 = vmatprep.subr.mxu0 0.0
      %1046 = vmatpush1.msra.mxu0 0.0
      %1047 = vmatprep.subr.mxu0 0.0
      %1048 = vmatpush1.msra.mxu0 0.0
      %1049 = vmatprep.subr.mxu0 0.0
      %1050 = vmatpush1.msra.mxu0 0.0
      %1051 = vmatprep.subr.mxu0 0.0
      %1052 = vmatpush1.msra.mxu0 0.0
      %1053 = vmatprep.subr.mxu0 0.0
      %1054 = vmatpush1.msra.mxu0 0.0
      %1055 = vmatprep.subr.mxu0 0.0
      %1056 = vmatpush1.msra.mxu0 0.0
      %1057 = vmatprep.subr.mxu0 0.0
      %1058 = vmatpush1.msra.mxu0 0.0
      %1059 = vmatprep.subr.mxu0 0.0
      %1060 = vmatpush1.msra.mxu0 0.0
      %1061 = vmatprep.subr.mxu0 0.0
      %1062 = vmatpush1.msra.mxu0 0.0
      %1063 = vmatprep.subr.mxu0 0.0
      %1064 = vmatpush1.msra.mxu0 0.0
      %1065 = vmatprep.subr.mxu0 0.0
      %1066 = vmatpush1.msra.mxu0 0.0
      %1067 = vmatprep.subr.mxu0 0.0
      %1068 = vmatpush1.msra.mxu0 0.0
      %1069 = vmatprep.subr.mxu0 0.0
      %1070 = vmatpush1.msra.mxu0 0.0
      %1071 = vmatprep.subr.mxu0 0.0
      %1072 = vmatpush1.msra.mxu0 0.0
      %1073 = vmatprep.mubr.f32.mxu0 0.0
      %1074 = vmatmul.mubr.f32.gmra.mrb[0].mxu0 %v914
      %v1075 = vpop.f32.mrb[0].mxu0
      %v1076 = vadd.f32 0.0, %v1075
      %v1077 = vpop.f32.mrb[0].mxu0
      %1078 = vmatprep.mubr.f32.mxu0 0.0
      %1079 = vmatmul.mubr.f32.gmra.mrb[0].mxu0 %v917
      %v1080 = vpop.f32.mrb[0].mxu0
      %v1081 = vadd.f32 0.0, %v1080
      %v1082 = vpop.f32.mrb[0].mxu0
      %1083 = vmatprep.mubr.f32.mxu0 0.0
      %1084 = vmatmul.mubr.f32.gmra.mrb[0].mxu0 %v920
      %v1085 = vpop.f32.mrb[0].mxu0
      %v1086 = vadd.f32 0.0, %v1085
      %v1087 = vpop.f32.mrb[0].mxu0
      %1088 = vmatprep.mubr.f32.mxu0 0.0
      %1089 = vmatmul.mubr.f32.gmra.mrb[0].mxu0 %v923
      %v1090 = vpop.f32.mrb[0].mxu0
      %v1091 = vadd.f32 0.0, %v1090
      %v1092 = vpop.f32.mrb[0].mxu0
      %1093 = vmatprep.mubr.f32.mxu0 0.0
      %1094 = vmatmul.mubr.f32.gmra.mrb[0].mxu0 %v926
      %v1095 = vpop.f32.mrb[0].mxu0
      %v1096 = vadd.f32 0.0, %v1095
      %v1097 = vpop.f32.mrb[0].mxu0
      %1098 = vmatprep.mubr.f32.mxu0 0.0
      %1099 = vmatmul.mubr.f32.gmra.mrb[0].mxu0 %v929
      %v1100 = vpop.f32.mrb[0].mxu0
      %v1101 = vadd.f32 0.0, %v1100
      %v1102 = vpop.f32.mrb[0].mxu0
      %1103 = vmatprep.mubr.f32.mxu0 0.0
      %1104 = vmatmul.mubr.f32.gmra.mrb[0].mxu0 %v932
      %v1105 = vpop.f32.mrb[0].mxu0
      %v1106 = vadd.f32 0.0, %v1105
      %v1107 = vpop.f32.mrb[0].mxu0
      %1108 = vmatprep.mubr.f32.mxu0 0.0
      %1109 = vmatmul.mubr.f32.gmra.mrb[0].mxu0 %v935
      %v1110 = vpop.f32.mrb[0].mxu0
      %v1111 = vadd.f32 0.0, %v1110
      %v1112 = vpop.f32.mrb[0].mxu0
      %1113 = vmatprep.mubr.f32.mxu0 0.0
      %1114 = vmatmul.mubr.f32.gmra.mrb[0].mxu0 %v938
      %v1115 = vpop.f32.mrb[0].mxu0
      %v1116 = vadd.f32 0.0, %v1115
      %v1117 = vpop.f32.mrb[0].mxu0
      %1118 = vmatprep.mubr.f32.mxu0 0.0
      %1119 = vmatmul.mubr.f32.gmra.mrb[0].mxu0 %v941
      %v1120 = vpop.f32.mrb[0].mxu0
      %v1121 = vadd.f32 0.0, %v1120
      %v1122 = vpop.f32.mrb[0].mxu0
      %1123 = vmatprep.mubr.f32.mxu0 0.0
      %1124 = vmatmul.mubr.f32.gmra.mrb[0].mxu0 %v944
      %v1125 = vpop.f32.mrb[0].mxu0
      %v1126 = vadd.f32 0.0, %v1125
      %v1127 = vpop.f32.mrb[0].mxu0
      %1128 = vmatprep.mubr.f32.mxu0 0.0
      %1129 = vmatmul.mubr.f32.gmra.mrb[0].mxu0 %v947
      %v1130 = vpop.f32.mrb[0].mxu0
      %v1131 = vadd.f32 0.0, %v1130
      %v1132 = vpop.f32.mrb[0].mxu0
      %1133 = vmatprep.mubr.f32.mxu0 0.0
      %1134 = vmatmul.mubr.f32.gmra.mrb[0].mxu0 %v950
      %v1135 = vpop.f32.mrb[0].mxu0
      %v1136 = vadd.f32 0.0, %v1135
      %v1137 = vpop.f32.mrb[0].mxu0
      %1138 = vmatprep.mubr.f32.mxu0 0.0
      %1139 = vmatmul.mubr.f32.gmra.mrb[0].mxu0 %v953
      %v1140 = vpop.f32.mrb[0].mxu0
      %v1141 = vadd.f32 0.0, %v1140
      %v1142 = vpop.f32.mrb[0].mxu0
      %1143 = vmatprep.mubr.f32.mxu0 0.0
      %1144 = vmatmul.mubr.f32.gmra.mrb[0].mxu0 %v956
      %v1145 = vpop.f32.mrb[0].mxu0
      %v1146 = vadd.f32 0.0, %v1145
      %v1147 = vpop.f32.mrb[0].mxu0
      %1148 = vmatprep.mubr.f32.mxu0 0.0
      %1149 = vmatmul.mubr.f32.gmra.mrb[0].mxu0 %v959
      %v1150 = vpop.f32.mrb[0].mxu0
      %v1151 = vadd.f32 0.0, %v1150
      %v1152 = vpop.f32.mrb[0].mxu0
      %1153 = vmatprep.mubr.f32.mxu0 0.0
      %1154 = vmatmul.mubr.f32.gmra.mrb[0].mxu0 %v962
      %v1155 = vpop.f32.mrb[0].mxu0
      %v1156 = vadd.f32 0.0, %v1155
      %v1157 = vpop.f32.mrb[0].mxu0
      %1158 = vmatprep.mubr.f32.mxu0 0.0
      %1159 = vmatmul.mubr.f32.gmra.mrb[0].mxu0 %v965
      %v1160 = vpop.f32.mrb[0].mxu0
      %v1161 = vadd.f32 0.0, %v1160
      %v1162 = vpop.f32.mrb[0].mxu0
      %1163 = vmatprep.mubr.f32.mxu0 0.0
      %1164 = vmatmul.mubr.f32.gmra.mrb[0].mxu0 %v968
      %v1165 = vpop.f32.mrb[0].mxu0
      %v1166 = vadd.f32 0.0, %v1165
      %v1167 = vpop.f32.mrb[0].mxu0
      %1168 = vmatprep.mubr.f32.mxu0 0.0
      %1169 = vmatmul.mubr.f32.gmra.mrb[0].mxu0 %v971
      %v1170 = vpop.f32.mrb[0].mxu0
      %v1171 = vadd.f32 0.0, %v1170
      %v1172 = vpop.f32.mrb[0].mxu0
      %1173 = vmatprep.mubr.f32.mxu0 0.0
      %1174 = vmatmul.mubr.f32.gmra.mrb[0].mxu0 %v974
      %v1175 = vpop.f32.mrb[0].mxu0
      %v1176 = vadd.f32 0.0, %v1175
      %v1177 = vpop.f32.mrb[0].mxu0
      %1178 = vmatprep.mubr.f32.mxu0 0.0
      %1179 = vmatmul.mubr.f32.gmra.mrb[0].mxu0 %v977
      %v1180 = vpop.f32.mrb[0].mxu0
      %v1181 = vadd.f32 0.0, %v1180
      %v1182 = vpop.f32.mrb[0].mxu0
      %1183 = vmatprep.mubr.f32.mxu0 0.0
      %1184 = vmatmul.mubr.f32.gmra.mrb[0].mxu0 %v980
      %v1185 = vpop.f32.mrb[0].mxu0
      %v1186 = vadd.f32 0.0, %v1185
      %v1187 = vpop.f32.mrb[0].mxu0
      %1188 = vmatprep.mubr.f32.mxu0 0.0
      %1189 = vmatmul.mubr.f32.gmra.mrb[0].mxu0 %v983
      %v1190 = vpop.f32.mrb[0].mxu0
      %v1191 = vadd.f32 0.0, %v1190
      %v1192 = vpop.f32.mrb[0].mxu0
      %1193 = vmatprep.mubr.f32.mxu0 0.0
      %1194 = vmatmul.mubr.f32.gmra.mrb[0].mxu0 %v986
      %v1195 = vpop.f32.mrb[0].mxu0
      %v1196 = vadd.f32 0.0, %v1195
      %v1197 = vpop.f32.mrb[0].mxu0
      %1198 = vmatprep.mubr.f32.mxu0 0.0
      %1199 = vmatmul.mubr.f32.gmra.mrb[0].mxu0 %v989
      %v1200 = vpop.f32.mrb[0].mxu0
      %v1201 = vadd.f32 0.0, %v1200
      %v1202 = vpop.f32.mrb[0].mxu0
      %1203 = vmatprep.mubr.f32.mxu0 0.0
      %1204 = vmatmul.mubr.f32.gmra.mrb[0].mxu0 %v992
      %v1205 = vpop.f32.mrb[0].mxu0
      %v1206 = vadd.f32 0.0, %v1205
      %v1207 = vpop.f32.mrb[0].mxu0
      %1208 = vmatprep.mubr.f32.mxu0 0.0
      %1209 = vmatmul.mubr.f32.gmra.mrb[0].mxu0 %v995
      %v1210 = vpop.f32.mrb[0].mxu0
      %v1211 = vadd.f32 0.0, %v1210
      %v1212 = vpop.f32.mrb[0].mxu0
      %1213 = vmatprep.mubr.f32.mxu0 0.0
      %1214 = vmatmul.mubr.f32.gmra.mrb[0].mxu0 %v998
      %v1215 = vpop.f32.mrb[0].mxu0
      %v1216 = vadd.f32 0.0, %v1215
      %v1217 = vpop.f32.mrb[0].mxu0
      %1218 = vmatprep.mubr.f32.mxu0 0.0
      %1219 = vmatmul.mubr.f32.gmra.mrb[0].mxu0 %v1001
      %v1220 = vpop.f32.mrb[0].mxu0
      %v1221 = vadd.f32 0.0, %v1220
      %v1222 = vpop.f32.mrb[0].mxu0
      %1223 = vmatprep.mubr.f32.mxu0 0.0
      %1224 = vmatmul.mubr.f32.gmra.mrb[0].mxu0 %v1004
      %v1225 = vpop.f32.mrb[0].mxu0
      %v1226 = vadd.f32 0.0, %v1225
      %v1227 = vpop.f32.mrb[0].mxu0
      %1228 = vmatprep.mubr.f32.mxu0 0.0
      %1229 = vmatmul.mubr.f32.gmra.mrb[0].mxu0 %v1007
      %v1230 = vpop.f32.mrb[0].mxu0
      %v1231 = vadd.f32 0.0, %v1230
      %v1232 = vpop.f32.mrb[0].mxu0
      %1233 = vdwg.mxu0
      %v1234 = vadd.f32 %v846, %v1076
      %v1235 = vadd.f32 %v847, %v1081
      %v1236 = vadd.f32 %v848, %v1086
      %v1237 = vadd.f32 %v849, %v1091
      %v1238 = vadd.f32 %v850, %v1096
      %v1239 = vadd.f32 %v851, %v1101
      %v1240 = vadd.f32 %v852, %v1106
      %v1241 = vadd.f32 %v853, %v1111
      %v1242 = vadd.f32 %v854, %v1116
      %v1243 = vadd.f32 %v855, %v1121
      %v1244 = vadd.f32 %v856, %v1126
      %v1245 = vadd.f32 %v857, %v1131
      %v1246 = vadd.f32 %v858, %v1136
      %v1247 = vadd.f32 %v859, %v1141
      %v1248 = vadd.f32 %v860, %v1146
      %v1249 = vadd.f32 %v861, %v1151
      %v1250 = vadd.f32 %v862, %v1156
      %v1251 = vadd.f32 %v863, %v1161
      %v1252 = vadd.f32 %v864, %v1166
      %v1253 = vadd.f32 %v865, %v1171
      %v1254 = vadd.f32 %v866, %v1176
      %v1255 = vadd.f32 %v867, %v1181
      %v1256 = vadd.f32 %v868, %v1186
      %v1257 = vadd.f32 %v869, %v1191
      %v1258 = vadd.f32 %v870, %v1196
      %v1259 = vadd.f32 %v871, %v1201
      %v1260 = vadd.f32 %v872, %v1206
      %v1261 = vadd.f32 %v873, %v1211
      %v1262 = vadd.f32 %v874, %v1216
      %v1263 = vadd.f32 %v875, %v1221
      %v1264 = vadd.f32 %v876, %v1226
      %v1265 = vadd.f32 %v877, %v1231
      %v1266 = vld [vmem:[#allocation2 + $0x2] sm:$0xff]
      %v1267 = vld [vmem:[#allocation2 + $0xa] sm:$0xff]
      %v1268 = vld [vmem:[#allocation2 + $0x1a] sm:$0xff]
      %v1269 = vld [vmem:[#allocation2 + $0x22] sm:$0xff]
      %v1270 = vld [vmem:[#allocation2 + $0x32] sm:$0xff]
      %v1271 = vld [vmem:[#allocation2 + $0x3a] sm:$0xff]
      %v1272 = vld [vmem:[#allocation2 + $0x4a] sm:$0xff]
      %v1273 = vld [vmem:[#allocation2 + $0x52] sm:$0xff]
      %v1274 = vld [vmem:[#allocation2 + $0x62] sm:$0xff]
      %v1275 = vld [vmem:[#allocation2 + $0x6a] sm:$0xff]
      %v1276 = vld [vmem:[#allocation2 + $0x7a] sm:$0xff]
      %v1277 = vld [vmem:[#allocation2 + $0x82] sm:$0xff]
      %v1278 = vld [vmem:[#allocation2 + $0x92] sm:$0xff]
      %v1279 = vld [vmem:[#allocation2 + $0x9a] sm:$0xff]
      %v1280 = vld [vmem:[#allocation2 + $0xaa] sm:$0xff]
      %v1281 = vld [vmem:[#allocation2 + $0xb2] sm:$0xff]
      %v1282 = vld [vmem:[#allocation2 + $0xc2] sm:$0xff]
      %v1283 = vld [vmem:[#allocation2 + $0xca] sm:$0xff]
      %v1284 = vld [vmem:[#allocation2 + $0xda] sm:$0xff]
      %v1285 = vld [vmem:[#allocation2 + $0xe2] sm:$0xff]
      %v1286 = vld [vmem:[#allocation2 + $0xf2] sm:$0xff]
      %v1287 = vld [vmem:[#allocation2 + $0xfa] sm:$0xff]
      %v1288 = vld [vmem:[#allocation2 + $0x10a] sm:$0xff]
      %v1289 = vld [vmem:[#allocation2 + $0x112] sm:$0xff]
      %v1290 = vld [vmem:[#allocation2 + $0x122] sm:$0xff]
      %v1291 = vld [vmem:[#allocation2 + $0x12a] sm:$0xff]
      %v1292 = vld [vmem:[#allocation2 + $0x13a] sm:$0xff]
      %v1293 = vld [vmem:[#allocation2 + $0x142] sm:$0xff]
      %v1294 = vld [vmem:[#allocation2 + $0x152] sm:$0xff]
      %v1295 = vld [vmem:[#allocation2 + $0x15a] sm:$0xff]
      %v1296 = vld [vmem:[#allocation2 + $0x16a] sm:$0xff]
      %v1297 = vld [vmem:[#allocation2 + $0x172] sm:$0xff]
      %s1298 = scalar_lea.vmem %s3, 32
      %v1299 = vld [vmem:[%s1298] sm:$0xff]
      %v1300 = vld [vmem:[%s1298 + $0x8] sm:$0xff]
      %v1302 = vsel %vm405, %v1266, 0
      %v1305 = vsel %vm405, %v1267, 0
      %v1308 = vsel %vm405, %v1268, 0
      %v1311 = vsel %vm405, %v1269, 0
      %v1314 = vsel %vm405, %v1270, 0
      %v1317 = vsel %vm405, %v1271, 0
      %v1320 = vsel %vm405, %v1272, 0
      %v1323 = vsel %vm405, %v1273, 0
      %v1326 = vsel %vm405, %v1274, 0
      %v1329 = vsel %vm405, %v1275, 0
      %v1332 = vsel %vm405, %v1276, 0
      %v1335 = vsel %vm405, %v1277, 0
      %v1338 = vsel %vm405, %v1278, 0
      %v1341 = vsel %vm405, %v1279, 0
      %v1344 = vsel %vm405, %v1280, 0
      %v1347 = vsel %vm405, %v1281, 0
      %v1350 = vsel %vm405, %v1282, 0
      %v1353 = vsel %vm405, %v1283, 0
      %v1356 = vsel %vm405, %v1284, 0
      %v1359 = vsel %vm405, %v1285, 0
      %v1362 = vsel %vm405, %v1286, 0
      %v1365 = vsel %vm405, %v1287, 0
      %v1368 = vsel %vm405, %v1288, 0
      %v1371 = vsel %vm405, %v1289, 0
      %v1374 = vsel %vm405, %v1290, 0
      %v1377 = vsel %vm405, %v1291, 0
      %v1380 = vsel %vm405, %v1292, 0
      %v1383 = vsel %vm405, %v1293, 0
      %v1386 = vsel %vm405, %v1294, 0
      %v1389 = vsel %vm405, %v1295, 0
      %v1392 = vsel %vm405, %v1296, 0
      %v1395 = vsel %vm405, %v1297, 0
      %1397 = vmatprep.subr.mxu0 0.0
      %1398 = vmatpush1.msra.mxu0 %v1299
      %1399 = vmatprep.subr.mxu0 0.0
      %1400 = vmatpush1.msra.mxu0 %v1300
      %1401 = vmatprep.subr.mxu0 0.0
      %1402 = vmatpush1.msra.mxu0 0.0
      %1403 = vmatprep.subr.mxu0 0.0
      %1404 = vmatpush1.msra.mxu0 0.0
      %1405 = vmatprep.subr.mxu0 0.0
      %1406 = vmatpush1.msra.mxu0 0.0
      %1407 = vmatprep.subr.mxu0 0.0
      %1408 = vmatpush1.msra.mxu0 0.0
      %1409 = vmatprep.subr.mxu0 0.0
      %1410 = vmatpush1.msra.mxu0 0.0
      %1411 = vmatprep.subr.mxu0 0.0
      %1412 = vmatpush1.msra.mxu0 0.0
      %1413 = vmatprep.subr.mxu0 0.0
      %1414 = vmatpush1.msra.mxu0 0.0
      %1415 = vmatprep.subr.mxu0 0.0
      %1416 = vmatpush1.msra.mxu0 0.0
      %1417 = vmatprep.subr.mxu0 0.0
      %1418 = vmatpush1.msra.mxu0 0.0
      %1419 = vmatprep.subr.mxu0 0.0
      %1420 = vmatpush1.msra.mxu0 0.0
      %1421 = vmatprep.subr.mxu0 0.0
      %1422 = vmatpush1.msra.mxu0 0.0
      %1423 = vmatprep.subr.mxu0 0.0
      %1424 = vmatpush1.msra.mxu0 0.0
      %1425 = vmatprep.subr.mxu0 0.0
      %1426 = vmatpush1.msra.mxu0 0.0
      %1427 = vmatprep.subr.mxu0 0.0
      %1428 = vmatpush1.msra.mxu0 0.0
      %1429 = vmatprep.subr.mxu0 0.0
      %1430 = vmatpush1.msra.mxu0 0.0
      %1431 = vmatprep.subr.mxu0 0.0
      %1432 = vmatpush1.msra.mxu0 0.0
      %1433 = vmatprep.subr.mxu0 0.0
      %1434 = vmatpush1.msra.mxu0 0.0
      %1435 = vmatprep.subr.mxu0 0.0
      %1436 = vmatpush1.msra.mxu0 0.0
      %1437 = vmatprep.subr.mxu0 0.0
      %1438 = vmatpush1.msra.mxu0 0.0
      %1439 = vmatprep.subr.mxu0 0.0
      %1440 = vmatpush1.msra.mxu0 0.0
      %1441 = vmatprep.subr.mxu0 0.0
      %1442 = vmatpush1.msra.mxu0 0.0
      %1443 = vmatprep.subr.mxu0 0.0
      %1444 = vmatpush1.msra.mxu0 0.0
      %1445 = vmatprep.subr.mxu0 0.0
      %1446 = vmatpush1.msra.mxu0 0.0
      %1447 = vmatprep.subr.mxu0 0.0
      %1448 = vmatpush1.msra.mxu0 0.0
      %1449 = vmatprep.subr.mxu0 0.0
      %1450 = vmatpush1.msra.mxu0 0.0
      %1451 = vmatprep.subr.mxu0 0.0
      %1452 = vmatpush1.msra.mxu0 0.0
      %1453 = vmatprep.subr.mxu0 0.0
      %1454 = vmatpush1.msra.mxu0 0.0
      %1455 = vmatprep.subr.mxu0 0.0
      %1456 = vmatpush1.msra.mxu0 0.0
      %1457 = vmatprep.subr.mxu0 0.0
      %1458 = vmatpush1.msra.mxu0 0.0
      %1459 = vmatprep.subr.mxu0 0.0
      %1460 = vmatpush1.msra.mxu0 0.0
      %1461 = vmatprep.mubr.f32.mxu0 0.0
      %1462 = vmatmul.mubr.f32.gmra.mrb[0].mxu0 %v1302
      %v1463 = vpop.f32.mrb[0].mxu0
      %v1464 = vadd.f32 0.0, %v1463
      %v1465 = vpop.f32.mrb[0].mxu0
      %1466 = vmatprep.mubr.f32.mxu0 0.0
      %1467 = vmatmul.mubr.f32.gmra.mrb[0].mxu0 %v1305
      %v1468 = vpop.f32.mrb[0].mxu0
      %v1469 = vadd.f32 0.0, %v1468
      %v1470 = vpop.f32.mrb[0].mxu0
      %1471 = vmatprep.mubr.f32.mxu0 0.0
      %1472 = vmatmul.mubr.f32.gmra.mrb[0].mxu0 %v1308
      %v1473 = vpop.f32.mrb[0].mxu0
      %v1474 = vadd.f32 0.0, %v1473
      %v1475 = vpop.f32.mrb[0].mxu0
      %1476 = vmatprep.mubr.f32.mxu0 0.0
      %1477 = vmatmul.mubr.f32.gmra.mrb[0].mxu0 %v1311
      %v1478 = vpop.f32.mrb[0].mxu0
      %v1479 = vadd.f32 0.0, %v1478
      %v1480 = vpop.f32.mrb[0].mxu0
      %1481 = vmatprep.mubr.f32.mxu0 0.0
      %1482 = vmatmul.mubr.f32.gmra.mrb[0].mxu0 %v1314
      %v1483 = vpop.f32.mrb[0].mxu0
      %v1484 = vadd.f32 0.0, %v1483
      %v1485 = vpop.f32.mrb[0].mxu0
      %1486 = vmatprep.mubr.f32.mxu0 0.0
      %1487 = vmatmul.mubr.f32.gmra.mrb[0].mxu0 %v1317
      %v1488 = vpop.f32.mrb[0].mxu0
      %v1489 = vadd.f32 0.0, %v1488
      %v1490 = vpop.f32.mrb[0].mxu0
      %1491 = vmatprep.mubr.f32.mxu0 0.0
      %1492 = vmatmul.mubr.f32.gmra.mrb[0].mxu0 %v1320
      %v1493 = vpop.f32.mrb[0].mxu0
      %v1494 = vadd.f32 0.0, %v1493
      %v1495 = vpop.f32.mrb[0].mxu0
      %1496 = vmatprep.mubr.f32.mxu0 0.0
      %1497 = vmatmul.mubr.f32.gmra.mrb[0].mxu0 %v1323
      %v1498 = vpop.f32.mrb[0].mxu0
      %v1499 = vadd.f32 0.0, %v1498
      %v1500 = vpop.f32.mrb[0].mxu0
      %1501 = vmatprep.mubr.f32.mxu0 0.0
      %1502 = vmatmul.mubr.f32.gmra.mrb[0].mxu0 %v1326
      %v1503 = vpop.f32.mrb[0].mxu0
      %v1504 = vadd.f32 0.0, %v1503
      %v1505 = vpop.f32.mrb[0].mxu0
      %1506 = vmatprep.mubr.f32.mxu0 0.0
      %1507 = vmatmul.mubr.f32.gmra.mrb[0].mxu0 %v1329
      %v1508 = vpop.f32.mrb[0].mxu0
      %v1509 = vadd.f32 0.0, %v1508
      %v1510 = vpop.f32.mrb[0].mxu0
      %1511 = vmatprep.mubr.f32.mxu0 0.0
      %1512 = vmatmul.mubr.f32.gmra.mrb[0].mxu0 %v1332
      %v1513 = vpop.f32.mrb[0].mxu0
      %v1514 = vadd.f32 0.0, %v1513
      %v1515 = vpop.f32.mrb[0].mxu0
      %1516 = vmatprep.mubr.f32.mxu0 0.0
      %1517 = vmatmul.mubr.f32.gmra.mrb[0].mxu0 %v1335
      %v1518 = vpop.f32.mrb[0].mxu0
      %v1519 = vadd.f32 0.0, %v1518
      %v1520 = vpop.f32.mrb[0].mxu0
      %1521 = vmatprep.mubr.f32.mxu0 0.0
      %1522 = vmatmul.mubr.f32.gmra.mrb[0].mxu0 %v1338
      %v1523 = vpop.f32.mrb[0].mxu0
      %v1524 = vadd.f32 0.0, %v1523
      %v1525 = vpop.f32.mrb[0].mxu0
      %1526 = vmatprep.mubr.f32.mxu0 0.0
      %1527 = vmatmul.mubr.f32.gmra.mrb[0].mxu0 %v1341
      %v1528 = vpop.f32.mrb[0].mxu0
      %v1529 = vadd.f32 0.0, %v1528
      %v1530 = vpop.f32.mrb[0].mxu0
      %1531 = vmatprep.mubr.f32.mxu0 0.0
      %1532 = vmatmul.mubr.f32.gmra.mrb[0].mxu0 %v1344
      %v1533 = vpop.f32.mrb[0].mxu0
      %v1534 = vadd.f32 0.0, %v1533
      %v1535 = vpop.f32.mrb[0].mxu0
      %1536 = vmatprep.mubr.f32.mxu0 0.0
      %1537 = vmatmul.mubr.f32.gmra.mrb[0].mxu0 %v1347
      %v1538 = vpop.f32.mrb[0].mxu0
      %v1539 = vadd.f32 0.0, %v1538
      %v1540 = vpop.f32.mrb[0].mxu0
      %1541 = vmatprep.mubr.f32.mxu0 0.0
      %1542 = vmatmul.mubr.f32.gmra.mrb[0].mxu0 %v1350
      %v1543 = vpop.f32.mrb[0].mxu0
      %v1544 = vadd.f32 0.0, %v1543
      %v1545 = vpop.f32.mrb[0].mxu0
      %1546 = vmatprep.mubr.f32.mxu0 0.0
      %1547 = vmatmul.mubr.f32.gmra.mrb[0].mxu0 %v1353
      %v1548 = vpop.f32.mrb[0].mxu0
      %v1549 = vadd.f32 0.0, %v1548
      %v1550 = vpop.f32.mrb[0].mxu0
      %1551 = vmatprep.mubr.f32.mxu0 0.0
      %1552 = vmatmul.mubr.f32.gmra.mrb[0].mxu0 %v1356
      %v1553 = vpop.f32.mrb[0].mxu0
      %v1554 = vadd.f32 0.0, %v1553
      %v1555 = vpop.f32.mrb[0].mxu0
      %1556 = vmatprep.mubr.f32.mxu0 0.0
      %1557 = vmatmul.mubr.f32.gmra.mrb[0].mxu0 %v1359
      %v1558 = vpop.f32.mrb[0].mxu0
      %v1559 = vadd.f32 0.0, %v1558
      %v1560 = vpop.f32.mrb[0].mxu0
      %1561 = vmatprep.mubr.f32.mxu0 0.0
      %1562 = vmatmul.mubr.f32.gmra.mrb[0].mxu0 %v1362
      %v1563 = vpop.f32.mrb[0].mxu0
      %v1564 = vadd.f32 0.0, %v1563
      %v1565 = vpop.f32.mrb[0].mxu0
      %1566 = vmatprep.mubr.f32.mxu0 0.0
      %1567 = vmatmul.mubr.f32.gmra.mrb[0].mxu0 %v1365
      %v1568 = vpop.f32.mrb[0].mxu0
      %v1569 = vadd.f32 0.0, %v1568
      %v1570 = vpop.f32.mrb[0].mxu0
      %1571 = vmatprep.mubr.f32.mxu0 0.0
      %1572 = vmatmul.mubr.f32.gmra.mrb[0].mxu0 %v1368
      %v1573 = vpop.f32.mrb[0].mxu0
      %v1574 = vadd.f32 0.0, %v1573
      %v1575 = vpop.f32.mrb[0].mxu0
      %1576 = vmatprep.mubr.f32.mxu0 0.0
      %1577 = vmatmul.mubr.f32.gmra.mrb[0].mxu0 %v1371
      %v1578 = vpop.f32.mrb[0].mxu0
      %v1579 = vadd.f32 0.0, %v1578
      %v1580 = vpop.f32.mrb[0].mxu0
      %1581 = vmatprep.mubr.f32.mxu0 0.0
      %1582 = vmatmul.mubr.f32.gmra.mrb[0].mxu0 %v1374
      %v1583 = vpop.f32.mrb[0].mxu0
      %v1584 = vadd.f32 0.0, %v1583
      %v1585 = vpop.f32.mrb[0].mxu0
      %1586 = vmatprep.mubr.f32.mxu0 0.0
      %1587 = vmatmul.mubr.f32.gmra.mrb[0].mxu0 %v1377
      %v1588 = vpop.f32.mrb[0].mxu0
      %v1589 = vadd.f32 0.0, %v1588
      %v1590 = vpop.f32.mrb[0].mxu0
      %1591 = vmatprep.mubr.f32.mxu0 0.0
      %1592 = vmatmul.mubr.f32.gmra.mrb[0].mxu0 %v1380
      %v1593 = vpop.f32.mrb[0].mxu0
      %v1594 = vadd.f32 0.0, %v1593
      %v1595 = vpop.f32.mrb[0].mxu0
      %1596 = vmatprep.mubr.f32.mxu0 0.0
      %1597 = vmatmul.mubr.f32.gmra.mrb[0].mxu0 %v1383
      %v1598 = vpop.f32.mrb[0].mxu0
      %v1599 = vadd.f32 0.0, %v1598
      %v1600 = vpop.f32.mrb[0].mxu0
      %1601 = vmatprep.mubr.f32.mxu0 0.0
      %1602 = vmatmul.mubr.f32.gmra.mrb[0].mxu0 %v1386
      %v1603 = vpop.f32.mrb[0].mxu0
      %v1604 = vadd.f32 0.0, %v1603
      %v1605 = vpop.f32.mrb[0].mxu0
      %1606 = vmatprep.mubr.f32.mxu0 0.0
      %1607 = vmatmul.mubr.f32.gmra.mrb[0].mxu0 %v1389
      %v1608 = vpop.f32.mrb[0].mxu0
      %v1609 = vadd.f32 0.0, %v1608
      %v1610 = vpop.f32.mrb[0].mxu0
      %1611 = vmatprep.mubr.f32.mxu0 0.0
      %1612 = vmatmul.mubr.f32.gmra.mrb[0].mxu0 %v1392
      %v1613 = vpop.f32.mrb[0].mxu0
      %v1614 = vadd.f32 0.0, %v1613
      %v1615 = vpop.f32.mrb[0].mxu0
      %1616 = vmatprep.mubr.f32.mxu0 0.0
      %1617 = vmatmul.mubr.f32.gmra.mrb[0].mxu0 %v1395
      %v1618 = vpop.f32.mrb[0].mxu0
      %v1619 = vadd.f32 0.0, %v1618
      %v1620 = vpop.f32.mrb[0].mxu0
      %1621 = vdwg.mxu0
      %v1622 = vadd.f32 %v1234, %v1464
      %v1623 = vadd.f32 %v1235, %v1469
      %v1624 = vadd.f32 %v1236, %v1474
      %v1625 = vadd.f32 %v1237, %v1479
      %v1626 = vadd.f32 %v1238, %v1484
      %v1627 = vadd.f32 %v1239, %v1489
      %v1628 = vadd.f32 %v1240, %v1494
      %v1629 = vadd.f32 %v1241, %v1499
      %v1630 = vadd.f32 %v1242, %v1504
      %v1631 = vadd.f32 %v1243, %v1509
      %v1632 = vadd.f32 %v1244, %v1514
      %v1633 = vadd.f32 %v1245, %v1519
      %v1634 = vadd.f32 %v1246, %v1524
      %v1635 = vadd.f32 %v1247, %v1529
      %v1636 = vadd.f32 %v1248, %v1534
      %v1637 = vadd.f32 %v1249, %v1539
      %v1638 = vadd.f32 %v1250, %v1544
      %v1639 = vadd.f32 %v1251, %v1549
      %v1640 = vadd.f32 %v1252, %v1554
      %v1641 = vadd.f32 %v1253, %v1559
      %v1642 = vadd.f32 %v1254, %v1564
      %v1643 = vadd.f32 %v1255, %v1569
      %v1644 = vadd.f32 %v1256, %v1574
      %v1645 = vadd.f32 %v1257, %v1579
      %v1646 = vadd.f32 %v1258, %v1584
      %v1647 = vadd.f32 %v1259, %v1589
      %v1648 = vadd.f32 %v1260, %v1594
      %v1649 = vadd.f32 %v1261, %v1599
      %v1650 = vadd.f32 %v1262, %v1604
      %v1651 = vadd.f32 %v1263, %v1609
      %v1652 = vadd.f32 %v1264, %v1614
      %v1653 = vadd.f32 %v1265, %v1619
      %v1654 = vld [vmem:[%s451] sm:$0xff]
      %v1655 = vld [vmem:[%s451 + $0x8] sm:$0xff]
      %v1656 = vld [vmem:[%s451 + $0x18] sm:$0xff]
      %v1657 = vld [vmem:[%s451 + $0x20] sm:$0xff]
      %v1658 = vld [vmem:[%s451 + $0x30] sm:$0xff]
      %v1659 = vld [vmem:[%s451 + $0x38] sm:$0xff]
      %v1660 = vld [vmem:[%s451 + $0x48] sm:$0xff]
      %v1661 = vld [vmem:[%s451 + $0x50] sm:$0xff]
      %v1662 = vld [vmem:[%s451 + $0x60] sm:$0xff]
      %v1663 = vld [vmem:[%s451 + $0x68] sm:$0xff]
      %v1664 = vld [vmem:[%s451 + $0x78] sm:$0xff]
      %v1665 = vld [vmem:[%s451 + $0x80] sm:$0xff]
      %v1666 = vld [vmem:[%s451 + $0x90] sm:$0xff]
      %v1667 = vld [vmem:[%s451 + $0x98] sm:$0xff]
      %v1668 = vld [vmem:[%s451 + $0xa8] sm:$0xff]
      %v1669 = vld [vmem:[%s451 + $0xb0] sm:$0xff]
      %v1670 = vld [vmem:[%s451 + $0xc0] sm:$0xff]
      %v1671 = vld [vmem:[%s451 + $0xc8] sm:$0xff]
      %v1672 = vld [vmem:[%s451 + $0xd8] sm:$0xff]
      %v1673 = vld [vmem:[%s451 + $0xe0] sm:$0xff]
      %v1674 = vld [vmem:[%s451 + $0xf0] sm:$0xff]
      %v1675 = vld [vmem:[%s451 + $0xf8] sm:$0xff]
      %v1676 = vld [vmem:[%s451 + $0x108] sm:$0xff]
      %v1677 = vld [vmem:[%s451 + $0x110] sm:$0xff]
      %v1678 = vld [vmem:[%s451 + $0x120] sm:$0xff]
      %v1679 = vld [vmem:[%s451 + $0x128] sm:$0xff]
      %v1680 = vld [vmem:[%s451 + $0x138] sm:$0xff]
      %v1681 = vld [vmem:[%s451 + $0x140] sm:$0xff]
      %v1682 = vld [vmem:[%s451 + $0x150] sm:$0xff]
      %v1683 = vld [vmem:[%s451 + $0x158] sm:$0xff]
      %v1684 = vld [vmem:[%s451 + $0x168] sm:$0xff]
      %v1685 = vld [vmem:[%s451 + $0x170] sm:$0xff]
      %s1686 = scalar_lea.vmem %s3, 48
      %v1687 = vld [vmem:[%s1686] sm:$0xff]
      %v1688 = vld [vmem:[%s1686 + $0x8] sm:$0xff]
      %v1690 = vsel %vm405, %v1654, 0
      %v1693 = vsel %vm405, %v1655, 0
      %v1696 = vsel %vm405, %v1656, 0
      %v1699 = vsel %vm405, %v1657, 0
      %v1702 = vsel %vm405, %v1658, 0
      %v1705 = vsel %vm405, %v1659, 0
      %v1708 = vsel %vm405, %v1660, 0
      %v1711 = vsel %vm405, %v1661, 0
      %v1714 = vsel %vm405, %v1662, 0
      %v1717 = vsel %vm405, %v1663, 0
      %v1720 = vsel %vm405, %v1664, 0
      %v1723 = vsel %vm405, %v1665, 0
      %v1726 = vsel %vm405, %v1666, 0
      %v1729 = vsel %vm405, %v1667, 0
      %v1732 = vsel %vm405, %v1668, 0
      %v1735 = vsel %vm405, %v1669, 0
      %v1738 = vsel %vm405, %v1670, 0
      %v1741 = vsel %vm405, %v1671, 0
      %v1744 = vsel %vm405, %v1672, 0
      %v1747 = vsel %vm405, %v1673, 0
      %v1750 = vsel %vm405, %v1674, 0
      %v1753 = vsel %vm405, %v1675, 0
      %v1756 = vsel %vm405, %v1676, 0
      %v1759 = vsel %vm405, %v1677, 0
      %v1762 = vsel %vm405, %v1678, 0
      %v1765 = vsel %vm405, %v1679, 0
      %v1768 = vsel %vm405, %v1680, 0
      %v1771 = vsel %vm405, %v1681, 0
      %v1774 = vsel %vm405, %v1682, 0
      %v1777 = vsel %vm405, %v1683, 0
      %v1780 = vsel %vm405, %v1684, 0
      %v1783 = vsel %vm405, %v1685, 0
      %1785 = vmatprep.subr.mxu0 0.0
      %1786 = vmatpush1.msra.mxu0 %v1687
      %1787 = vmatprep.subr.mxu0 0.0
      %1788 = vmatpush1.msra.mxu0 %v1688
      %1789 = vmatprep.subr.mxu0 0.0
      %1790 = vmatpush1.msra.mxu0 0.0
      %1791 = vmatprep.subr.mxu0 0.0
      %1792 = vmatpush1.msra.mxu0 0.0
      %1793 = vmatprep.subr.mxu0 0.0
      %1794 = vmatpush1.msra.mxu0 0.0
      %1795 = vmatprep.subr.mxu0 0.0
      %1796 = vmatpush1.msra.mxu0 0.0
      %1797 = vmatprep.subr.mxu0 0.0
      %1798 = vmatpush1.msra.mxu0 0.0
      %1799 = vmatprep.subr.mxu0 0.0
      %1800 = vmatpush1.msra.mxu0 0.0
      %1801 = vmatprep.subr.mxu0 0.0
      %1802 = vmatpush1.msra.mxu0 0.0
      %1803 = vmatprep.subr.mxu0 0.0
      %1804 = vmatpush1.msra.mxu0 0.0
      %1805 = vmatprep.subr.mxu0 0.0
      %1806 = vmatpush1.msra.mxu0 0.0
      %1807 = vmatprep.subr.mxu0 0.0
      %1808 = vmatpush1.msra.mxu0 0.0
      %1809 = vmatprep.subr.mxu0 0.0
      %1810 = vmatpush1.msra.mxu0 0.0
      %1811 = vmatprep.subr.mxu0 0.0
      %1812 = vmatpush1.msra.mxu0 0.0
      %1813 = vmatprep.subr.mxu0 0.0
      %1814 = vmatpush1.msra.mxu0 0.0
      %1815 = vmatprep.subr.mxu0 0.0
      %1816 = vmatpush1.msra.mxu0 0.0
      %1817 = vmatprep.subr.mxu0 0.0
      %1818 = vmatpush1.msra.mxu0 0.0
      %1819 = vmatprep.subr.mxu0 0.0
      %1820 = vmatpush1.msra.mxu0 0.0
      %1821 = vmatprep.subr.mxu0 0.0
      %1822 = vmatpush1.msra.mxu0 0.0
      %1823 = vmatprep.subr.mxu0 0.0
      %1824 = vmatpush1.msra.mxu0 0.0
      %1825 = vmatprep.subr.mxu0 0.0
      %1826 = vmatpush1.msra.mxu0 0.0
      %1827 = vmatprep.subr.mxu0 0.0
      %1828 = vmatpush1.msra.mxu0 0.0
      %1829 = vmatprep.subr.mxu0 0.0
      %1830 = vmatpush1.msra.mxu0 0.0
      %1831 = vmatprep.subr.mxu0 0.0
      %1832 = vmatpush1.msra.mxu0 0.0
      %1833 = vmatprep.subr.mxu0 0.0
      %1834 = vmatpush1.msra.mxu0 0.0
      %1835 = vmatprep.subr.mxu0 0.0
      %1836 = vmatpush1.msra.mxu0 0.0
      %1837 = vmatprep.subr.mxu0 0.0
      %1838 = vmatpush1.msra.mxu0 0.0
      %1839 = vmatprep.subr.mxu0 0.0
      %1840 = vmatpush1.msra.mxu0 0.0
      %1841 = vmatprep.subr.mxu0 0.0
      %1842 = vmatpush1.msra.mxu0 0.0
      %1843 = vmatprep.subr.mxu0 0.0
      %1844 = vmatpush1.msra.mxu0 0.0
      %1845 = vmatprep.subr.mxu0 0.0
      %1846 = vmatpush1.msra.mxu0 0.0
      %1847 = vmatprep.subr.mxu0 0.0
      %1848 = vmatpush1.msra.mxu0 0.0
      %1849 = vmatprep.mubr.f32.mxu0 0.0
      %1850 = vmatmul.mubr.f32.gmra.mrb[0].mxu0 %v1690
      %v1851 = vpop.f32.mrb[0].mxu0
      %v1852 = vadd.f32 0.0, %v1851
      %v1853 = vpop.f32.mrb[0].mxu0
      %1854 = vmatprep.mubr.f32.mxu0 0.0
      %1855 = vmatmul.mubr.f32.gmra.mrb[0].mxu0 %v1693
      %v1856 = vpop.f32.mrb[0].mxu0
      %v1857 = vadd.f32 0.0, %v1856
      %v1858 = vpop.f32.mrb[0].mxu0
      %1859 = vmatprep.mubr.f32.mxu0 0.0
      %1860 = vmatmul.mubr.f32.gmra.mrb[0].mxu0 %v1696
      %v1861 = vpop.f32.mrb[0].mxu0
      %v1862 = vadd.f32 0.0, %v1861
      %v1863 = vpop.f32.mrb[0].mxu0
      %1864 = vmatprep.mubr.f32.mxu0 0.0
      %1865 = vmatmul.mubr.f32.gmra.mrb[0].mxu0 %v1699
      %v1866 = vpop.f32.mrb[0].mxu0
      %v1867 = vadd.f32 0.0, %v1866
      %v1868 = vpop.f32.mrb[0].mxu0
      %1869 = vmatprep.mubr.f32.mxu0 0.0
      %1870 = vmatmul.mubr.f32.gmra.mrb[0].mxu0 %v1702
      %v1871 = vpop.f32.mrb[0].mxu0
      %v1872 = vadd.f32 0.0, %v1871
      %v1873 = vpop.f32.mrb[0].mxu0
      %1874 = vmatprep.mubr.f32.mxu0 0.0
      %1875 = vmatmul.mubr.f32.gmra.mrb[0].mxu0 %v1705
      %v1876 = vpop.f32.mrb[0].mxu0
      %v1877 = vadd.f32 0.0, %v1876
      %v1878 = vpop.f32.mrb[0].mxu0
      %1879 = vmatprep.mubr.f32.mxu0 0.0
      %1880 = vmatmul.mubr.f32.gmra.mrb[0].mxu0 %v1708
      %v1881 = vpop.f32.mrb[0].mxu0
      %v1882 = vadd.f32 0.0, %v1881
      %v1883 = vpop.f32.mrb[0].mxu0
      %1884 = vmatprep.mubr.f32.mxu0 0.0
      %1885 = vmatmul.mubr.f32.gmra.mrb[0].mxu0 %v1711
      %v1886 = vpop.f32.mrb[0].mxu0
      %v1887 = vadd.f32 0.0, %v1886
      %v1888 = vpop.f32.mrb[0].mxu0
      %1889 = vmatprep.mubr.f32.mxu0 0.0
      %1890 = vmatmul.mubr.f32.gmra.mrb[0].mxu0 %v1714
      %v1891 = vpop.f32.mrb[0].mxu0
      %v1892 = vadd.f32 0.0, %v1891
      %v1893 = vpop.f32.mrb[0].mxu0
      %1894 = vmatprep.mubr.f32.mxu0 0.0
      %1895 = vmatmul.mubr.f32.gmra.mrb[0].mxu0 %v1717
      %v1896 = vpop.f32.mrb[0].mxu0
      %v1897 = vadd.f32 0.0, %v1896
      %v1898 = vpop.f32.mrb[0].mxu0
      %1899 = vmatprep.mubr.f32.mxu0 0.0
      %1900 = vmatmul.mubr.f32.gmra.mrb[0].mxu0 %v1720
      %v1901 = vpop.f32.mrb[0].mxu0
      %v1902 = vadd.f32 0.0, %v1901
      %v1903 = vpop.f32.mrb[0].mxu0
      %1904 = vmatprep.mubr.f32.mxu0 0.0
      %1905 = vmatmul.mubr.f32.gmra.mrb[0].mxu0 %v1723
      %v1906 = vpop.f32.mrb[0].mxu0
      %v1907 = vadd.f32 0.0, %v1906
      %v1908 = vpop.f32.mrb[0].mxu0
      %1909 = vmatprep.mubr.f32.mxu0 0.0
      %1910 = vmatmul.mubr.f32.gmra.mrb[0].mxu0 %v1726
      %v1911 = vpop.f32.mrb[0].mxu0
      %v1912 = vadd.f32 0.0, %v1911
      %v1913 = vpop.f32.mrb[0].mxu0
      %1914 = vmatprep.mubr.f32.mxu0 0.0
      %1915 = vmatmul.mubr.f32.gmra.mrb[0].mxu0 %v1729
      %v1916 = vpop.f32.mrb[0].mxu0
      %v1917 = vadd.f32 0.0, %v1916
      %v1918 = vpop.f32.mrb[0].mxu0
      %1919 = vmatprep.mubr.f32.mxu0 0.0
      %1920 = vmatmul.mubr.f32.gmra.mrb[0].mxu0 %v1732
      %v1921 = vpop.f32.mrb[0].mxu0
      %v1922 = vadd.f32 0.0, %v1921
      %v1923 = vpop.f32.mrb[0].mxu0
      %1924 = vmatprep.mubr.f32.mxu0 0.0
      %1925 = vmatmul.mubr.f32.gmra.mrb[0].mxu0 %v1735
      %v1926 = vpop.f32.mrb[0].mxu0
      %v1927 = vadd.f32 0.0, %v1926
      %v1928 = vpop.f32.mrb[0].mxu0
      %1929 = vmatprep.mubr.f32.mxu0 0.0
      %1930 = vmatmul.mubr.f32.gmra.mrb[0].mxu0 %v1738
      %v1931 = vpop.f32.mrb[0].mxu0
      %v1932 = vadd.f32 0.0, %v1931
      %v1933 = vpop.f32.mrb[0].mxu0
      %1934 = vmatprep.mubr.f32.mxu0 0.0
      %1935 = vmatmul.mubr.f32.gmra.mrb[0].mxu0 %v1741
      %v1936 = vpop.f32.mrb[0].mxu0
      %v1937 = vadd.f32 0.0, %v1936
      %v1938 = vpop.f32.mrb[0].mxu0
      %1939 = vmatprep.mubr.f32.mxu0 0.0
      %1940 = vmatmul.mubr.f32.gmra.mrb[0].mxu0 %v1744
      %v1941 = vpop.f32.mrb[0].mxu0
      %v1942 = vadd.f32 0.0, %v1941
      %v1943 = vpop.f32.mrb[0].mxu0
      %1944 = vmatprep.mubr.f32.mxu0 0.0
      %1945 = vmatmul.mubr.f32.gmra.mrb[0].mxu0 %v1747
      %v1946 = vpop.f32.mrb[0].mxu0
      %v1947 = vadd.f32 0.0, %v1946
      %v1948 = vpop.f32.mrb[0].mxu0
      %1949 = vmatprep.mubr.f32.mxu0 0.0
      %1950 = vmatmul.mubr.f32.gmra.mrb[0].mxu0 %v1750
      %v1951 = vpop.f32.mrb[0].mxu0
      %v1952 = vadd.f32 0.0, %v1951
      %v1953 = vpop.f32.mrb[0].mxu0
      %1954 = vmatprep.mubr.f32.mxu0 0.0
      %1955 = vmatmul.mubr.f32.gmra.mrb[0].mxu0 %v1753
      %v1956 = vpop.f32.mrb[0].mxu0
      %v1957 = vadd.f32 0.0, %v1956
      %v1958 = vpop.f32.mrb[0].mxu0
      %1959 = vmatprep.mubr.f32.mxu0 0.0
      %1960 = vmatmul.mubr.f32.gmra.mrb[0].mxu0 %v1756
      %v1961 = vpop.f32.mrb[0].mxu0
      %v1962 = vadd.f32 0.0, %v1961
      %v1963 = vpop.f32.mrb[0].mxu0
      %1964 = vmatprep.mubr.f32.mxu0 0.0
      %1965 = vmatmul.mubr.f32.gmra.mrb[0].mxu0 %v1759
      %v1966 = vpop.f32.mrb[0].mxu0
      %v1967 = vadd.f32 0.0, %v1966
      %v1968 = vpop.f32.mrb[0].mxu0
      %1969 = vmatprep.mubr.f32.mxu0 0.0
      %1970 = vmatmul.mubr.f32.gmra.mrb[0].mxu0 %v1762
      %v1971 = vpop.f32.mrb[0].mxu0
      %v1972 = vadd.f32 0.0, %v1971
      %v1973 = vpop.f32.mrb[0].mxu0
      %1974 = vmatprep.mubr.f32.mxu0 0.0
      %1975 = vmatmul.mubr.f32.gmra.mrb[0].mxu0 %v1765
      %v1976 = vpop.f32.mrb[0].mxu0
      %v1977 = vadd.f32 0.0, %v1976
      %v1978 = vpop.f32.mrb[0].mxu0
      %1979 = vmatprep.mubr.f32.mxu0 0.0
      %1980 = vmatmul.mubr.f32.gmra.mrb[0].mxu0 %v1768
      %v1981 = vpop.f32.mrb[0].mxu0
      %v1982 = vadd.f32 0.0, %v1981
      %v1983 = vpop.f32.mrb[0].mxu0
      %1984 = vmatprep.mubr.f32.mxu0 0.0
      %1985 = vmatmul.mubr.f32.gmra.mrb[0].mxu0 %v1771
      %v1986 = vpop.f32.mrb[0].mxu0
      %v1987 = vadd.f32 0.0, %v1986
      %v1988 = vpop.f32.mrb[0].mxu0
      %1989 = vmatprep.mubr.f32.mxu0 0.0
      %1990 = vmatmul.mubr.f32.gmra.mrb[0].mxu0 %v1774
      %v1991 = vpop.f32.mrb[0].mxu0
      %v1992 = vadd.f32 0.0, %v1991
      %v1993 = vpop.f32.mrb[0].mxu0
      %1994 = vmatprep.mubr.f32.mxu0 0.0
      %1995 = vmatmul.mubr.f32.gmra.mrb[0].mxu0 %v1777
      %v1996 = vpop.f32.mrb[0].mxu0
      %v1997 = vadd.f32 0.0, %v1996
      %v1998 = vpop.f32.mrb[0].mxu0
      %1999 = vmatprep.mubr.f32.mxu0 0.0
      %2000 = vmatmul.mubr.f32.gmra.mrb[0].mxu0 %v1780
      %v2001 = vpop.f32.mrb[0].mxu0
      %v2002 = vadd.f32 0.0, %v2001
      %v2003 = vpop.f32.mrb[0].mxu0
      %2004 = vmatprep.mubr.f32.mxu0 0.0
      %2005 = vmatmul.mubr.f32.gmra.mrb[0].mxu0 %v1783
      %v2006 = vpop.f32.mrb[0].mxu0
      %v2007 = vadd.f32 0.0, %v2006
      %v2008 = vpop.f32.mrb[0].mxu0
      %2009 = vdwg.mxu0
      %v2010 = vadd.f32 %v1622, %v1852
      %v2011 = vadd.f32 %v1623, %v1857
      %v2012 = vadd.f32 %v1624, %v1862
      %v2013 = vadd.f32 %v1625, %v1867
      %v2014 = vadd.f32 %v1626, %v1872
      %v2015 = vadd.f32 %v1627, %v1877
      %v2016 = vadd.f32 %v1628, %v1882
      %v2017 = vadd.f32 %v1629, %v1887
      %v2018 = vadd.f32 %v1630, %v1892
      %v2019 = vadd.f32 %v1631, %v1897
      %v2020 = vadd.f32 %v1632, %v1902
      %v2021 = vadd.f32 %v1633, %v1907
      %v2022 = vadd.f32 %v1634, %v1912
      %v2023 = vadd.f32 %v1635, %v1917
      %v2024 = vadd.f32 %v1636, %v1922
      %v2025 = vadd.f32 %v1637, %v1927
      %v2026 = vadd.f32 %v1638, %v1932
      %v2027 = vadd.f32 %v1639, %v1937
      %v2028 = vadd.f32 %v1640, %v1942
      %v2029 = vadd.f32 %v1641, %v1947
      %v2030 = vadd.f32 %v1642, %v1952
      %v2031 = vadd.f32 %v1643, %v1957
      %v2032 = vadd.f32 %v1644, %v1962
      %v2033 = vadd.f32 %v1645, %v1967
      %v2034 = vadd.f32 %v1646, %v1972
      %v2035 = vadd.f32 %v1647, %v1977
      %v2036 = vadd.f32 %v1648, %v1982
      %v2037 = vadd.f32 %v1649, %v1987
      %v2038 = vadd.f32 %v1650, %v1992
      %v2039 = vadd.f32 %v1651, %v1997
      %v2040 = vadd.f32 %v1652, %v2002
      %v2041 = vadd.f32 %v1653, %v2007
      %v2042 = vld [vmem:[%s451 + $0x1] sm:$0xff]
      %v2043 = vld [vmem:[%s451 + $0x9] sm:$0xff]
      %v2044 = vld [vmem:[%s451 + $0x19] sm:$0xff]
      %v2045 = vld [vmem:[%s451 + $0x21] sm:$0xff]
      %v2046 = vld [vmem:[%s451 + $0x31] sm:$0xff]
      %v2047 = vld [vmem:[%s451 + $0x39] sm:$0xff]
      %v2048 = vld [vmem:[%s451 + $0x49] sm:$0xff]
      %v2049 = vld [vmem:[%s451 + $0x51] sm:$0xff]
      %v2050 = vld [vmem:[%s451 + $0x61] sm:$0xff]
      %v2051 = vld [vmem:[%s451 + $0x69] sm:$0xff]
      %v2052 = vld [vmem:[%s451 + $0x79] sm:$0xff]
      %v2053 = vld [vmem:[%s451 + $0x81] sm:$0xff]
      %v2054 = vld [vmem:[%s451 + $0x91] sm:$0xff]
      %v2055 = vld [vmem:[%s451 + $0x99] sm:$0xff]
      %v2056 = vld [vmem:[%s451 + $0xa9] sm:$0xff]
      %v2057 = vld [vmem:[%s451 + $0xb1] sm:$0xff]
      %v2058 = vld [vmem:[%s451 + $0xc1] sm:$0xff]
      %v2059 = vld [vmem:[%s451 + $0xc9] sm:$0xff]
      %v2060 = vld [vmem:[%s451 + $0xd9] sm:$0xff]
      %v2061 = vld [vmem:[%s451 + $0xe1] sm:$0xff]
      %v2062 = vld [vmem:[%s451 + $0xf1] sm:$0xff]
      %v2063 = vld [vmem:[%s451 + $0xf9] sm:$0xff]
      %v2064 = vld [vmem:[%s451 + $0x109] sm:$0xff]
      %v2065 = vld [vmem:[%s451 + $0x111] sm:$0xff]
      %v2066 = vld [vmem:[%s451 + $0x121] sm:$0xff]
      %v2067 = vld [vmem:[%s451 + $0x129] sm:$0xff]
      %v2068 = vld [vmem:[%s451 + $0x139] sm:$0xff]
      %v2069 = vld [vmem:[%s451 + $0x141] sm:$0xff]
      %v2070 = vld [vmem:[%s451 + $0x151] sm:$0xff]
      %v2071 = vld [vmem:[%s451 + $0x159] sm:$0xff]
      %v2072 = vld [vmem:[%s451 + $0x169] sm:$0xff]
      %v2073 = vld [vmem:[%s451 + $0x171] sm:$0xff]
      %s2074 = scalar_lea.vmem %s3, 64
      %v2075 = vld [vmem:[%s2074] sm:$0xff]
      %v2076 = vld [vmem:[%s2074 + $0x8] sm:$0xff]
      %v2078 = vsel %vm405, %v2042, 0
      %v2081 = vsel %vm405, %v2043, 0
      %v2084 = vsel %vm405, %v2044, 0
      %v2087 = vsel %vm405, %v2045, 0
      %v2090 = vsel %vm405, %v2046, 0
      %v2093 = vsel %vm405, %v2047, 0
      %v2096 = vsel %vm405, %v2048, 0
      %v2099 = vsel %vm405, %v2049, 0
      %v2102 = vsel %vm405, %v2050, 0
      %v2105 = vsel %vm405, %v2051, 0
      %v2108 = vsel %vm405, %v2052, 0
      %v2111 = vsel %vm405, %v2053, 0
      %v2114 = vsel %vm405, %v2054, 0
      %v2117 = vsel %vm405, %v2055, 0
      %v2120 = vsel %vm405, %v2056, 0
      %v2123 = vsel %vm405, %v2057, 0
      %v2126 = vsel %vm405, %v2058, 0
      %v2129 = vsel %vm405, %v2059, 0
      %v2132 = vsel %vm405, %v2060, 0
      %v2135 = vsel %vm405, %v2061, 0
      %v2138 = vsel %vm405, %v2062, 0
      %v2141 = vsel %vm405, %v2063, 0
      %v2144 = vsel %vm405, %v2064, 0
      %v2147 = vsel %vm405, %v2065, 0
      %v2150 = vsel %vm405, %v2066, 0
      %v2153 = vsel %vm405, %v2067, 0
      %v2156 = vsel %vm405, %v2068, 0
      %v2159 = vsel %vm405, %v2069, 0
      %v2162 = vsel %vm405, %v2070, 0
      %v2165 = vsel %vm405, %v2071, 0
      %v2168 = vsel %vm405, %v2072, 0
      %v2171 = vsel %vm405, %v2073, 0
      %2173 = vmatprep.subr.mxu0 0.0
      %2174 = vmatpush1.msra.mxu0 %v2075
      %2175 = vmatprep.subr.mxu0 0.0
      %2176 = vmatpush1.msra.mxu0 %v2076
      %2177 = vmatprep.subr.mxu0 0.0
      %2178 = vmatpush1.msra.mxu0 0.0
      %2179 = vmatprep.subr.mxu0 0.0
      %2180 = vmatpush1.msra.mxu0 0.0
      %2181 = vmatprep.subr.mxu0 0.0
      %2182 = vmatpush1.msra.mxu0 0.0
      %2183 = vmatprep.subr.mxu0 0.0
      %2184 = vmatpush1.msra.mxu0 0.0
      %2185 = vmatprep.subr.mxu0 0.0
      %2186 = vmatpush1.msra.mxu0 0.0
      %2187 = vmatprep.subr.mxu0 0.0
      %2188 = vmatpush1.msra.mxu0 0.0
      %2189 = vmatprep.subr.mxu0 0.0
      %2190 = vmatpush1.msra.mxu0 0.0
      %2191 = vmatprep.subr.mxu0 0.0
      %2192 = vmatpush1.msra.mxu0 0.0
      %2193 = vmatprep.subr.mxu0 0.0
      %2194 = vmatpush1.msra.mxu0 0.0
      %2195 = vmatprep.subr.mxu0 0.0
      %2196 = vmatpush1.msra.mxu0 0.0
      %2197 = vmatprep.subr.mxu0 0.0
      %2198 = vmatpush1.msra.mxu0 0.0
      %2199 = vmatprep.subr.mxu0 0.0
      %2200 = vmatpush1.msra.mxu0 0.0
      %2201 = vmatprep.subr.mxu0 0.0
      %2202 = vmatpush1.msra.mxu0 0.0
      %2203 = vmatprep.subr.mxu0 0.0
      %2204 = vmatpush1.msra.mxu0 0.0
      %2205 = vmatprep.subr.mxu0 0.0
      %2206 = vmatpush1.msra.mxu0 0.0
      %2207 = vmatprep.subr.mxu0 0.0
      %2208 = vmatpush1.msra.mxu0 0.0
      %2209 = vmatprep.subr.mxu0 0.0
      %2210 = vmatpush1.msra.mxu0 0.0
      %2211 = vmatprep.subr.mxu0 0.0
      %2212 = vmatpush1.msra.mxu0 0.0
      %2213 = vmatprep.subr.mxu0 0.0
      %2214 = vmatpush1.msra.mxu0 0.0
      %2215 = vmatprep.subr.mxu0 0.0
      %2216 = vmatpush1.msra.mxu0 0.0
      %2217 = vmatprep.subr.mxu0 0.0
      %2218 = vmatpush1.msra.mxu0 0.0
      %2219 = vmatprep.subr.mxu0 0.0
      %2220 = vmatpush1.msra.mxu0 0.0
      %2221 = vmatprep.subr.mxu0 0.0
      %2222 = vmatpush1.msra.mxu0 0.0
      %2223 = vmatprep.subr.mxu0 0.0
      %2224 = vmatpush1.msra.mxu0 0.0
      %2225 = vmatprep.subr.mxu0 0.0
      %2226 = vmatpush1.msra.mxu0 0.0
      %2227 = vmatprep.subr.mxu0 0.0
      %2228 = vmatpush1.msra.mxu0 0.0
      %2229 = vmatprep.subr.mxu0 0.0
      %2230 = vmatpush1.msra.mxu0 0.0
      %2231 = vmatprep.subr.mxu0 0.0
      %2232 = vmatpush1.msra.mxu0 0.0
      %2233 = vmatprep.subr.mxu0 0.0
      %2234 = vmatpush1.msra.mxu0 0.0
      %2235 = vmatprep.subr.mxu0 0.0
      %2236 = vmatpush1.msra.mxu0 0.0
      %2237 = vmatprep.mubr.f32.mxu0 0.0
      %2238 = vmatmul.mubr.f32.gmra.mrb[0].mxu0 %v2078
      %v2239 = vpop.f32.mrb[0].mxu0
      %v2240 = vadd.f32 0.0, %v2239
      %v2241 = vpop.f32.mrb[0].mxu0
      %2242 = vmatprep.mubr.f32.mxu0 0.0
      %2243 = vmatmul.mubr.f32.gmra.mrb[0].mxu0 %v2081
      %v2244 = vpop.f32.mrb[0].mxu0
      %v2245 = vadd.f32 0.0, %v2244
      %v2246 = vpop.f32.mrb[0].mxu0
      %2247 = vmatprep.mubr.f32.mxu0 0.0
      %2248 = vmatmul.mubr.f32.gmra.mrb[0].mxu0 %v2084
      %v2249 = vpop.f32.mrb[0].mxu0
      %v2250 = vadd.f32 0.0, %v2249
      %v2251 = vpop.f32.mrb[0].mxu0
      %2252 = vmatprep.mubr.f32.mxu0 0.0
      %2253 = vmatmul.mubr.f32.gmra.mrb[0].mxu0 %v2087
      %v2254 = vpop.f32.mrb[0].mxu0
      %v2255 = vadd.f32 0.0, %v2254
      %v2256 = vpop.f32.mrb[0].mxu0
      %2257 = vmatprep.mubr.f32.mxu0 0.0
      %2258 = vmatmul.mubr.f32.gmra.mrb[0].mxu0 %v2090
      %v2259 = vpop.f32.mrb[0].mxu0
      %v2260 = vadd.f32 0.0, %v2259
      %v2261 = vpop.f32.mrb[0].mxu0
      %2262 = vmatprep.mubr.f32.mxu0 0.0
      %2263 = vmatmul.mubr.f32.gmra.mrb[0].mxu0 %v2093
      %v2264 = vpop.f32.mrb[0].mxu0
      %v2265 = vadd.f32 0.0, %v2264
      %v2266 = vpop.f32.mrb[0].mxu0
      %2267 = vmatprep.mubr.f32.mxu0 0.0
      %2268 = vmatmul.mubr.f32.gmra.mrb[0].mxu0 %v2096
      %v2269 = vpop.f32.mrb[0].mxu0
      %v2270 = vadd.f32 0.0, %v2269
      %v2271 = vpop.f32.mrb[0].mxu0
      %2272 = vmatprep.mubr.f32.mxu0 0.0
      %2273 = vmatmul.mubr.f32.gmra.mrb[0].mxu0 %v2099
      %v2274 = vpop.f32.mrb[0].mxu0
      %v2275 = vadd.f32 0.0, %v2274
      %v2276 = vpop.f32.mrb[0].mxu0
      %2277 = vmatprep.mubr.f32.mxu0 0.0
      %2278 = vmatmul.mubr.f32.gmra.mrb[0].mxu0 %v2102
      %v2279 = vpop.f32.mrb[0].mxu0
      %v2280 = vadd.f32 0.0, %v2279
      %v2281 = vpop.f32.mrb[0].mxu0
      %2282 = vmatprep.mubr.f32.mxu0 0.0
      %2283 = vmatmul.mubr.f32.gmra.mrb[0].mxu0 %v2105
      %v2284 = vpop.f32.mrb[0].mxu0
      %v2285 = vadd.f32 0.0, %v2284
      %v2286 = vpop.f32.mrb[0].mxu0
      %2287 = vmatprep.mubr.f32.mxu0 0.0
      %2288 = vmatmul.mubr.f32.gmra.mrb[0].mxu0 %v2108
      %v2289 = vpop.f32.mrb[0].mxu0
      %v2290 = vadd.f32 0.0, %v2289
      %v2291 = vpop.f32.mrb[0].mxu0
      %2292 = vmatprep.mubr.f32.mxu0 0.0
      %2293 = vmatmul.mubr.f32.gmra.mrb[0].mxu0 %v2111
      %v2294 = vpop.f32.mrb[0].mxu0
      %v2295 = vadd.f32 0.0, %v2294
      %v2296 = vpop.f32.mrb[0].mxu0
      %2297 = vmatprep.mubr.f32.mxu0 0.0
      %2298 = vmatmul.mubr.f32.gmra.mrb[0].mxu0 %v2114
      %v2299 = vpop.f32.mrb[0].mxu0
      %v2300 = vadd.f32 0.0, %v2299
      %v2301 = vpop.f32.mrb[0].mxu0
      %2302 = vmatprep.mubr.f32.mxu0 0.0
      %2303 = vmatmul.mubr.f32.gmra.mrb[0].mxu0 %v2117
      %v2304 = vpop.f32.mrb[0].mxu0
      %v2305 = vadd.f32 0.0, %v2304
      %v2306 = vpop.f32.mrb[0].mxu0
      %2307 = vmatprep.mubr.f32.mxu0 0.0
      %2308 = vmatmul.mubr.f32.gmra.mrb[0].mxu0 %v2120
      %v2309 = vpop.f32.mrb[0].mxu0
      %v2310 = vadd.f32 0.0, %v2309
      %v2311 = vpop.f32.mrb[0].mxu0
      %2312 = vmatprep.mubr.f32.mxu0 0.0
      %2313 = vmatmul.mubr.f32.gmra.mrb[0].mxu0 %v2123
      %v2314 = vpop.f32.mrb[0].mxu0
      %v2315 = vadd.f32 0.0, %v2314
      %v2316 = vpop.f32.mrb[0].mxu0
      %2317 = vmatprep.mubr.f32.mxu0 0.0
      %2318 = vmatmul.mubr.f32.gmra.mrb[0].mxu0 %v2126
      %v2319 = vpop.f32.mrb[0].mxu0
      %v2320 = vadd.f32 0.0, %v2319
      %v2321 = vpop.f32.mrb[0].mxu0
      %2322 = vmatprep.mubr.f32.mxu0 0.0
      %2323 = vmatmul.mubr.f32.gmra.mrb[0].mxu0 %v2129
      %v2324 = vpop.f32.mrb[0].mxu0
      %v2325 = vadd.f32 0.0, %v2324
      %v2326 = vpop.f32.mrb[0].mxu0
      %2327 = vmatprep.mubr.f32.mxu0 0.0
      %2328 = vmatmul.mubr.f32.gmra.mrb[0].mxu0 %v2132
      %v2329 = vpop.f32.mrb[0].mxu0
      %v2330 = vadd.f32 0.0, %v2329
      %v2331 = vpop.f32.mrb[0].mxu0
      %2332 = vmatprep.mubr.f32.mxu0 0.0
      %2333 = vmatmul.mubr.f32.gmra.mrb[0].mxu0 %v2135
      %v2334 = vpop.f32.mrb[0].mxu0
      %v2335 = vadd.f32 0.0, %v2334
      %v2336 = vpop.f32.mrb[0].mxu0
      %2337 = vmatprep.mubr.f32.mxu0 0.0
      %2338 = vmatmul.mubr.f32.gmra.mrb[0].mxu0 %v2138
      %v2339 = vpop.f32.mrb[0].mxu0
      %v2340 = vadd.f32 0.0, %v2339
      %v2341 = vpop.f32.mrb[0].mxu0
      %2342 = vmatprep.mubr.f32.mxu0 0.0
      %2343 = vmatmul.mubr.f32.gmra.mrb[0].mxu0 %v2141
      %v2344 = vpop.f32.mrb[0].mxu0
      %v2345 = vadd.f32 0.0, %v2344
      %v2346 = vpop.f32.mrb[0].mxu0
      %2347 = vmatprep.mubr.f32.mxu0 0.0
      %2348 = vmatmul.mubr.f32.gmra.mrb[0].mxu0 %v2144
      %v2349 = vpop.f32.mrb[0].mxu0
      %v2350 = vadd.f32 0.0, %v2349
      %v2351 = vpop.f32.mrb[0].mxu0
      %2352 = vmatprep.mubr.f32.mxu0 0.0
      %2353 = vmatmul.mubr.f32.gmra.mrb[0].mxu0 %v2147
      %v2354 = vpop.f32.mrb[0].mxu0
      %v2355 = vadd.f32 0.0, %v2354
      %v2356 = vpop.f32.mrb[0].mxu0
      %2357 = vmatprep.mubr.f32.mxu0 0.0
      %2358 = vmatmul.mubr.f32.gmra.mrb[0].mxu0 %v2150
      %v2359 = vpop.f32.mrb[0].mxu0
      %v2360 = vadd.f32 0.0, %v2359
      %v2361 = vpop.f32.mrb[0].mxu0
      %2362 = vmatprep.mubr.f32.mxu0 0.0
      %2363 = vmatmul.mubr.f32.gmra.mrb[0].mxu0 %v2153
      %v2364 = vpop.f32.mrb[0].mxu0
      %v2365 = vadd.f32 0.0, %v2364
      %v2366 = vpop.f32.mrb[0].mxu0
      %2367 = vmatprep.mubr.f32.mxu0 0.0
      %2368 = vmatmul.mubr.f32.gmra.mrb[0].mxu0 %v2156
      %v2369 = vpop.f32.mrb[0].mxu0
      %v2370 = vadd.f32 0.0, %v2369
      %v2371 = vpop.f32.mrb[0].mxu0
      %2372 = vmatprep.mubr.f32.mxu0 0.0
      %2373 = vmatmul.mubr.f32.gmra.mrb[0].mxu0 %v2159
      %v2374 = vpop.f32.mrb[0].mxu0
      %v2375 = vadd.f32 0.0, %v2374
      %v2376 = vpop.f32.mrb[0].mxu0
      %2377 = vmatprep.mubr.f32.mxu0 0.0
      %2378 = vmatmul.mubr.f32.gmra.mrb[0].mxu0 %v2162
      %v2379 = vpop.f32.mrb[0].mxu0
      %v2380 = vadd.f32 0.0, %v2379
      %v2381 = vpop.f32.mrb[0].mxu0
      %2382 = vmatprep.mubr.f32.mxu0 0.0
      %2383 = vmatmul.mubr.f32.gmra.mrb[0].mxu0 %v2165
      %v2384 = vpop.f32.mrb[0].mxu0
      %v2385 = vadd.f32 0.0, %v2384
      %v2386 = vpop.f32.mrb[0].mxu0
      %2387 = vmatprep.mubr.f32.mxu0 0.0
      %2388 = vmatmul.mubr.f32.gmra.mrb[0].mxu0 %v2168
      %v2389 = vpop.f32.mrb[0].mxu0
      %v2390 = vadd.f32 0.0, %v2389
      %v2391 = vpop.f32.mrb[0].mxu0
      %2392 = vmatprep.mubr.f32.mxu0 0.0
      %2393 = vmatmul.mubr.f32.gmra.mrb[0].mxu0 %v2171
      %v2394 = vpop.f32.mrb[0].mxu0
      %v2395 = vadd.f32 0.0, %v2394
      %v2396 = vpop.f32.mrb[0].mxu0
      %2397 = vdwg.mxu0
      %v2398 = vadd.f32 %v2010, %v2240
      %v2399 = vadd.f32 %v2011, %v2245
      %v2400 = vadd.f32 %v2012, %v2250
      %v2401 = vadd.f32 %v2013, %v2255
      %v2402 = vadd.f32 %v2014, %v2260
      %v2403 = vadd.f32 %v2015, %v2265
      %v2404 = vadd.f32 %v2016, %v2270
      %v2405 = vadd.f32 %v2017, %v2275
      %v2406 = vadd.f32 %v2018, %v2280
      %v2407 = vadd.f32 %v2019, %v2285
      %v2408 = vadd.f32 %v2020, %v2290
      %v2409 = vadd.f32 %v2021, %v2295
      %v2410 = vadd.f32 %v2022, %v2300
      %v2411 = vadd.f32 %v2023, %v2305
      %v2412 = vadd.f32 %v2024, %v2310
      %v2413 = vadd.f32 %v2025, %v2315
      %v2414 = vadd.f32 %v2026, %v2320
      %v2415 = vadd.f32 %v2027, %v2325
      %v2416 = vadd.f32 %v2028, %v2330
      %v2417 = vadd.f32 %v2029, %v2335
      %v2418 = vadd.f32 %v2030, %v2340
      %v2419 = vadd.f32 %v2031, %v2345
      %v2420 = vadd.f32 %v2032, %v2350
      %v2421 = vadd.f32 %v2033, %v2355
      %v2422 = vadd.f32 %v2034, %v2360
      %v2423 = vadd.f32 %v2035, %v2365
      %v2424 = vadd.f32 %v2036, %v2370
      %v2425 = vadd.f32 %v2037, %v2375
      %v2426 = vadd.f32 %v2038, %v2380
      %v2427 = vadd.f32 %v2039, %v2385
      %v2428 = vadd.f32 %v2040, %v2390
      %v2429 = vadd.f32 %v2041, %v2395
      %v2430 = vld [vmem:[%s451 + $0x2] sm:$0xff]
      %v2431 = vld [vmem:[%s451 + $0xa] sm:$0xff]
      %v2432 = vld [vmem:[%s451 + $0x1a] sm:$0xff]
      %v2433 = vld [vmem:[%s451 + $0x22] sm:$0xff]
      %v2434 = vld [vmem:[%s451 + $0x32] sm:$0xff]
      %v2435 = vld [vmem:[%s451 + $0x3a] sm:$0xff]
      %v2436 = vld [vmem:[%s451 + $0x4a] sm:$0xff]
      %v2437 = vld [vmem:[%s451 + $0x52] sm:$0xff]
      %v2438 = vld [vmem:[%s451 + $0x62] sm:$0xff]
      %v2439 = vld [vmem:[%s451 + $0x6a] sm:$0xff]
      %v2440 = vld [vmem:[%s451 + $0x7a] sm:$0xff]
      %v2441 = vld [vmem:[%s451 + $0x82] sm:$0xff]
      %v2442 = vld [vmem:[%s451 + $0x92] sm:$0xff]
      %v2443 = vld [vmem:[%s451 + $0x9a] sm:$0xff]
      %v2444 = vld [vmem:[%s451 + $0xaa] sm:$0xff]
      %v2445 = vld [vmem:[%s451 + $0xb2] sm:$0xff]
      %v2446 = vld [vmem:[%s451 + $0xc2] sm:$0xff]
      %v2447 = vld [vmem:[%s451 + $0xca] sm:$0xff]
      %v2448 = vld [vmem:[%s451 + $0xda] sm:$0xff]
      %v2449 = vld [vmem:[%s451 + $0xe2] sm:$0xff]
      %v2450 = vld [vmem:[%s451 + $0xf2] sm:$0xff]
      %v2451 = vld [vmem:[%s451 + $0xfa] sm:$0xff]
      %v2452 = vld [vmem:[%s451 + $0x10a] sm:$0xff]
      %v2453 = vld [vmem:[%s451 + $0x112] sm:$0xff]
      %v2454 = vld [vmem:[%s451 + $0x122] sm:$0xff]
      %v2455 = vld [vmem:[%s451 + $0x12a] sm:$0xff]
      %v2456 = vld [vmem:[%s451 + $0x13a] sm:$0xff]
      %v2457 = vld [vmem:[%s451 + $0x142] sm:$0xff]
      %v2458 = vld [vmem:[%s451 + $0x152] sm:$0xff]
      %v2459 = vld [vmem:[%s451 + $0x15a] sm:$0xff]
      %v2460 = vld [vmem:[%s451 + $0x16a] sm:$0xff]
      %v2461 = vld [vmem:[%s451 + $0x172] sm:$0xff]
      %s2462 = scalar_lea.vmem %s3, 80
      %v2463 = vld [vmem:[%s2462] sm:$0xff]
      %v2464 = vld [vmem:[%s2462 + $0x8] sm:$0xff]
      %v2466 = vsel %vm405, %v2430, 0
      %v2469 = vsel %vm405, %v2431, 0
      %v2472 = vsel %vm405, %v2432, 0
      %v2475 = vsel %vm405, %v2433, 0
      %v2478 = vsel %vm405, %v2434, 0
      %v2481 = vsel %vm405, %v2435, 0
      %v2484 = vsel %vm405, %v2436, 0
      %v2487 = vsel %vm405, %v2437, 0
      %v2490 = vsel %vm405, %v2438, 0
      %v2493 = vsel %vm405, %v2439, 0
      %v2496 = vsel %vm405, %v2440, 0
      %v2499 = vsel %vm405, %v2441, 0
      %v2502 = vsel %vm405, %v2442, 0
      %v2505 = vsel %vm405, %v2443, 0
      %v2508 = vsel %vm405, %v2444, 0
      %v2511 = vsel %vm405, %v2445, 0
      %v2514 = vsel %vm405, %v2446, 0
      %v2517 = vsel %vm405, %v2447, 0
      %v2520 = vsel %vm405, %v2448, 0
      %v2523 = vsel %vm405, %v2449, 0
      %v2526 = vsel %vm405, %v2450, 0
      %v2529 = vsel %vm405, %v2451, 0
      %v2532 = vsel %vm405, %v2452, 0
      %v2535 = vsel %vm405, %v2453, 0
      %v2538 = vsel %vm405, %v2454, 0
      %v2541 = vsel %vm405, %v2455, 0
      %v2544 = vsel %vm405, %v2456, 0
      %v2547 = vsel %vm405, %v2457, 0
      %v2550 = vsel %vm405, %v2458, 0
      %v2553 = vsel %vm405, %v2459, 0
      %v2556 = vsel %vm405, %v2460, 0
      %v2559 = vsel %vm405, %v2461, 0
      %2561 = vmatprep.subr.mxu0 0.0
      %2562 = vmatpush1.msra.mxu0 %v2463
      %2563 = vmatprep.subr.mxu0 0.0
      %2564 = vmatpush1.msra.mxu0 %v2464
      %2565 = vmatprep.subr.mxu0 0.0
      %2566 = vmatpush1.msra.mxu0 0.0
      %2567 = vmatprep.subr.mxu0 0.0
      %2568 = vmatpush1.msra.mxu0 0.0
      %2569 = vmatprep.subr.mxu0 0.0
      %2570 = vmatpush1.msra.mxu0 0.0
      %2571 = vmatprep.subr.mxu0 0.0
      %2572 = vmatpush1.msra.mxu0 0.0
      %2573 = vmatprep.subr.mxu0 0.0
      %2574 = vmatpush1.msra.mxu0 0.0
      %2575 = vmatprep.subr.mxu0 0.0
      %2576 = vmatpush1.msra.mxu0 0.0
      %2577 = vmatprep.subr.mxu0 0.0
      %2578 = vmatpush1.msra.mxu0 0.0
      %2579 = vmatprep.subr.mxu0 0.0
      %2580 = vmatpush1.msra.mxu0 0.0
      %2581 = vmatprep.subr.mxu0 0.0
      %2582 = vmatpush1.msra.mxu0 0.0
      %2583 = vmatprep.subr.mxu0 0.0
      %2584 = vmatpush1.msra.mxu0 0.0
      %2585 = vmatprep.subr.mxu0 0.0
      %2586 = vmatpush1.msra.mxu0 0.0
      %2587 = vmatprep.subr.mxu0 0.0
      %2588 = vmatpush1.msra.mxu0 0.0
      %2589 = vmatprep.subr.mxu0 0.0
      %2590 = vmatpush1.msra.mxu0 0.0
      %2591 = vmatprep.subr.mxu0 0.0
      %2592 = vmatpush1.msra.mxu0 0.0
      %2593 = vmatprep.subr.mxu0 0.0
      %2594 = vmatpush1.msra.mxu0 0.0
      %2595 = vmatprep.subr.mxu0 0.0
      %2596 = vmatpush1.msra.mxu0 0.0
      %2597 = vmatprep.subr.mxu0 0.0
      %2598 = vmatpush1.msra.mxu0 0.0
      %2599 = vmatprep.subr.mxu0 0.0
      %2600 = vmatpush1.msra.mxu0 0.0
      %2601 = vmatprep.subr.mxu0 0.0
      %2602 = vmatpush1.msra.mxu0 0.0
      %2603 = vmatprep.subr.mxu0 0.0
      %2604 = vmatpush1.msra.mxu0 0.0
      %2605 = vmatprep.subr.mxu0 0.0
      %2606 = vmatpush1.msra.mxu0 0.0
      %2607 = vmatprep.subr.mxu0 0.0
      %2608 = vmatpush1.msra.mxu0 0.0
      %2609 = vmatprep.subr.mxu0 0.0
      %2610 = vmatpush1.msra.mxu0 0.0
      %2611 = vmatprep.subr.mxu0 0.0
      %2612 = vmatpush1.msra.mxu0 0.0
      %2613 = vmatprep.subr.mxu0 0.0
      %2614 = vmatpush1.msra.mxu0 0.0
      %2615 = vmatprep.subr.mxu0 0.0
      %2616 = vmatpush1.msra.mxu0 0.0
      %2617 = vmatprep.subr.mxu0 0.0
      %2618 = vmatpush1.msra.mxu0 0.0
      %2619 = vmatprep.subr.mxu0 0.0
      %2620 = vmatpush1.msra.mxu0 0.0
      %2621 = vmatprep.subr.mxu0 0.0
      %2622 = vmatpush1.msra.mxu0 0.0
      %2623 = vmatprep.subr.mxu0 0.0
      %2624 = vmatpush1.msra.mxu0 0.0
      %2625 = vmatprep.mubr.f32.mxu0 0.0
      %2626 = vmatmul.mubr.f32.gmra.mrb[0].mxu0 %v2466
      %v2627 = vpop.f32.mrb[0].mxu0
      %v2628 = vadd.f32 0.0, %v2627
      %v2629 = vpop.f32.mrb[0].mxu0
      %2630 = vmatprep.mubr.f32.mxu0 0.0
      %2631 = vmatmul.mubr.f32.gmra.mrb[0].mxu0 %v2469
      %v2632 = vpop.f32.mrb[0].mxu0
      %v2633 = vadd.f32 0.0, %v2632
      %v2634 = vpop.f32.mrb[0].mxu0
      %2635 = vmatprep.mubr.f32.mxu0 0.0
      %2636 = vmatmul.mubr.f32.gmra.mrb[0].mxu0 %v2472
      %v2637 = vpop.f32.mrb[0].mxu0
      %v2638 = vadd.f32 0.0, %v2637
      %v2639 = vpop.f32.mrb[0].mxu0
      %2640 = vmatprep.mubr.f32.mxu0 0.0
      %2641 = vmatmul.mubr.f32.gmra.mrb[0].mxu0 %v2475
      %v2642 = vpop.f32.mrb[0].mxu0
      %v2643 = vadd.f32 0.0, %v2642
      %v2644 = vpop.f32.mrb[0].mxu0
      %2645 = vmatprep.mubr.f32.mxu0 0.0
      %2646 = vmatmul.mubr.f32.gmra.mrb[0].mxu0 %v2478
      %v2647 = vpop.f32.mrb[0].mxu0
      %v2648 = vadd.f32 0.0, %v2647
      %v2649 = vpop.f32.mrb[0].mxu0
      %2650 = vmatprep.mubr.f32.mxu0 0.0
      %2651 = vmatmul.mubr.f32.gmra.mrb[0].mxu0 %v2481
      %v2652 = vpop.f32.mrb[0].mxu0
      %v2653 = vadd.f32 0.0, %v2652
      %v2654 = vpop.f32.mrb[0].mxu0
      %2655 = vmatprep.mubr.f32.mxu0 0.0
      %2656 = vmatmul.mubr.f32.gmra.mrb[0].mxu0 %v2484
      %v2657 = vpop.f32.mrb[0].mxu0
      %v2658 = vadd.f32 0.0, %v2657
      %v2659 = vpop.f32.mrb[0].mxu0
      %2660 = vmatprep.mubr.f32.mxu0 0.0
      %2661 = vmatmul.mubr.f32.gmra.mrb[0].mxu0 %v2487
      %v2662 = vpop.f32.mrb[0].mxu0
      %v2663 = vadd.f32 0.0, %v2662
      %v2664 = vpop.f32.mrb[0].mxu0
      %2665 = vmatprep.mubr.f32.mxu0 0.0
      %2666 = vmatmul.mubr.f32.gmra.mrb[0].mxu0 %v2490
      %v2667 = vpop.f32.mrb[0].mxu0
      %v2668 = vadd.f32 0.0, %v2667
      %v2669 = vpop.f32.mrb[0].mxu0
      %2670 = vmatprep.mubr.f32.mxu0 0.0
      %2671 = vmatmul.mubr.f32.gmra.mrb[0].mxu0 %v2493
      %v2672 = vpop.f32.mrb[0].mxu0
      %v2673 = vadd.f32 0.0, %v2672
      %v2674 = vpop.f32.mrb[0].mxu0
      %2675 = vmatprep.mubr.f32.mxu0 0.0
      %2676 = vmatmul.mubr.f32.gmra.mrb[0].mxu0 %v2496
      %v2677 = vpop.f32.mrb[0].mxu0
      %v2678 = vadd.f32 0.0, %v2677
      %v2679 = vpop.f32.mrb[0].mxu0
      %2680 = vmatprep.mubr.f32.mxu0 0.0
      %2681 = vmatmul.mubr.f32.gmra.mrb[0].mxu0 %v2499
      %v2682 = vpop.f32.mrb[0].mxu0
      %v2683 = vadd.f32 0.0, %v2682
      %v2684 = vpop.f32.mrb[0].mxu0
      %2685 = vmatprep.mubr.f32.mxu0 0.0
      %2686 = vmatmul.mubr.f32.gmra.mrb[0].mxu0 %v2502
      %v2687 = vpop.f32.mrb[0].mxu0
      %v2688 = vadd.f32 0.0, %v2687
      %v2689 = vpop.f32.mrb[0].mxu0
      %2690 = vmatprep.mubr.f32.mxu0 0.0
      %2691 = vmatmul.mubr.f32.gmra.mrb[0].mxu0 %v2505
      %v2692 = vpop.f32.mrb[0].mxu0
      %v2693 = vadd.f32 0.0, %v2692
      %v2694 = vpop.f32.mrb[0].mxu0
      %2695 = vmatprep.mubr.f32.mxu0 0.0
      %2696 = vmatmul.mubr.f32.gmra.mrb[0].mxu0 %v2508
      %v2697 = vpop.f32.mrb[0].mxu0
      %v2698 = vadd.f32 0.0, %v2697
      %v2699 = vpop.f32.mrb[0].mxu0
      %2700 = vmatprep.mubr.f32.mxu0 0.0
      %2701 = vmatmul.mubr.f32.gmra.mrb[0].mxu0 %v2511
      %v2702 = vpop.f32.mrb[0].mxu0
      %v2703 = vadd.f32 0.0, %v2702
      %v2704 = vpop.f32.mrb[0].mxu0
      %2705 = vmatprep.mubr.f32.mxu0 0.0
      %2706 = vmatmul.mubr.f32.gmra.mrb[0].mxu0 %v2514
      %v2707 = vpop.f32.mrb[0].mxu0
      %v2708 = vadd.f32 0.0, %v2707
      %v2709 = vpop.f32.mrb[0].mxu0
      %2710 = vmatprep.mubr.f32.mxu0 0.0
      %2711 = vmatmul.mubr.f32.gmra.mrb[0].mxu0 %v2517
      %v2712 = vpop.f32.mrb[0].mxu0
      %v2713 = vadd.f32 0.0, %v2712
      %v2714 = vpop.f32.mrb[0].mxu0
      %2715 = vmatprep.mubr.f32.mxu0 0.0
      %2716 = vmatmul.mubr.f32.gmra.mrb[0].mxu0 %v2520
      %v2717 = vpop.f32.mrb[0].mxu0
      %v2718 = vadd.f32 0.0, %v2717
      %v2719 = vpop.f32.mrb[0].mxu0
      %2720 = vmatprep.mubr.f32.mxu0 0.0
      %2721 = vmatmul.mubr.f32.gmra.mrb[0].mxu0 %v2523
      %v2722 = vpop.f32.mrb[0].mxu0
      %v2723 = vadd.f32 0.0, %v2722
      %v2724 = vpop.f32.mrb[0].mxu0
      %2725 = vmatprep.mubr.f32.mxu0 0.0
      %2726 = vmatmul.mubr.f32.gmra.mrb[0].mxu0 %v2526
      %v2727 = vpop.f32.mrb[0].mxu0
      %v2728 = vadd.f32 0.0, %v2727
      %v2729 = vpop.f32.mrb[0].mxu0
      %2730 = vmatprep.mubr.f32.mxu0 0.0
      %2731 = vmatmul.mubr.f32.gmra.mrb[0].mxu0 %v2529
      %v2732 = vpop.f32.mrb[0].mxu0
      %v2733 = vadd.f32 0.0, %v2732
      %v2734 = vpop.f32.mrb[0].mxu0
      %2735 = vmatprep.mubr.f32.mxu0 0.0
      %2736 = vmatmul.mubr.f32.gmra.mrb[0].mxu0 %v2532
      %v2737 = vpop.f32.mrb[0].mxu0
      %v2738 = vadd.f32 0.0, %v2737
      %v2739 = vpop.f32.mrb[0].mxu0
      %2740 = vmatprep.mubr.f32.mxu0 0.0
      %2741 = vmatmul.mubr.f32.gmra.mrb[0].mxu0 %v2535
      %v2742 = vpop.f32.mrb[0].mxu0
      %v2743 = vadd.f32 0.0, %v2742
      %v2744 = vpop.f32.mrb[0].mxu0
      %2745 = vmatprep.mubr.f32.mxu0 0.0
      %2746 = vmatmul.mubr.f32.gmra.mrb[0].mxu0 %v2538
      %v2747 = vpop.f32.mrb[0].mxu0
      %v2748 = vadd.f32 0.0, %v2747
      %v2749 = vpop.f32.mrb[0].mxu0
      %2750 = vmatprep.mubr.f32.mxu0 0.0
      %2751 = vmatmul.mubr.f32.gmra.mrb[0].mxu0 %v2541
      %v2752 = vpop.f32.mrb[0].mxu0
      %v2753 = vadd.f32 0.0, %v2752
      %v2754 = vpop.f32.mrb[0].mxu0
      %2755 = vmatprep.mubr.f32.mxu0 0.0
      %2756 = vmatmul.mubr.f32.gmra.mrb[0].mxu0 %v2544
      %v2757 = vpop.f32.mrb[0].mxu0
      %v2758 = vadd.f32 0.0, %v2757
      %v2759 = vpop.f32.mrb[0].mxu0
      %2760 = vmatprep.mubr.f32.mxu0 0.0
      %2761 = vmatmul.mubr.f32.gmra.mrb[0].mxu0 %v2547
      %v2762 = vpop.f32.mrb[0].mxu0
      %v2763 = vadd.f32 0.0, %v2762
      %v2764 = vpop.f32.mrb[0].mxu0
      %2765 = vmatprep.mubr.f32.mxu0 0.0
      %2766 = vmatmul.mubr.f32.gmra.mrb[0].mxu0 %v2550
      %v2767 = vpop.f32.mrb[0].mxu0
      %v2768 = vadd.f32 0.0, %v2767
      %v2769 = vpop.f32.mrb[0].mxu0
      %2770 = vmatprep.mubr.f32.mxu0 0.0
      %2771 = vmatmul.mubr.f32.gmra.mrb[0].mxu0 %v2553
      %v2772 = vpop.f32.mrb[0].mxu0
      %v2773 = vadd.f32 0.0, %v2772
      %v2774 = vpop.f32.mrb[0].mxu0
      %2775 = vmatprep.mubr.f32.mxu0 0.0
      %2776 = vmatmul.mubr.f32.gmra.mrb[0].mxu0 %v2556
      %v2777 = vpop.f32.mrb[0].mxu0
      %v2778 = vadd.f32 0.0, %v2777
      %v2779 = vpop.f32.mrb[0].mxu0
      %2780 = vmatprep.mubr.f32.mxu0 0.0
      %2781 = vmatmul.mubr.f32.gmra.mrb[0].mxu0 %v2559
      %v2782 = vpop.f32.mrb[0].mxu0
      %v2783 = vadd.f32 0.0, %v2782
      %v2784 = vpop.f32.mrb[0].mxu0
      %2785 = vdwg.mxu0
      %v2786 = vadd.f32 %v2398, %v2628
      %v2787 = vadd.f32 %v2399, %v2633
      %v2788 = vadd.f32 %v2400, %v2638
      %v2789 = vadd.f32 %v2401, %v2643
      %v2790 = vadd.f32 %v2402, %v2648
      %v2791 = vadd.f32 %v2403, %v2653
      %v2792 = vadd.f32 %v2404, %v2658
      %v2793 = vadd.f32 %v2405, %v2663
      %v2794 = vadd.f32 %v2406, %v2668
      %v2795 = vadd.f32 %v2407, %v2673
      %v2796 = vadd.f32 %v2408, %v2678
      %v2797 = vadd.f32 %v2409, %v2683
      %v2798 = vadd.f32 %v2410, %v2688
      %v2799 = vadd.f32 %v2411, %v2693
      %v2800 = vadd.f32 %v2412, %v2698
      %v2801 = vadd.f32 %v2413, %v2703
      %v2802 = vadd.f32 %v2414, %v2708
      %v2803 = vadd.f32 %v2415, %v2713
      %v2804 = vadd.f32 %v2416, %v2718
      %v2805 = vadd.f32 %v2417, %v2723
      %v2806 = vadd.f32 %v2418, %v2728
      %v2807 = vadd.f32 %v2419, %v2733
      %v2808 = vadd.f32 %v2420, %v2738
      %v2809 = vadd.f32 %v2421, %v2743
      %v2810 = vadd.f32 %v2422, %v2748
      %v2811 = vadd.f32 %v2423, %v2753
      %v2812 = vadd.f32 %v2424, %v2758
      %v2813 = vadd.f32 %v2425, %v2763
      %v2814 = vadd.f32 %v2426, %v2768
      %v2815 = vadd.f32 %v2427, %v2773
      %v2816 = vadd.f32 %v2428, %v2778
      %v2817 = vadd.f32 %v2429, %v2783
      %s2818 = scalar_lea.vmem [#allocation2], 48
      %v2819 = vld [vmem:[%s2818] sm:$0xff]
      %v2820 = vld [vmem:[%s2818 + $0x8] sm:$0xff]
      %v2821 = vld [vmem:[%s2818 + $0x18] sm:$0xff]
      %v2822 = vld [vmem:[%s2818 + $0x20] sm:$0xff]
      %v2823 = vld [vmem:[%s2818 + $0x30] sm:$0xff]
      %v2824 = vld [vmem:[%s2818 + $0x38] sm:$0xff]
      %v2825 = vld [vmem:[%s2818 + $0x48] sm:$0xff]
      %v2826 = vld [vmem:[%s2818 + $0x50] sm:$0xff]
      %v2827 = vld [vmem:[%s2818 + $0x60] sm:$0xff]
      %v2828 = vld [vmem:[%s2818 + $0x68] sm:$0xff]
      %v2829 = vld [vmem:[%s2818 + $0x78] sm:$0xff]
      %v2830 = vld [vmem:[%s2818 + $0x80] sm:$0xff]
      %v2831 = vld [vmem:[%s2818 + $0x90] sm:$0xff]
      %v2832 = vld [vmem:[%s2818 + $0x98] sm:$0xff]
      %v2833 = vld [vmem:[%s2818 + $0xa8] sm:$0xff]
      %v2834 = vld [vmem:[%s2818 + $0xb0] sm:$0xff]
      %v2835 = vld [vmem:[%s2818 + $0xc0] sm:$0xff]
      %v2836 = vld [vmem:[%s2818 + $0xc8] sm:$0xff]
      %v2837 = vld [vmem:[%s2818 + $0xd8] sm:$0xff]
      %v2838 = vld [vmem:[%s2818 + $0xe0] sm:$0xff]
      %v2839 = vld [vmem:[%s2818 + $0xf0] sm:$0xff]
      %v2840 = vld [vmem:[%s2818 + $0xf8] sm:$0xff]
      %v2841 = vld [vmem:[%s2818 + $0x108] sm:$0xff]
      %v2842 = vld [vmem:[%s2818 + $0x110] sm:$0xff]
      %v2843 = vld [vmem:[%s2818 + $0x120] sm:$0xff]
      %v2844 = vld [vmem:[%s2818 + $0x128] sm:$0xff]
      %v2845 = vld [vmem:[%s2818 + $0x138] sm:$0xff]
      %v2846 = vld [vmem:[%s2818 + $0x140] sm:$0xff]
      %v2847 = vld [vmem:[%s2818 + $0x150] sm:$0xff]
      %v2848 = vld [vmem:[%s2818 + $0x158] sm:$0xff]
      %v2849 = vld [vmem:[%s2818 + $0x168] sm:$0xff]
      %v2850 = vld [vmem:[%s2818 + $0x170] sm:$0xff]
      %s2851 = scalar_lea.vmem %s3, 96
      %v2852 = vld [vmem:[%s2851] sm:$0xff]
      %v2853 = vld [vmem:[%s2851 + $0x8] sm:$0xff]
      %v2855 = vsel %vm405, %v2819, 0
      %v2858 = vsel %vm405, %v2820, 0
      %v2861 = vsel %vm405, %v2821, 0
      %v2864 = vsel %vm405, %v2822, 0
      %v2867 = vsel %vm405, %v2823, 0
      %v2870 = vsel %vm405, %v2824, 0
      %v2873 = vsel %vm405, %v2825, 0
      %v2876 = vsel %vm405, %v2826, 0
      %v2879 = vsel %vm405, %v2827, 0
      %v2882 = vsel %vm405, %v2828, 0
      %v2885 = vsel %vm405, %v2829, 0
      %v2888 = vsel %vm405, %v2830, 0
      %v2891 = vsel %vm405, %v2831, 0
      %v2894 = vsel %vm405, %v2832, 0
      %v2897 = vsel %vm405, %v2833, 0
      %v2900 = vsel %vm405, %v2834, 0
      %v2903 = vsel %vm405, %v2835, 0
      %v2906 = vsel %vm405, %v2836, 0
      %v2909 = vsel %vm405, %v2837, 0
      %v2912 = vsel %vm405, %v2838, 0
      %v2915 = vsel %vm405, %v2839, 0
      %v2918 = vsel %vm405, %v2840, 0
      %v2921 = vsel %vm405, %v2841, 0
      %v2924 = vsel %vm405, %v2842, 0
      %v2927 = vsel %vm405, %v2843, 0
      %v2930 = vsel %vm405, %v2844, 0
      %v2933 = vsel %vm405, %v2845, 0
      %v2936 = vsel %vm405, %v2846, 0
      %v2939 = vsel %vm405, %v2847, 0
      %v2942 = vsel %vm405, %v2848, 0
      %v2945 = vsel %vm405, %v2849, 0
      %v2948 = vsel %vm405, %v2850, 0
      %2950 = vmatprep.subr.mxu0 0.0
      %2951 = vmatpush1.msra.mxu0 %v2852
      %2952 = vmatprep.subr.mxu0 0.0
      %2953 = vmatpush1.msra.mxu0 %v2853
      %2954 = vmatprep.subr.mxu0 0.0
      %2955 = vmatpush1.msra.mxu0 0.0
      %2956 = vmatprep.subr.mxu0 0.0
      %2957 = vmatpush1.msra.mxu0 0.0
      %2958 = vmatprep.subr.mxu0 0.0
      %2959 = vmatpush1.msra.mxu0 0.0
      %2960 = vmatprep.subr.mxu0 0.0
      %2961 = vmatpush1.msra.mxu0 0.0
      %2962 = vmatprep.subr.mxu0 0.0
      %2963 = vmatpush1.msra.mxu0 0.0
      %2964 = vmatprep.subr.mxu0 0.0
      %2965 = vmatpush1.msra.mxu0 0.0
      %2966 = vmatprep.subr.mxu0 0.0
      %2967 = vmatpush1.msra.mxu0 0.0
      %2968 = vmatprep.subr.mxu0 0.0
      %2969 = vmatpush1.msra.mxu0 0.0
      %2970 = vmatprep.subr.mxu0 0.0
      %2971 = vmatpush1.msra.mxu0 0.0
      %2972 = vmatprep.subr.mxu0 0.0
      %2973 = vmatpush1.msra.mxu0 0.0
      %2974 = vmatprep.subr.mxu0 0.0
      %2975 = vmatpush1.msra.mxu0 0.0
      %2976 = vmatprep.subr.mxu0 0.0
      %2977 = vmatpush1.msra.mxu0 0.0
      %2978 = vmatprep.subr.mxu0 0.0
      %2979 = vmatpush1.msra.mxu0 0.0
      %2980 = vmatprep.subr.mxu0 0.0
      %2981 = vmatpush1.msra.mxu0 0.0
      %2982 = vmatprep.subr.mxu0 0.0
      %2983 = vmatpush1.msra.mxu0 0.0
      %2984 = vmatprep.subr.mxu0 0.0
      %2985 = vmatpush1.msra.mxu0 0.0
      %2986 = vmatprep.subr.mxu0 0.0
      %2987 = vmatpush1.msra.mxu0 0.0
      %2988 = vmatprep.subr.mxu0 0.0
      %2989 = vmatpush1.msra.mxu0 0.0
      %2990 = vmatprep.subr.mxu0 0.0
      %2991 = vmatpush1.msra.mxu0 0.0
      %2992 = vmatprep.subr.mxu0 0.0
      %2993 = vmatpush1.msra.mxu0 0.0
      %2994 = vmatprep.subr.mxu0 0.0
      %2995 = vmatpush1.msra.mxu0 0.0
      %2996 = vmatprep.subr.mxu0 0.0
      %2997 = vmatpush1.msra.mxu0 0.0
      %2998 = vmatprep.subr.mxu0 0.0
      %2999 = vmatpush1.msra.mxu0 0.0
      %3000 = vmatprep.subr.mxu0 0.0
      %3001 = vmatpush1.msra.mxu0 0.0
      %3002 = vmatprep.subr.mxu0 0.0
      %3003 = vmatpush1.msra.mxu0 0.0
      %3004 = vmatprep.subr.mxu0 0.0
      %3005 = vmatpush1.msra.mxu0 0.0
      %3006 = vmatprep.subr.mxu0 0.0
      %3007 = vmatpush1.msra.mxu0 0.0
      %3008 = vmatprep.subr.mxu0 0.0
      %3009 = vmatpush1.msra.mxu0 0.0
      %3010 = vmatprep.subr.mxu0 0.0
      %3011 = vmatpush1.msra.mxu0 0.0
      %3012 = vmatprep.subr.mxu0 0.0
      %3013 = vmatpush1.msra.mxu0 0.0
      %3014 = vmatprep.mubr.f32.mxu0 0.0
      %3015 = vmatmul.mubr.f32.gmra.mrb[0].mxu0 %v2855
      %v3016 = vpop.f32.mrb[0].mxu0
      %v3017 = vadd.f32 0.0, %v3016
      %v3018 = vpop.f32.mrb[0].mxu0
      %3019 = vmatprep.mubr.f32.mxu0 0.0
      %3020 = vmatmul.mubr.f32.gmra.mrb[0].mxu0 %v2858
      %v3021 = vpop.f32.mrb[0].mxu0
      %v3022 = vadd.f32 0.0, %v3021
      %v3023 = vpop.f32.mrb[0].mxu0
      %3024 = vmatprep.mubr.f32.mxu0 0.0
      %3025 = vmatmul.mubr.f32.gmra.mrb[0].mxu0 %v2861
      %v3026 = vpop.f32.mrb[0].mxu0
      %v3027 = vadd.f32 0.0, %v3026
      %v3028 = vpop.f32.mrb[0].mxu0
      %3029 = vmatprep.mubr.f32.mxu0 0.0
      %3030 = vmatmul.mubr.f32.gmra.mrb[0].mxu0 %v2864
      %v3031 = vpop.f32.mrb[0].mxu0
      %v3032 = vadd.f32 0.0, %v3031
      %v3033 = vpop.f32.mrb[0].mxu0
      %3034 = vmatprep.mubr.f32.mxu0 0.0
      %3035 = vmatmul.mubr.f32.gmra.mrb[0].mxu0 %v2867
      %v3036 = vpop.f32.mrb[0].mxu0
      %v3037 = vadd.f32 0.0, %v3036
      %v3038 = vpop.f32.mrb[0].mxu0
      %3039 = vmatprep.mubr.f32.mxu0 0.0
      %3040 = vmatmul.mubr.f32.gmra.mrb[0].mxu0 %v2870
      %v3041 = vpop.f32.mrb[0].mxu0
      %v3042 = vadd.f32 0.0, %v3041
      %v3043 = vpop.f32.mrb[0].mxu0
      %3044 = vmatprep.mubr.f32.mxu0 0.0
      %3045 = vmatmul.mubr.f32.gmra.mrb[0].mxu0 %v2873
      %v3046 = vpop.f32.mrb[0].mxu0
      %v3047 = vadd.f32 0.0, %v3046
      %v3048 = vpop.f32.mrb[0].mxu0
      %3049 = vmatprep.mubr.f32.mxu0 0.0
      %3050 = vmatmul.mubr.f32.gmra.mrb[0].mxu0 %v2876
      %v3051 = vpop.f32.mrb[0].mxu0
      %v3052 = vadd.f32 0.0, %v3051
      %v3053 = vpop.f32.mrb[0].mxu0
      %3054 = vmatprep.mubr.f32.mxu0 0.0
      %3055 = vmatmul.mubr.f32.gmra.mrb[0].mxu0 %v2879
      %v3056 = vpop.f32.mrb[0].mxu0
      %v3057 = vadd.f32 0.0, %v3056
      %v3058 = vpop.f32.mrb[0].mxu0
      %3059 = vmatprep.mubr.f32.mxu0 0.0
      %3060 = vmatmul.mubr.f32.gmra.mrb[0].mxu0 %v2882
      %v3061 = vpop.f32.mrb[0].mxu0
      %v3062 = vadd.f32 0.0, %v3061
      %v3063 = vpop.f32.mrb[0].mxu0
      %3064 = vmatprep.mubr.f32.mxu0 0.0
      %3065 = vmatmul.mubr.f32.gmra.mrb[0].mxu0 %v2885
      %v3066 = vpop.f32.mrb[0].mxu0
      %v3067 = vadd.f32 0.0, %v3066
      %v3068 = vpop.f32.mrb[0].mxu0
      %3069 = vmatprep.mubr.f32.mxu0 0.0
      %3070 = vmatmul.mubr.f32.gmra.mrb[0].mxu0 %v2888
      %v3071 = vpop.f32.mrb[0].mxu0
      %v3072 = vadd.f32 0.0, %v3071
      %v3073 = vpop.f32.mrb[0].mxu0
      %3074 = vmatprep.mubr.f32.mxu0 0.0
      %3075 = vmatmul.mubr.f32.gmra.mrb[0].mxu0 %v2891
      %v3076 = vpop.f32.mrb[0].mxu0
      %v3077 = vadd.f32 0.0, %v3076
      %v3078 = vpop.f32.mrb[0].mxu0
      %3079 = vmatprep.mubr.f32.mxu0 0.0
      %3080 = vmatmul.mubr.f32.gmra.mrb[0].mxu0 %v2894
      %v3081 = vpop.f32.mrb[0].mxu0
      %v3082 = vadd.f32 0.0, %v3081
      %v3083 = vpop.f32.mrb[0].mxu0
      %3084 = vmatprep.mubr.f32.mxu0 0.0
      %3085 = vmatmul.mubr.f32.gmra.mrb[0].mxu0 %v2897
      %v3086 = vpop.f32.mrb[0].mxu0
      %v3087 = vadd.f32 0.0, %v3086
      %v3088 = vpop.f32.mrb[0].mxu0
      %3089 = vmatprep.mubr.f32.mxu0 0.0
      %3090 = vmatmul.mubr.f32.gmra.mrb[0].mxu0 %v2900
      %v3091 = vpop.f32.mrb[0].mxu0
      %v3092 = vadd.f32 0.0, %v3091
      %v3093 = vpop.f32.mrb[0].mxu0
      %3094 = vmatprep.mubr.f32.mxu0 0.0
      %3095 = vmatmul.mubr.f32.gmra.mrb[0].mxu0 %v2903
      %v3096 = vpop.f32.mrb[0].mxu0
      %v3097 = vadd.f32 0.0, %v3096
      %v3098 = vpop.f32.mrb[0].mxu0
      %3099 = vmatprep.mubr.f32.mxu0 0.0
      %3100 = vmatmul.mubr.f32.gmra.mrb[0].mxu0 %v2906
      %v3101 = vpop.f32.mrb[0].mxu0
      %v3102 = vadd.f32 0.0, %v3101
      %v3103 = vpop.f32.mrb[0].mxu0
      %3104 = vmatprep.mubr.f32.mxu0 0.0
      %3105 = vmatmul.mubr.f32.gmra.mrb[0].mxu0 %v2909
      %v3106 = vpop.f32.mrb[0].mxu0
      %v3107 = vadd.f32 0.0, %v3106
      %v3108 = vpop.f32.mrb[0].mxu0
      %3109 = vmatprep.mubr.f32.mxu0 0.0
      %3110 = vmatmul.mubr.f32.gmra.mrb[0].mxu0 %v2912
      %v3111 = vpop.f32.mrb[0].mxu0
      %v3112 = vadd.f32 0.0, %v3111
      %v3113 = vpop.f32.mrb[0].mxu0
      %3114 = vmatprep.mubr.f32.mxu0 0.0
      %3115 = vmatmul.mubr.f32.gmra.mrb[0].mxu0 %v2915
      %v3116 = vpop.f32.mrb[0].mxu0
      %v3117 = vadd.f32 0.0, %v3116
      %v3118 = vpop.f32.mrb[0].mxu0
      %3119 = vmatprep.mubr.f32.mxu0 0.0
      %3120 = vmatmul.mubr.f32.gmra.mrb[0].mxu0 %v2918
      %v3121 = vpop.f32.mrb[0].mxu0
      %v3122 = vadd.f32 0.0, %v3121
      %v3123 = vpop.f32.mrb[0].mxu0
      %3124 = vmatprep.mubr.f32.mxu0 0.0
      %3125 = vmatmul.mubr.f32.gmra.mrb[0].mxu0 %v2921
      %v3126 = vpop.f32.mrb[0].mxu0
      %v3127 = vadd.f32 0.0, %v3126
      %v3128 = vpop.f32.mrb[0].mxu0
      %3129 = vmatprep.mubr.f32.mxu0 0.0
      %3130 = vmatmul.mubr.f32.gmra.mrb[0].mxu0 %v2924
      %v3131 = vpop.f32.mrb[0].mxu0
      %v3132 = vadd.f32 0.0, %v3131
      %v3133 = vpop.f32.mrb[0].mxu0
      %3134 = vmatprep.mubr.f32.mxu0 0.0
      %3135 = vmatmul.mubr.f32.gmra.mrb[0].mxu0 %v2927
      %v3136 = vpop.f32.mrb[0].mxu0
      %v3137 = vadd.f32 0.0, %v3136
      %v3138 = vpop.f32.mrb[0].mxu0
      %3139 = vmatprep.mubr.f32.mxu0 0.0
      %3140 = vmatmul.mubr.f32.gmra.mrb[0].mxu0 %v2930
      %v3141 = vpop.f32.mrb[0].mxu0
      %v3142 = vadd.f32 0.0, %v3141
      %v3143 = vpop.f32.mrb[0].mxu0
      %3144 = vmatprep.mubr.f32.mxu0 0.0
      %3145 = vmatmul.mubr.f32.gmra.mrb[0].mxu0 %v2933
      %v3146 = vpop.f32.mrb[0].mxu0
      %v3147 = vadd.f32 0.0, %v3146
      %v3148 = vpop.f32.mrb[0].mxu0
      %3149 = vmatprep.mubr.f32.mxu0 0.0
      %3150 = vmatmul.mubr.f32.gmra.mrb[0].mxu0 %v2936
      %v3151 = vpop.f32.mrb[0].mxu0
      %v3152 = vadd.f32 0.0, %v3151
      %v3153 = vpop.f32.mrb[0].mxu0
      %3154 = vmatprep.mubr.f32.mxu0 0.0
      %3155 = vmatmul.mubr.f32.gmra.mrb[0].mxu0 %v2939
      %v3156 = vpop.f32.mrb[0].mxu0
      %v3157 = vadd.f32 0.0, %v3156
      %v3158 = vpop.f32.mrb[0].mxu0
      %3159 = vmatprep.mubr.f32.mxu0 0.0
      %3160 = vmatmul.mubr.f32.gmra.mrb[0].mxu0 %v2942
      %v3161 = vpop.f32.mrb[0].mxu0
      %v3162 = vadd.f32 0.0, %v3161
      %v3163 = vpop.f32.mrb[0].mxu0
      %3164 = vmatprep.mubr.f32.mxu0 0.0
      %3165 = vmatmul.mubr.f32.gmra.mrb[0].mxu0 %v2945
      %v3166 = vpop.f32.mrb[0].mxu0
      %v3167 = vadd.f32 0.0, %v3166
      %v3168 = vpop.f32.mrb[0].mxu0
      %3169 = vmatprep.mubr.f32.mxu0 0.0
      %3170 = vmatmul.mubr.f32.gmra.mrb[0].mxu0 %v2948
      %v3171 = vpop.f32.mrb[0].mxu0
      %v3172 = vadd.f32 0.0, %v3171
      %v3173 = vpop.f32.mrb[0].mxu0
      %3174 = vdwg.mxu0
      %v3175 = vadd.f32 %v2786, %v3017
      %v3176 = vadd.f32 %v2787, %v3022
      %v3177 = vadd.f32 %v2788, %v3027
      %v3178 = vadd.f32 %v2789, %v3032
      %v3179 = vadd.f32 %v2790, %v3037
      %v3180 = vadd.f32 %v2791, %v3042
      %v3181 = vadd.f32 %v2792, %v3047
      %v3182 = vadd.f32 %v2793, %v3052
      %v3183 = vadd.f32 %v2794, %v3057
      %v3184 = vadd.f32 %v2795, %v3062
      %v3185 = vadd.f32 %v2796, %v3067
      %v3186 = vadd.f32 %v2797, %v3072
      %v3187 = vadd.f32 %v2798, %v3077
      %v3188 = vadd.f32 %v2799, %v3082
      %v3189 = vadd.f32 %v2800, %v3087
      %v3190 = vadd.f32 %v2801, %v3092
      %v3191 = vadd.f32 %v2802, %v3097
      %v3192 = vadd.f32 %v2803, %v3102
      %v3193 = vadd.f32 %v2804, %v3107
      %v3194 = vadd.f32 %v2805, %v3112
      %v3195 = vadd.f32 %v2806, %v3117
      %v3196 = vadd.f32 %v2807, %v3122
      %v3197 = vadd.f32 %v2808, %v3127
      %v3198 = vadd.f32 %v2809, %v3132
      %v3199 = vadd.f32 %v2810, %v3137
      %v3200 = vadd.f32 %v2811, %v3142
      %v3201 = vadd.f32 %v2812, %v3147
      %v3202 = vadd.f32 %v2813, %v3152
      %v3203 = vadd.f32 %v2814, %v3157
      %v3204 = vadd.f32 %v2815, %v3162
      %v3205 = vadd.f32 %v2816, %v3167
      %v3206 = vadd.f32 %v2817, %v3172
      %v3207 = vld [vmem:[%s2818 + $0x1] sm:$0xff]
      %v3208 = vld [vmem:[%s2818 + $0x9] sm:$0xff]
      %v3209 = vld [vmem:[%s2818 + $0x19] sm:$0xff]
      %v3210 = vld [vmem:[%s2818 + $0x21] sm:$0xff]
      %v3211 = vld [vmem:[%s2818 + $0x31] sm:$0xff]
      %v3212 = vld [vmem:[%s2818 + $0x39] sm:$0xff]
      %v3213 = vld [vmem:[%s2818 + $0x49] sm:$0xff]
      %v3214 = vld [vmem:[%s2818 + $0x51] sm:$0xff]
      %v3215 = vld [vmem:[%s2818 + $0x61] sm:$0xff]
      %v3216 = vld [vmem:[%s2818 + $0x69] sm:$0xff]
      %v3217 = vld [vmem:[%s2818 + $0x79] sm:$0xff]
      %v3218 = vld [vmem:[%s2818 + $0x81] sm:$0xff]
      %v3219 = vld [vmem:[%s2818 + $0x91] sm:$0xff]
      %v3220 = vld [vmem:[%s2818 + $0x99] sm:$0xff]
      %v3221 = vld [vmem:[%s2818 + $0xa9] sm:$0xff]
      %v3222 = vld [vmem:[%s2818 + $0xb1] sm:$0xff]
      %v3223 = vld [vmem:[%s2818 + $0xc1] sm:$0xff]
      %v3224 = vld [vmem:[%s2818 + $0xc9] sm:$0xff]
      %v3225 = vld [vmem:[%s2818 + $0xd9] sm:$0xff]
      %v3226 = vld [vmem:[%s2818 + $0xe1] sm:$0xff]
      %v3227 = vld [vmem:[%s2818 + $0xf1] sm:$0xff]
      %v3228 = vld [vmem:[%s2818 + $0xf9] sm:$0xff]
      %v3229 = vld [vmem:[%s2818 + $0x109] sm:$0xff]
      %v3230 = vld [vmem:[%s2818 + $0x111] sm:$0xff]
      %v3231 = vld [vmem:[%s2818 + $0x121] sm:$0xff]
      %v3232 = vld [vmem:[%s2818 + $0x129] sm:$0xff]
      %v3233 = vld [vmem:[%s2818 + $0x139] sm:$0xff]
      %v3234 = vld [vmem:[%s2818 + $0x141] sm:$0xff]
      %v3235 = vld [vmem:[%s2818 + $0x151] sm:$0xff]
      %v3236 = vld [vmem:[%s2818 + $0x159] sm:$0xff]
      %v3237 = vld [vmem:[%s2818 + $0x169] sm:$0xff]
      %v3238 = vld [vmem:[%s2818 + $0x171] sm:$0xff]
      %s3239 = scalar_lea.vmem %s3, 112
      %v3240 = vld [vmem:[%s3239] sm:$0xff]
      %v3241 = vld [vmem:[%s3239 + $0x8] sm:$0xff]
      %v3243 = vsel %vm405, %v3207, 0
      %v3246 = vsel %vm405, %v3208, 0
      %v3249 = vsel %vm405, %v3209, 0
      %v3252 = vsel %vm405, %v3210, 0
      %v3255 = vsel %vm405, %v3211, 0
      %v3258 = vsel %vm405, %v3212, 0
      %v3261 = vsel %vm405, %v3213, 0
      %v3264 = vsel %vm405, %v3214, 0
      %v3267 = vsel %vm405, %v3215, 0
      %v3270 = vsel %vm405, %v3216, 0
      %v3273 = vsel %vm405, %v3217, 0
      %v3276 = vsel %vm405, %v3218, 0
      %v3279 = vsel %vm405, %v3219, 0
      %v3282 = vsel %vm405, %v3220, 0
      %v3285 = vsel %vm405, %v3221, 0
      %v3288 = vsel %vm405, %v3222, 0
      %v3291 = vsel %vm405, %v3223, 0
      %v3294 = vsel %vm405, %v3224, 0
      %v3297 = vsel %vm405, %v3225, 0
      %v3300 = vsel %vm405, %v3226, 0
      %v3303 = vsel %vm405, %v3227, 0
      %v3306 = vsel %vm405, %v3228, 0
      %v3309 = vsel %vm405, %v3229, 0
      %v3312 = vsel %vm405, %v3230, 0
      %v3315 = vsel %vm405, %v3231, 0
      %v3318 = vsel %vm405, %v3232, 0
      %v3321 = vsel %vm405, %v3233, 0
      %v3324 = vsel %vm405, %v3234, 0
      %v3327 = vsel %vm405, %v3235, 0
      %v3330 = vsel %vm405, %v3236, 0
      %v3333 = vsel %vm405, %v3237, 0
      %v3336 = vsel %vm405, %v3238, 0
      %3338 = vmatprep.subr.mxu0 0.0
      %3339 = vmatpush1.msra.mxu0 %v3240
      %3340 = vmatprep.subr.mxu0 0.0
      %3341 = vmatpush1.msra.mxu0 %v3241
      %3342 = vmatprep.subr.mxu0 0.0
      %3343 = vmatpush1.msra.mxu0 0.0
      %3344 = vmatprep.subr.mxu0 0.0
      %3345 = vmatpush1.msra.mxu0 0.0
      %3346 = vmatprep.subr.mxu0 0.0
      %3347 = vmatpush1.msra.mxu0 0.0
      %3348 = vmatprep.subr.mxu0 0.0
      %3349 = vmatpush1.msra.mxu0 0.0
      %3350 = vmatprep.subr.mxu0 0.0
      %3351 = vmatpush1.msra.mxu0 0.0
      %3352 = vmatprep.subr.mxu0 0.0
      %3353 = vmatpush1.msra.mxu0 0.0
      %3354 = vmatprep.subr.mxu0 0.0
      %3355 = vmatpush1.msra.mxu0 0.0
      %3356 = vmatprep.subr.mxu0 0.0
      %3357 = vmatpush1.msra.mxu0 0.0
      %3358 = vmatprep.subr.mxu0 0.0
      %3359 = vmatpush1.msra.mxu0 0.0
      %3360 = vmatprep.subr.mxu0 0.0
      %3361 = vmatpush1.msra.mxu0 0.0
      %3362 = vmatprep.subr.mxu0 0.0
      %3363 = vmatpush1.msra.mxu0 0.0
      %3364 = vmatprep.subr.mxu0 0.0
      %3365 = vmatpush1.msra.mxu0 0.0
      %3366 = vmatprep.subr.mxu0 0.0
      %3367 = vmatpush1.msra.mxu0 0.0
      %3368 = vmatprep.subr.mxu0 0.0
      %3369 = vmatpush1.msra.mxu0 0.0
      %3370 = vmatprep.subr.mxu0 0.0
      %3371 = vmatpush1.msra.mxu0 0.0
      %3372 = vmatprep.subr.mxu0 0.0
      %3373 = vmatpush1.msra.mxu0 0.0
      %3374 = vmatprep.subr.mxu0 0.0
      %3375 = vmatpush1.msra.mxu0 0.0
      %3376 = vmatprep.subr.mxu0 0.0
      %3377 = vmatpush1.msra.mxu0 0.0
      %3378 = vmatprep.subr.mxu0 0.0
      %3379 = vmatpush1.msra.mxu0 0.0
      %3380 = vmatprep.subr.mxu0 0.0
      %3381 = vmatpush1.msra.mxu0 0.0
      %3382 = vmatprep.subr.mxu0 0.0
      %3383 = vmatpush1.msra.mxu0 0.0
      %3384 = vmatprep.subr.mxu0 0.0
      %3385 = vmatpush1.msra.mxu0 0.0
      %3386 = vmatprep.subr.mxu0 0.0
      %3387 = vmatpush1.msra.mxu0 0.0
      %3388 = vmatprep.subr.mxu0 0.0
      %3389 = vmatpush1.msra.mxu0 0.0
      %3390 = vmatprep.subr.mxu0 0.0
      %3391 = vmatpush1.msra.mxu0 0.0
      %3392 = vmatprep.subr.mxu0 0.0
      %3393 = vmatpush1.msra.mxu0 0.0
      %3394 = vmatprep.subr.mxu0 0.0
      %3395 = vmatpush1.msra.mxu0 0.0
      %3396 = vmatprep.subr.mxu0 0.0
      %3397 = vmatpush1.msra.mxu0 0.0
      %3398 = vmatprep.subr.mxu0 0.0
      %3399 = vmatpush1.msra.mxu0 0.0
      %3400 = vmatprep.subr.mxu0 0.0
      %3401 = vmatpush1.msra.mxu0 0.0
      %3402 = vmatprep.mubr.f32.mxu0 0.0
      %3403 = vmatmul.mubr.f32.gmra.mrb[0].mxu0 %v3243
      %v3404 = vpop.f32.mrb[0].mxu0
      %v3405 = vadd.f32 0.0, %v3404
      %v3406 = vpop.f32.mrb[0].mxu0
      %3407 = vmatprep.mubr.f32.mxu0 0.0
      %3408 = vmatmul.mubr.f32.gmra.mrb[0].mxu0 %v3246
      %v3409 = vpop.f32.mrb[0].mxu0
      %v3410 = vadd.f32 0.0, %v3409
      %v3411 = vpop.f32.mrb[0].mxu0
      %3412 = vmatprep.mubr.f32.mxu0 0.0
      %3413 = vmatmul.mubr.f32.gmra.mrb[0].mxu0 %v3249
      %v3414 = vpop.f32.mrb[0].mxu0
      %v3415 = vadd.f32 0.0, %v3414
      %v3416 = vpop.f32.mrb[0].mxu0
      %3417 = vmatprep.mubr.f32.mxu0 0.0
      %3418 = vmatmul.mubr.f32.gmra.mrb[0].mxu0 %v3252
      %v3419 = vpop.f32.mrb[0].mxu0
      %v3420 = vadd.f32 0.0, %v3419
      %v3421 = vpop.f32.mrb[0].mxu0
      %3422 = vmatprep.mubr.f32.mxu0 0.0
      %3423 = vmatmul.mubr.f32.gmra.mrb[0].mxu0 %v3255
      %v3424 = vpop.f32.mrb[0].mxu0
      %v3425 = vadd.f32 0.0, %v3424
      %v3426 = vpop.f32.mrb[0].mxu0
      %3427 = vmatprep.mubr.f32.mxu0 0.0
      %3428 = vmatmul.mubr.f32.gmra.mrb[0].mxu0 %v3258
      %v3429 = vpop.f32.mrb[0].mxu0
      %v3430 = vadd.f32 0.0, %v3429
      %v3431 = vpop.f32.mrb[0].mxu0
      %3432 = vmatprep.mubr.f32.mxu0 0.0
      %3433 = vmatmul.mubr.f32.gmra.mrb[0].mxu0 %v3261
      %v3434 = vpop.f32.mrb[0].mxu0
      %v3435 = vadd.f32 0.0, %v3434
      %v3436 = vpop.f32.mrb[0].mxu0
      %3437 = vmatprep.mubr.f32.mxu0 0.0
      %3438 = vmatmul.mubr.f32.gmra.mrb[0].mxu0 %v3264
      %v3439 = vpop.f32.mrb[0].mxu0
      %v3440 = vadd.f32 0.0, %v3439
      %v3441 = vpop.f32.mrb[0].mxu0
      %3442 = vmatprep.mubr.f32.mxu0 0.0
      %3443 = vmatmul.mubr.f32.gmra.mrb[0].mxu0 %v3267
      %v3444 = vpop.f32.mrb[0].mxu0
      %v3445 = vadd.f32 0.0, %v3444
      %v3446 = vpop.f32.mrb[0].mxu0
      %3447 = vmatprep.mubr.f32.mxu0 0.0
      %3448 = vmatmul.mubr.f32.gmra.mrb[0].mxu0 %v3270
      %v3449 = vpop.f32.mrb[0].mxu0
      %v3450 = vadd.f32 0.0, %v3449
      %v3451 = vpop.f32.mrb[0].mxu0
      %3452 = vmatprep.mubr.f32.mxu0 0.0
      %3453 = vmatmul.mubr.f32.gmra.mrb[0].mxu0 %v3273
      %v3454 = vpop.f32.mrb[0].mxu0
      %v3455 = vadd.f32 0.0, %v3454
      %v3456 = vpop.f32.mrb[0].mxu0
      %3457 = vmatprep.mubr.f32.mxu0 0.0
      %3458 = vmatmul.mubr.f32.gmra.mrb[0].mxu0 %v3276
      %v3459 = vpop.f32.mrb[0].mxu0
      %v3460 = vadd.f32 0.0, %v3459
      %v3461 = vpop.f32.mrb[0].mxu0
      %3462 = vmatprep.mubr.f32.mxu0 0.0
      %3463 = vmatmul.mubr.f32.gmra.mrb[0].mxu0 %v3279
      %v3464 = vpop.f32.mrb[0].mxu0
      %v3465 = vadd.f32 0.0, %v3464
      %v3466 = vpop.f32.mrb[0].mxu0
      %3467 = vmatprep.mubr.f32.mxu0 0.0
      %3468 = vmatmul.mubr.f32.gmra.mrb[0].mxu0 %v3282
      %v3469 = vpop.f32.mrb[0].mxu0
      %v3470 = vadd.f32 0.0, %v3469
      %v3471 = vpop.f32.mrb[0].mxu0
      %3472 = vmatprep.mubr.f32.mxu0 0.0
      %3473 = vmatmul.mubr.f32.gmra.mrb[0].mxu0 %v3285
      %v3474 = vpop.f32.mrb[0].mxu0
      %v3475 = vadd.f32 0.0, %v3474
      %v3476 = vpop.f32.mrb[0].mxu0
      %3477 = vmatprep.mubr.f32.mxu0 0.0
      %3478 = vmatmul.mubr.f32.gmra.mrb[0].mxu0 %v3288
      %v3479 = vpop.f32.mrb[0].mxu0
      %v3480 = vadd.f32 0.0, %v3479
      %v3481 = vpop.f32.mrb[0].mxu0
      %3482 = vmatprep.mubr.f32.mxu0 0.0
      %3483 = vmatmul.mubr.f32.gmra.mrb[0].mxu0 %v3291
      %v3484 = vpop.f32.mrb[0].mxu0
      %v3485 = vadd.f32 0.0, %v3484
      %v3486 = vpop.f32.mrb[0].mxu0
      %3487 = vmatprep.mubr.f32.mxu0 0.0
      %3488 = vmatmul.mubr.f32.gmra.mrb[0].mxu0 %v3294
      %v3489 = vpop.f32.mrb[0].mxu0
      %v3490 = vadd.f32 0.0, %v3489
      %v3491 = vpop.f32.mrb[0].mxu0
      %3492 = vmatprep.mubr.f32.mxu0 0.0
      %3493 = vmatmul.mubr.f32.gmra.mrb[0].mxu0 %v3297
      %v3494 = vpop.f32.mrb[0].mxu0
      %v3495 = vadd.f32 0.0, %v3494
      %v3496 = vpop.f32.mrb[0].mxu0
      %3497 = vmatprep.mubr.f32.mxu0 0.0
      %3498 = vmatmul.mubr.f32.gmra.mrb[0].mxu0 %v3300
      %v3499 = vpop.f32.mrb[0].mxu0
      %v3500 = vadd.f32 0.0, %v3499
      %v3501 = vpop.f32.mrb[0].mxu0
      %3502 = vmatprep.mubr.f32.mxu0 0.0
      %3503 = vmatmul.mubr.f32.gmra.mrb[0].mxu0 %v3303
      %v3504 = vpop.f32.mrb[0].mxu0
      %v3505 = vadd.f32 0.0, %v3504
      %v3506 = vpop.f32.mrb[0].mxu0
      %3507 = vmatprep.mubr.f32.mxu0 0.0
      %3508 = vmatmul.mubr.f32.gmra.mrb[0].mxu0 %v3306
      %v3509 = vpop.f32.mrb[0].mxu0
      %v3510 = vadd.f32 0.0, %v3509
      %v3511 = vpop.f32.mrb[0].mxu0
      %3512 = vmatprep.mubr.f32.mxu0 0.0
      %3513 = vmatmul.mubr.f32.gmra.mrb[0].mxu0 %v3309
      %v3514 = vpop.f32.mrb[0].mxu0
      %v3515 = vadd.f32 0.0, %v3514
      %v3516 = vpop.f32.mrb[0].mxu0
      %3517 = vmatprep.mubr.f32.mxu0 0.0
      %3518 = vmatmul.mubr.f32.gmra.mrb[0].mxu0 %v3312
      %v3519 = vpop.f32.mrb[0].mxu0
      %v3520 = vadd.f32 0.0, %v3519
      %v3521 = vpop.f32.mrb[0].mxu0
      %3522 = vmatprep.mubr.f32.mxu0 0.0
      %3523 = vmatmul.mubr.f32.gmra.mrb[0].mxu0 %v3315
      %v3524 = vpop.f32.mrb[0].mxu0
      %v3525 = vadd.f32 0.0, %v3524
      %v3526 = vpop.f32.mrb[0].mxu0
      %3527 = vmatprep.mubr.f32.mxu0 0.0
      %3528 = vmatmul.mubr.f32.gmra.mrb[0].mxu0 %v3318
      %v3529 = vpop.f32.mrb[0].mxu0
      %v3530 = vadd.f32 0.0, %v3529
      %v3531 = vpop.f32.mrb[0].mxu0
      %3532 = vmatprep.mubr.f32.mxu0 0.0
      %3533 = vmatmul.mubr.f32.gmra.mrb[0].mxu0 %v3321
      %v3534 = vpop.f32.mrb[0].mxu0
      %v3535 = vadd.f32 0.0, %v3534
      %v3536 = vpop.f32.mrb[0].mxu0
      %3537 = vmatprep.mubr.f32.mxu0 0.0
      %3538 = vmatmul.mubr.f32.gmra.mrb[0].mxu0 %v3324
      %v3539 = vpop.f32.mrb[0].mxu0
      %v3540 = vadd.f32 0.0, %v3539
      %v3541 = vpop.f32.mrb[0].mxu0
      %3542 = vmatprep.mubr.f32.mxu0 0.0
      %3543 = vmatmul.mubr.f32.gmra.mrb[0].mxu0 %v3327
      %v3544 = vpop.f32.mrb[0].mxu0
      %v3545 = vadd.f32 0.0, %v3544
      %v3546 = vpop.f32.mrb[0].mxu0
      %3547 = vmatprep.mubr.f32.mxu0 0.0
      %3548 = vmatmul.mubr.f32.gmra.mrb[0].mxu0 %v3330
      %v3549 = vpop.f32.mrb[0].mxu0
      %v3550 = vadd.f32 0.0, %v3549
      %v3551 = vpop.f32.mrb[0].mxu0
      %3552 = vmatprep.mubr.f32.mxu0 0.0
      %3553 = vmatmul.mubr.f32.gmra.mrb[0].mxu0 %v3333
      %v3554 = vpop.f32.mrb[0].mxu0
      %v3555 = vadd.f32 0.0, %v3554
      %v3556 = vpop.f32.mrb[0].mxu0
      %3557 = vmatprep.mubr.f32.mxu0 0.0
      %3558 = vmatmul.mubr.f32.gmra.mrb[0].mxu0 %v3336
      %v3559 = vpop.f32.mrb[0].mxu0
      %v3560 = vadd.f32 0.0, %v3559
      %v3561 = vpop.f32.mrb[0].mxu0
      %3562 = vdwg.mxu0
      %v3563 = vadd.f32 %v3175, %v3405
      %v3564 = vadd.f32 %v3176, %v3410
      %v3565 = vadd.f32 %v3177, %v3415
      %v3566 = vadd.f32 %v3178, %v3420
      %v3567 = vadd.f32 %v3179, %v3425
      %v3568 = vadd.f32 %v3180, %v3430
      %v3569 = vadd.f32 %v3181, %v3435
      %v3570 = vadd.f32 %v3182, %v3440
      %v3571 = vadd.f32 %v3183, %v3445
      %v3572 = vadd.f32 %v3184, %v3450
      %v3573 = vadd.f32 %v3185, %v3455
      %v3574 = vadd.f32 %v3186, %v3460
      %v3575 = vadd.f32 %v3187, %v3465
      %v3576 = vadd.f32 %v3188, %v3470
      %v3577 = vadd.f32 %v3189, %v3475
      %v3578 = vadd.f32 %v3190, %v3480
      %v3579 = vadd.f32 %v3191, %v3485
      %v3580 = vadd.f32 %v3192, %v3490
      %v3581 = vadd.f32 %v3193, %v3495
      %v3582 = vadd.f32 %v3194, %v3500
      %v3583 = vadd.f32 %v3195, %v3505
      %v3584 = vadd.f32 %v3196, %v3510
      %v3585 = vadd.f32 %v3197, %v3515
      %v3586 = vadd.f32 %v3198, %v3520
      %v3587 = vadd.f32 %v3199, %v3525
      %v3588 = vadd.f32 %v3200, %v3530
      %v3589 = vadd.f32 %v3201, %v3535
      %v3590 = vadd.f32 %v3202, %v3540
      %v3591 = vadd.f32 %v3203, %v3545
      %v3592 = vadd.f32 %v3204, %v3550
      %v3593 = vadd.f32 %v3205, %v3555
      %v3594 = vadd.f32 %v3206, %v3560
      %v3595 = vld [vmem:[%s2818 + $0x2] sm:$0xff]
      %v3596 = vld [vmem:[%s2818 + $0xa] sm:$0xff]
      %v3597 = vld [vmem:[%s2818 + $0x1a] sm:$0xff]
      %v3598 = vld [vmem:[%s2818 + $0x22] sm:$0xff]
      %v3599 = vld [vmem:[%s2818 + $0x32] sm:$0xff]
      %v3600 = vld [vmem:[%s2818 + $0x3a] sm:$0xff]
      %v3601 = vld [vmem:[%s2818 + $0x4a] sm:$0xff]
      %v3602 = vld [vmem:[%s2818 + $0x52] sm:$0xff]
      %v3603 = vld [vmem:[%s2818 + $0x62] sm:$0xff]
      %v3604 = vld [vmem:[%s2818 + $0x6a] sm:$0xff]
      %v3605 = vld [vmem:[%s2818 + $0x7a] sm:$0xff]
      %v3606 = vld [vmem:[%s2818 + $0x82] sm:$0xff]
      %v3607 = vld [vmem:[%s2818 + $0x92] sm:$0xff]
      %v3608 = vld [vmem:[%s2818 + $0x9a] sm:$0xff]
      %v3609 = vld [vmem:[%s2818 + $0xaa] sm:$0xff]
      %v3610 = vld [vmem:[%s2818 + $0xb2] sm:$0xff]
      %v3611 = vld [vmem:[%s2818 + $0xc2] sm:$0xff]
      %v3612 = vld [vmem:[%s2818 + $0xca] sm:$0xff]
      %v3613 = vld [vmem:[%s2818 + $0xda] sm:$0xff]
      %v3614 = vld [vmem:[%s2818 + $0xe2] sm:$0xff]
      %v3615 = vld [vmem:[%s2818 + $0xf2] sm:$0xff]
      %v3616 = vld [vmem:[%s2818 + $0xfa] sm:$0xff]
      %v3617 = vld [vmem:[%s2818 + $0x10a] sm:$0xff]
      %v3618 = vld [vmem:[%s2818 + $0x112] sm:$0xff]
      %v3619 = vld [vmem:[%s2818 + $0x122] sm:$0xff]
      %v3620 = vld [vmem:[%s2818 + $0x12a] sm:$0xff]
      %v3621 = vld [vmem:[%s2818 + $0x13a] sm:$0xff]
      %v3622 = vld [vmem:[%s2818 + $0x142] sm:$0xff]
      %v3623 = vld [vmem:[%s2818 + $0x152] sm:$0xff]
      %v3624 = vld [vmem:[%s2818 + $0x15a] sm:$0xff]
      %v3625 = vld [vmem:[%s2818 + $0x16a] sm:$0xff]
      %v3626 = vld [vmem:[%s2818 + $0x172] sm:$0xff]
      %s3627 = scalar_lea.vmem %s3, 128
      %v3628 = vld [vmem:[%s3627] sm:$0xff]
      %v3629 = vld [vmem:[%s3627 + $0x8] sm:$0xff]
      %v3631 = vsel %vm405, %v3595, 0
      %v3634 = vsel %vm405, %v3596, 0
      %v3637 = vsel %vm405, %v3597, 0
      %v3640 = vsel %vm405, %v3598, 0
      %v3643 = vsel %vm405, %v3599, 0
      %v3646 = vsel %vm405, %v3600, 0
      %v3649 = vsel %vm405, %v3601, 0
      %v3652 = vsel %vm405, %v3602, 0
      %v3655 = vsel %vm405, %v3603, 0
      %v3658 = vsel %vm405, %v3604, 0
      %v3661 = vsel %vm405, %v3605, 0
      %v3664 = vsel %vm405, %v3606, 0
      %v3667 = vsel %vm405, %v3607, 0
      %v3670 = vsel %vm405, %v3608, 0
      %v3673 = vsel %vm405, %v3609, 0
      %v3676 = vsel %vm405, %v3610, 0
      %v3679 = vsel %vm405, %v3611, 0
      %v3682 = vsel %vm405, %v3612, 0
      %v3685 = vsel %vm405, %v3613, 0
      %v3688 = vsel %vm405, %v3614, 0
      %v3691 = vsel %vm405, %v3615, 0
      %v3694 = vsel %vm405, %v3616, 0
      %v3697 = vsel %vm405, %v3617, 0
      %v3700 = vsel %vm405, %v3618, 0
      %v3703 = vsel %vm405, %v3619, 0
      %v3706 = vsel %vm405, %v3620, 0
      %v3709 = vsel %vm405, %v3621, 0
      %v3712 = vsel %vm405, %v3622, 0
      %v3715 = vsel %vm405, %v3623, 0
      %v3718 = vsel %vm405, %v3624, 0
      %v3721 = vsel %vm405, %v3625, 0
      %v3724 = vsel %vm405, %v3626, 0
      %3726 = vmatprep.subr.mxu0 0.0
      %3727 = vmatpush1.msra.mxu0 %v3628
      %3728 = vmatprep.subr.mxu0 0.0
      %3729 = vmatpush1.msra.mxu0 %v3629
      %3730 = vmatprep.subr.mxu0 0.0
      %3731 = vmatpush1.msra.mxu0 0.0
      %3732 = vmatprep.subr.mxu0 0.0
      %3733 = vmatpush1.msra.mxu0 0.0
      %3734 = vmatprep.subr.mxu0 0.0
      %3735 = vmatpush1.msra.mxu0 0.0
      %3736 = vmatprep.subr.mxu0 0.0
      %3737 = vmatpush1.msra.mxu0 0.0
      %3738 = vmatprep.subr.mxu0 0.0
      %3739 = vmatpush1.msra.mxu0 0.0
      %3740 = vmatprep.subr.mxu0 0.0
      %3741 = vmatpush1.msra.mxu0 0.0
      %3742 = vmatprep.subr.mxu0 0.0
      %3743 = vmatpush1.msra.mxu0 0.0
      %3744 = vmatprep.subr.mxu0 0.0
      %3745 = vmatpush1.msra.mxu0 0.0
      %3746 = vmatprep.subr.mxu0 0.0
      %3747 = vmatpush1.msra.mxu0 0.0
      %3748 = vmatprep.subr.mxu0 0.0
      %3749 = vmatpush1.msra.mxu0 0.0
      %3750 = vmatprep.subr.mxu0 0.0
      %3751 = vmatpush1.msra.mxu0 0.0
      %3752 = vmatprep.subr.mxu0 0.0
      %3753 = vmatpush1.msra.mxu0 0.0
      %3754 = vmatprep.subr.mxu0 0.0
      %3755 = vmatpush1.msra.mxu0 0.0
      %3756 = vmatprep.subr.mxu0 0.0
      %3757 = vmatpush1.msra.mxu0 0.0
      %3758 = vmatprep.subr.mxu0 0.0
      %3759 = vmatpush1.msra.mxu0 0.0
      %3760 = vmatprep.subr.mxu0 0.0
      %3761 = vmatpush1.msra.mxu0 0.0
      %3762 = vmatprep.subr.mxu0 0.0
      %3763 = vmatpush1.msra.mxu0 0.0
      %3764 = vmatprep.subr.mxu0 0.0
      %3765 = vmatpush1.msra.mxu0 0.0
      %3766 = vmatprep.subr.mxu0 0.0
      %3767 = vmatpush1.msra.mxu0 0.0
      %3768 = vmatprep.subr.mxu0 0.0
      %3769 = vmatpush1.msra.mxu0 0.0
      %3770 = vmatprep.subr.mxu0 0.0
      %3771 = vmatpush1.msra.mxu0 0.0
      %3772 = vmatprep.subr.mxu0 0.0
      %3773 = vmatpush1.msra.mxu0 0.0
      %3774 = vmatprep.subr.mxu0 0.0
      %3775 = vmatpush1.msra.mxu0 0.0
      %3776 = vmatprep.subr.mxu0 0.0
      %3777 = vmatpush1.msra.mxu0 0.0
      %3778 = vmatprep.subr.mxu0 0.0
      %3779 = vmatpush1.msra.mxu0 0.0
      %3780 = vmatprep.subr.mxu0 0.0
      %3781 = vmatpush1.msra.mxu0 0.0
      %3782 = vmatprep.subr.mxu0 0.0
      %3783 = vmatpush1.msra.mxu0 0.0
      %3784 = vmatprep.subr.mxu0 0.0
      %3785 = vmatpush1.msra.mxu0 0.0
      %3786 = vmatprep.subr.mxu0 0.0
      %3787 = vmatpush1.msra.mxu0 0.0
      %3788 = vmatprep.subr.mxu0 0.0
      %3789 = vmatpush1.msra.mxu0 0.0
      %3790 = vmatprep.mubr.f32.mxu0 0.0
      %3791 = vmatmul.mubr.f32.gmra.mrb[0].mxu0 %v3631
      %v3792 = vpop.f32.mrb[0].mxu0
      %v3793 = vadd.f32 0.0, %v3792
      %v3794 = vpop.f32.mrb[0].mxu0
      %3795 = vmatprep.mubr.f32.mxu0 0.0
      %3796 = vmatmul.mubr.f32.gmra.mrb[0].mxu0 %v3634
      %v3797 = vpop.f32.mrb[0].mxu0
      %v3798 = vadd.f32 0.0, %v3797
      %v3799 = vpop.f32.mrb[0].mxu0
      %3800 = vmatprep.mubr.f32.mxu0 0.0
      %3801 = vmatmul.mubr.f32.gmra.mrb[0].mxu0 %v3637
      %v3802 = vpop.f32.mrb[0].mxu0
      %v3803 = vadd.f32 0.0, %v3802
      %v3804 = vpop.f32.mrb[0].mxu0
      %3805 = vmatprep.mubr.f32.mxu0 0.0
      %3806 = vmatmul.mubr.f32.gmra.mrb[0].mxu0 %v3640
      %v3807 = vpop.f32.mrb[0].mxu0
      %v3808 = vadd.f32 0.0, %v3807
      %v3809 = vpop.f32.mrb[0].mxu0
      %3810 = vmatprep.mubr.f32.mxu0 0.0
      %3811 = vmatmul.mubr.f32.gmra.mrb[0].mxu0 %v3643
      %v3812 = vpop.f32.mrb[0].mxu0
      %v3813 = vadd.f32 0.0, %v3812
      %v3814 = vpop.f32.mrb[0].mxu0
      %3815 = vmatprep.mubr.f32.mxu0 0.0
      %3816 = vmatmul.mubr.f32.gmra.mrb[0].mxu0 %v3646
      %v3817 = vpop.f32.mrb[0].mxu0
      %v3818 = vadd.f32 0.0, %v3817
      %v3819 = vpop.f32.mrb[0].mxu0
      %3820 = vmatprep.mubr.f32.mxu0 0.0
      %3821 = vmatmul.mubr.f32.gmra.mrb[0].mxu0 %v3649
      %v3822 = vpop.f32.mrb[0].mxu0
      %v3823 = vadd.f32 0.0, %v3822
      %v3824 = vpop.f32.mrb[0].mxu0
      %3825 = vmatprep.mubr.f32.mxu0 0.0
      %3826 = vmatmul.mubr.f32.gmra.mrb[0].mxu0 %v3652
      %v3827 = vpop.f32.mrb[0].mxu0
      %v3828 = vadd.f32 0.0, %v3827
      %v3829 = vpop.f32.mrb[0].mxu0
      %3830 = vmatprep.mubr.f32.mxu0 0.0
      %3831 = vmatmul.mubr.f32.gmra.mrb[0].mxu0 %v3655
      %v3832 = vpop.f32.mrb[0].mxu0
      %v3833 = vadd.f32 0.0, %v3832
      %v3834 = vpop.f32.mrb[0].mxu0
      %3835 = vmatprep.mubr.f32.mxu0 0.0
      %3836 = vmatmul.mubr.f32.gmra.mrb[0].mxu0 %v3658
      %v3837 = vpop.f32.mrb[0].mxu0
      %v3838 = vadd.f32 0.0, %v3837
      %v3839 = vpop.f32.mrb[0].mxu0
      %3840 = vmatprep.mubr.f32.mxu0 0.0
      %3841 = vmatmul.mubr.f32.gmra.mrb[0].mxu0 %v3661
      %v3842 = vpop.f32.mrb[0].mxu0
      %v3843 = vadd.f32 0.0, %v3842
      %v3844 = vpop.f32.mrb[0].mxu0
      %3845 = vmatprep.mubr.f32.mxu0 0.0
      %3846 = vmatmul.mubr.f32.gmra.mrb[0].mxu0 %v3664
      %v3847 = vpop.f32.mrb[0].mxu0
      %v3848 = vadd.f32 0.0, %v3847
      %v3849 = vpop.f32.mrb[0].mxu0
      %3850 = vmatprep.mubr.f32.mxu0 0.0
      %3851 = vmatmul.mubr.f32.gmra.mrb[0].mxu0 %v3667
      %v3852 = vpop.f32.mrb[0].mxu0
      %v3853 = vadd.f32 0.0, %v3852
      %v3854 = vpop.f32.mrb[0].mxu0
      %3855 = vmatprep.mubr.f32.mxu0 0.0
      %3856 = vmatmul.mubr.f32.gmra.mrb[0].mxu0 %v3670
      %v3857 = vpop.f32.mrb[0].mxu0
      %v3858 = vadd.f32 0.0, %v3857
      %v3859 = vpop.f32.mrb[0].mxu0
      %3860 = vmatprep.mubr.f32.mxu0 0.0
      %3861 = vmatmul.mubr.f32.gmra.mrb[0].mxu0 %v3673
      %v3862 = vpop.f32.mrb[0].mxu0
      %v3863 = vadd.f32 0.0, %v3862
      %v3864 = vpop.f32.mrb[0].mxu0
      %3865 = vmatprep.mubr.f32.mxu0 0.0
      %3866 = vmatmul.mubr.f32.gmra.mrb[0].mxu0 %v3676
      %v3867 = vpop.f32.mrb[0].mxu0
      %v3868 = vadd.f32 0.0, %v3867
      %v3869 = vpop.f32.mrb[0].mxu0
      %3870 = vmatprep.mubr.f32.mxu0 0.0
      %3871 = vmatmul.mubr.f32.gmra.mrb[0].mxu0 %v3679
      %v3872 = vpop.f32.mrb[0].mxu0
      %v3873 = vadd.f32 0.0, %v3872
      %v3874 = vpop.f32.mrb[0].mxu0
      %3875 = vmatprep.mubr.f32.mxu0 0.0
      %3876 = vmatmul.mubr.f32.gmra.mrb[0].mxu0 %v3682
      %v3877 = vpop.f32.mrb[0].mxu0
      %v3878 = vadd.f32 0.0, %v3877
      %v3879 = vpop.f32.mrb[0].mxu0
      %3880 = vmatprep.mubr.f32.mxu0 0.0
      %3881 = vmatmul.mubr.f32.gmra.mrb[0].mxu0 %v3685
      %v3882 = vpop.f32.mrb[0].mxu0
      %v3883 = vadd.f32 0.0, %v3882
      %v3884 = vpop.f32.mrb[0].mxu0
      %3885 = vmatprep.mubr.f32.mxu0 0.0
      %3886 = vmatmul.mubr.f32.gmra.mrb[0].mxu0 %v3688
      %v3887 = vpop.f32.mrb[0].mxu0
      %v3888 = vadd.f32 0.0, %v3887
      %v3889 = vpop.f32.mrb[0].mxu0
      %3890 = vmatprep.mubr.f32.mxu0 0.0
      %3891 = vmatmul.mubr.f32.gmra.mrb[0].mxu0 %v3691
      %v3892 = vpop.f32.mrb[0].mxu0
      %v3893 = vadd.f32 0.0, %v3892
      %v3894 = vpop.f32.mrb[0].mxu0
      %3895 = vmatprep.mubr.f32.mxu0 0.0
      %3896 = vmatmul.mubr.f32.gmra.mrb[0].mxu0 %v3694
      %v3897 = vpop.f32.mrb[0].mxu0
      %v3898 = vadd.f32 0.0, %v3897
      %v3899 = vpop.f32.mrb[0].mxu0
      %3900 = vmatprep.mubr.f32.mxu0 0.0
      %3901 = vmatmul.mubr.f32.gmra.mrb[0].mxu0 %v3697
      %v3902 = vpop.f32.mrb[0].mxu0
      %v3903 = vadd.f32 0.0, %v3902
      %v3904 = vpop.f32.mrb[0].mxu0
      %3905 = vmatprep.mubr.f32.mxu0 0.0
      %3906 = vmatmul.mubr.f32.gmra.mrb[0].mxu0 %v3700
      %v3907 = vpop.f32.mrb[0].mxu0
      %v3908 = vadd.f32 0.0, %v3907
      %v3909 = vpop.f32.mrb[0].mxu0
      %3910 = vmatprep.mubr.f32.mxu0 0.0
      %3911 = vmatmul.mubr.f32.gmra.mrb[0].mxu0 %v3703
      %v3912 = vpop.f32.mrb[0].mxu0
      %v3913 = vadd.f32 0.0, %v3912
      %v3914 = vpop.f32.mrb[0].mxu0
      %3915 = vmatprep.mubr.f32.mxu0 0.0
      %3916 = vmatmul.mubr.f32.gmra.mrb[0].mxu0 %v3706
      %v3917 = vpop.f32.mrb[0].mxu0
      %v3918 = vadd.f32 0.0, %v3917
      %v3919 = vpop.f32.mrb[0].mxu0
      %3920 = vmatprep.mubr.f32.mxu0 0.0
      %3921 = vmatmul.mubr.f32.gmra.mrb[0].mxu0 %v3709
      %v3922 = vpop.f32.mrb[0].mxu0
      %v3923 = vadd.f32 0.0, %v3922
      %v3924 = vpop.f32.mrb[0].mxu0
      %3925 = vmatprep.mubr.f32.mxu0 0.0
      %3926 = vmatmul.mubr.f32.gmra.mrb[0].mxu0 %v3712
      %v3927 = vpop.f32.mrb[0].mxu0
      %v3928 = vadd.f32 0.0, %v3927
      %v3929 = vpop.f32.mrb[0].mxu0
      %3930 = vmatprep.mubr.f32.mxu0 0.0
      %3931 = vmatmul.mubr.f32.gmra.mrb[0].mxu0 %v3715
      %v3932 = vpop.f32.mrb[0].mxu0
      %v3933 = vadd.f32 0.0, %v3932
      %v3934 = vpop.f32.mrb[0].mxu0
      %3935 = vmatprep.mubr.f32.mxu0 0.0
      %3936 = vmatmul.mubr.f32.gmra.mrb[0].mxu0 %v3718
      %v3937 = vpop.f32.mrb[0].mxu0
      %v3938 = vadd.f32 0.0, %v3937
      %v3939 = vpop.f32.mrb[0].mxu0
      %3940 = vmatprep.mubr.f32.mxu0 0.0
      %3941 = vmatmul.mubr.f32.gmra.mrb[0].mxu0 %v3721
      %v3942 = vpop.f32.mrb[0].mxu0
      %v3943 = vadd.f32 0.0, %v3942
      %v3944 = vpop.f32.mrb[0].mxu0
      %3945 = vmatprep.mubr.f32.mxu0 0.0
      %3946 = vmatmul.mubr.f32.gmra.mrb[0].mxu0 %v3724
      %v3947 = vpop.f32.mrb[0].mxu0
      %v3948 = vadd.f32 0.0, %v3947
      %v3949 = vpop.f32.mrb[0].mxu0
      %3950 = vdwg.mxu0
      %v3951 = vadd.f32 %v3563, %v3793
      %v3952 = vadd.f32 %v3564, %v3798
      %v3953 = vadd.f32 %v3565, %v3803
      %v3954 = vadd.f32 %v3566, %v3808
      %v3955 = vadd.f32 %v3567, %v3813
      %v3956 = vadd.f32 %v3568, %v3818
      %v3957 = vadd.f32 %v3569, %v3823
      %v3958 = vadd.f32 %v3570, %v3828
      %v3959 = vadd.f32 %v3571, %v3833
      %v3960 = vadd.f32 %v3572, %v3838
      %v3961 = vadd.f32 %v3573, %v3843
      %v3962 = vadd.f32 %v3574, %v3848
      %v3963 = vadd.f32 %v3575, %v3853
      %v3964 = vadd.f32 %v3576, %v3858
      %v3965 = vadd.f32 %v3577, %v3863
      %v3966 = vadd.f32 %v3578, %v3868
      %v3967 = vadd.f32 %v3579, %v3873
      %v3968 = vadd.f32 %v3580, %v3878
      %v3969 = vadd.f32 %v3581, %v3883
      %v3970 = vadd.f32 %v3582, %v3888
      %v3971 = vadd.f32 %v3583, %v3893
      %v3972 = vadd.f32 %v3584, %v3898
      %v3973 = vadd.f32 %v3585, %v3903
      %v3974 = vadd.f32 %v3586, %v3908
      %v3975 = vadd.f32 %v3587, %v3913
      %v3976 = vadd.f32 %v3588, %v3918
      %v3977 = vadd.f32 %v3589, %v3923
      %v3978 = vadd.f32 %v3590, %v3928
      %v3979 = vadd.f32 %v3591, %v3933
      %v3980 = vadd.f32 %v3592, %v3938
      %v3981 = vadd.f32 %v3593, %v3943
      %v3982 = vadd.f32 %v3594, %v3948
      %3983 = vst.msk [vmem:[%s258] sm:$0xff] %vm405, %v3951
      %3984 = vst.msk [vmem:[%s258 + $0x8] sm:$0xff] %vm405, %v3952
      %3985 = vst.msk [vmem:[%s258 + $0x10] sm:$0xff] %vm405, %v3953
      %3986 = vst.msk [vmem:[%s258 + $0x18] sm:$0xff] %vm405, %v3954
      %3987 = vst.msk [vmem:[%s258 + $0x20] sm:$0xff] %vm405, %v3955
      %3988 = vst.msk [vmem:[%s258 + $0x28] sm:$0xff] %vm405, %v3956
      %3989 = vst.msk [vmem:[%s258 + $0x30] sm:$0xff] %vm405, %v3957
      %3990 = vst.msk [vmem:[%s258 + $0x38] sm:$0xff] %vm405, %v3958
      %3991 = vst.msk [vmem:[%s258 + $0x40] sm:$0xff] %vm405, %v3959
      %3992 = vst.msk [vmem:[%s258 + $0x48] sm:$0xff] %vm405, %v3960
      %3993 = vst.msk [vmem:[%s258 + $0x50] sm:$0xff] %vm405, %v3961
      %3994 = vst.msk [vmem:[%s258 + $0x58] sm:$0xff] %vm405, %v3962
      %3995 = vst.msk [vmem:[%s258 + $0x60] sm:$0xff] %vm405, %v3963
      %3996 = vst.msk [vmem:[%s258 + $0x68] sm:$0xff] %vm405, %v3964
      %3997 = vst.msk [vmem:[%s258 + $0x70] sm:$0xff] %vm405, %v3965
      %3998 = vst.msk [vmem:[%s258 + $0x78] sm:$0xff] %vm405, %v3966
      %3999 = vst.msk [vmem:[%s258 + $0x80] sm:$0xff] %vm405, %v3967
      %4000 = vst.msk [vmem:[%s258 + $0x88] sm:$0xff] %vm405, %v3968
      %4001 = vst.msk [vmem:[%s258 + $0x90] sm:$0xff] %vm405, %v3969
      %4002 = vst.msk [vmem:[%s258 + $0x98] sm:$0xff] %vm405, %v3970
      %4003 = vst.msk [vmem:[%s258 + $0xa0] sm:$0xff] %vm405, %v3971
      %4004 = vst.msk [vmem:[%s258 + $0xa8] sm:$0xff] %vm405, %v3972
      %4005 = vst.msk [vmem:[%s258 + $0xb0] sm:$0xff] %vm405, %v3973
      %4006 = vst.msk [vmem:[%s258 + $0xb8] sm:$0xff] %vm405, %v3974
      %4007 = vst.msk [vmem:[%s258 + $0xc0] sm:$0xff] %vm405, %v3975
      %4008 = vst.msk [vmem:[%s258 + $0xc8] sm:$0xff] %vm405, %v3976
      %4009 = vst.msk [vmem:[%s258 + $0xd0] sm:$0xff] %vm405, %v3977
      %4010 = vst.msk [vmem:[%s258 + $0xd8] sm:$0xff] %vm405, %v3978
      %4011 = vst.msk [vmem:[%s258 + $0xe0] sm:$0xff] %vm405, %v3979
      %4012 = vst.msk [vmem:[%s258 + $0xe8] sm:$0xff] %vm405, %v3980
      %4013 = vst.msk [vmem:[%s258 + $0xf0] sm:$0xff] %vm405, %v3981
      %4014 = vst.msk [vmem:[%s258 + $0xf8] sm:$0xff] %vm405, %v3982
      %v4015 = vsel %vm405, %v3951, 0.0
      %v4016 = vsel %vm405, %v3952, 0.0
      %v4017 = vadd.f32 %v4015, %v4016
      %v4018 = vsel %vm405, %v3953, 0.0
      %v4019 = vadd.f32 %v4017, %v4018
      %v4020 = vsel %vm405, %v3954, 0.0
      %v4021 = vadd.f32 %v4019, %v4020
      %v4022 = vsel %vm405, %v3955, 0.0
      %v4023 = vadd.f32 %v4021, %v4022
      %v4024 = vsel %vm405, %v3956, 0.0
      %v4025 = vadd.f32 %v4023, %v4024
      %v4026 = vsel %vm405, %v3957, 0.0
      %v4027 = vadd.f32 %v4025, %v4026
      %v4028 = vsel %vm405, %v3958, 0.0
      %v4029 = vadd.f32 %v4027, %v4028
      %v4030 = vsel %vm405, %v3959, 0.0
      %v4031 = vadd.f32 %v4029, %v4030
      %v4032 = vsel %vm405, %v3960, 0.0
      %v4033 = vadd.f32 %v4031, %v4032
      %v4034 = vsel %vm405, %v3961, 0.0
      %v4035 = vadd.f32 %v4033, %v4034
      %v4036 = vsel %vm405, %v3962, 0.0
      %v4037 = vadd.f32 %v4035, %v4036
      %v4038 = vsel %vm405, %v3963, 0.0
      %v4039 = vadd.f32 %v4037, %v4038
      %v4040 = vsel %vm405, %v3964, 0.0
      %v4041 = vadd.f32 %v4039, %v4040
      %v4042 = vsel %vm405, %v3965, 0.0
      %v4043 = vadd.f32 %v4041, %v4042
      %v4044 = vsel %vm405, %v3966, 0.0
      %v4045 = vadd.f32 %v4043, %v4044
      %v4046 = vsel %vm405, %v3967, 0.0
      %v4047 = vadd.f32 %v4045, %v4046
      %v4048 = vsel %vm405, %v3968, 0.0
      %v4049 = vadd.f32 %v4047, %v4048
      %v4050 = vsel %vm405, %v3969, 0.0
      %v4051 = vadd.f32 %v4049, %v4050
      %v4052 = vsel %vm405, %v3970, 0.0
      %v4053 = vadd.f32 %v4051, %v4052
      %v4054 = vsel %vm405, %v3971, 0.0
      %v4055 = vadd.f32 %v4053, %v4054
      %v4056 = vsel %vm405, %v3972, 0.0
      %v4057 = vadd.f32 %v4055, %v4056
      %v4058 = vsel %vm405, %v3973, 0.0
      %v4059 = vadd.f32 %v4057, %v4058
      %v4060 = vsel %vm405, %v3974, 0.0
      %v4061 = vadd.f32 %v4059, %v4060
      %v4062 = vsel %vm405, %v3975, 0.0
      %v4063 = vadd.f32 %v4061, %v4062
      %v4064 = vsel %vm405, %v3976, 0.0
      %v4065 = vadd.f32 %v4063, %v4064
      %v4066 = vsel %vm405, %v3977, 0.0
      %v4067 = vadd.f32 %v4065, %v4066
      %v4068 = vsel %vm405, %v3978, 0.0
      %v4069 = vadd.f32 %v4067, %v4068
      %v4070 = vsel %vm405, %v3979, 0.0
      %v4071 = vadd.f32 %v4069, %v4070
      %v4072 = vsel %vm405, %v3980, 0.0
      %v4073 = vadd.f32 %v4071, %v4072
      %v4074 = vsel %vm405, %v3981, 0.0
      %v4075 = vadd.f32 %v4073, %v4074
      %v4076 = vsel %vm405, %v3982, 0.0
      %v4077 = vadd.f32 %v4075, %v4076
      %v4078 = vrot.slane %v4077, 4
      %v4079 = vadd.f32 %v4077, %v4078
      %v4080 = vrot.slane %v4079, 2
      %v4081 = vadd.f32 %v4079, %v4080
      %v4082 = vrot.slane %v4081, 1
      %v4083 = vadd.f32 %v4081, %v4082
      %v4084 = vmul.f32 %v4083, 0.00390625
      %v4085 = vsub.f32 %v3951, %v4084
      %v4086 = vsub.f32 %v3952, %v4084
      %v4087 = vsub.f32 %v3953, %v4084
      %v4088 = vsub.f32 %v3954, %v4084
      %v4089 = vsub.f32 %v3955, %v4084
      %v4090 = vsub.f32 %v3956, %v4084
      %v4091 = vsub.f32 %v3957, %v4084
      %v4092 = vsub.f32 %v3958, %v4084
      %v4093 = vsub.f32 %v3959, %v4084
      %v4094 = vsub.f32 %v3960, %v4084
      %v4095 = vsub.f32 %v3961, %v4084
      %v4096 = vsub.f32 %v3962, %v4084
      %v4097 = vsub.f32 %v3963, %v4084
      %v4098 = vsub.f32 %v3964, %v4084
      %v4099 = vsub.f32 %v3965, %v4084
      %v4100 = vsub.f32 %v3966, %v4084
      %v4101 = vsub.f32 %v3967, %v4084
      %v4102 = vsub.f32 %v3968, %v4084
      %v4103 = vsub.f32 %v3969, %v4084
      %v4104 = vsub.f32 %v3970, %v4084
      %v4105 = vsub.f32 %v3971, %v4084
      %v4106 = vsub.f32 %v3972, %v4084
      %v4107 = vsub.f32 %v3973, %v4084
      %v4108 = vsub.f32 %v3974, %v4084
      %v4109 = vsub.f32 %v3975, %v4084
      %v4110 = vsub.f32 %v3976, %v4084
      %v4111 = vsub.f32 %v3977, %v4084
      %v4112 = vsub.f32 %v3978, %v4084
      %v4113 = vsub.f32 %v3979, %v4084
      %v4114 = vsub.f32 %v3980, %v4084
      %v4115 = vsub.f32 %v3981, %v4084
      %v4116 = vsub.f32 %v3982, %v4084
      %4117 = vst.msk [vmem:[%s262] sm:$0x1] %vm414, %v4083
      %v4118 = vmul.f32 %v4085, %v4085
      %v4119 = vmul.f32 %v4086, %v4086
      %v4120 = vmul.f32 %v4087, %v4087
      %v4121 = vmul.f32 %v4088, %v4088
      %v4122 = vmul.f32 %v4089, %v4089
      %v4123 = vmul.f32 %v4090, %v4090
      %v4124 = vmul.f32 %v4091, %v4091
      %v4125 = vmul.f32 %v4092, %v4092
      %v4126 = vmul.f32 %v4093, %v4093
      %v4127 = vmul.f32 %v4094, %v4094
      %v4128 = vmul.f32 %v4095, %v4095
      %v4129 = vmul.f32 %v4096, %v4096
      %v4130 = vmul.f32 %v4097, %v4097
      %v4131 = vmul.f32 %v4098, %v4098
      %v4132 = vmul.f32 %v4099, %v4099
      %v4133 = vmul.f32 %v4100, %v4100
      %v4134 = vmul.f32 %v4101, %v4101
      %v4135 = vmul.f32 %v4102, %v4102
      %v4136 = vmul.f32 %v4103, %v4103
      %v4137 = vmul.f32 %v4104, %v4104
      %v4138 = vmul.f32 %v4105, %v4105
      %v4139 = vmul.f32 %v4106, %v4106
      %v4140 = vmul.f32 %v4107, %v4107
      %v4141 = vmul.f32 %v4108, %v4108
      %v4142 = vmul.f32 %v4109, %v4109
      %v4143 = vmul.f32 %v4110, %v4110
      %v4144 = vmul.f32 %v4111, %v4111
      %v4145 = vmul.f32 %v4112, %v4112
      %v4146 = vmul.f32 %v4113, %v4113
      %v4147 = vmul.f32 %v4114, %v4114
      %v4148 = vmul.f32 %v4115, %v4115
      %v4149 = vmul.f32 %v4116, %v4116
      %v4150 = vsel %vm405, %v4118, 0.0
      %v4151 = vsel %vm405, %v4119, 0.0
      %v4152 = vadd.f32 %v4150, %v4151
      %v4153 = vsel %vm405, %v4120, 0.0
      %v4154 = vadd.f32 %v4152, %v4153
      %v4155 = vsel %vm405, %v4121, 0.0
      %v4156 = vadd.f32 %v4154, %v4155
      %v4157 = vsel %vm405, %v4122, 0.0
      %v4158 = vadd.f32 %v4156, %v4157
      %v4159 = vsel %vm405, %v4123, 0.0
      %v4160 = vadd.f32 %v4158, %v4159
      %v4161 = vsel %vm405, %v4124, 0.0
      %v4162 = vadd.f32 %v4160, %v4161
      %v4163 = vsel %vm405, %v4125, 0.0
      %v4164 = vadd.f32 %v4162, %v4163
      %v4165 = vsel %vm405, %v4126, 0.0
      %v4166 = vadd.f32 %v4164, %v4165
      %v4167 = vsel %vm405, %v4127, 0.0
      %v4168 = vadd.f32 %v4166, %v4167
      %v4169 = vsel %vm405, %v4128, 0.0
      %v4170 = vadd.f32 %v4168, %v4169
      %v4171 = vsel %vm405, %v4129, 0.0
      %v4172 = vadd.f32 %v4170, %v4171
      %v4173 = vsel %vm405, %v4130, 0.0
      %v4174 = vadd.f32 %v4172, %v4173
      %v4175 = vsel %vm405, %v4131, 0.0
      %v4176 = vadd.f32 %v4174, %v4175
      %v4177 = vsel %vm405, %v4132, 0.0
      %v4178 = vadd.f32 %v4176, %v4177
      %v4179 = vsel %vm405, %v4133, 0.0
      %v4180 = vadd.f32 %v4178, %v4179
      %v4181 = vsel %vm405, %v4134, 0.0
      %v4182 = vadd.f32 %v4180, %v4181
      %v4183 = vsel %vm405, %v4135, 0.0
      %v4184 = vadd.f32 %v4182, %v4183
      %v4185 = vsel %vm405, %v4136, 0.0
      %v4186 = vadd.f32 %v4184, %v4185
      %v4187 = vsel %vm405, %v4137, 0.0
      %v4188 = vadd.f32 %v4186, %v4187
      %v4189 = vsel %vm405, %v4138, 0.0
      %v4190 = vadd.f32 %v4188, %v4189
      %v4191 = vsel %vm405, %v4139, 0.0
      %v4192 = vadd.f32 %v4190, %v4191
      %v4193 = vsel %vm405, %v4140, 0.0
      %v4194 = vadd.f32 %v4192, %v4193
      %v4195 = vsel %vm405, %v4141, 0.0
      %v4196 = vadd.f32 %v4194, %v4195
      %v4197 = vsel %vm405, %v4142, 0.0
      %v4198 = vadd.f32 %v4196, %v4197
      %v4199 = vsel %vm405, %v4143, 0.0
      %v4200 = vadd.f32 %v4198, %v4199
      %v4201 = vsel %vm405, %v4144, 0.0
      %v4202 = vadd.f32 %v4200, %v4201
      %v4203 = vsel %vm405, %v4145, 0.0
      %v4204 = vadd.f32 %v4202, %v4203
      %v4205 = vsel %vm405, %v4146, 0.0
      %v4206 = vadd.f32 %v4204, %v4205
      %v4207 = vsel %vm405, %v4147, 0.0
      %v4208 = vadd.f32 %v4206, %v4207
      %v4209 = vsel %vm405, %v4148, 0.0
      %v4210 = vadd.f32 %v4208, %v4209
      %v4211 = vsel %vm405, %v4149, 0.0
      %v4212 = vadd.f32 %v4210, %v4211
      %v4213 = vrot.slane %v4212, 4
      %v4214 = vadd.f32 %v4212, %v4213
      %v4215 = vrot.slane %v4214, 2
      %v4216 = vadd.f32 %v4214, %v4215
      %v4217 = vrot.slane %v4216, 1
      %v4218 = vadd.f32 %v4216, %v4217
      %4219 = vst.msk [vmem:[%s262 + $0x1] sm:$0x1] %vm414, %v4218
      %p4220 = scmp.lt.s32.totalorder %s18, 1
      %s4221 = scalar_select %p4220, %s18, 1
      %s4222 = smul.addr %s4221, 32
      %s4223 = smul.addr %s4222, 8
      %s4224 = scalar_lea.vmem %s5, %s4223
      %p4225 = scmp.lt.s32.totalorder %s18, 1
      %s4226 = scalar_select %p4225, %s18, 1
      %s4227 = smul.addr %s4226, 2
      %s4228 = scalar_lea.vmem %s6, %s4227
      // Predicated region
      $region41: #{up_conv.4} parent=39 // pred_check
        %p4229 = pneg %p146
      $region42: #{up_conv.4} parent=39 // pred_check_branch
        %4231 = sbr.rel (%p4229) target = $region44
      $region43: #{up_conv.4} parent=39 // pred_region
        _
      $region44: #{up_conv.4} parent=39 // pred_fallthru
        _
      // Predicated region
      $region45: #{up_conv.4} parent=39 // pred_check
        %p4232 = pneg %p172
      $region46: #{up_conv.4} parent=39 // pred_check_branch
        %4234 = sbr.rel (%p4232) target = $region48
      $region47: #{up_conv.4} parent=39 // pred_region
        _
      $region48: #{up_conv.4} parent=39 // pred_fallthru
        _
    $region40: #{up_conv.4} parent=5 // pred_fallthru
      _
    %p4235 = scmp.le.s32.totalorder 2, %s13
    // Predicated region
    $region49: #{up_conv.4} parent=5 // pred_check
      %p4236 = pneg %p4235
    $region50: #{up_conv.4} parent=5 // pred_check_branch
      %4238 = sbr.rel (%p4236) target = $region52
    $region51: #{up_conv.4} parent=5 // pred_region
      %s4239 = ssub.s32 %s13, 2
      // Predicated region
      $region53: #{up_conv.4} parent=51 // pred_check
        %p4240 = pneg %p152
      $region54: #{up_conv.4} parent=51 // pred_check_branch
        %4242 = sbr.rel (%p4240) target = $region56
      $region55: #{up_conv.4} parent=51 // pred_region
        %p4243 = scmp.lt.s32.totalorder %s19, 1
        %s4244 = scalar_select %p4243, %s19, 1
        %s4245 = smul.addr %s4244, 32
        %s4246 = smul.addr %s4245, 8
        %s4247 = scalar_lea.vmem %s5, %s4246
      $region56: #{up_conv.4} parent=51 // pred_fallthru
        _
      // Predicated region
      $region57: #{up_conv.4} parent=51 // pred_check
        %p4248 = pneg %p178
      $region58: #{up_conv.4} parent=51 // pred_check_branch
        %4250 = sbr.rel (%p4248) target = $region60
      $region59: #{up_conv.4} parent=51 // pred_region
        %p4251 = scmp.lt.s32.totalorder %s19, 1
        %s4252 = scalar_select %p4251, %s19, 1
        %s4253 = smul.addr %s4252, 2
        %s4254 = scalar_lea.vmem %s6, %s4253
      $region60: #{up_conv.4} parent=51 // pred_fallthru
        _
    $region52: #{up_conv.4} parent=5 // pred_fallthru
      _
  $region6: #{up_conv.4} parent=0 // loop_footer
    %s17 = sadd.s32 1, %s13
  $region7: #{up_conv.4} parent=0 // loop_footer_branch
    %12 = sbr.rel target = $region3
  $region8: #{up_conv.4} parent=0 // loop_exit
    _

// kernel: up_conv.3
$region0: #{up_conv.3}
  #allocation0 [shape = 'u32[]', space=smem, size = 0x4, offset = 0x4, fixed_abs, tag = 'smem constant byte address 0x4 - core index']
  #allocation1 [shape = 'u32[144,128]{1,0:T(1,128)}', space=vmem, size = 0x12000, scoped, tag = 'internal scratch']
  #allocation2 [shape = 'f32[8,16,8]{2,1,0:T(8,128)}', space=vmem, size = 0x10000, scoped, tag = 'scratch operand']
  #allocation3 [shape = 'f32[18,18,16]{2,1,0:T(8,128)}', space=vmem, size = 0x36000, scoped, tag = 'scratch operand']
  %s0 = inlined_call_operand.vmem [shape: f32[2,8,8,8], index: 0, kind: input, shape index: {}]
  %s1 = inlined_call_operand.vmem [shape: f32[2,16,16,16], index: 1, kind: input, shape index: {}]
  %s2 = inlined_call_operand.vmem [shape: f32[16,8], index: 2, kind: input, shape index: {}]
  %s3 = inlined_call_operand.vmem [shape: s32[16,2], index: 3, kind: input, shape index: {}]
  %s4 = inlined_call_operand.vmem [shape: f32[16,2], index: 4, kind: input, shape index: {}]
  %s5 = inlined_call_operand.vmem [shape: f32[16,8], index: 5, kind: input, shape index: {}]
  %s6 = inlined_call_operand.vmem [shape: f32[9,16,16], index: 6, kind: input, shape index: {}]
  %s7 = inlined_call_operand.vmem [shape: f32[1,16], index: 7, kind: input, shape index: {}]
  %s8 = inlined_call_operand.vmem [shape: f32[2,16,16,16], index: 8, kind: output, shape index: {0}]
  %s9 = inlined_call_operand.vmem [shape: f32[2,2,16], index: 9, kind: output, shape index: {1}]
  %10 = xla_tuple %s8, %s9
  %s11 = sld [smem:[#allocation0]]
  $region95: #{up_conv.3} parent=0
    _
  %s13 = ssub.s32 1, %s11
  %s14 = scalar_select 0, %s13, %s11
  $region1: #{up_conv.3} parent=0
    #allocation4 [shape = 'u8[8192]{0}', space=smem, size = 0x2000, scoped, tag = 'input window, operand 3, single buffered']
    #allocation5 [shape = 's32[2]{0}', space=sflag, size = 0x8, scoped, tag = 'scoped memory for up_conv.3']
    #allocation6 [shape = 'u8[8192]{0}', space=smem, size = 0x2000, scoped, tag = 'input window, operand 4, single buffered']
    #allocation7 [shape = 's32[1]{0}', space=sflag, size = 0x4, scoped, tag = 'scoped memory for up_conv.3']
    %15 = vsyncpa [#allocation5], 0
    %16 = vsyncpa [#allocation7], 0
    loop: start=0, step=1, limit=4
    $region2: #{up_conv.3} parent=1 // loop_pre_header
      _
    $region3: #{up_conv.3} parent=1 // loop_header
      %s18 = sphi 0, %s22
      %p19 = scmp.ge.s32.totalorder %s18, 4
      %s28 = sphi 0, %s30
      %s31 = sphi 0, %s28
      %s32 = sphi 0, %s31
      %s48 = sphi 0, %s32
      %s54 = sphi 0, %s56
      %s57 = sphi 0, %s54
      %s58 = sphi 0, %s57
      %s74 = sphi 0, %s58
      %s78 = sphi 0, %s78
      %s80 = sphi 0, %s78
      %s81 = sphi 0, %s80
      %s95 = sphi 0, %s81
      %s99 = sphi 0, %s99
      %s101 = sphi 0, %s99
      %s102 = sphi 0, %s101
      %s116 = sphi 0, %s102
      %s120 = sphi 0, %s120
      %s122 = sphi 0, %s120
      %s123 = sphi 0, %s122
      %s137 = sphi 0, %s123
      %s141 = sphi 0, %s141
      %s143 = sphi 0, %s141
      %s144 = sphi 0, %s143
      %s158 = sphi 0, %s144
      %s162 = sphi 0, %s162
      %s164 = sphi 0, %s162
      %s165 = sphi 0, %s164
      %s179 = sphi 0, %s165
      %s183 = sphi 0, %s183
      %s185 = sphi 0, %s183
      %s186 = sphi 0, %s185
      %s200 = sphi 0, %s186
      %s206 = sphi 0, %s208
      %s209 = sphi 0, %s206
      %s210 = sphi 0, %s209
      %s226 = sphi 0, %s210
      %s232 = sphi 0, %s234
      %s235 = sphi 0, %s232
      %s236 = sphi 0, %s235
      %s252 = sphi 0, %s236
    $region4: #{up_conv.3} parent=1 // loop_header_branch
      %21 = sbr.rel (%p19) target = $region8
    $region5: #{up_conv.3} parent=1 // loop_body
      %s23 = ssub.s32 %s18, 1
      %s24 = ssub.s32 %s18, 2
      %s25 = sadd.s32 %s18, 1
      %s26 = ssub.s32 %s18, %s25
      %p27 = scmp.eq.s32.totalorder %s26, 0
      %s29 = sadd.s32 %s28, 1
      %s30 = scalar_select %p27, %s28, %s29
      %p33 = pneg %p27
      %p34 = scmp.eq.s32.totalorder %s18, 1
      %p35 = por %p33, %p34
      %p36 = scmp.ne.s32.totalorder %s28, %s31
      %p37 = scmp.eq.s32.totalorder %s18, 0
      %p38 = por %p36, %p37
      %p39 = scmp.ne.s32.totalorder %s28, %s31
      %p40 = scmp.eq.s32.totalorder %s23, 1
      %p41 = por %p39, %p40
      %p42 = scmp.ne.s32.totalorder %s31, %s32
      %p43 = scmp.eq.s32.totalorder %s23, 0
      %p44 = por %p42, %p43
      %p45 = scmp.ne.s32.totalorder %s31, %s32
      %p46 = scmp.eq.s32.totalorder %s24, 1
      %p47 = por %p45, %p46
      %p49 = scmp.ne.s32.totalorder %s32, %s48
      %p50 = scmp.eq.s32.totalorder %s24, 0
      %p51 = por %p49, %p50
      %s52 = ssub.s32 %s18, %s25
      %p53 = scmp.eq.s32.totalorder %s52, 0
      %s55 = sadd.s32 %s54, 1
      %s56 = scalar_select %p53, %s54, %s55
      %p59 = pneg %p53
      %p60 = scmp.eq.s32.totalorder %s18, 1
      %p61 = por %p59, %p60
      %p62 = scmp.ne.s32.totalorder %s54, %s57
      %p63 = scmp.eq.s32.totalorder %s18, 0
      %p64 = por %p62, %p63
      %p65 = scmp.ne.s32.totalorder %s54, %s57
      %p66 = scmp.eq.s32.totalorder %s23, 1
      %p67 = por %p65, %p66
      %p68 = scmp.ne.s32.totalorder %s57, %s58
      %p69 = scmp.eq.s32.totalorder %s23, 0
      %p70 = por %p68, %p69
      %p71 = scmp.ne.s32.totalorder %s57, %s58
      %p72 = scmp.eq.s32.totalorder %s24, 1
      %p73 = por %p71, %p72
      %p75 = scmp.ne.s32.totalorder %s58, %s74
      %p76 = scmp.eq.s32.totalorder %s24, 0
      %p77 = por %p75, %p76
      %s79 = sadd.s32 %s78, 1
      %p82 = scmp.eq.s32.totalorder %s18, 1
      %p83 = scmp.ne.s32.totalorder %s78, %s80
      %p84 = scmp.eq.s32.totalorder %s18, 0
      %p85 = por %p83, %p84
      %p86 = scmp.ne.s32.totalorder %s78, %s80
      %p87 = scmp.eq.s32.totalorder %s23, 1
      %p88 = por %p86, %p87
      %p89 = scmp.ne.s32.totalorder %s80, %s81
      %p90 = scmp.eq.s32.totalorder %s23, 0
      %p91 = por %p89, %p90
      %p92 = scmp.ne.s32.totalorder %s80, %s81
      %p93 = scmp.eq.s32.totalorder %s24, 1
      %p94 = por %p92, %p93
      %p96 = scmp.ne.s32.totalorder %s81, %s95
      %p97 = scmp.eq.s32.totalorder %s24, 0
      %p98 = por %p96, %p97
      %s100 = sadd.s32 %s99, 1
      %p103 = scmp.eq.s32.totalorder %s18, 1
      %p104 = scmp.ne.s32.totalorder %s99, %s101
      %p105 = scmp.eq.s32.totalorder %s18, 0
      %p106 = por %p104, %p105
      %p107 = scmp.ne.s32.totalorder %s99, %s101
      %p108 = scmp.eq.s32.totalorder %s23, 1
      %p109 = por %p107, %p108
      %p110 = scmp.ne.s32.totalorder %s101, %s102
      %p111 = scmp.eq.s32.totalorder %s23, 0
      %p112 = por %p110, %p111
      %p113 = scmp.ne.s32.totalorder %s101, %s102
      %p114 = scmp.eq.s32.totalorder %s24, 1
      %p115 = por %p113, %p114
      %p117 = scmp.ne.s32.totalorder %s102, %s116
      %p118 = scmp.eq.s32.totalorder %s24, 0
      %p119 = por %p117, %p118
      %s121 = sadd.s32 %s120, 1
      %p124 = scmp.eq.s32.totalorder %s18, 1
      %p125 = scmp.ne.s32.totalorder %s120, %s122
      %p126 = scmp.eq.s32.totalorder %s18, 0
      %p127 = por %p125, %p126
      %p128 = scmp.ne.s32.totalorder %s120, %s122
      %p129 = scmp.eq.s32.totalorder %s23, 1
      %p130 = por %p128, %p129
      %p131 = scmp.ne.s32.totalorder %s122, %s123
      %p132 = scmp.eq.s32.totalorder %s23, 0
      %p133 = por %p131, %p132
      %p134 = scmp.ne.s32.totalorder %s122, %s123
      %p135 = scmp.eq.s32.totalorder %s24, 1
      %p136 = por %p134, %p135
      %p138 = scmp.ne.s32.totalorder %s123, %s137
      %p139 = scmp.eq.s32.totalorder %s24, 0
      %p140 = por %p138, %p139
      %s142 = sadd.s32 %s141, 1
      %p145 = scmp.eq.s32.totalorder %s18, 1
      %p146 = scmp.ne.s32.totalorder %s141, %s143
      %p147 = scmp.eq.s32.totalorder %s18, 0
      %p148 = por %p146, %p147
      %p149 = scmp.ne.s32.totalorder %s141, %s143
      %p150 = scmp.eq.s32.totalorder %s23, 1
      %p151 = por %p149, %p150
      %p152 = scmp.ne.s32.totalorder %s143, %s144
      %p153 = scmp.eq.s32.totalorder %s23, 0
      %p154 = por %p152, %p153
      %p155 = scmp.ne.s32.totalorder %s143, %s144
      %p156 = scmp.eq.s32.totalorder %s24, 1
      %p157 = por %p155, %p156
      %p159 = scmp.ne.s32.totalorder %s144, %s158
      %p160 = scmp.eq.s32.totalorder %s24, 0
      %p161 = por %p159, %p160
      %s163 = sadd.s32 %s162, 1
      %p166 = scmp.eq.s32.totalorder %s18, 1
      %p167 = scmp.ne.s32.totalorder %s162, %s164
      %p168 = scmp.eq.s32.totalorder %s18, 0
      %p169 = por %p167, %p168
      %p170 = scmp.ne.s32.totalorder %s162, %s164
      %p171 = scmp.eq.s32.totalorder %s23, 1
      %p172 = por %p170, %p171
      %p173 = scmp.ne.s32.totalorder %s164, %s165
      %p174 = scmp.eq.s32.totalorder %s23, 0
      %p175 = por %p173, %p174
      %p176 = scmp.ne.s32.totalorder %s164, %s165
      %p177 = scmp.eq.s32.totalorder %s24, 1
      %p178 = por %p176, %p177
      %p180 = scmp.ne.s32.totalorder %s165, %s179
      %p181 = scmp.eq.s32.totalorder %s24, 0
      %p182 = por %p180, %p181
      %s184 = sadd.s32 %s183, 1
      %p187 = scmp.eq.s32.totalorder %s18, 1
      %p188 = scmp.ne.s32.totalorder %s183, %s185
      %p189 = scmp.eq.s32.totalorder %s18, 0
      %p190 = por %p188, %p189
      %p191 = scmp.ne.s32.totalorder %s183, %s185
      %p192 = scmp.eq.s32.totalorder %s23, 1
      %p193 = por %p191, %p192
      %p194 = scmp.ne.s32.totalorder %s185, %s186
      %p195 = scmp.eq.s32.totalorder %s23, 0
      %p196 = por %p194, %p195
      %p197 = scmp.ne.s32.totalorder %s185, %s186
      %p198 = scmp.eq.s32.totalorder %s24, 1
      %p199 = por %p197, %p198
      %p201 = scmp.ne.s32.totalorder %s186, %s200
      %p202 = scmp.eq.s32.totalorder %s24, 0
      %p203 = por %p201, %p202
      %s204 = ssub.s32 %s18, %s25
      %p205 = scmp.eq.s32.totalorder %s204, 0
      %s207 = sadd.s32 %s206, 1
      %s208 = scalar_select %p205, %s206, %s207
      %p211 = pneg %p205
      %p212 = scmp.eq.s32.totalorder %s18, 1
      %p213 = por %p211, %p212
      %p214 = scmp.ne.s32.totalorder %s206, %s209
      %p215 = scmp.eq.s32.totalorder %s18, 0
      %p216 = por %p214, %p215
      %p217 = scmp.ne.s32.totalorder %s206, %s209
      %p218 = scmp.eq.s32.totalorder %s23, 1
      %p219 = por %p217, %p218
      %p220 = scmp.ne.s32.totalorder %s209, %s210
      %p221 = scmp.eq.s32.totalorder %s23, 0
      %p222 = por %p220, %p221
      %p223 = scmp.ne.s32.totalorder %s209, %s210
      %p224 = scmp.eq.s32.totalorder %s24, 1
      %p225 = por %p223, %p224
      %p227 = scmp.ne.s32.totalorder %s210, %s226
      %p228 = scmp.eq.s32.totalorder %s24, 0
      %p229 = por %p227, %p228
      %s230 = ssub.s32 %s18, %s25
      %p231 = scmp.eq.s32.totalorder %s230, 0
      %s233 = sadd.s32 %s232, 1
      %s234 = scalar_select %p231, %s232, %s233
      %p237 = pneg %p231
      %p238 = scmp.eq.s32.totalorder %s18, 1
      %p239 = por %p237, %p238
      %p240 = scmp.ne.s32.totalorder %s232, %s235
      %p241 = scmp.eq.s32.totalorder %s18, 0
      %p242 = por %p240, %p241
      %p243 = scmp.ne.s32.totalorder %s232, %s235
      %p244 = scmp.eq.s32.totalorder %s23, 1
      %p245 = por %p243, %p244
      %p246 = scmp.ne.s32.totalorder %s235, %s236
      %p247 = scmp.eq.s32.totalorder %s23, 0
      %p248 = por %p246, %p247
      %p249 = scmp.ne.s32.totalorder %s235, %s236
      %p250 = scmp.eq.s32.totalorder %s24, 1
      %p251 = por %p249, %p250
      %p253 = scmp.ne.s32.totalorder %s236, %s252
      %p254 = scmp.eq.s32.totalorder %s24, 0
      %p255 = por %p253, %p254
      %p256 = scmp.le.s32.totalorder 1, %s18
      %p257 = scmp.lt.s32.totalorder %s18, 3
      %p258 = pnand %p256, %p257
      %p259 = pneg %p258
      // Predicated region
      $region9: #{up_conv.3} parent=5 // pred_check
        _
      $region10: #{up_conv.3} parent=5 // pred_check_branch
        %261 = sbr.rel (%p258) target = $region12
      $region11: #{up_conv.3} parent=5 // pred_region
        %s262 = ssub.s32 %s18, 1
        // Predicated region
        $region13: #{up_conv.3} parent=11 // pred_check
          %p263 = pneg %p91
        $region14: #{up_conv.3} parent=11 // pred_check_branch
          %265 = sbr.rel (%p263) target = $region16
        $region15: #{up_conv.3} parent=11 // pred_region
          _
        $region16: #{up_conv.3} parent=11 // pred_fallthru
          _
        // Predicated region
        $region17: #{up_conv.3} parent=11 // pred_check
          %p266 = pneg %p112
        $region18: #{up_conv.3} parent=11 // pred_check_branch
          %268 = sbr.rel (%p266) target = $region20
        $region19: #{up_conv.3} parent=11 // pred_region
          %s270 = ssub.s32 256, 256
          %271 = vsyncadd [#allocation5], %s270
          %s272 = sshll.u32 %s3, 4
          %s273 = int_to_ptr.vmem [resolvable:$true] %s272
          %278 = dma.vmem_to_smem %s273, 256, [#allocation4], [#allocation5], 128, 128, 8
        $region20: #{up_conv.3} parent=11 // pred_fallthru
          _
        // Predicated region
        $region21: #{up_conv.3} parent=11 // pred_check
          %p279 = pneg %p133
        $region22: #{up_conv.3} parent=11 // pred_check_branch
          %281 = sbr.rel (%p279) target = $region24
        $region23: #{up_conv.3} parent=11 // pred_region
          %s283 = ssub.s32 256, 256
          %284 = vsyncadd [#allocation7], %s283
          %s285 = sshll.u32 %s4, 4
          %s286 = int_to_ptr.vmem [resolvable:$true] %s285
          %291 = dma.vmem_to_smem %s286, 256, [#allocation6], [#allocation7], 128, 128, 8
        $region24: #{up_conv.3} parent=11 // pred_fallthru
          _
        // Predicated region
        $region25: #{up_conv.3} parent=11 // pred_check
          %p292 = pneg %p154
        $region26: #{up_conv.3} parent=11 // pred_check_branch
          %294 = sbr.rel (%p292) target = $region28
        $region27: #{up_conv.3} parent=11 // pred_region
          _
        $region28: #{up_conv.3} parent=11 // pred_fallthru
          _
        // Predicated region
        $region29: #{up_conv.3} parent=11 // pred_check
          %p295 = pneg %p175
        $region30: #{up_conv.3} parent=11 // pred_check_branch
          %297 = sbr.rel (%p295) target = $region32
        $region31: #{up_conv.3} parent=11 // pred_region
          _
        $region32: #{up_conv.3} parent=11 // pred_fallthru
          _
        // Predicated region
        $region33: #{up_conv.3} parent=11 // pred_check
          %p298 = pneg %p196
        $region34: #{up_conv.3} parent=11 // pred_check_branch
          %300 = sbr.rel (%p298) target = $region36
        $region35: #{up_conv.3} parent=11 // pred_region
          _
        $region36: #{up_conv.3} parent=11 // pred_fallthru
          _
      $region12: #{up_conv.3} parent=5 // pred_fallthru
        _
      %p301 = scmp.lt.s32.totalorder %s18, 2
      // Predicated region
      $region37: #{up_conv.3} parent=5 // pred_check
        %p302 = pneg %p301
      $region38: #{up_conv.3} parent=5 // pred_check_branch
        %304 = sbr.rel (%p302) target = $region40
      $region39: #{up_conv.3} parent=5 // pred_region
        // Predicated region
        $region41: #{up_conv.3} parent=39 // pred_check
          %p305 = pneg %p38
        $region42: #{up_conv.3} parent=39 // pred_check_branch
          %307 = sbr.rel (%p305) target = $region44
        $region43: #{up_conv.3} parent=39 // pred_region
          %p308 = scmp.lt.s32.totalorder %s18, 1
          %s309 = scalar_select %p308, %s18, 1
          %s310 = smul.addr %s309, 8
          %s311 = smul.addr %s310, 8
          %s312 = scalar_lea.vmem %s0, %s311
        $region44: #{up_conv.3} parent=39 // pred_fallthru
          _
        // Predicated region
        $region45: #{up_conv.3} parent=39 // pred_check
          %p313 = pneg %p64
        $region46: #{up_conv.3} parent=39 // pred_check_branch
          %315 = sbr.rel (%p313) target = $region48
        $region47: #{up_conv.3} parent=39 // pred_region
          %p316 = scmp.lt.s32.totalorder %s18, 1
          %s317 = scalar_select %p316, %s18, 1
          %s318 = smul.addr %s317, 32
          %s319 = smul.addr %s318, 8
          %s320 = scalar_lea.vmem %s1, %s319
        $region48: #{up_conv.3} parent=39 // pred_fallthru
          _
      $region40: #{up_conv.3} parent=5 // pred_fallthru
        _
      %p321 = scmp.le.s32.totalorder 1, %s18
      %p322 = scmp.lt.s32.totalorder %s18, 3
      %p323 = pnand %p321, %p322
      %p324 = pneg %p323
      // Predicated region
      $region49: #{up_conv.3} parent=5 // pred_check
        _
      $region50: #{up_conv.3} parent=5 // pred_check_branch
        %326 = sbr.rel (%p323) target = $region52
      $region51: #{up_conv.3} parent=5 // pred_region
        %s327 = ssub.s32 %s18, 1
        // Predicated region
        $region53: #{up_conv.3} parent=51 // pred_check
          %p328 = pneg %p112
        $region54: #{up_conv.3} parent=51 // pred_check_branch
          %330 = sbr.rel (%p328) target = $region56
        $region55: #{up_conv.3} parent=51 // pred_region
          %331 = dma.done [#allocation5], 256
        $region56: #{up_conv.3} parent=51 // pred_fallthru
          _
        // Predicated region
        $region57: #{up_conv.3} parent=51 // pred_check
          %p332 = pneg %p133
        $region58: #{up_conv.3} parent=51 // pred_check_branch
          %334 = sbr.rel (%p332) target = $region60
        $region59: #{up_conv.3} parent=51 // pred_region
          %335 = dma.done [#allocation7], 256
        $region60: #{up_conv.3} parent=51 // pred_fallthru
          _
        %336 = sfence
        %p337 = scmp.lt.s32.totalorder %s23, 1
        %s338 = scalar_select %p337, %s23, 1
        %s339 = smul.addr %s338, 8
        %s340 = smul.addr %s339, 8
        %s341 = scalar_lea.vmem %s0, %s340
        %p342 = pneg %p44
        %p343 = pneg %p41
        %p344 = scmp.lt.s32.totalorder %s23, 1
        %s345 = scalar_select %p344, %s23, 1
        %s346 = smul.addr %s345, 32
        %s347 = smul.addr %s346, 8
        %s348 = scalar_lea.vmem %s1, %s347
        %p349 = pneg %p70
        %p350 = pneg %p67
        %p351 = pneg %p91
        %p352 = pneg %p88
        %p353 = pneg %p112
        %p354 = pneg %p109
        %p355 = pneg %p133
        %p356 = pneg %p130
        %p357 = pneg %p154
        %p358 = pneg %p151
        %p359 = pneg %p175
        %p360 = pneg %p172
        %p361 = pneg %p196
        %p362 = pneg %p193
        %p363 = pneg %p222
        %p364 = pneg %p219
        %p365 = scmp.lt.s32.totalorder %s23, 1
        %s366 = scalar_select %p365, %s23, 1
        %s367 = smul.addr %s366, 32
        %s368 = smul.addr %s367, 8
        %s369 = scalar_lea.vmem %s8, %s368
        %p370 = pneg %p248
        %p371 = pneg %p245
        %p372 = scmp.lt.s32.totalorder %s23, 1
        %s373 = scalar_select %p372, %s23, 1
        %s374 = smul.addr %s373, 2
        %s375 = scalar_lea.vmem %s9, %s374
        %p376 = scmp.lt.s32.totalorder %s23, 1
        %s377 = scalar_select %p376, %s23, 1
        %s378 = smul.addr %s377, 8
        %s379 = smul.addr %s378, 8
        %s380 = scalar_lea.vmem %s0, %s379
        %p381 = scmp.lt.s32.totalorder %s23, 1
        %s382 = scalar_select %p381, %s23, 1
        %s383 = smul.addr %s382, 32
        %s384 = smul.addr %s383, 8
        %s385 = scalar_lea.vmem %s1, %s384
        %p386 = scmp.lt.s32.totalorder %s23, 1
        %s387 = scalar_select %p386, %s23, 1
        %s388 = smul.addr %s387, 32
        %s389 = smul.addr %s388, 8
        %s390 = scalar_lea.vmem %s8, %s389
        %p391 = scmp.lt.s32.totalorder %s23, 1
        %s392 = scalar_select %p391, %s23, 1
        %s393 = smul.addr %s392, 2
        %s394 = scalar_lea.vmem %s9, %s393
        %v395 = vld [vmem:[%s2] sm:$0xff]
        %v396 = vld [vmem:[%s2 + $0x8] sm:$0xff]
        loop: start=0, step=1, limit=8
        $region61: #{up_conv.3} parent=51 // loop_pre_header
          _
        $region62: #{up_conv.3} parent=51 // loop_header
          %s398 = sphi 0, %s402
          %p399 = scmp.ge.s32.totalorder %s398, 8
        $region63: #{up_conv.3} parent=51 // loop_header_branch
          %401 = sbr.rel (%p399) target = $region67
        $region64: #{up_conv.3} parent=51 // loop_body
          %s403 = smul.u32 %s398, 8
          %s404 = scalar_lea.vmem %s380, %s403
          %v405 = vld [vmem:[%s404] sm:$0xff]
          %vm406 = vcmask 64512
          %v408 = vsel %vm406, %v395, 0
          %v411 = vsel %vm406, %v396, 0
          %413 = vmatprep.subr.mxu0 0.0
          %414 = vmatpush1.msra.mxu0 %v405
          %415 = vmatprep.subr.mxu0 0.0
          %416 = vmatpush1.msra.mxu0 0.0
          %417 = vmatprep.subr.mxu0 0.0
          %418 = vmatpush1.msra.mxu0 0.0
          %419 = vmatprep.subr.mxu0 0.0
          %420 = vmatpush1.msra.mxu0 0.0
          %421 = vmatprep.subr.mxu0 0.0
          %422 = vmatpush1.msra.mxu0 0.0
          %423 = vmatprep.subr.mxu0 0.0
          %424 = vmatpush1.msra.mxu0 0.0
          %425 = vmatprep.subr.mxu0 0.0
          %426 = vmatpush1.msra.mxu0 0.0
          %427 = vmatprep.subr.mxu0 0.0
          %428 = vmatpush1.msra.mxu0 0.0
          %429 = vmatprep.subr.mxu0 0.0
          %430 = vmatpush1.msra.mxu0 0.0
          %431 = vmatprep.subr.mxu0 0.0
          %432 = vmatpush1.msra.mxu0 0.0
          %433 = vmatprep.subr.mxu0 0.0
          %434 = vmatpush1.msra.mxu0 0.0
          %435 = vmatprep.subr.mxu0 0.0
          %436 = vmatpush1.msra.mxu0 0.0
          %437 = vmatprep.subr.mxu0 0.0
          %438 = vmatpush1.msra.mxu0 0.0
          %439 = vmatprep.subr.mxu0 0.0
          %440 = vmatpush1.msra.mxu0 0.0
          %441 = vmatprep.subr.mxu0 0.0
          %442 = vmatpush1.msra.mxu0 0.0
          %443 = vmatprep.subr.mxu0 0.0
          %444 = vmatpush1.msra.mxu0 0.0
          %445 = vmatprep.subr.mxu0 0.0
          %446 = vmatpush1.msra.mxu0 0.0
          %447 = vmatprep.subr.mxu0 0.0
          %448 = vmatpush1.msra.mxu0 0.0
          %449 = vmatprep.subr.mxu0 0.0
          %450 = vmatpush1.msra.mxu0 0.0
          %451 = vmatprep.subr.mxu0 0.0
          %452 = vmatpush1.msra.mxu0 0.0
          %453 = vmatprep.subr.mxu0 0.0
          %454 = vmatpush1.msra.mxu0 0.0
          %455 = vmatprep.subr.mxu0 0.0
          %456 = vmatpush1.msra.mxu0 0.0
          %457 = vmatprep.subr.mxu0 0.0
          %458 = vmatpush1.msra.mxu0 0.0
          %459 = vmatprep.subr.mxu0 0.0
          %460 = vmatpush1.msra.mxu0 0.0
          %461 = vmatprep.subr.mxu0 0.0
          %462 = vmatpush1.msra.mxu0 0.0
          %463 = vmatprep.subr.mxu0 0.0
          %464 = vmatpush1.msra.mxu0 0.0
          %465 = vmatprep.subr.mxu0 0.0
          %466 = vmatpush1.msra.mxu0 0.0
          %467 = vmatprep.subr.mxu0 0.0
          %468 = vmatpush1.msra.mxu0 0.0
          %469 = vmatprep.subr.mxu0 0.0
          %470 = vmatpush1.msra.mxu0 0.0
          %471 = vmatprep.subr.mxu0 0.0
          %472 = vmatpush1.msra.mxu0 0.0
          %473 = vmatprep.subr.mxu0 0.0
          %474 = vmatpush1.msra.mxu0 0.0
          %475 = vmatprep.subr.mxu0 0.0
          %476 = vmatpush1.msra.mxu0 0.0
          %477 = vmatprep.mubr.f32.mxu0 0.0
          %478 = vmatmul.mubr.f32.gmra.mrb[0].mxu0 %v408
          %v479 = vpop.f32.mrb[0].mxu0
          %v480 = vadd.f32 0.0, %v479
          %v481 = vpop.f32.mrb[0].mxu0
          %482 = vmatprep.mubr.f32.mxu0 0.0
          %483 = vmatmul.mubr.f32.gmra.mrb[0].mxu0 %v411
          %v484 = vpop.f32.mrb[0].mxu0
          %v485 = vadd.f32 0.0, %v484
          %v486 = vpop.f32.mrb[0].mxu0
          %487 = vdwg.mxu0
          %s488 = smul.u32 %s398, 16
          %s489 = scalar_lea.vmem [#allocation2], %s488
          %490 = vst.msk [vmem:[%s489] sm:$0xff] %vm406, %v480
          %491 = vst.msk [vmem:[%s489 + $0x8] sm:$0xff] %vm406, %v485
        $region65: #{up_conv.3} parent=51 // loop_footer
          %s402 = sadd.s32 1, %s398
        $region66: #{up_conv.3} parent=51 // loop_footer_branch
          %397 = sbr.rel target = $region62
        $region67: #{up_conv.3} parent=51 // loop_exit
          _
        %vm492 = vcmask 130048
        %493 = vst.msk [vmem:[#allocation3] sm:$0xff] %vm492, 0.0
        %494 = vst.msk [vmem:[#allocation3 + $0x8] sm:$0xff] %vm492, 0.0
        %vm495 = vcmask 123904
        %496 = vst.msk [vmem:[#allocation3 + $0x10] sm:$0x3] %vm495, 0.0
        %s497 = scalar_lea.vmem [#allocation3], 408
        %498 = vst.msk [vmem:[%s497] sm:$0xff] %vm492, 0.0
        %499 = vst.msk [vmem:[%s497 + $0x8] sm:$0xff] %vm492, 0.0
        %500 = vst.msk [vmem:[%s497 + $0x10] sm:$0x3] %vm495, 0.0
        %vm501 = vcmask 122880
        %502 = vst.msk [vmem:[#allocation3] sm:$0x1] %vm501, 0.0
        %503 = vst.msk [vmem:[#allocation3 + $0x18] sm:$0x1] %vm501, 0.0
        %504 = vst.msk [vmem:[#allocation3 + $0x30] sm:$0x1] %vm501, 0.0
        %505 = vst.msk [vmem:[#allocation3 + $0x48] sm:$0x1] %vm501, 0.0
        %506 = vst.msk [vmem:[#allocation3 + $0x60] sm:$0x1] %vm501, 0.0
        %507 = vst.msk [vmem:[#allocation3 + $0x78] sm:$0x1] %vm501, 0.0
        %508 = vst.msk [vmem:[#allocation3 + $0x90] sm:$0x1] %vm501, 0.0
        %509 = vst.msk [vmem:[#allocation3 + $0xa8] sm:$0x1] %vm501, 0.0
        %510 = vst.msk [vmem:[#allocation3 + $0xc0] sm:$0x1] %vm501, 0.0
        %511 = vst.msk [vmem:[#allocation3 + $0xd8] sm:$0x1] %vm501, 0.0
        %512 = vst.msk [vmem:[#allocation3 + $0xf0] sm:$0x1] %vm501, 0.0
        %513 = vst.msk [vmem:[#allocation3 + $0x108] sm:$0x1] %vm501, 0.0
        %514 = vst.msk [vmem:[#allocation3 + $0x120] sm:$0x1] %vm501, 0.0
        %515 = vst.msk [vmem:[#allocation3 + $0x138] sm:$0x1] %vm501, 0.0
        %516 = vst.msk [vmem:[#allocation3 + $0x150] sm:$0x1] %vm501, 0.0
        %517 = vst.msk [vmem:[#allocation3 + $0x168] sm:$0x1] %vm501, 0.0
        %518 = vst.msk [vmem:[#allocation3 + $0x180] sm:$0x1] %vm501, 0.0
        %519 = vst.msk [vmem:[#allocation3 + $0x198] sm:$0x1] %vm501, 0.0
        %520 = vst.msk [vmem:[#allocation3 + $0x11] sm:$0x1] %vm501, 0.0
        %521 = vst.msk [vmem:[#allocation3 + $0x29] sm:$0x1] %vm501, 0.0
        %522 = vst.msk [vmem:[#allocation3 + $0x41] sm:$0x1] %vm501, 0.0
        %523 = vst.msk [vmem:[#allocation3 + $0x59] sm:$0x1] %vm501, 0.0
        %524 = vst.msk [vmem:[#allocation3 + $0x71] sm:$0x1] %vm501, 0.0
        %525 = vst.msk [vmem:[#allocation3 + $0x89] sm:$0x1] %vm501, 0.0
        %526 = vst.msk [vmem:[#allocation3 + $0xa1] sm:$0x1] %vm501, 0.0
        %527 = vst.msk [vmem:[#allocation3 + $0xb9] sm:$0x1] %vm501, 0.0
        %528 = vst.msk [vmem:[#allocation3 + $0xd1] sm:$0x1] %vm501, 0.0
        %529 = vst.msk [vmem:[#allocation3 + $0xe9] sm:$0x1] %vm501, 0.0
        %530 = vst.msk [vmem:[#allocation3 + $0x101] sm:$0x1] %vm501, 0.0
        %531 = vst.msk [vmem:[#allocation3 + $0x119] sm:$0x1] %vm501, 0.0
        %532 = vst.msk [vmem:[#allocation3 + $0x131] sm:$0x1] %vm501, 0.0
        %533 = vst.msk [vmem:[#allocation3 + $0x149] sm:$0x1] %vm501, 0.0
        %534 = vst.msk [vmem:[#allocation3 + $0x161] sm:$0x1] %vm501, 0.0
        %535 = vst.msk [vmem:[#allocation3 + $0x179] sm:$0x1] %vm501, 0.0
        %536 = vst.msk [vmem:[#allocation3 + $0x191] sm:$0x1] %vm501, 0.0
        %537 = vst.msk [vmem:[#allocation3 + $0x1a9] sm:$0x1] %vm501, 0.0
        loop: start=0, step=1, limit=16
        $region68: #{up_conv.3} parent=51 // loop_pre_header
          _
        $region69: #{up_conv.3} parent=51 // loop_header
          %s539 = sphi 0, %s543
          %p540 = scmp.ge.s32.totalorder %s539, 16
        $region70: #{up_conv.3} parent=51 // loop_header_branch
          %542 = sbr.rel (%p540) target = $region74
        $region71: #{up_conv.3} parent=51 // loop_body
          %s544 = smul.u32 %s539, 128
          %s545 = sld [smem:[#allocation4 + %s544]]
          %s546 = sadd.s32 %s544, 1
          %s547 = sld [smem:[#allocation4 + %s546]]
          %s548 = sld [smem:[#allocation6 + %s544]]
          %s549 = sld [smem:[#allocation6 + %s546]]
          %s550 = smul.u32 %s545, 16
          %s551 = scalar_lea.vmem [#allocation2], %s550
          %v552 = vld [vmem:[%s551] sm:$0xff]
          %v553 = vld [vmem:[%s551 + $0x8] sm:$0xff]
          %v554 = vstv %s548
          %v555 = vmul.f32 %v554, %v552
          %v556 = vmul.f32 %v554, %v553
          %s557 = smul.u32 %s547, 16
          %s558 = scalar_lea.vmem [#allocation2], %s557
          %v559 = vld [vmem:[%s558] sm:$0xff]
          %v560 = vld [vmem:[%s558 + $0x8] sm:$0xff]
          %v561 = vstv %s549
          %v562 = vmul.f32 %v561, %v559
          %v563 = vmul.f32 %v561, %v560
          %v564 = vadd.f32 %v555, %v562
          %v565 = vadd.f32 %v556, %v563
          %s566 = sadd.s32 %s539, 1
          %s567 = smul.u32 %s566, 24
          %s568 = scalar_lea.vmem [#allocation3], %s567
          %vm569 = vcmask 64512
          %570 = vst.msk [vmem:[%s568 + $0x1] sm:$0xff] %vm569, %v564
          %571 = vst.msk [vmem:[%s568 + $0x9] sm:$0xff] %vm569, %v565
        $region72: #{up_conv.3} parent=51 // loop_footer
          %s543 = sadd.s32 1, %s539
        $region73: #{up_conv.3} parent=51 // loop_footer_branch
          %538 = sbr.rel target = $region69
        $region74: #{up_conv.3} parent=51 // loop_exit
          _
        %v572 = vld [vmem:[%s385] sm:$0xff]
        %v573 = vld [vmem:[%s385 + $0x8] sm:$0xff]
        %v574 = vld [vmem:[%s385 + $0x10] sm:$0xff]
        %v575 = vld [vmem:[%s385 + $0x18] sm:$0xff]
        %v576 = vld [vmem:[%s385 + $0x20] sm:$0xff]
        %v577 = vld [vmem:[%s385 + $0x28] sm:$0xff]
        %v578 = vld [vmem:[%s385 + $0x30] sm:$0xff]
        %v579 = vld [vmem:[%s385 + $0x38] sm:$0xff]
        %v580 = vld [vmem:[%s385 + $0x40] sm:$0xff]
        %v581 = vld [vmem:[%s385 + $0x48] sm:$0xff]
        %v582 = vld [vmem:[%s385 + $0x50] sm:$0xff]
        %v583 = vld [vmem:[%s385 + $0x58] sm:$0xff]
        %v584 = vld [vmem:[%s385 + $0x60] sm:$0xff]
        %v585 = vld [vmem:[%s385 + $0x68] sm:$0xff]
        %v586 = vld [vmem:[%s385 + $0x70] sm:$0xff]
        %v587 = vld [vmem:[%s385 + $0x78] sm:$0xff]
        %v588 = vld [vmem:[%s385 + $0x80] sm:$0xff]
        %v589 = vld [vmem:[%s385 + $0x88] sm:$0xff]
        %v590 = vld [vmem:[%s385 + $0x90] sm:$0xff]
        %v591 = vld [vmem:[%s385 + $0x98] sm:$0xff]
        %v592 = vld [vmem:[%s385 + $0xa0] sm:$0xff]
        %v593 = vld [vmem:[%s385 + $0xa8] sm:$0xff]
        %v594 = vld [vmem:[%s385 + $0xb0] sm:$0xff]
        %v595 = vld [vmem:[%s385 + $0xb8] sm:$0xff]
        %v596 = vld [vmem:[%s385 + $0xc0] sm:$0xff]
        %v597 = vld [vmem:[%s385 + $0xc8] sm:$0xff]
        %v598 = vld [vmem:[%s385 + $0xd0] sm:$0xff]
        %v599 = vld [vmem:[%s385 + $0xd8] sm:$0xff]
        %v600 = vld [vmem:[%s385 + $0xe0] sm:$0xff]
        %v601 = vld [vmem:[%s385 + $0xe8] sm:$0xff]
        %v602 = vld [vmem:[%s385 + $0xf0] sm:$0xff]
        %v603 = vld [vmem:[%s385 + $0xf8] sm:$0xff]
        %v604 = vld [vmem:[%s5] sm:$0xff]
        %v605 = vld [vmem:[%s5 + $0x8] sm:$0xff]
        %v607 = vsel %vm492, %v572, 0
        %v610 = vsel %vm492, %v573, 0
        %v613 = vsel %vm492, %v574, 0
        %v616 = vsel %vm492, %v575, 0
        %v619 = vsel %vm492, %v576, 0
        %v622 = vsel %vm492, %v577, 0
        %v625 = vsel %vm492, %v578, 0
        %v628 = vsel %vm492, %v579, 0
        %v631 = vsel %vm492, %v580, 0
        %v634 = vsel %vm492, %v581, 0
        %v637 = vsel %vm492, %v582, 0
        %v640 = vsel %vm492, %v583, 0
        %v643 = vsel %vm492, %v584, 0
        %v646 = vsel %vm492, %v585, 0
        %v649 = vsel %vm492, %v586, 0
        %v652 = vsel %vm492, %v587, 0
        %v655 = vsel %vm492, %v588, 0
        %v658 = vsel %vm492, %v589, 0
        %v661 = vsel %vm492, %v590, 0
        %v664 = vsel %vm492, %v591, 0
        %v667 = vsel %vm492, %v592, 0
        %v670 = vsel %vm492, %v593, 0
        %v673 = vsel %vm492, %v594, 0
        %v676 = vsel %vm492, %v595, 0
        %v679 = vsel %vm492, %v596, 0
        %v682 = vsel %vm492, %v597, 0
        %v685 = vsel %vm492, %v598, 0
        %v688 = vsel %vm492, %v599, 0
        %v691 = vsel %vm492, %v600, 0
        %v694 = vsel %vm492, %v601, 0
        %v697 = vsel %vm492, %v602, 0
        %v700 = vsel %vm492, %v603, 0
        %702 = vmatprep.subr.mxu0 0.0
        %703 = vmatpush1.msra.mxu0 %v604
        %704 = vmatprep.subr.mxu0 0.0
        %705 = vmatpush1.msra.mxu0 %v605
        %706 = vmatprep.subr.mxu0 0.0
        %707 = vmatpush1.msra.mxu0 0.0
        %708 = vmatprep.subr.mxu0 0.0
        %709 = vmatpush1.msra.mxu0 0.0
        %710 = vmatprep.subr.mxu0 0.0
        %711 = vmatpush1.msra.mxu0 0.0
        %712 = vmatprep.subr.mxu0 0.0
        %713 = vmatpush1.msra.mxu0 0.0
        %714 = vmatprep.subr.mxu0 0.0
        %715 = vmatpush1.msra.mxu0 0.0
        %716 = vmatprep.subr.mxu0 0.0
        %717 = vmatpush1.msra.mxu0 0.0
        %718 = vmatprep.subr.mxu0 0.0
        %719 = vmatpush1.msra.mxu0 0.0
        %720 = vmatprep.subr.mxu0 0.0
        %721 = vmatpush1.msra.mxu0 0.0
        %722 = vmatprep.subr.mxu0 0.0
        %723 = vmatpush1.msra.mxu0 0.0
        %724 = vmatprep.subr.mxu0 0.0
        %725 = vmatpush1.msra.mxu0 0.0
        %726 = vmatprep.subr.mxu0 0.0
        %727 = vmatpush1.msra.mxu0 0.0
        %728 = vmatprep.subr.mxu0 0.0
        %729 = vmatpush1.msra.mxu0 0.0
        %730 = vmatprep.subr.mxu0 0.0
        %731 = vmatpush1.msra.mxu0 0.0
        %732 = vmatprep.subr.mxu0 0.0
        %733 = vmatpush1.msra.mxu0 0.0
        %734 = vmatprep.subr.mxu0 0.0
        %735 = vmatpush1.msra.mxu0 0.0
        %736 = vmatprep.subr.mxu0 0.0
        %737 = vmatpush1.msra.mxu0 0.0
        %738 = vmatprep.subr.mxu0 0.0
        %739 = vmatpush1.msra.mxu0 0.0
        %740 = vmatprep.subr.mxu0 0.0
        %741 = vmatpush1.msra.mxu0 0.0
        %742 = vmatprep.subr.mxu0 0.0
        %743 = vmatpush1.msra.mxu0 0.0
        %744 = vmatprep.subr.mxu0 0.0
        %745 = vmatpush1.msra.mxu0 0.0
        %746 = vmatprep.subr.mxu0 0.0
        %747 = vmatpush1.msra.mxu0 0.0
        %748 = vmatprep.subr.mxu0 0.0
        %749 = vmatpush1.msra.mxu0 0.0
        %750 = vmatprep.subr.mxu0 0.0
        %751 = vmatpush1.msra.mxu0 0.0
        %752 = vmatprep.subr.mxu0 0.0
        %753 = vmatpush1.msra.mxu0 0.0
        %754 = vmatprep.subr.mxu0 0.0
        %755 = vmatpush1.msra.mxu0 0.0
        %756 = vmatprep.subr.mxu0 0.0
        %757 = vmatpush1.msra.mxu0 0.0
        %758 = vmatprep.subr.mxu0 0.0
        %759 = vmatpush1.msra.mxu0 0.0
        %760 = vmatprep.subr.mxu0 0.0
        %761 = vmatpush1.msra.mxu0 0.0
        %762 = vmatprep.subr.mxu0 0.0
        %763 = vmatpush1.msra.mxu0 0.0
        %764 = vmatprep.subr.mxu0 0.0
        %765 = vmatpush1.msra.mxu0 0.0
        %766 = vmatprep.mubr.f32.mxu0 0.0
        %767 = vmatmul.mubr.f32.gmra.mrb[0].mxu0 %v607
        %v768 = vpop.f32.mrb[0].mxu0
        %v769 = vadd.f32 0.0, %v768
        %v770 = vpop.f32.mrb[0].mxu0
        %771 = vmatprep.mubr.f32.mxu0 0.0
        %772 = vmatmul.mubr.f32.gmra.mrb[0].mxu0 %v610
        %v773 = vpop.f32.mrb[0].mxu0
        %v774 = vadd.f32 0.0, %v773
        %v775 = vpop.f32.mrb[0].mxu0
        %776 = vmatprep.mubr.f32.mxu0 0.0
        %777 = vmatmul.mubr.f32.gmra.mrb[0].mxu0 %v613
        %v778 = vpop.f32.mrb[0].mxu0
        %v779 = vadd.f32 0.0, %v778
        %v780 = vpop.f32.mrb[0].mxu0
        %781 = vmatprep.mubr.f32.mxu0 0.0
        %782 = vmatmul.mubr.f32.gmra.mrb[0].mxu0 %v616
        %v783 = vpop.f32.mrb[0].mxu0
        %v784 = vadd.f32 0.0, %v783
        %v785 = vpop.f32.mrb[0].mxu0
        %786 = vmatprep.mubr.f32.mxu0 0.0
        %787 = vmatmul.mubr.f32.gmra.mrb[0].mxu0 %v619
        %v788 = vpop.f32.mrb[0].mxu0
        %v789 = vadd.f32 0.0, %v788
        %v790 = vpop.f32.mrb[0].mxu0
        %791 = vmatprep.mubr.f32.mxu0 0.0
        %792 = vmatmul.mubr.f32.gmra.mrb[0].mxu0 %v622
        %v793 = vpop.f32.mrb[0].mxu0
        %v794 = vadd.f32 0.0, %v793
        %v795 = vpop.f32.mrb[0].mxu0
        %796 = vmatprep.mubr.f32.mxu0 0.0
        %797 = vmatmul.mubr.f32.gmra.mrb[0].mxu0 %v625
        %v798 = vpop.f32.mrb[0].mxu0
        %v799 = vadd.f32 0.0, %v798
        %v800 = vpop.f32.mrb[0].mxu0
        %801 = vmatprep.mubr.f32.mxu0 0.0
        %802 = vmatmul.mubr.f32.gmra.mrb[0].mxu0 %v628
        %v803 = vpop.f32.mrb[0].mxu0
        %v804 = vadd.f32 0.0, %v803
        %v805 = vpop.f32.mrb[0].mxu0
        %806 = vmatprep.mubr.f32.mxu0 0.0
        %807 = vmatmul.mubr.f32.gmra.mrb[0].mxu0 %v631
        %v808 = vpop.f32.mrb[0].mxu0
        %v809 = vadd.f32 0.0, %v808
        %v810 = vpop.f32.mrb[0].mxu0
        %811 = vmatprep.mubr.f32.mxu0 0.0
        %812 = vmatmul.mubr.f32.gmra.mrb[0].mxu0 %v634
        %v813 = vpop.f32.mrb[0].mxu0
        %v814 = vadd.f32 0.0, %v813
        %v815 = vpop.f32.mrb[0].mxu0
        %816 = vmatprep.mubr.f32.mxu0 0.0
        %817 = vmatmul.mubr.f32.gmra.mrb[0].mxu0 %v637
        %v818 = vpop.f32.mrb[0].mxu0
        %v819 = vadd.f32 0.0, %v818
        %v820 = vpop.f32.mrb[0].mxu0
        %821 = vmatprep.mubr.f32.mxu0 0.0
        %822 = vmatmul.mubr.f32.gmra.mrb[0].mxu0 %v640
        %v823 = vpop.f32.mrb[0].mxu0
        %v824 = vadd.f32 0.0, %v823
        %v825 = vpop.f32.mrb[0].mxu0
        %826 = vmatprep.mubr.f32.mxu0 0.0
        %827 = vmatmul.mubr.f32.gmra.mrb[0].mxu0 %v643
        %v828 = vpop.f32.mrb[0].mxu0
        %v829 = vadd.f32 0.0, %v828
        %v830 = vpop.f32.mrb[0].mxu0
        %831 = vmatprep.mubr.f32.mxu0 0.0
        %832 = vmatmul.mubr.f32.gmra.mrb[0].mxu0 %v646
        %v833 = vpop.f32.mrb[0].mxu0
        %v834 = vadd.f32 0.0, %v833
        %v835 = vpop.f32.mrb[0].mxu0
        %836 = vmatprep.mubr.f32.mxu0 0.0
        %837 = vmatmul.mubr.f32.gmra.mrb[0].mxu0 %v649
        %v838 = vpop.f32.mrb[0].mxu0
        %v839 = vadd.f32 0.0, %v838
        %v840 = vpop.f32.mrb[0].mxu0
        %841 = vmatprep.mubr.f32.mxu0 0.0
        %842 = vmatmul.mubr.f32.gmra.mrb[0].mxu0 %v652
        %v843 = vpop.f32.mrb[0].mxu0
        %v844 = vadd.f32 0.0, %v843
        %v845 = vpop.f32.mrb[0].mxu0
        %846 = vmatprep.mubr.f32.mxu0 0.0
        %847 = vmatmul.mubr.f32.gmra.mrb[0].mxu0 %v655
        %v848 = vpop.f32.mrb[0].mxu0
        %v849 = vadd.f32 0.0, %v848
        %v850 = vpop.f32.mrb[0].mxu0
        %851 = vmatprep.mubr.f32.mxu0 0.0
        %852 = vmatmul.mubr.f32.gmra.mrb[0].mxu0 %v658
        %v853 = vpop.f32.mrb[0].mxu0
        %v854 = vadd.f32 0.0, %v853
        %v855 = vpop.f32.mrb[0].mxu0
        %856 = vmatprep.mubr.f32.mxu0 0.0
        %857 = vmatmul.mubr.f32.gmra.mrb[0].mxu0 %v661
        %v858 = vpop.f32.mrb[0].mxu0
        %v859 = vadd.f32 0.0, %v858
        %v860 = vpop.f32.mrb[0].mxu0
        %861 = vmatprep.mubr.f32.mxu0 0.0
        %862 = vmatmul.mubr.f32.gmra.mrb[0].mxu0 %v664
        %v863 = vpop.f32.mrb[0].mxu0
        %v864 = vadd.f32 0.0, %v863
        %v865 = vpop.f32.mrb[0].mxu0
        %866 = vmatprep.mubr.f32.mxu0 0.0
        %867 = vmatmul.mubr.f32.gmra.mrb[0].mxu0 %v667
        %v868 = vpop.f32.mrb[0].mxu0
        %v869 = vadd.f32 0.0, %v868
        %v870 = vpop.f32.mrb[0].mxu0
        %871 = vmatprep.mubr.f32.mxu0 0.0
        %872 = vmatmul.mubr.f32.gmra.mrb[0].mxu0 %v670
        %v873 = vpop.f32.mrb[0].mxu0
        %v874 = vadd.f32 0.0, %v873
        %v875 = vpop.f32.mrb[0].mxu0
        %876 = vmatprep.mubr.f32.mxu0 0.0
        %877 = vmatmul.mubr.f32.gmra.mrb[0].mxu0 %v673
        %v878 = vpop.f32.mrb[0].mxu0
        %v879 = vadd.f32 0.0, %v878
        %v880 = vpop.f32.mrb[0].mxu0
        %881 = vmatprep.mubr.f32.mxu0 0.0
        %882 = vmatmul.mubr.f32.gmra.mrb[0].mxu0 %v676
        %v883 = vpop.f32.mrb[0].mxu0
        %v884 = vadd.f32 0.0, %v883
        %v885 = vpop.f32.mrb[0].mxu0
        %886 = vmatprep.mubr.f32.mxu0 0.0
        %887 = vmatmul.mubr.f32.gmra.mrb[0].mxu0 %v679
        %v888 = vpop.f32.mrb[0].mxu0
        %v889 = vadd.f32 0.0, %v888
        %v890 = vpop.f32.mrb[0].mxu0
        %891 = vmatprep.mubr.f32.mxu0 0.0
        %892 = vmatmul.mubr.f32.gmra.mrb[0].mxu0 %v682
        %v893 = vpop.f32.mrb[0].mxu0
        %v894 = vadd.f32 0.0, %v893
        %v895 = vpop.f32.mrb[0].mxu0
        %896 = vmatprep.mubr.f32.mxu0 0.0
        %897 = vmatmul.mubr.f32.gmra.mrb[0].mxu0 %v685
        %v898 = vpop.f32.mrb[0].mxu0
        %v899 = vadd.f32 0.0, %v898
        %v900 = vpop.f32.mrb[0].mxu0
        %901 = vmatprep.mubr.f32.mxu0 0.0
        %902 = vmatmul.mubr.f32.gmra.mrb[0].mxu0 %v688
        %v903 = vpop.f32.mrb[0].mxu0
        %v904 = vadd.f32 0.0, %v903
        %v905 = vpop.f32.mrb[0].mxu0
        %906 = vmatprep.mubr.f32.mxu0 0.0
        %907 = vmatmul.mubr.f32.gmra.mrb[0].mxu0 %v691
        %v908 = vpop.f32.mrb[0].mxu0
        %v909 = vadd.f32 0.0, %v908
        %v910 = vpop.f32.mrb[0].mxu0
        %911 = vmatprep.mubr.f32.mxu0 0.0
        %912 = vmatmul.mubr.f32.gmra.mrb[0].mxu0 %v694
        %v913 = vpop.f32.mrb[0].mxu0
        %v914 = vadd.f32 0.0, %v913
        %v915 = vpop.f32.mrb[0].mxu0
        %916 = vmatprep.mubr.f32.mxu0 0.0
        %917 = vmatmul.mubr.f32.gmra.mrb[0].mxu0 %v697
        %v918 = vpop.f32.mrb[0].mxu0
        %v919 = vadd.f32 0.0, %v918
        %v920 = vpop.f32.mrb[0].mxu0
        %921 = vmatprep.mubr.f32.mxu0 0.0
        %922 = vmatmul.mubr.f32.gmra.mrb[0].mxu0 %v700
        %v923 = vpop.f32.mrb[0].mxu0
        %v924 = vadd.f32 0.0, %v923
        %v925 = vpop.f32.mrb[0].mxu0
        %926 = vdwg.mxu0
        %959 = vrot.lane.b32.xlu0 %v769, 8
        %v960 = vpop.permute.xlu0 %959
        %961 = vrot.lane.b32.xlu0 %v774, 8
        %v962 = vpop.permute.xlu0 %961
        %963 = vrot.lane.b32.xlu0 %v779, 8
        %v964 = vpop.permute.xlu0 %963
        %965 = vrot.lane.b32.xlu0 %v784, 8
        %v966 = vpop.permute.xlu0 %965
        %967 = vrot.lane.b32.xlu0 %v789, 8
        %v968 = vpop.permute.xlu0 %967
        %969 = vrot.lane.b32.xlu0 %v794, 8
        %v970 = vpop.permute.xlu0 %969
        %971 = vrot.lane.b32.xlu0 %v799, 8
        %v972 = vpop.permute.xlu0 %971
        %973 = vrot.lane.b32.xlu0 %v804, 8
        %v974 = vpop.permute.xlu0 %973
        %975 = vrot.lane.b32.xlu0 %v809, 8
        %v976 = vpop.permute.xlu0 %975
        %977 = vrot.lane.b32.xlu0 %v814, 8
        %v978 = vpop.permute.xlu0 %977
        %979 = vrot.lane.b32.xlu0 %v819, 8
        %v980 = vpop.permute.xlu0 %979
        %981 = vrot.lane.b32.xlu0 %v824, 8
        %v982 = vpop.permute.xlu0 %981
        %983 = vrot.lane.b32.xlu0 %v829, 8
        %v984 = vpop.permute.xlu0 %983
        %985 = vrot.lane.b32.xlu0 %v834, 8
        %v986 = vpop.permute.xlu0 %985
        %987 = vrot.lane.b32.xlu0 %v839, 8
        %v988 = vpop.permute.xlu0 %987
        %989 = vrot.lane.b32.xlu0 %v844, 8
        %v990 = vpop.permute.xlu0 %989
        %991 = vrot.lane.b32.xlu0 %v849, 8
        %v992 = vpop.permute.xlu0 %991
        %993 = vrot.lane.b32.xlu0 %v854, 8
        %v994 = vpop.permute.xlu0 %993
        %995 = vrot.lane.b32.xlu0 %v859, 8
        %v996 = vpop.permute.xlu0 %995
        %997 = vrot.lane.b32.xlu0 %v864, 8
        %v998 = vpop.permute.xlu0 %997
        %999 = vrot.lane.b32.xlu0 %v869, 8
        %v1000 = vpop.permute.xlu0 %999
        %1001 = vrot.lane.b32.xlu0 %v874, 8
        %v1002 = vpop.permute.xlu0 %1001
        %1003 = vrot.lane.b32.xlu0 %v879, 8
        %v1004 = vpop.permute.xlu0 %1003
        %1005 = vrot.lane.b32.xlu0 %v884, 8
        %v1006 = vpop.permute.xlu0 %1005
        %1007 = vrot.lane.b32.xlu0 %v889, 8
        %v1008 = vpop.permute.xlu0 %1007
        %1009 = vrot.lane.b32.xlu0 %v894, 8
        %v1010 = vpop.permute.xlu0 %1009
        %1011 = vrot.lane.b32.xlu0 %v899, 8
        %v1012 = vpop.permute.xlu0 %1011
        %1013 = vrot.lane.b32.xlu0 %v904, 8
        %v1014 = vpop.permute.xlu0 %1013
        %1015 = vrot.lane.b32.xlu0 %v909, 8
        %v1016 = vpop.permute.xlu0 %1015
        %1017 = vrot.lane.b32.xlu0 %v914, 8
        %v1018 = vpop.permute.xlu0 %1017
        %1019 = vrot.lane.b32.xlu0 %v919, 8
        %v1020 = vpop.permute.xlu0 %1019
        %1021 = vrot.lane.b32.xlu0 %v924, 8
        %v1022 = vpop.permute.xlu0 %1021
        %s1055 = scalar_lea.vmem [#allocation3], 24
        %vm1056 = vcmask 130112
        %1057 = vst.msk [vmem:[%s1055 + $0x1] sm:$0xff] %vm1056, %v960
        %1058 = vst.msk [vmem:[%s1055 + $0x9] sm:$0xff] %vm1056, %v962
        %1059 = vst.msk [vmem:[%s1055 + $0x19] sm:$0xff] %vm1056, %v964
        %1060 = vst.msk [vmem:[%s1055 + $0x21] sm:$0xff] %vm1056, %v966
        %1061 = vst.msk [vmem:[%s1055 + $0x31] sm:$0xff] %vm1056, %v968
        %1062 = vst.msk [vmem:[%s1055 + $0x39] sm:$0xff] %vm1056, %v970
        %1063 = vst.msk [vmem:[%s1055 + $0x49] sm:$0xff] %vm1056, %v972
        %1064 = vst.msk [vmem:[%s1055 + $0x51] sm:$0xff] %vm1056, %v974
        %1065 = vst.msk [vmem:[%s1055 + $0x61] sm:$0xff] %vm1056, %v976
        %1066 = vst.msk [vmem:[%s1055 + $0x69] sm:$0xff] %vm1056, %v978
        %1067 = vst.msk [vmem:[%s1055 + $0x79] sm:$0xff] %vm1056, %v980
        %1068 = vst.msk [vmem:[%s1055 + $0x81] sm:$0xff] %vm1056, %v982
        %1069 = vst.msk [vmem:[%s1055 + $0x91] sm:$0xff] %vm1056, %v984
        %1070 = vst.msk [vmem:[%s1055 + $0x99] sm:$0xff] %vm1056, %v986
        %1071 = vst.msk [vmem:[%s1055 + $0xa9] sm:$0xff] %vm1056, %v988
        %1072 = vst.msk [vmem:[%s1055 + $0xb1] sm:$0xff] %vm1056, %v990
        %1073 = vst.msk [vmem:[%s1055 + $0xc1] sm:$0xff] %vm1056, %v992
        %1074 = vst.msk [vmem:[%s1055 + $0xc9] sm:$0xff] %vm1056, %v994
        %1075 = vst.msk [vmem:[%s1055 + $0xd9] sm:$0xff] %vm1056, %v996
        %1076 = vst.msk [vmem:[%s1055 + $0xe1] sm:$0xff] %vm1056, %v998
        %1077 = vst.msk [vmem:[%s1055 + $0xf1] sm:$0xff] %vm1056, %v1000
        %1078 = vst.msk [vmem:[%s1055 + $0xf9] sm:$0xff] %vm1056, %v1002
        %1079 = vst.msk [vmem:[%s1055 + $0x109] sm:$0xff] %vm1056, %v1004
        %1080 = vst.msk [vmem:[%s1055 + $0x111] sm:$0xff] %vm1056, %v1006
        %1081 = vst.msk [vmem:[%s1055 + $0x121] sm:$0xff] %vm1056, %v1008
        %1082 = vst.msk [vmem:[%s1055 + $0x129] sm:$0xff] %vm1056, %v1010
        %1083 = vst.msk [vmem:[%s1055 + $0x139] sm:$0xff] %vm1056, %v1012
        %1084 = vst.msk [vmem:[%s1055 + $0x141] sm:$0xff] %vm1056, %v1014
        %1085 = vst.msk [vmem:[%s1055 + $0x151] sm:$0xff] %vm1056, %v1016
        %1086 = vst.msk [vmem:[%s1055 + $0x159] sm:$0xff] %vm1056, %v1018
        %1087 = vst.msk [vmem:[%s1055 + $0x169] sm:$0xff] %vm1056, %v1020
        %1088 = vst.msk [vmem:[%s1055 + $0x171] sm:$0xff] %vm1056, %v1022
        %v1089 = vld [vmem:[%s7] sm:$0x1]
        %v1091 = vlaneseq
        %v1092 = vshrl.u32 %v1091, 7
        %v1093 = vsub.s32 0, %v1092
        %v1094 = vrot.slane %v1089, %v1093
        %v1096 = vld [vmem:[#allocation3] sm:$0xff]
        %v1097 = vld [vmem:[#allocation3 + $0x8] sm:$0xff]
        %v1098 = vld [vmem:[#allocation3 + $0x18] sm:$0xff]
        %v1099 = vld [vmem:[#allocation3 + $0x20] sm:$0xff]
        %v1100 = vld [vmem:[#allocation3 + $0x30] sm:$0xff]
        %v1101 = vld [vmem:[#allocation3 + $0x38] sm:$0xff]
        %v1102 = vld [vmem:[#allocation3 + $0x48] sm:$0xff]
        %v1103 = vld [vmem:[#allocation3 + $0x50] sm:$0xff]
        %v1104 = vld [vmem:[#allocation3 + $0x60] sm:$0xff]
        %v1105 = vld [vmem:[#allocation3 + $0x68] sm:$0xff]
        %v1106 = vld [vmem:[#allocation3 + $0x78] sm:$0xff]
        %v1107 = vld [vmem:[#allocation3 + $0x80] sm:$0xff]
        %v1108 = vld [vmem:[#allocation3 + $0x90] sm:$0xff]
        %v1109 = vld [vmem:[#allocation3 + $0x98] sm:$0xff]
        %v1110 = vld [vmem:[#allocation3 + $0xa8] sm:$0xff]
        %v1111 = vld [vmem:[#allocation3 + $0xb0] sm:$0xff]
        %v1112 = vld [vmem:[#allocation3 + $0xc0] sm:$0xff]
        %v1113 = vld [vmem:[#allocation3 + $0xc8] sm:$0xff]
        %v1114 = vld [vmem:[#allocation3 + $0xd8] sm:$0xff]
        %v1115 = vld [vmem:[#allocation3 + $0xe0] sm:$0xff]
        %v1116 = vld [vmem:[#allocation3 + $0xf0] sm:$0xff]
        %v1117 = vld [vmem:[#allocation3 + $0xf8] sm:$0xff]
        %v1118 = vld [vmem:[#allocation3 + $0x108] sm:$0xff]
        %v1119 = vld [vmem:[#allocation3 + $0x110] sm:$0xff]
        %v1120 = vld [vmem:[#allocation3 + $0x120] sm:$0xff]
        %v1121 = vld [vmem:[#allocation3 + $0x128] sm:$0xff]
        %v1122 = vld [vmem:[#allocation3 + $0x138] sm:$0xff]
        %v1123 = vld [vmem:[#allocation3 + $0x140] sm:$0xff]
        %v1124 = vld [vmem:[#allocation3 + $0x150] sm:$0xff]
        %v1125 = vld [vmem:[#allocation3 + $0x158] sm:$0xff]
        %v1126 = vld [vmem:[#allocation3 + $0x168] sm:$0xff]
        %v1127 = vld [vmem:[#allocation3 + $0x170] sm:$0xff]
        %v1128 = vld [vmem:[%s6] sm:$0xff]
        %v1129 = vld [vmem:[%s6 + $0x8] sm:$0xff]
        %v1131 = vsel %vm492, %v1096, 0
        %v1134 = vsel %vm492, %v1097, 0
        %v1137 = vsel %vm492, %v1098, 0
        %v1140 = vsel %vm492, %v1099, 0
        %v1143 = vsel %vm492, %v1100, 0
        %v1146 = vsel %vm492, %v1101, 0
        %v1149 = vsel %vm492, %v1102, 0
        %v1152 = vsel %vm492, %v1103, 0
        %v1155 = vsel %vm492, %v1104, 0
        %v1158 = vsel %vm492, %v1105, 0
        %v1161 = vsel %vm492, %v1106, 0
        %v1164 = vsel %vm492, %v1107, 0
        %v1167 = vsel %vm492, %v1108, 0
        %v1170 = vsel %vm492, %v1109, 0
        %v1173 = vsel %vm492, %v1110, 0
        %v1176 = vsel %vm492, %v1111, 0
        %v1179 = vsel %vm492, %v1112, 0
        %v1182 = vsel %vm492, %v1113, 0
        %v1185 = vsel %vm492, %v1114, 0
        %v1188 = vsel %vm492, %v1115, 0
        %v1191 = vsel %vm492, %v1116, 0
        %v1194 = vsel %vm492, %v1117, 0
        %v1197 = vsel %vm492, %v1118, 0
        %v1200 = vsel %vm492, %v1119, 0
        %v1203 = vsel %vm492, %v1120, 0
        %v1206 = vsel %vm492, %v1121, 0
        %v1209 = vsel %vm492, %v1122, 0
        %v1212 = vsel %vm492, %v1123, 0
        %v1215 = vsel %vm492, %v1124, 0
        %v1218 = vsel %vm492, %v1125, 0
        %v1221 = vsel %vm492, %v1126, 0
        %v1224 = vsel %vm492, %v1127, 0
        %1226 = vmatprep.subr.mxu0 0.0
        %1227 = vmatpush1.msra.mxu0 %v1128
        %1228 = vmatprep.subr.mxu0 0.0
        %1229 = vmatpush1.msra.mxu0 %v1129
        %1230 = vmatprep.subr.mxu0 0.0
        %1231 = vmatpush1.msra.mxu0 0.0
        %1232 = vmatprep.subr.mxu0 0.0
        %1233 = vmatpush1.msra.mxu0 0.0
        %1234 = vmatprep.subr.mxu0 0.0
        %1235 = vmatpush1.msra.mxu0 0.0
        %1236 = vmatprep.subr.mxu0 0.0
        %1237 = vmatpush1.msra.mxu0 0.0
        %1238 = vmatprep.subr.mxu0 0.0
        %1239 = vmatpush1.msra.mxu0 0.0
        %1240 = vmatprep.subr.mxu0 0.0
        %1241 = vmatpush1.msra.mxu0 0.0
        %1242 = vmatprep.subr.mxu0 0.0
        %1243 = vmatpush1.msra.mxu0 0.0
        %1244 = vmatprep.subr.mxu0 0.0
        %1245 = vmatpush1.msra.mxu0 0.0
        %1246 = vmatprep.subr.mxu0 0.0
        %1247 = vmatpush1.msra.mxu0 0.0
        %1248 = vmatprep.subr.mxu0 0.0
        %1249 = vmatpush1.msra.mxu0 0.0
        %1250 = vmatprep.subr.mxu0 0.0
        %1251 = vmatpush1.msra.mxu0 0.0
        %1252 = vmatprep.subr.mxu0 0.0
        %1253 = vmatpush1.msra.mxu0 0.0
        %1254 = vmatprep.subr.mxu0 0.0
        %1255 = vmatpush1.msra.mxu0 0.0
        %1256 = vmatprep.subr.mxu0 0.0
        %1257 = vmatpush1.msra.mxu0 0.0
        %1258 = vmatprep.subr.mxu0 0.0
        %1259 = vmatpush1.msra.mxu0 0.0
        %1260 = vmatprep.subr.mxu0 0.0
        %1261 = vmatpush1.msra.mxu0 0.0
        %1262 = vmatprep.subr.mxu0 0.0
        %1263 = vmatpush1.msra.mxu0 0.0
        %1264 = vmatprep.subr.mxu0 0.0
        %1265 = vmatpush1.msra.mxu0 0.0
        %1266 = vmatprep.subr.mxu0 0.0
        %1267 = vmatpush1.msra.mxu0 0.0
        %1268 = vmatprep.subr.mxu0 0.0
        %1269 = vmatpush1.msra.mxu0 0.0
        %1270 = vmatprep.subr.mxu0 0.0
        %1271 = vmatpush1.msra.mxu0 0.0
        %1272 = vmatprep.subr.mxu0 0.0
        %1273 = vmatpush1.msra.mxu0 0.0
        %1274 = vmatprep.subr.mxu0 0.0
        %1275 = vmatpush1.msra.mxu0 0.0
        %1276 = vmatprep.subr.mxu0 0.0
        %1277 = vmatpush1.msra.mxu0 0.0
        %1278 = vmatprep.subr.mxu0 0.0
        %1279 = vmatpush1.msra.mxu0 0.0
        %1280 = vmatprep.subr.mxu0 0.0
        %1281 = vmatpush1.msra.mxu0 0.0
        %1282 = vmatprep.subr.mxu0 0.0
        %1283 = vmatpush1.msra.mxu0 0.0
        %1284 = vmatprep.subr.mxu0 0.0
        %1285 = vmatpush1.msra.mxu0 0.0
        %1286 = vmatprep.subr.mxu0 0.0
        %1287 = vmatpush1.msra.mxu0 0.0
        %1288 = vmatprep.subr.mxu0 0.0
        %1289 = vmatpush1.msra.mxu0 0.0
        %1290 = vmatprep.mubr.f32.mxu0 0.0
        %1291 = vmatmul.mubr.f32.gmra.mrb[0].mxu0 %v1131
        %v1292 = vpop.f32.mrb[0].mxu0
        %v1293 = vadd.f32 0.0, %v1292
        %v1294 = vpop.f32.mrb[0].mxu0
        %1295 = vmatprep.mubr.f32.mxu0 0.0
        %1296 = vmatmul.mubr.f32.gmra.mrb[0].mxu0 %v1134
        %v1297 = vpop.f32.mrb[0].mxu0
        %v1298 = vadd.f32 0.0, %v1297
        %v1299 = vpop.f32.mrb[0].mxu0
        %1300 = vmatprep.mubr.f32.mxu0 0.0
        %1301 = vmatmul.mubr.f32.gmra.mrb[0].mxu0 %v1137
        %v1302 = vpop.f32.mrb[0].mxu0
        %v1303 = vadd.f32 0.0, %v1302
        %v1304 = vpop.f32.mrb[0].mxu0
        %1305 = vmatprep.mubr.f32.mxu0 0.0
        %1306 = vmatmul.mubr.f32.gmra.mrb[0].mxu0 %v1140
        %v1307 = vpop.f32.mrb[0].mxu0
        %v1308 = vadd.f32 0.0, %v1307
        %v1309 = vpop.f32.mrb[0].mxu0
        %1310 = vmatprep.mubr.f32.mxu0 0.0
        %1311 = vmatmul.mubr.f32.gmra.mrb[0].mxu0 %v1143
        %v1312 = vpop.f32.mrb[0].mxu0
        %v1313 = vadd.f32 0.0, %v1312
        %v1314 = vpop.f32.mrb[0].mxu0
        %1315 = vmatprep.mubr.f32.mxu0 0.0
        %1316 = vmatmul.mubr.f32.gmra.mrb[0].mxu0 %v1146
        %v1317 = vpop.f32.mrb[0].mxu0
        %v1318 = vadd.f32 0.0, %v1317
        %v1319 = vpop.f32.mrb[0].mxu0
        %1320 = vmatprep.mubr.f32.mxu0 0.0
        %1321 = vmatmul.mubr.f32.gmra.mrb[0].mxu0 %v1149
        %v1322 = vpop.f32.mrb[0].mxu0
        %v1323 = vadd.f32 0.0, %v1322
        %v1324 = vpop.f32.mrb[0].mxu0
        %1325 = vmatprep.mubr.f32.mxu0 0.0
        %1326 = vmatmul.mubr.f32.gmra.mrb[0].mxu0 %v1152
        %v1327 = vpop.f32.mrb[0].mxu0
        %v1328 = vadd.f32 0.0, %v1327
        %v1329 = vpop.f32.mrb[0].mxu0
        %1330 = vmatprep.mubr.f32.mxu0 0.0
        %1331 = vmatmul.mubr.f32.gmra.mrb[0].mxu0 %v1155
        %v1332 = vpop.f32.mrb[0].mxu0
        %v1333 = vadd.f32 0.0, %v1332
        %v1334 = vpop.f32.mrb[0].mxu0
        %1335 = vmatprep.mubr.f32.mxu0 0.0
        %1336 = vmatmul.mubr.f32.gmra.mrb[0].mxu0 %v1158
        %v1337 = vpop.f32.mrb[0].mxu0
        %v1338 = vadd.f32 0.0, %v1337
        %v1339 = vpop.f32.mrb[0].mxu0
        %1340 = vmatprep.mubr.f32.mxu0 0.0
        %1341 = vmatmul.mubr.f32.gmra.mrb[0].mxu0 %v1161
        %v1342 = vpop.f32.mrb[0].mxu0
        %v1343 = vadd.f32 0.0, %v1342
        %v1344 = vpop.f32.mrb[0].mxu0
        %1345 = vmatprep.mubr.f32.mxu0 0.0
        %1346 = vmatmul.mubr.f32.gmra.mrb[0].mxu0 %v1164
        %v1347 = vpop.f32.mrb[0].mxu0
        %v1348 = vadd.f32 0.0, %v1347
        %v1349 = vpop.f32.mrb[0].mxu0
        %1350 = vmatprep.mubr.f32.mxu0 0.0
        %1351 = vmatmul.mubr.f32.gmra.mrb[0].mxu0 %v1167
        %v1352 = vpop.f32.mrb[0].mxu0
        %v1353 = vadd.f32 0.0, %v1352
        %v1354 = vpop.f32.mrb[0].mxu0
        %1355 = vmatprep.mubr.f32.mxu0 0.0
        %1356 = vmatmul.mubr.f32.gmra.mrb[0].mxu0 %v1170
        %v1357 = vpop.f32.mrb[0].mxu0
        %v1358 = vadd.f32 0.0, %v1357
        %v1359 = vpop.f32.mrb[0].mxu0
        %1360 = vmatprep.mubr.f32.mxu0 0.0
        %1361 = vmatmul.mubr.f32.gmra.mrb[0].mxu0 %v1173
        %v1362 = vpop.f32.mrb[0].mxu0
        %v1363 = vadd.f32 0.0, %v1362
        %v1364 = vpop.f32.mrb[0].mxu0
        %1365 = vmatprep.mubr.f32.mxu0 0.0
        %1366 = vmatmul.mubr.f32.gmra.mrb[0].mxu0 %v1176
        %v1367 = vpop.f32.mrb[0].mxu0
        %v1368 = vadd.f32 0.0, %v1367
        %v1369 = vpop.f32.mrb[0].mxu0
        %1370 = vmatprep.mubr.f32.mxu0 0.0
        %1371 = vmatmul.mubr.f32.gmra.mrb[0].mxu0 %v1179
        %v1372 = vpop.f32.mrb[0].mxu0
        %v1373 = vadd.f32 0.0, %v1372
        %v1374 = vpop.f32.mrb[0].mxu0
        %1375 = vmatprep.mubr.f32.mxu0 0.0
        %1376 = vmatmul.mubr.f32.gmra.mrb[0].mxu0 %v1182
        %v1377 = vpop.f32.mrb[0].mxu0
        %v1378 = vadd.f32 0.0, %v1377
        %v1379 = vpop.f32.mrb[0].mxu0
        %1380 = vmatprep.mubr.f32.mxu0 0.0
        %1381 = vmatmul.mubr.f32.gmra.mrb[0].mxu0 %v1185
        %v1382 = vpop.f32.mrb[0].mxu0
        %v1383 = vadd.f32 0.0, %v1382
        %v1384 = vpop.f32.mrb[0].mxu0
        %1385 = vmatprep.mubr.f32.mxu0 0.0
        %1386 = vmatmul.mubr.f32.gmra.mrb[0].mxu0 %v1188
        %v1387 = vpop.f32.mrb[0].mxu0
        %v1388 = vadd.f32 0.0, %v1387
        %v1389 = vpop.f32.mrb[0].mxu0
        %1390 = vmatprep.mubr.f32.mxu0 0.0
        %1391 = vmatmul.mubr.f32.gmra.mrb[0].mxu0 %v1191
        %v1392 = vpop.f32.mrb[0].mxu0
        %v1393 = vadd.f32 0.0, %v1392
        %v1394 = vpop.f32.mrb[0].mxu0
        %1395 = vmatprep.mubr.f32.mxu0 0.0
        %1396 = vmatmul.mubr.f32.gmra.mrb[0].mxu0 %v1194
        %v1397 = vpop.f32.mrb[0].mxu0
        %v1398 = vadd.f32 0.0, %v1397
        %v1399 = vpop.f32.mrb[0].mxu0
        %1400 = vmatprep.mubr.f32.mxu0 0.0
        %1401 = vmatmul.mubr.f32.gmra.mrb[0].mxu0 %v1197
        %v1402 = vpop.f32.mrb[0].mxu0
        %v1403 = vadd.f32 0.0, %v1402
        %v1404 = vpop.f32.mrb[0].mxu0
        %1405 = vmatprep.mubr.f32.mxu0 0.0
        %1406 = vmatmul.mubr.f32.gmra.mrb[0].mxu0 %v1200
        %v1407 = vpop.f32.mrb[0].mxu0
        %v1408 = vadd.f32 0.0, %v1407
        %v1409 = vpop.f32.mrb[0].mxu0
        %1410 = vmatprep.mubr.f32.mxu0 0.0
        %1411 = vmatmul.mubr.f32.gmra.mrb[0].mxu0 %v1203
        %v1412 = vpop.f32.mrb[0].mxu0
        %v1413 = vadd.f32 0.0, %v1412
        %v1414 = vpop.f32.mrb[0].mxu0
        %1415 = vmatprep.mubr.f32.mxu0 0.0
        %1416 = vmatmul.mubr.f32.gmra.mrb[0].mxu0 %v1206
        %v1417 = vpop.f32.mrb[0].mxu0
        %v1418 = vadd.f32 0.0, %v1417
        %v1419 = vpop.f32.mrb[0].mxu0
        %1420 = vmatprep.mubr.f32.mxu0 0.0
        %1421 = vmatmul.mubr.f32.gmra.mrb[0].mxu0 %v1209
        %v1422 = vpop.f32.mrb[0].mxu0
        %v1423 = vadd.f32 0.0, %v1422
        %v1424 = vpop.f32.mrb[0].mxu0
        %1425 = vmatprep.mubr.f32.mxu0 0.0
        %1426 = vmatmul.mubr.f32.gmra.mrb[0].mxu0 %v1212
        %v1427 = vpop.f32.mrb[0].mxu0
        %v1428 = vadd.f32 0.0, %v1427
        %v1429 = vpop.f32.mrb[0].mxu0
        %1430 = vmatprep.mubr.f32.mxu0 0.0
        %1431 = vmatmul.mubr.f32.gmra.mrb[0].mxu0 %v1215
        %v1432 = vpop.f32.mrb[0].mxu0
        %v1433 = vadd.f32 0.0, %v1432
        %v1434 = vpop.f32.mrb[0].mxu0
        %1435 = vmatprep.mubr.f32.mxu0 0.0
        %1436 = vmatmul.mubr.f32.gmra.mrb[0].mxu0 %v1218
        %v1437 = vpop.f32.mrb[0].mxu0
        %v1438 = vadd.f32 0.0, %v1437
        %v1439 = vpop.f32.mrb[0].mxu0
        %1440 = vmatprep.mubr.f32.mxu0 0.0
        %1441 = vmatmul.mubr.f32.gmra.mrb[0].mxu0 %v1221
        %v1442 = vpop.f32.mrb[0].mxu0
        %v1443 = vadd.f32 0.0, %v1442
        %v1444 = vpop.f32.mrb[0].mxu0
        %1445 = vmatprep.mubr.f32.mxu0 0.0
        %1446 = vmatmul.mubr.f32.gmra.mrb[0].mxu0 %v1224
        %v1447 = vpop.f32.mrb[0].mxu0
        %v1448 = vadd.f32 0.0, %v1447
        %v1449 = vpop.f32.mrb[0].mxu0
        %1450 = vdwg.mxu0
        %v1451 = vadd.f32 %v1094, %v1293
        %v1452 = vadd.f32 %v1094, %v1298
        %v1453 = vadd.f32 %v1094, %v1303
        %v1454 = vadd.f32 %v1094, %v1308
        %v1455 = vadd.f32 %v1094, %v1313
        %v1456 = vadd.f32 %v1094, %v1318
        %v1457 = vadd.f32 %v1094, %v1323
        %v1458 = vadd.f32 %v1094, %v1328
        %v1459 = vadd.f32 %v1094, %v1333
        %v1460 = vadd.f32 %v1094, %v1338
        %v1461 = vadd.f32 %v1094, %v1343
        %v1462 = vadd.f32 %v1094, %v1348
        %v1463 = vadd.f32 %v1094, %v1353
        %v1464 = vadd.f32 %v1094, %v1358
        %v1465 = vadd.f32 %v1094, %v1363
        %v1466 = vadd.f32 %v1094, %v1368
        %v1467 = vadd.f32 %v1094, %v1373
        %v1468 = vadd.f32 %v1094, %v1378
        %v1469 = vadd.f32 %v1094, %v1383
        %v1470 = vadd.f32 %v1094, %v1388
        %v1471 = vadd.f32 %v1094, %v1393
        %v1472 = vadd.f32 %v1094, %v1398
        %v1473 = vadd.f32 %v1094, %v1403
        %v1474 = vadd.f32 %v1094, %v1408
        %v1475 = vadd.f32 %v1094, %v1413
        %v1476 = vadd.f32 %v1094, %v1418
        %v1477 = vadd.f32 %v1094, %v1423
        %v1478 = vadd.f32 %v1094, %v1428
        %v1479 = vadd.f32 %v1094, %v1433
        %v1480 = vadd.f32 %v1094, %v1438
        %v1481 = vadd.f32 %v1094, %v1443
        %v1482 = vadd.f32 %v1094, %v1448
        %v1483 = vld [vmem:[#allocation3 + $0x1] sm:$0xff]
        %v1484 = vld [vmem:[#allocation3 + $0x9] sm:$0xff]
        %v1485 = vld [vmem:[#allocation3 + $0x19] sm:$0xff]
        %v1486 = vld [vmem:[#allocation3 + $0x21] sm:$0xff]
        %v1487 = vld [vmem:[#allocation3 + $0x31] sm:$0xff]
        %v1488 = vld [vmem:[#allocation3 + $0x39] sm:$0xff]
        %v1489 = vld [vmem:[#allocation3 + $0x49] sm:$0xff]
        %v1490 = vld [vmem:[#allocation3 + $0x51] sm:$0xff]
        %v1491 = vld [vmem:[#allocation3 + $0x61] sm:$0xff]
        %v1492 = vld [vmem:[#allocation3 + $0x69] sm:$0xff]
        %v1493 = vld [vmem:[#allocation3 + $0x79] sm:$0xff]
        %v1494 = vld [vmem:[#allocation3 + $0x81] sm:$0xff]
        %v1495 = vld [vmem:[#allocation3 + $0x91] sm:$0xff]
        %v1496 = vld [vmem:[#allocation3 + $0x99] sm:$0xff]
        %v1497 = vld [vmem:[#allocation3 + $0xa9] sm:$0xff]
        %v1498 = vld [vmem:[#allocation3 + $0xb1] sm:$0xff]
        %v1499 = vld [vmem:[#allocation3 + $0xc1] sm:$0xff]
        %v1500 = vld [vmem:[#allocation3 + $0xc9] sm:$0xff]
        %v1501 = vld [vmem:[#allocation3 + $0xd9] sm:$0xff]
        %v1502 = vld [vmem:[#allocation3 + $0xe1] sm:$0xff]
        %v1503 = vld [vmem:[#allocation3 + $0xf1] sm:$0xff]
        %v1504 = vld [vmem:[#allocation3 + $0xf9] sm:$0xff]
        %v1505 = vld [vmem:[#allocation3 + $0x109] sm:$0xff]
        %v1506 = vld [vmem:[#allocation3 + $0x111] sm:$0xff]
        %v1507 = vld [vmem:[#allocation3 + $0x121] sm:$0xff]
        %v1508 = vld [vmem:[#allocation3 + $0x129] sm:$0xff]
        %v1509 = vld [vmem:[#allocation3 + $0x139] sm:$0xff]
        %v1510 = vld [vmem:[#allocation3 + $0x141] sm:$0xff]
        %v1511 = vld [vmem:[#allocation3 + $0x151] sm:$0xff]
        %v1512 = vld [vmem:[#allocation3 + $0x159] sm:$0xff]
        %v1513 = vld [vmem:[#allocation3 + $0x169] sm:$0xff]
        %v1514 = vld [vmem:[#allocation3 + $0x171] sm:$0xff]
        %s1515 = scalar_lea.vmem %s6, 16
        %v1516 = vld [vmem:[%s1515] sm:$0xff]
        %v1517 = vld [vmem:[%s1515 + $0x8] sm:$0xff]
        %v1519 = vsel %vm492, %v1483, 0
        %v1522 = vsel %vm492, %v1484, 0
        %v1525 = vsel %vm492, %v1485, 0
        %v1528 = vsel %vm492, %v1486, 0
        %v1531 = vsel %vm492, %v1487, 0
        %v1534 = vsel %vm492, %v1488, 0
        %v1537 = vsel %vm492, %v1489, 0
        %v1540 = vsel %vm492, %v1490, 0
        %v1543 = vsel %vm492, %v1491, 0
        %v1546 = vsel %vm492, %v1492, 0
        %v1549 = vsel %vm492, %v1493, 0
        %v1552 = vsel %vm492, %v1494, 0
        %v1555 = vsel %vm492, %v1495, 0
        %v1558 = vsel %vm492, %v1496, 0
        %v1561 = vsel %vm492, %v1497, 0
        %v1564 = vsel %vm492, %v1498, 0
        %v1567 = vsel %vm492, %v1499, 0
        %v1570 = vsel %vm492, %v1500, 0
        %v1573 = vsel %vm492, %v1501, 0
        %v1576 = vsel %vm492, %v1502, 0
        %v1579 = vsel %vm492, %v1503, 0
        %v1582 = vsel %vm492, %v1504, 0
        %v1585 = vsel %vm492, %v1505, 0
        %v1588 = vsel %vm492, %v1506, 0
        %v1591 = vsel %vm492, %v1507, 0
        %v1594 = vsel %vm492, %v1508, 0
        %v1597 = vsel %vm492, %v1509, 0
        %v1600 = vsel %vm492, %v1510, 0
        %v1603 = vsel %vm492, %v1511, 0
        %v1606 = vsel %vm492, %v1512, 0
        %v1609 = vsel %vm492, %v1513, 0
        %v1612 = vsel %vm492, %v1514, 0
        %1614 = vmatprep.subr.mxu0 0.0
        %1615 = vmatpush1.msra.mxu0 %v1516
        %1616 = vmatprep.subr.mxu0 0.0
        %1617 = vmatpush1.msra.mxu0 %v1517
        %1618 = vmatprep.subr.mxu0 0.0
        %1619 = vmatpush1.msra.mxu0 0.0
        %1620 = vmatprep.subr.mxu0 0.0
        %1621 = vmatpush1.msra.mxu0 0.0
        %1622 = vmatprep.subr.mxu0 0.0
        %1623 = vmatpush1.msra.mxu0 0.0
        %1624 = vmatprep.subr.mxu0 0.0
        %1625 = vmatpush1.msra.mxu0 0.0
        %1626 = vmatprep.subr.mxu0 0.0
        %1627 = vmatpush1.msra.mxu0 0.0
        %1628 = vmatprep.subr.mxu0 0.0
        %1629 = vmatpush1.msra.mxu0 0.0
        %1630 = vmatprep.subr.mxu0 0.0
        %1631 = vmatpush1.msra.mxu0 0.0
        %1632 = vmatprep.subr.mxu0 0.0
        %1633 = vmatpush1.msra.mxu0 0.0
        %1634 = vmatprep.subr.mxu0 0.0
        %1635 = vmatpush1.msra.mxu0 0.0
        %1636 = vmatprep.subr.mxu0 0.0
        %1637 = vmatpush1.msra.mxu0 0.0
        %1638 = vmatprep.subr.mxu0 0.0
        %1639 = vmatpush1.msra.mxu0 0.0
        %1640 = vmatprep.subr.mxu0 0.0
        %1641 = vmatpush1.msra.mxu0 0.0
        %1642 = vmatprep.subr.mxu0 0.0
        %1643 = vmatpush1.msra.mxu0 0.0
        %1644 = vmatprep.subr.mxu0 0.0
        %1645 = vmatpush1.msra.mxu0 0.0
        %1646 = vmatprep.subr.mxu0 0.0
        %1647 = vmatpush1.msra.mxu0 0.0
        %1648 = vmatprep.subr.mxu0 0.0
        %1649 = vmatpush1.msra.mxu0 0.0
        %1650 = vmatprep.subr.mxu0 0.0
        %1651 = vmatpush1.msra.mxu0 0.0
        %1652 = vmatprep.subr.mxu0 0.0
        %1653 = vmatpush1.msra.mxu0 0.0
        %1654 = vmatprep.subr.mxu0 0.0
        %1655 = vmatpush1.msra.mxu0 0.0
        %1656 = vmatprep.subr.mxu0 0.0
        %1657 = vmatpush1.msra.mxu0 0.0
        %1658 = vmatprep.subr.mxu0 0.0
        %1659 = vmatpush1.msra.mxu0 0.0
        %1660 = vmatprep.subr.mxu0 0.0
        %1661 = vmatpush1.msra.mxu0 0.0
        %1662 = vmatprep.subr.mxu0 0.0
        %1663 = vmatpush1.msra.mxu0 0.0
        %1664 = vmatprep.subr.mxu0 0.0
        %1665 = vmatpush1.msra.mxu0 0.0
        %1666 = vmatprep.subr.mxu0 0.0
        %1667 = vmatpush1.msra.mxu0 0.0
        %1668 = vmatprep.subr.mxu0 0.0
        %1669 = vmatpush1.msra.mxu0 0.0
        %1670 = vmatprep.subr.mxu0 0.0
        %1671 = vmatpush1.msra.mxu0 0.0
        %1672 = vmatprep.subr.mxu0 0.0
        %1673 = vmatpush1.msra.mxu0 0.0
        %1674 = vmatprep.subr.mxu0 0.0
        %1675 = vmatpush1.msra.mxu0 0.0
        %1676 = vmatprep.subr.mxu0 0.0
        %1677 = vmatpush1.msra.mxu0 0.0
        %1678 = vmatprep.mubr.f32.mxu0 0.0
        %1679 = vmatmul.mubr.f32.gmra.mrb[0].mxu0 %v1519
        %v1680 = vpop.f32.mrb[0].mxu0
        %v1681 = vadd.f32 0.0, %v1680
        %v1682 = vpop.f32.mrb[0].mxu0
        %1683 = vmatprep.mubr.f32.mxu0 0.0
        %1684 = vmatmul.mubr.f32.gmra.mrb[0].mxu0 %v1522
        %v1685 = vpop.f32.mrb[0].mxu0
        %v1686 = vadd.f32 0.0, %v1685
        %v1687 = vpop.f32.mrb[0].mxu0
        %1688 = vmatprep.mubr.f32.mxu0 0.0
        %1689 = vmatmul.mubr.f32.gmra.mrb[0].mxu0 %v1525
        %v1690 = vpop.f32.mrb[0].mxu0
        %v1691 = vadd.f32 0.0, %v1690
        %v1692 = vpop.f32.mrb[0].mxu0
        %1693 = vmatprep.mubr.f32.mxu0 0.0
        %1694 = vmatmul.mubr.f32.gmra.mrb[0].mxu0 %v1528
        %v1695 = vpop.f32.mrb[0].mxu0
        %v1696 = vadd.f32 0.0, %v1695
        %v1697 = vpop.f32.mrb[0].mxu0
        %1698 = vmatprep.mubr.f32.mxu0 0.0
        %1699 = vmatmul.mubr.f32.gmra.mrb[0].mxu0 %v1531
        %v1700 = vpop.f32.mrb[0].mxu0
        %v1701 = vadd.f32 0.0, %v1700
        %v1702 = vpop.f32.mrb[0].mxu0
        %1703 = vmatprep.mubr.f32.mxu0 0.0
        %1704 = vmatmul.mubr.f32.gmra.mrb[0].mxu0 %v1534
        %v1705 = vpop.f32.mrb[0].mxu0
        %v1706 = vadd.f32 0.0, %v1705
        %v1707 = vpop.f32.mrb[0].mxu0
        %1708 = vmatprep.mubr.f32.mxu0 0.0
        %1709 = vmatmul.mubr.f32.gmra.mrb[0].mxu0 %v1537
        %v1710 = vpop.f32.mrb[0].mxu0
        %v1711 = vadd.f32 0.0, %v1710
        %v1712 = vpop.f32.mrb[0].mxu0
        %1713 = vmatprep.mubr.f32.mxu0 0.0
        %1714 = vmatmul.mubr.f32.gmra.mrb[0].mxu0 %v1540
        %v1715 = vpop.f32.mrb[0].mxu0
        %v1716 = vadd.f32 0.0, %v1715
        %v1717 = vpop.f32.mrb[0].mxu0
        %1718 = vmatprep.mubr.f32.mxu0 0.0
        %1719 = vmatmul.mubr.f32.gmra.mrb[0].mxu0 %v1543
        %v1720 = vpop.f32.mrb[0].mxu0
        %v1721 = vadd.f32 0.0, %v1720
        %v1722 = vpop.f32.mrb[0].mxu0
        %1723 = vmatprep.mubr.f32.mxu0 0.0
        %1724 = vmatmul.mubr.f32.gmra.mrb[0].mxu0 %v1546
        %v1725 = vpop.f32.mrb[0].mxu0
        %v1726 = vadd.f32 0.0, %v1725
        %v1727 = vpop.f32.mrb[0].mxu0
        %1728 = vmatprep.mubr.f32.mxu0 0.0
        %1729 = vmatmul.mubr.f32.gmra.mrb[0].mxu0 %v1549
        %v1730 = vpop.f32.mrb[0].mxu0
        %v1731 = vadd.f32 0.0, %v1730
        %v1732 = vpop.f32.mrb[0].mxu0
        %1733 = vmatprep.mubr.f32.mxu0 0.0
        %1734 = vmatmul.mubr.f32.gmra.mrb[0].mxu0 %v1552
        %v1735 = vpop.f32.mrb[0].mxu0
        %v1736 = vadd.f32 0.0, %v1735
        %v1737 = vpop.f32.mrb[0].mxu0
        %1738 = vmatprep.mubr.f32.mxu0 0.0
        %1739 = vmatmul.mubr.f32.gmra.mrb[0].mxu0 %v1555
        %v1740 = vpop.f32.mrb[0].mxu0
        %v1741 = vadd.f32 0.0, %v1740
        %v1742 = vpop.f32.mrb[0].mxu0
        %1743 = vmatprep.mubr.f32.mxu0 0.0
        %1744 = vmatmul.mubr.f32.gmra.mrb[0].mxu0 %v1558
        %v1745 = vpop.f32.mrb[0].mxu0
        %v1746 = vadd.f32 0.0, %v1745
        %v1747 = vpop.f32.mrb[0].mxu0
        %1748 = vmatprep.mubr.f32.mxu0 0.0
        %1749 = vmatmul.mubr.f32.gmra.mrb[0].mxu0 %v1561
        %v1750 = vpop.f32.mrb[0].mxu0
        %v1751 = vadd.f32 0.0, %v1750
        %v1752 = vpop.f32.mrb[0].mxu0
        %1753 = vmatprep.mubr.f32.mxu0 0.0
        %1754 = vmatmul.mubr.f32.gmra.mrb[0].mxu0 %v1564
        %v1755 = vpop.f32.mrb[0].mxu0
        %v1756 = vadd.f32 0.0, %v1755
        %v1757 = vpop.f32.mrb[0].mxu0
        %1758 = vmatprep.mubr.f32.mxu0 0.0
        %1759 = vmatmul.mubr.f32.gmra.mrb[0].mxu0 %v1567
        %v1760 = vpop.f32.mrb[0].mxu0
        %v1761 = vadd.f32 0.0, %v1760
        %v1762 = vpop.f32.mrb[0].mxu0
        %1763 = vmatprep.mubr.f32.mxu0 0.0
        %1764 = vmatmul.mubr.f32.gmra.mrb[0].mxu0 %v1570
        %v1765 = vpop.f32.mrb[0].mxu0
        %v1766 = vadd.f32 0.0, %v1765
        %v1767 = vpop.f32.mrb[0].mxu0
        %1768 = vmatprep.mubr.f32.mxu0 0.0
        %1769 = vmatmul.mubr.f32.gmra.mrb[0].mxu0 %v1573
        %v1770 = vpop.f32.mrb[0].mxu0
        %v1771 = vadd.f32 0.0, %v1770
        %v1772 = vpop.f32.mrb[0].mxu0
        %1773 = vmatprep.mubr.f32.mxu0 0.0
        %1774 = vmatmul.mubr.f32.gmra.mrb[0].mxu0 %v1576
        %v1775 = vpop.f32.mrb[0].mxu0
        %v1776 = vadd.f32 0.0, %v1775
        %v1777 = vpop.f32.mrb[0].mxu0
        %1778 = vmatprep.mubr.f32.mxu0 0.0
        %1779 = vmatmul.mubr.f32.gmra.mrb[0].mxu0 %v1579
        %v1780 = vpop.f32.mrb[0].mxu0
        %v1781 = vadd.f32 0.0, %v1780
        %v1782 = vpop.f32.mrb[0].mxu0
        %1783 = vmatprep.mubr.f32.mxu0 0.0
        %1784 = vmatmul.mubr.f32.gmra.mrb[0].mxu0 %v1582
        %v1785 = vpop.f32.mrb[0].mxu0
        %v1786 = vadd.f32 0.0, %v1785
        %v1787 = vpop.f32.mrb[0].mxu0
        %1788 = vmatprep.mubr.f32.mxu0 0.0
        %1789 = vmatmul.mubr.f32.gmra.mrb[0].mxu0 %v1585
        %v1790 = vpop.f32.mrb[0].mxu0
        %v1791 = vadd.f32 0.0, %v1790
        %v1792 = vpop.f32.mrb[0].mxu0
        %1793 = vmatprep.mubr.f32.mxu0 0.0
        %1794 = vmatmul.mubr.f32.gmra.mrb[0].mxu0 %v1588
        %v1795 = vpop.f32.mrb[0].mxu0
        %v1796 = vadd.f32 0.0, %v1795
        %v1797 = vpop.f32.mrb[0].mxu0
        %1798 = vmatprep.mubr.f32.mxu0 0.0
        %1799 = vmatmul.mubr.f32.gmra.mrb[0].mxu0 %v1591
        %v1800 = vpop.f32.mrb[0].mxu0
        %v1801 = vadd.f32 0.0, %v1800
        %v1802 = vpop.f32.mrb[0].mxu0
        %1803 = vmatprep.mubr.f32.mxu0 0.0
        %1804 = vmatmul.mubr.f32.gmra.mrb[0].mxu0 %v1594
        %v1805 = vpop.f32.mrb[0].mxu0
        %v1806 = vadd.f32 0.0, %v1805
        %v1807 = vpop.f32.mrb[0].mxu0
        %1808 = vmatprep.mubr.f32.mxu0 0.0
        %1809 = vmatmul.mubr.f32.gmra.mrb[0].mxu0 %v1597
        %v1810 = vpop.f32.mrb[0].mxu0
        %v1811 = vadd.f32 0.0, %v1810
        %v1812 = vpop.f32.mrb[0].mxu0
        %1813 = vmatprep.mubr.f32.mxu0 0.0
        %1814 = vmatmul.mubr.f32.gmra.mrb[0].mxu0 %v1600
        %v1815 = vpop.f32.mrb[0].mxu0
        %v1816 = vadd.f32 0.0, %v1815
        %v1817 = vpop.f32.mrb[0].mxu0
        %1818 = vmatprep.mubr.f32.mxu0 0.0
        %1819 = vmatmul.mubr.f32.gmra.mrb[0].mxu0 %v1603
        %v1820 = vpop.f32.mrb[0].mxu0
        %v1821 = vadd.f32 0.0, %v1820
        %v1822 = vpop.f32.mrb[0].mxu0
        %1823 = vmatprep.mubr.f32.mxu0 0.0
        %1824 = vmatmul.mubr.f32.gmra.mrb[0].mxu0 %v1606
        %v1825 = vpop.f32.mrb[0].mxu0
        %v1826 = vadd.f32 0.0, %v1825
        %v1827 = vpop.f32.mrb[0].mxu0
        %1828 = vmatprep.mubr.f32.mxu0 0.0
        %1829 = vmatmul.mubr.f32.gmra.mrb[0].mxu0 %v1609
        %v1830 = vpop.f32.mrb[0].mxu0
        %v1831 = vadd.f32 0.0, %v1830
        %v1832 = vpop.f32.mrb[0].mxu0
        %1833 = vmatprep.mubr.f32.mxu0 0.0
        %1834 = vmatmul.mubr.f32.gmra.mrb[0].mxu0 %v1612
        %v1835 = vpop.f32.mrb[0].mxu0
        %v1836 = vadd.f32 0.0, %v1835
        %v1837 = vpop.f32.mrb[0].mxu0
        %1838 = vdwg.mxu0
        %v1839 = vadd.f32 %v1451, %v1681
        %v1840 = vadd.f32 %v1452, %v1686
        %v1841 = vadd.f32 %v1453, %v1691
        %v1842 = vadd.f32 %v1454, %v1696
        %v1843 = vadd.f32 %v1455, %v1701
        %v1844 = vadd.f32 %v1456, %v1706
        %v1845 = vadd.f32 %v1457, %v1711
        %v1846 = vadd.f32 %v1458, %v1716
        %v1847 = vadd.f32 %v1459, %v1721
        %v1848 = vadd.f32 %v1460, %v1726
        %v1849 = vadd.f32 %v1461, %v1731
        %v1850 = vadd.f32 %v1462, %v1736
        %v1851 = vadd.f32 %v1463, %v1741
        %v1852 = vadd.f32 %v1464, %v1746
        %v1853 = vadd.f32 %v1465, %v1751
        %v1854 = vadd.f32 %v1466, %v1756
        %v1855 = vadd.f32 %v1467, %v1761
        %v1856 = vadd.f32 %v1468, %v1766
        %v1857 = vadd.f32 %v1469, %v1771
        %v1858 = vadd.f32 %v1470, %v1776
        %v1859 = vadd.f32 %v1471, %v1781
        %v1860 = vadd.f32 %v1472, %v1786
        %v1861 = vadd.f32 %v1473, %v1791
        %v1862 = vadd.f32 %v1474, %v1796
        %v1863 = vadd.f32 %v1475, %v1801
        %v1864 = vadd.f32 %v1476, %v1806
        %v1865 = vadd.f32 %v1477, %v1811
        %v1866 = vadd.f32 %v1478, %v1816
        %v1867 = vadd.f32 %v1479, %v1821
        %v1868 = vadd.f32 %v1480, %v1826
        %v1869 = vadd.f32 %v1481, %v1831
        %v1870 = vadd.f32 %v1482, %v1836
        %v1871 = vld [vmem:[#allocation3 + $0x2] sm:$0xff]
        %v1872 = vld [vmem:[#allocation3 + $0xa] sm:$0xff]
        %v1873 = vld [vmem:[#allocation3 + $0x1a] sm:$0xff]
        %v1874 = vld [vmem:[#allocation3 + $0x22] sm:$0xff]
        %v1875 = vld [vmem:[#allocation3 + $0x32] sm:$0xff]
        %v1876 = vld [vmem:[#allocation3 + $0x3a] sm:$0xff]
        %v1877 = vld [vmem:[#allocation3 + $0x4a] sm:$0xff]
        %v1878 = vld [vmem:[#allocation3 + $0x52] sm:$0xff]
        %v1879 = vld [vmem:[#allocation3 + $0x62] sm:$0xff]
        %v1880 = vld [vmem:[#allocation3 + $0x6a] sm:$0xff]
        %v1881 = vld [vmem:[#allocation3 + $0x7a] sm:$0xff]
        %v1882 = vld [vmem:[#allocation3 + $0x82] sm:$0xff]
        %v1883 = vld [vmem:[#allocation3 + $0x92] sm:$0xff]
        %v1884 = vld [vmem:[#allocation3 + $0x9a] sm:$0xff]
        %v1885 = vld [vmem:[#allocation3 + $0xaa] sm:$0xff]
        %v1886 = vld [vmem:[#allocation3 + $0xb2] sm:$0xff]
        %v1887 = vld [vmem:[#allocation3 + $0xc2] sm:$0xff]
        %v1888 = vld [vmem:[#allocation3 + $0xca] sm:$0xff]
        %v1889 = vld [vmem:[#allocation3 + $0xda] sm:$0xff]
        %v1890 = vld [vmem:[#allocation3 + $0xe2] sm:$0xff]
        %v1891 = vld [vmem:[#allocation3 + $0xf2] sm:$0xff]
        %v1892 = vld [vmem:[#allocation3 + $0xfa] sm:$0xff]
        %v1893 = vld [vmem:[#allocation3 + $0x10a] sm:$0xff]
        %v1894 = vld [vmem:[#allocation3 + $0x112] sm:$0xff]
        %v1895 = vld [vmem:[#allocation3 + $0x122] sm:$0xff]
        %v1896 = vld [vmem:[#allocation3 + $0x12a] sm:$0xff]
        %v1897 = vld [vmem:[#allocation3 + $0x13a] sm:$0xff]
        %v1898 = vld [vmem:[#allocation3 + $0x142] sm:$0xff]
        %v1899 = vld [vmem:[#allocation3 + $0x152] sm:$0xff]
        %v1900 = vld [vmem:[#allocation3 + $0x15a] sm:$0xff]
        %v1901 = vld [vmem:[#allocation3 + $0x16a] sm:$0xff]
        %v1902 = vld [vmem:[#allocation3 + $0x172] sm:$0xff]
        %s1903 = scalar_lea.vmem %s6, 32
        %v1904 = vld [vmem:[%s1903] sm:$0xff]
        %v1905 = vld [vmem:[%s1903 + $0x8] sm:$0xff]
        %v1907 = vsel %vm492, %v1871, 0
        %v1910 = vsel %vm492, %v1872, 0
        %v1913 = vsel %vm492, %v1873, 0
        %v1916 = vsel %vm492, %v1874, 0
        %v1919 = vsel %vm492, %v1875, 0
        %v1922 = vsel %vm492, %v1876, 0
        %v1925 = vsel %vm492, %v1877, 0
        %v1928 = vsel %vm492, %v1878, 0
        %v1931 = vsel %vm492, %v1879, 0
        %v1934 = vsel %vm492, %v1880, 0
        %v1937 = vsel %vm492, %v1881, 0
        %v1940 = vsel %vm492, %v1882, 0
        %v1943 = vsel %vm492, %v1883, 0
        %v1946 = vsel %vm492, %v1884, 0
        %v1949 = vsel %vm492, %v1885, 0
        %v1952 = vsel %vm492, %v1886, 0
        %v1955 = vsel %vm492, %v1887, 0
        %v1958 = vsel %vm492, %v1888, 0
        %v1961 = vsel %vm492, %v1889, 0
        %v1964 = vsel %vm492, %v1890, 0
        %v1967 = vsel %vm492, %v1891, 0
        %v1970 = vsel %vm492, %v1892, 0
        %v1973 = vsel %vm492, %v1893, 0
        %v1976 = vsel %vm492, %v1894, 0
        %v1979 = vsel %vm492, %v1895, 0
        %v1982 = vsel %vm492, %v1896, 0
        %v1985 = vsel %vm492, %v1897, 0
        %v1988 = vsel %vm492, %v1898, 0
        %v1991 = vsel %vm492, %v1899, 0
        %v1994 = vsel %vm492, %v1900, 0
        %v1997 = vsel %vm492, %v1901, 0
        %v2000 = vsel %vm492, %v1902, 0
        %2002 = vmatprep.subr.mxu0 0.0
        %2003 = vmatpush1.msra.mxu0 %v1904
        %2004 = vmatprep.subr.mxu0 0.0
        %2005 = vmatpush1.msra.mxu0 %v1905
        %2006 = vmatprep.subr.mxu0 0.0
        %2007 = vmatpush1.msra.mxu0 0.0
        %2008 = vmatprep.subr.mxu0 0.0
        %2009 = vmatpush1.msra.mxu0 0.0
        %2010 = vmatprep.subr.mxu0 0.0
        %2011 = vmatpush1.msra.mxu0 0.0
        %2012 = vmatprep.subr.mxu0 0.0
        %2013 = vmatpush1.msra.mxu0 0.0
        %2014 = vmatprep.subr.mxu0 0.0
        %2015 = vmatpush1.msra.mxu0 0.0
        %2016 = vmatprep.subr.mxu0 0.0
        %2017 = vmatpush1.msra.mxu0 0.0
        %2018 = vmatprep.subr.mxu0 0.0
        %2019 = vmatpush1.msra.mxu0 0.0
        %2020 = vmatprep.subr.mxu0 0.0
        %2021 = vmatpush1.msra.mxu0 0.0
        %2022 = vmatprep.subr.mxu0 0.0
        %2023 = vmatpush1.msra.mxu0 0.0
        %2024 = vmatprep.subr.mxu0 0.0
        %2025 = vmatpush1.msra.mxu0 0.0
        %2026 = vmatprep.subr.mxu0 0.0
        %2027 = vmatpush1.msra.mxu0 0.0
        %2028 = vmatprep.subr.mxu0 0.0
        %2029 = vmatpush1.msra.mxu0 0.0
        %2030 = vmatprep.subr.mxu0 0.0
        %2031 = vmatpush1.msra.mxu0 0.0
        %2032 = vmatprep.subr.mxu0 0.0
        %2033 = vmatpush1.msra.mxu0 0.0
        %2034 = vmatprep.subr.mxu0 0.0
        %2035 = vmatpush1.msra.mxu0 0.0
        %2036 = vmatprep.subr.mxu0 0.0
        %2037 = vmatpush1.msra.mxu0 0.0
        %2038 = vmatprep.subr.mxu0 0.0
        %2039 = vmatpush1.msra.mxu0 0.0
        %2040 = vmatprep.subr.mxu0 0.0
        %2041 = vmatpush1.msra.mxu0 0.0
        %2042 = vmatprep.subr.mxu0 0.0
        %2043 = vmatpush1.msra.mxu0 0.0
        %2044 = vmatprep.subr.mxu0 0.0
        %2045 = vmatpush1.msra.mxu0 0.0
        %2046 = vmatprep.subr.mxu0 0.0
        %2047 = vmatpush1.msra.mxu0 0.0
        %2048 = vmatprep.subr.mxu0 0.0
        %2049 = vmatpush1.msra.mxu0 0.0
        %2050 = vmatprep.subr.mxu0 0.0
        %2051 = vmatpush1.msra.mxu0 0.0
        %2052 = vmatprep.subr.mxu0 0.0
        %2053 = vmatpush1.msra.mxu0 0.0
        %2054 = vmatprep.subr.mxu0 0.0
        %2055 = vmatpush1.msra.mxu0 0.0
        %2056 = vmatprep.subr.mxu0 0.0
        %2057 = vmatpush1.msra.mxu0 0.0
        %2058 = vmatprep.subr.mxu0 0.0
        %2059 = vmatpush1.msra.mxu0 0.0
        %2060 = vmatprep.subr.mxu0 0.0
        %2061 = vmatpush1.msra.mxu0 0.0
        %2062 = vmatprep.subr.mxu0 0.0
        %2063 = vmatpush1.msra.mxu0 0.0
        %2064 = vmatprep.subr.mxu0 0.0
        %2065 = vmatpush1.msra.mxu0 0.0
        %2066 = vmatprep.mubr.f32.mxu0 0.0
        %2067 = vmatmul.mubr.f32.gmra.mrb[0].mxu0 %v1907
        %v2068 = vpop.f32.mrb[0].mxu0
        %v2069 = vadd.f32 0.0, %v2068
        %v2070 = vpop.f32.mrb[0].mxu0
        %2071 = vmatprep.mubr.f32.mxu0 0.0
        %2072 = vmatmul.mubr.f32.gmra.mrb[0].mxu0 %v1910
        %v2073 = vpop.f32.mrb[0].mxu0
        %v2074 = vadd.f32 0.0, %v2073
        %v2075 = vpop.f32.mrb[0].mxu0
        %2076 = vmatprep.mubr.f32.mxu0 0.0
        %2077 = vmatmul.mubr.f32.gmra.mrb[0].mxu0 %v1913
        %v2078 = vpop.f32.mrb[0].mxu0
        %v2079 = vadd.f32 0.0, %v2078
        %v2080 = vpop.f32.mrb[0].mxu0
        %2081 = vmatprep.mubr.f32.mxu0 0.0
        %2082 = vmatmul.mubr.f32.gmra.mrb[0].mxu0 %v1916
        %v2083 = vpop.f32.mrb[0].mxu0
        %v2084 = vadd.f32 0.0, %v2083
        %v2085 = vpop.f32.mrb[0].mxu0
        %2086 = vmatprep.mubr.f32.mxu0 0.0
        %2087 = vmatmul.mubr.f32.gmra.mrb[0].mxu0 %v1919
        %v2088 = vpop.f32.mrb[0].mxu0
        %v2089 = vadd.f32 0.0, %v2088
        %v2090 = vpop.f32.mrb[0].mxu0
        %2091 = vmatprep.mubr.f32.mxu0 0.0
        %2092 = vmatmul.mubr.f32.gmra.mrb[0].mxu0 %v1922
        %v2093 = vpop.f32.mrb[0].mxu0
        %v2094 = vadd.f32 0.0, %v2093
        %v2095 = vpop.f32.mrb[0].mxu0
        %2096 = vmatprep.mubr.f32.mxu0 0.0
        %2097 = vmatmul.mubr.f32.gmra.mrb[0].mxu0 %v1925
        %v2098 = vpop.f32.mrb[0].mxu0
        %v2099 = vadd.f32 0.0, %v2098
        %v2100 = vpop.f32.mrb[0].mxu0
        %2101 = vmatprep.mubr.f32.mxu0 0.0
        %2102 = vmatmul.mubr.f32.gmra.mrb[0].mxu0 %v1928
        %v2103 = vpop.f32.mrb[0].mxu0
        %v2104 = vadd.f32 0.0, %v2103
        %v2105 = vpop.f32.mrb[0].mxu0
        %2106 = vmatprep.mubr.f32.mxu0 0.0
        %2107 = vmatmul.mubr.f32.gmra.mrb[0].mxu0 %v1931
        %v2108 = vpop.f32.mrb[0].mxu0
        %v2109 = vadd.f32 0.0, %v2108
        %v2110 = vpop.f32.mrb[0].mxu0
        %2111 = vmatprep.mubr.f32.mxu0 0.0
        %2112 = vmatmul.mubr.f32.gmra.mrb[0].mxu0 %v1934
        %v2113 = vpop.f32.mrb[0].mxu0
        %v2114 = vadd.f32 0.0, %v2113
        %v2115 = vpop.f32.mrb[0].mxu0
        %2116 = vmatprep.mubr.f32.mxu0 0.0
        %2117 = vmatmul.mubr.f32.gmra.mrb[0].mxu0 %v1937
        %v2118 = vpop.f32.mrb[0].mxu0
        %v2119 = vadd.f32 0.0, %v2118
        %v2120 = vpop.f32.mrb[0].mxu0
        %2121 = vmatprep.mubr.f32.mxu0 0.0
        %2122 = vmatmul.mubr.f32.gmra.mrb[0].mxu0 %v1940
        %v2123 = vpop.f32.mrb[0].mxu0
        %v2124 = vadd.f32 0.0, %v2123
        %v2125 = vpop.f32.mrb[0].mxu0
        %2126 = vmatprep.mubr.f32.mxu0 0.0
        %2127 = vmatmul.mubr.f32.gmra.mrb[0].mxu0 %v1943
        %v2128 = vpop.f32.mrb[0].mxu0
        %v2129 = vadd.f32 0.0, %v2128
        %v2130 = vpop.f32.mrb[0].mxu0
        %2131 = vmatprep.mubr.f32.mxu0 0.0
        %2132 = vmatmul.mubr.f32.gmra.mrb[0].mxu0 %v1946
        %v2133 = vpop.f32.mrb[0].mxu0
        %v2134 = vadd.f32 0.0, %v2133
        %v2135 = vpop.f32.mrb[0].mxu0
        %2136 = vmatprep.mubr.f32.mxu0 0.0
        %2137 = vmatmul.mubr.f32.gmra.mrb[0].mxu0 %v1949
        %v2138 = vpop.f32.mrb[0].mxu0
        %v2139 = vadd.f32 0.0, %v2138
        %v2140 = vpop.f32.mrb[0].mxu0
        %2141 = vmatprep.mubr.f32.mxu0 0.0
        %2142 = vmatmul.mubr.f32.gmra.mrb[0].mxu0 %v1952
        %v2143 = vpop.f32.mrb[0].mxu0
        %v2144 = vadd.f32 0.0, %v2143
        %v2145 = vpop.f32.mrb[0].mxu0
        %2146 = vmatprep.mubr.f32.mxu0 0.0
        %2147 = vmatmul.mubr.f32.gmra.mrb[0].mxu0 %v1955
        %v2148 = vpop.f32.mrb[0].mxu0
        %v2149 = vadd.f32 0.0, %v2148
        %v2150 = vpop.f32.mrb[0].mxu0
        %2151 = vmatprep.mubr.f32.mxu0 0.0
        %2152 = vmatmul.mubr.f32.gmra.mrb[0].mxu0 %v1958
        %v2153 = vpop.f32.mrb[0].mxu0
        %v2154 = vadd.f32 0.0, %v2153
        %v2155 = vpop.f32.mrb[0].mxu0
        %2156 = vmatprep.mubr.f32.mxu0 0.0
        %2157 = vmatmul.mubr.f32.gmra.mrb[0].mxu0 %v1961
        %v2158 = vpop.f32.mrb[0].mxu0
        %v2159 = vadd.f32 0.0, %v2158
        %v2160 = vpop.f32.mrb[0].mxu0
        %2161 = vmatprep.mubr.f32.mxu0 0.0
        %2162 = vmatmul.mubr.f32.gmra.mrb[0].mxu0 %v1964
        %v2163 = vpop.f32.mrb[0].mxu0
        %v2164 = vadd.f32 0.0, %v2163
        %v2165 = vpop.f32.mrb[0].mxu0
        %2166 = vmatprep.mubr.f32.mxu0 0.0
        %2167 = vmatmul.mubr.f32.gmra.mrb[0].mxu0 %v1967
        %v2168 = vpop.f32.mrb[0].mxu0
        %v2169 = vadd.f32 0.0, %v2168
        %v2170 = vpop.f32.mrb[0].mxu0
        %2171 = vmatprep.mubr.f32.mxu0 0.0
        %2172 = vmatmul.mubr.f32.gmra.mrb[0].mxu0 %v1970
        %v2173 = vpop.f32.mrb[0].mxu0
        %v2174 = vadd.f32 0.0, %v2173
        %v2175 = vpop.f32.mrb[0].mxu0
        %2176 = vmatprep.mubr.f32.mxu0 0.0
        %2177 = vmatmul.mubr.f32.gmra.mrb[0].mxu0 %v1973
        %v2178 = vpop.f32.mrb[0].mxu0
        %v2179 = vadd.f32 0.0, %v2178
        %v2180 = vpop.f32.mrb[0].mxu0
        %2181 = vmatprep.mubr.f32.mxu0 0.0
        %2182 = vmatmul.mubr.f32.gmra.mrb[0].mxu0 %v1976
        %v2183 = vpop.f32.mrb[0].mxu0
        %v2184 = vadd.f32 0.0, %v2183
        %v2185 = vpop.f32.mrb[0].mxu0
        %2186 = vmatprep.mubr.f32.mxu0 0.0
        %2187 = vmatmul.mubr.f32.gmra.mrb[0].mxu0 %v1979
        %v2188 = vpop.f32.mrb[0].mxu0
        %v2189 = vadd.f32 0.0, %v2188
        %v2190 = vpop.f32.mrb[0].mxu0
        %2191 = vmatprep.mubr.f32.mxu0 0.0
        %2192 = vmatmul.mubr.f32.gmra.mrb[0].mxu0 %v1982
        %v2193 = vpop.f32.mrb[0].mxu0
        %v2194 = vadd.f32 0.0, %v2193
        %v2195 = vpop.f32.mrb[0].mxu0
        %2196 = vmatprep.mubr.f32.mxu0 0.0
        %2197 = vmatmul.mubr.f32.gmra.mrb[0].mxu0 %v1985
        %v2198 = vpop.f32.mrb[0].mxu0
        %v2199 = vadd.f32 0.0, %v2198
        %v2200 = vpop.f32.mrb[0].mxu0
        %2201 = vmatprep.mubr.f32.mxu0 0.0
        %2202 = vmatmul.mubr.f32.gmra.mrb[0].mxu0 %v1988
        %v2203 = vpop.f32.mrb[0].mxu0
        %v2204 = vadd.f32 0.0, %v2203
        %v2205 = vpop.f32.mrb[0].mxu0
        %2206 = vmatprep.mubr.f32.mxu0 0.0
        %2207 = vmatmul.mubr.f32.gmra.mrb[0].mxu0 %v1991
        %v2208 = vpop.f32.mrb[0].mxu0
        %v2209 = vadd.f32 0.0, %v2208
        %v2210 = vpop.f32.mrb[0].mxu0
        %2211 = vmatprep.mubr.f32.mxu0 0.0
        %2212 = vmatmul.mubr.f32.gmra.mrb[0].mxu0 %v1994
        %v2213 = vpop.f32.mrb[0].mxu0
        %v2214 = vadd.f32 0.0, %v2213
        %v2215 = vpop.f32.mrb[0].mxu0
        %2216 = vmatprep.mubr.f32.mxu0 0.0
        %2217 = vmatmul.mubr.f32.gmra.mrb[0].mxu0 %v1997
        %v2218 = vpop.f32.mrb[0].mxu0
        %v2219 = vadd.f32 0.0, %v2218
        %v2220 = vpop.f32.mrb[0].mxu0
        %2221 = vmatprep.mubr.f32.mxu0 0.0
        %2222 = vmatmul.mubr.f32.gmra.mrb[0].mxu0 %v2000
        %v2223 = vpop.f32.mrb[0].mxu0
        %v2224 = vadd.f32 0.0, %v2223
        %v2225 = vpop.f32.mrb[0].mxu0
        %2226 = vdwg.mxu0
        %v2227 = vadd.f32 %v1839, %v2069
        %v2228 = vadd.f32 %v1840, %v2074
        %v2229 = vadd.f32 %v1841, %v2079
        %v2230 = vadd.f32 %v1842, %v2084
        %v2231 = vadd.f32 %v1843, %v2089
        %v2232 = vadd.f32 %v1844, %v2094
        %v2233 = vadd.f32 %v1845, %v2099
        %v2234 = vadd.f32 %v1846, %v2104
        %v2235 = vadd.f32 %v1847, %v2109
        %v2236 = vadd.f32 %v1848, %v2114
        %v2237 = vadd.f32 %v1849, %v2119
        %v2238 = vadd.f32 %v1850, %v2124
        %v2239 = vadd.f32 %v1851, %v2129
        %v2240 = vadd.f32 %v1852, %v2134
        %v2241 = vadd.f32 %v1853, %v2139
        %v2242 = vadd.f32 %v1854, %v2144
        %v2243 = vadd.f32 %v1855, %v2149
        %v2244 = vadd.f32 %v1856, %v2154
        %v2245 = vadd.f32 %v1857, %v2159
        %v2246 = vadd.f32 %v1858, %v2164
        %v2247 = vadd.f32 %v1859, %v2169
        %v2248 = vadd.f32 %v1860, %v2174
        %v2249 = vadd.f32 %v1861, %v2179
        %v2250 = vadd.f32 %v1862, %v2184
        %v2251 = vadd.f32 %v1863, %v2189
        %v2252 = vadd.f32 %v1864, %v2194
        %v2253 = vadd.f32 %v1865, %v2199
        %v2254 = vadd.f32 %v1866, %v2204
        %v2255 = vadd.f32 %v1867, %v2209
        %v2256 = vadd.f32 %v1868, %v2214
        %v2257 = vadd.f32 %v1869, %v2219
        %v2258 = vadd.f32 %v1870, %v2224
        %v2259 = vld [vmem:[%s1055] sm:$0xff]
        %v2260 = vld [vmem:[%s1055 + $0x8] sm:$0xff]
        %v2261 = vld [vmem:[%s1055 + $0x18] sm:$0xff]
        %v2262 = vld [vmem:[%s1055 + $0x20] sm:$0xff]
        %v2263 = vld [vmem:[%s1055 + $0x30] sm:$0xff]
        %v2264 = vld [vmem:[%s1055 + $0x38] sm:$0xff]
        %v2265 = vld [vmem:[%s1055 + $0x48] sm:$0xff]
        %v2266 = vld [vmem:[%s1055 + $0x50] sm:$0xff]
        %v2267 = vld [vmem:[%s1055 + $0x60] sm:$0xff]
        %v2268 = vld [vmem:[%s1055 + $0x68] sm:$0xff]
        %v2269 = vld [vmem:[%s1055 + $0x78] sm:$0xff]
        %v2270 = vld [vmem:[%s1055 + $0x80] sm:$0xff]
        %v2271 = vld [vmem:[%s1055 + $0x90] sm:$0xff]
        %v2272 = vld [vmem:[%s1055 + $0x98] sm:$0xff]
        %v2273 = vld [vmem:[%s1055 + $0xa8] sm:$0xff]
        %v2274 = vld [vmem:[%s1055 + $0xb0] sm:$0xff]
        %v2275 = vld [vmem:[%s1055 + $0xc0] sm:$0xff]
        %v2276 = vld [vmem:[%s1055 + $0xc8] sm:$0xff]
        %v2277 = vld [vmem:[%s1055 + $0xd8] sm:$0xff]
        %v2278 = vld [vmem:[%s1055 + $0xe0] sm:$0xff]
        %v2279 = vld [vmem:[%s1055 + $0xf0] sm:$0xff]
        %v2280 = vld [vmem:[%s1055 + $0xf8] sm:$0xff]
        %v2281 = vld [vmem:[%s1055 + $0x108] sm:$0xff]
        %v2282 = vld [vmem:[%s1055 + $0x110] sm:$0xff]
        %v2283 = vld [vmem:[%s1055 + $0x120] sm:$0xff]
        %v2284 = vld [vmem:[%s1055 + $0x128] sm:$0xff]
        %v2285 = vld [vmem:[%s1055 + $0x138] sm:$0xff]
        %v2286 = vld [vmem:[%s1055 + $0x140] sm:$0xff]
        %v2287 = vld [vmem:[%s1055 + $0x150] sm:$0xff]
        %v2288 = vld [vmem:[%s1055 + $0x158] sm:$0xff]
        %v2289 = vld [vmem:[%s1055 + $0x168] sm:$0xff]
        %v2290 = vld [vmem:[%s1055 + $0x170] sm:$0xff]
        %s2291 = scalar_lea.vmem %s6, 48
        %v2292 = vld [vmem:[%s2291] sm:$0xff]
        %v2293 = vld [vmem:[%s2291 + $0x8] sm:$0xff]
        %v2295 = vsel %vm492, %v2259, 0
        %v2298 = vsel %vm492, %v2260, 0
        %v2301 = vsel %vm492, %v2261, 0
        %v2304 = vsel %vm492, %v2262, 0
        %v2307 = vsel %vm492, %v2263, 0
        %v2310 = vsel %vm492, %v2264, 0
        %v2313 = vsel %vm492, %v2265, 0
        %v2316 = vsel %vm492, %v2266, 0
        %v2319 = vsel %vm492, %v2267, 0
        %v2322 = vsel %vm492, %v2268, 0
        %v2325 = vsel %vm492, %v2269, 0
        %v2328 = vsel %vm492, %v2270, 0
        %v2331 = vsel %vm492, %v2271, 0
        %v2334 = vsel %vm492, %v2272, 0
        %v2337 = vsel %vm492, %v2273, 0
        %v2340 = vsel %vm492, %v2274, 0
        %v2343 = vsel %vm492, %v2275, 0
        %v2346 = vsel %vm492, %v2276, 0
        %v2349 = vsel %vm492, %v2277, 0
        %v2352 = vsel %vm492, %v2278, 0
        %v2355 = vsel %vm492, %v2279, 0
        %v2358 = vsel %vm492, %v2280, 0
        %v2361 = vsel %vm492, %v2281, 0
        %v2364 = vsel %vm492, %v2282, 0
        %v2367 = vsel %vm492, %v2283, 0
        %v2370 = vsel %vm492, %v2284, 0
        %v2373 = vsel %vm492, %v2285, 0
        %v2376 = vsel %vm492, %v2286, 0
        %v2379 = vsel %vm492, %v2287, 0
        %v2382 = vsel %vm492, %v2288, 0
        %v2385 = vsel %vm492, %v2289, 0
        %v2388 = vsel %vm492, %v2290, 0
        %2390 = vmatprep.subr.mxu0 0.0
        %2391 = vmatpush1.msra.mxu0 %v2292
        %2392 = vmatprep.subr.mxu0 0.0
        %2393 = vmatpush1.msra.mxu0 %v2293
        %2394 = vmatprep.subr.mxu0 0.0
        %2395 = vmatpush1.msra.mxu0 0.0
        %2396 = vmatprep.subr.mxu0 0.0
        %2397 = vmatpush1.msra.mxu0 0.0
        %2398 = vmatprep.subr.mxu0 0.0
        %2399 = vmatpush1.msra.mxu0 0.0
        %2400 = vmatprep.subr.mxu0 0.0
        %2401 = vmatpush1.msra.mxu0 0.0
        %2402 = vmatprep.subr.mxu0 0.0
        %2403 = vmatpush1.msra.mxu0 0.0
        %2404 = vmatprep.subr.mxu0 0.0
        %2405 = vmatpush1.msra.mxu0 0.0
        %2406 = vmatprep.subr.mxu0 0.0
        %2407 = vmatpush1.msra.mxu0 0.0
        %2408 = vmatprep.subr.mxu0 0.0
        %2409 = vmatpush1.msra.mxu0 0.0
        %2410 = vmatprep.subr.mxu0 0.0
        %2411 = vmatpush1.msra.mxu0 0.0
        %2412 = vmatprep.subr.mxu0 0.0
        %2413 = vmatpush1.msra.mxu0 0.0
        %2414 = vmatprep.subr.mxu0 0.0
        %2415 = vmatpush1.msra.mxu0 0.0
        %2416 = vmatprep.subr.mxu0 0.0
        %2417 = vmatpush1.msra.mxu0 0.0
        %2418 = vmatprep.subr.mxu0 0.0
        %2419 = vmatpush1.msra.mxu0 0.0
        %2420 = vmatprep.subr.mxu0 0.0
        %2421 = vmatpush1.msra.mxu0 0.0
        %2422 = vmatprep.subr.mxu0 0.0
        %2423 = vmatpush1.msra.mxu0 0.0
        %2424 = vmatprep.subr.mxu0 0.0
        %2425 = vmatpush1.msra.mxu0 0.0
        %2426 = vmatprep.subr.mxu0 0.0
        %2427 = vmatpush1.msra.mxu0 0.0
        %2428 = vmatprep.subr.mxu0 0.0
        %2429 = vmatpush1.msra.mxu0 0.0
        %2430 = vmatprep.subr.mxu0 0.0
        %2431 = vmatpush1.msra.mxu0 0.0
        %2432 = vmatprep.subr.mxu0 0.0
        %2433 = vmatpush1.msra.mxu0 0.0
        %2434 = vmatprep.subr.mxu0 0.0
        %2435 = vmatpush1.msra.mxu0 0.0
        %2436 = vmatprep.subr.mxu0 0.0
        %2437 = vmatpush1.msra.mxu0 0.0
        %2438 = vmatprep.subr.mxu0 0.0
        %2439 = vmatpush1.msra.mxu0 0.0
        %2440 = vmatprep.subr.mxu0 0.0
        %2441 = vmatpush1.msra.mxu0 0.0
        %2442 = vmatprep.subr.mxu0 0.0
        %2443 = vmatpush1.msra.mxu0 0.0
        %2444 = vmatprep.subr.mxu0 0.0
        %2445 = vmatpush1.msra.mxu0 0.0
        %2446 = vmatprep.subr.mxu0 0.0
        %2447 = vmatpush1.msra.mxu0 0.0
        %2448 = vmatprep.subr.mxu0 0.0
        %2449 = vmatpush1.msra.mxu0 0.0
        %2450 = vmatprep.subr.mxu0 0.0
        %2451 = vmatpush1.msra.mxu0 0.0
        %2452 = vmatprep.subr.mxu0 0.0
        %2453 = vmatpush1.msra.mxu0 0.0
        %2454 = vmatprep.mubr.f32.mxu0 0.0
        %2455 = vmatmul.mubr.f32.gmra.mrb[0].mxu0 %v2295
        %v2456 = vpop.f32.mrb[0].mxu0
        %v2457 = vadd.f32 0.0, %v2456
        %v2458 = vpop.f32.mrb[0].mxu0
        %2459 = vmatprep.mubr.f32.mxu0 0.0
        %2460 = vmatmul.mubr.f32.gmra.mrb[0].mxu0 %v2298
        %v2461 = vpop.f32.mrb[0].mxu0
        %v2462 = vadd.f32 0.0, %v2461
        %v2463 = vpop.f32.mrb[0].mxu0
        %2464 = vmatprep.mubr.f32.mxu0 0.0
        %2465 = vmatmul.mubr.f32.gmra.mrb[0].mxu0 %v2301
        %v2466 = vpop.f32.mrb[0].mxu0
        %v2467 = vadd.f32 0.0, %v2466
        %v2468 = vpop.f32.mrb[0].mxu0
        %2469 = vmatprep.mubr.f32.mxu0 0.0
        %2470 = vmatmul.mubr.f32.gmra.mrb[0].mxu0 %v2304
        %v2471 = vpop.f32.mrb[0].mxu0
        %v2472 = vadd.f32 0.0, %v2471
        %v2473 = vpop.f32.mrb[0].mxu0
        %2474 = vmatprep.mubr.f32.mxu0 0.0
        %2475 = vmatmul.mubr.f32.gmra.mrb[0].mxu0 %v2307
        %v2476 = vpop.f32.mrb[0].mxu0
        %v2477 = vadd.f32 0.0, %v2476
        %v2478 = vpop.f32.mrb[0].mxu0
        %2479 = vmatprep.mubr.f32.mxu0 0.0
        %2480 = vmatmul.mubr.f32.gmra.mrb[0].mxu0 %v2310
        %v2481 = vpop.f32.mrb[0].mxu0
        %v2482 = vadd.f32 0.0, %v2481
        %v2483 = vpop.f32.mrb[0].mxu0
        %2484 = vmatprep.mubr.f32.mxu0 0.0
        %2485 = vmatmul.mubr.f32.gmra.mrb[0].mxu0 %v2313
        %v2486 = vpop.f32.mrb[0].mxu0
        %v2487 = vadd.f32 0.0, %v2486
        %v2488 = vpop.f32.mrb[0].mxu0
        %2489 = vmatprep.mubr.f32.mxu0 0.0
        %2490 = vmatmul.mubr.f32.gmra.mrb[0].mxu0 %v2316
        %v2491 = vpop.f32.mrb[0].mxu0
        %v2492 = vadd.f32 0.0, %v2491
        %v2493 = vpop.f32.mrb[0].mxu0
        %2494 = vmatprep.mubr.f32.mxu0 0.0
        %2495 = vmatmul.mubr.f32.gmra.mrb[0].mxu0 %v2319
        %v2496 = vpop.f32.mrb[0].mxu0
        %v2497 = vadd.f32 0.0, %v2496
        %v2498 = vpop.f32.mrb[0].mxu0
        %2499 = vmatprep.mubr.f32.mxu0 0.0
        %2500 = vmatmul.mubr.f32.gmra.mrb[0].mxu0 %v2322
        %v2501 = vpop.f32.mrb[0].mxu0
        %v2502 = vadd.f32 0.0, %v2501
        %v2503 = vpop.f32.mrb[0].mxu0
        %2504 = vmatprep.mubr.f32.mxu0 0.0
        %2505 = vmatmul.mubr.f32.gmra.mrb[0].mxu0 %v2325
        %v2506 = vpop.f32.mrb[0].mxu0
        %v2507 = vadd.f32 0.0, %v2506
        %v2508 = vpop.f32.mrb[0].mxu0
        %2509 = vmatprep.mubr.f32.mxu0 0.0
        %2510 = vmatmul.mubr.f32.gmra.mrb[0].mxu0 %v2328
        %v2511 = vpop.f32.mrb[0].mxu0
        %v2512 = vadd.f32 0.0, %v2511
        %v2513 = vpop.f32.mrb[0].mxu0
        %2514 = vmatprep.mubr.f32.mxu0 0.0
        %2515 = vmatmul.mubr.f32.gmra.mrb[0].mxu0 %v2331
        %v2516 = vpop.f32.mrb[0].mxu0
        %v2517 = vadd.f32 0.0, %v2516
        %v2518 = vpop.f32.mrb[0].mxu0
        %2519 = vmatprep.mubr.f32.mxu0 0.0
        %2520 = vmatmul.mubr.f32.gmra.mrb[0].mxu0 %v2334
        %v2521 = vpop.f32.mrb[0].mxu0
        %v2522 = vadd.f32 0.0, %v2521
        %v2523 = vpop.f32.mrb[0].mxu0
        %2524 = vmatprep.mubr.f32.mxu0 0.0
        %2525 = vmatmul.mubr.f32.gmra.mrb[0].mxu0 %v2337
        %v2526 = vpop.f32.mrb[0].mxu0
        %v2527 = vadd.f32 0.0, %v2526
        %v2528 = vpop.f32.mrb[0].mxu0
        %2529 = vmatprep.mubr.f32.mxu0 0.0
        %2530 = vmatmul.mubr.f32.gmra.mrb[0].mxu0 %v2340
        %v2531 = vpop.f32.mrb[0].mxu0
        %v2532 = vadd.f32 0.0, %v2531
        %v2533 = vpop.f32.mrb[0].mxu0
        %2534 = vmatprep.mubr.f32.mxu0 0.0
        %2535 = vmatmul.mubr.f32.gmra.mrb[0].mxu0 %v2343
        %v2536 = vpop.f32.mrb[0].mxu0
        %v2537 = vadd.f32 0.0, %v2536
        %v2538 = vpop.f32.mrb[0].mxu0
        %2539 = vmatprep.mubr.f32.mxu0 0.0
        %2540 = vmatmul.mubr.f32.gmra.mrb[0].mxu0 %v2346
        %v2541 = vpop.f32.mrb[0].mxu0
        %v2542 = vadd.f32 0.0, %v2541
        %v2543 = vpop.f32.mrb[0].mxu0
        %2544 = vmatprep.mubr.f32.mxu0 0.0
        %2545 = vmatmul.mubr.f32.gmra.mrb[0].mxu0 %v2349
        %v2546 = vpop.f32.mrb[0].mxu0
        %v2547 = vadd.f32 0.0, %v2546
        %v2548 = vpop.f32.mrb[0].mxu0
        %2549 = vmatprep.mubr.f32.mxu0 0.0
        %2550 = vmatmul.mubr.f32.gmra.mrb[0].mxu0 %v2352
        %v2551 = vpop.f32.mrb[0].mxu0
        %v2552 = vadd.f32 0.0, %v2551
        %v2553 = vpop.f32.mrb[0].mxu0
        %2554 = vmatprep.mubr.f32.mxu0 0.0
        %2555 = vmatmul.mubr.f32.gmra.mrb[0].mxu0 %v2355
        %v2556 = vpop.f32.mrb[0].mxu0
        %v2557 = vadd.f32 0.0, %v2556
        %v2558 = vpop.f32.mrb[0].mxu0
        %2559 = vmatprep.mubr.f32.mxu0 0.0
        %2560 = vmatmul.mubr.f32.gmra.mrb[0].mxu0 %v2358
        %v2561 = vpop.f32.mrb[0].mxu0
        %v2562 = vadd.f32 0.0, %v2561
        %v2563 = vpop.f32.mrb[0].mxu0
        %2564 = vmatprep.mubr.f32.mxu0 0.0
        %2565 = vmatmul.mubr.f32.gmra.mrb[0].mxu0 %v2361
        %v2566 = vpop.f32.mrb[0].mxu0
        %v2567 = vadd.f32 0.0, %v2566
        %v2568 = vpop.f32.mrb[0].mxu0
        %2569 = vmatprep.mubr.f32.mxu0 0.0
        %2570 = vmatmul.mubr.f32.gmra.mrb[0].mxu0 %v2364
        %v2571 = vpop.f32.mrb[0].mxu0
        %v2572 = vadd.f32 0.0, %v2571
        %v2573 = vpop.f32.mrb[0].mxu0
        %2574 = vmatprep.mubr.f32.mxu0 0.0
        %2575 = vmatmul.mubr.f32.gmra.mrb[0].mxu0 %v2367
        %v2576 = vpop.f32.mrb[0].mxu0
        %v2577 = vadd.f32 0.0, %v2576
        %v2578 = vpop.f32.mrb[0].mxu0
        %2579 = vmatprep.mubr.f32.mxu0 0.0
        %2580 = vmatmul.mubr.f32.gmra.mrb[0].mxu0 %v2370
        %v2581 = vpop.f32.mrb[0].mxu0
        %v2582 = vadd.f32 0.0, %v2581
        %v2583 = vpop.f32.mrb[0].mxu0
        %2584 = vmatprep.mubr.f32.mxu0 0.0
        %2585 = vmatmul.mubr.f32.gmra.mrb[0].mxu0 %v2373
        %v2586 = vpop.f32.mrb[0].mxu0
        %v2587 = vadd.f32 0.0, %v2586
        %v2588 = vpop.f32.mrb[0].mxu0
        %2589 = vmatprep.mubr.f32.mxu0 0.0
        %2590 = vmatmul.mubr.f32.gmra.mrb[0].mxu0 %v2376
        %v2591 = vpop.f32.mrb[0].mxu0
        %v2592 = vadd.f32 0.0, %v2591
        %v2593 = vpop.f32.mrb[0].mxu0
        %2594 = vmatprep.mubr.f32.mxu0 0.0
        %2595 = vmatmul.mubr.f32.gmra.mrb[0].mxu0 %v2379
        %v2596 = vpop.f32.mrb[0].mxu0
        %v2597 = vadd.f32 0.0, %v2596
        %v2598 = vpop.f32.mrb[0].mxu0
        %2599 = vmatprep.mubr.f32.mxu0 0.0
        %2600 = vmatmul.mubr.f32.gmra.mrb[0].mxu0 %v2382
        %v2601 = vpop.f32.mrb[0].mxu0
        %v2602 = vadd.f32 0.0, %v2601
        %v2603 = vpop.f32.mrb[0].mxu0
        %2604 = vmatprep.mubr.f32.mxu0 0.0
        %2605 = vmatmul.mubr.f32.gmra.mrb[0].mxu0 %v2385
        %v2606 = vpop.f32.mrb[0].mxu0
        %v2607 = vadd.f32 0.0, %v2606
        %v2608 = vpop.f32.mrb[0].mxu0
        %2609 = vmatprep.mubr.f32.mxu0 0.0
        %2610 = vmatmul.mubr.f32.gmra.mrb[0].mxu0 %v2388
        %v2611 = vpop.f32.mrb[0].mxu0
        %v2612 = vadd.f32 0.0, %v2611
        %v2613 = vpop.f32.mrb[0].mxu0
        %2614 = vdwg.mxu0
        %v2615 = vadd.f32 %v2227, %v2457
        %v2616 = vadd.f32 %v2228, %v2462
        %v2617 = vadd.f32 %v2229, %v2467
        %v2618 = vadd.f32 %v2230, %v2472
        %v2619 = vadd.f32 %v2231, %v2477
        %v2620 = vadd.f32 %v2232, %v2482
        %v2621 = vadd.f32 %v2233, %v2487
        %v2622 = vadd.f32 %v2234, %v2492
        %v2623 = vadd.f32 %v2235, %v2497
        %v2624 = vadd.f32 %v2236, %v2502
        %v2625 = vadd.f32 %v2237, %v2507
        %v2626 = vadd.f32 %v2238, %v2512
        %v2627 = vadd.f32 %v2239, %v2517
        %v2628 = vadd.f32 %v2240, %v2522
        %v2629 = vadd.f32 %v2241, %v2527
        %v2630 = vadd.f32 %v2242, %v2532
        %v2631 = vadd.f32 %v2243, %v2537
        %v2632 = vadd.f32 %v2244, %v2542
        %v2633 = vadd.f32 %v2245, %v2547
        %v2634 = vadd.f32 %v2246, %v2552
        %v2635 = vadd.f32 %v2247, %v2557
        %v2636 = vadd.f32 %v2248, %v2562
        %v2637 = vadd.f32 %v2249, %v2567
        %v2638 = vadd.f32 %v2250, %v2572
        %v2639 = vadd.f32 %v2251, %v2577
        %v2640 = vadd.f32 %v2252, %v2582
        %v2641 = vadd.f32 %v2253, %v2587
        %v2642 = vadd.f32 %v2254, %v2592
        %v2643 = vadd.f32 %v2255, %v2597
        %v2644 = vadd.f32 %v2256, %v2602
        %v2645 = vadd.f32 %v2257, %v2607
        %v2646 = vadd.f32 %v2258, %v2612
        %v2647 = vld [vmem:[%s1055 + $0x1] sm:$0xff]
        %v2648 = vld [vmem:[%s1055 + $0x9] sm:$0xff]
        %v2649 = vld [vmem:[%s1055 + $0x19] sm:$0xff]
        %v2650 = vld [vmem:[%s1055 + $0x21] sm:$0xff]
        %v2651 = vld [vmem:[%s1055 + $0x31] sm:$0xff]
        %v2652 = vld [vmem:[%s1055 + $0x39] sm:$0xff]
        %v2653 = vld [vmem:[%s1055 + $0x49] sm:$0xff]
        %v2654 = vld [vmem:[%s1055 + $0x51] sm:$0xff]
        %v2655 = vld [vmem:[%s1055 + $0x61] sm:$0xff]
        %v2656 = vld [vmem:[%s1055 + $0x69] sm:$0xff]
        %v2657 = vld [vmem:[%s1055 + $0x79] sm:$0xff]
        %v2658 = vld [vmem:[%s1055 + $0x81] sm:$0xff]
        %v2659 = vld [vmem:[%s1055 + $0x91] sm:$0xff]
        %v2660 = vld [vmem:[%s1055 + $0x99] sm:$0xff]
        %v2661 = vld [vmem:[%s1055 + $0xa9] sm:$0xff]
        %v2662 = vld [vmem:[%s1055 + $0xb1] sm:$0xff]
        %v2663 = vld [vmem:[%s1055 + $0xc1] sm:$0xff]
        %v2664 = vld [vmem:[%s1055 + $0xc9] sm:$0xff]
        %v2665 = vld [vmem:[%s1055 + $0xd9] sm:$0xff]
        %v2666 = vld [vmem:[%s1055 + $0xe1] sm:$0xff]
        %v2667 = vld [vmem:[%s1055 + $0xf1] sm:$0xff]
        %v2668 = vld [vmem:[%s1055 + $0xf9] sm:$0xff]
        %v2669 = vld [vmem:[%s1055 + $0x109] sm:$0xff]
        %v2670 = vld [vmem:[%s1055 + $0x111] sm:$0xff]
        %v2671 = vld [vmem:[%s1055 + $0x121] sm:$0xff]
        %v2672 = vld [vmem:[%s1055 + $0x129] sm:$0xff]
        %v2673 = vld [vmem:[%s1055 + $0x139] sm:$0xff]
        %v2674 = vld [vmem:[%s1055 + $0x141] sm:$0xff]
        %v2675 = vld [vmem:[%s1055 + $0x151] sm:$0xff]
        %v2676 = vld [vmem:[%s1055 + $0x159] sm:$0xff]
        %v2677 = vld [vmem:[%s1055 + $0x169] sm:$0xff]
        %v2678 = vld [vmem:[%s1055 + $0x171] sm:$0xff]
        %s2679 = scalar_lea.vmem %s6, 64
        %v2680 = vld [vmem:[%s2679] sm:$0xff]
        %v2681 = vld [vmem:[%s2679 + $0x8] sm:$0xff]
        %v2683 = vsel %vm492, %v2647, 0
        %v2686 = vsel %vm492, %v2648, 0
        %v2689 = vsel %vm492, %v2649, 0
        %v2692 = vsel %vm492, %v2650, 0
        %v2695 = vsel %vm492, %v2651, 0
        %v2698 = vsel %vm492, %v2652, 0
        %v2701 = vsel %vm492, %v2653, 0
        %v2704 = vsel %vm492, %v2654, 0
        %v2707 = vsel %vm492, %v2655, 0
        %v2710 = vsel %vm492, %v2656, 0
        %v2713 = vsel %vm492, %v2657, 0
        %v2716 = vsel %vm492, %v2658, 0
        %v2719 = vsel %vm492, %v2659, 0
        %v2722 = vsel %vm492, %v2660, 0
        %v2725 = vsel %vm492, %v2661, 0
        %v2728 = vsel %vm492, %v2662, 0
        %v2731 = vsel %vm492, %v2663, 0
        %v2734 = vsel %vm492, %v2664, 0
        %v2737 = vsel %vm492, %v2665, 0
        %v2740 = vsel %vm492, %v2666, 0
        %v2743 = vsel %vm492, %v2667, 0
        %v2746 = vsel %vm492, %v2668, 0
        %v2749 = vsel %vm492, %v2669, 0
        %v2752 = vsel %vm492, %v2670, 0
        %v2755 = vsel %vm492, %v2671, 0
        %v2758 = vsel %vm492, %v2672, 0
        %v2761 = vsel %vm492, %v2673, 0
        %v2764 = vsel %vm492, %v2674, 0
        %v2767 = vsel %vm492, %v2675, 0
        %v2770 = vsel %vm492, %v2676, 0
        %v2773 = vsel %vm492, %v2677, 0
        %v2776 = vsel %vm492, %v2678, 0
        %2778 = vmatprep.subr.mxu0 0.0
        %2779 = vmatpush1.msra.mxu0 %v2680
        %2780 = vmatprep.subr.mxu0 0.0
        %2781 = vmatpush1.msra.mxu0 %v2681
        %2782 = vmatprep.subr.mxu0 0.0
        %2783 = vmatpush1.msra.mxu0 0.0
        %2784 = vmatprep.subr.mxu0 0.0
        %2785 = vmatpush1.msra.mxu0 0.0
        %2786 = vmatprep.subr.mxu0 0.0
        %2787 = vmatpush1.msra.mxu0 0.0
        %2788 = vmatprep.subr.mxu0 0.0
        %2789 = vmatpush1.msra.mxu0 0.0
        %2790 = vmatprep.subr.mxu0 0.0
        %2791 = vmatpush1.msra.mxu0 0.0
        %2792 = vmatprep.subr.mxu0 0.0
        %2793 = vmatpush1.msra.mxu0 0.0
        %2794 = vmatprep.subr.mxu0 0.0
        %2795 = vmatpush1.msra.mxu0 0.0
        %2796 = vmatprep.subr.mxu0 0.0
        %2797 = vmatpush1.msra.mxu0 0.0
        %2798 = vmatprep.subr.mxu0 0.0
        %2799 = vmatpush1.msra.mxu0 0.0
        %2800 = vmatprep.subr.mxu0 0.0
        %2801 = vmatpush1.msra.mxu0 0.0
        %2802 = vmatprep.subr.mxu0 0.0
        %2803 = vmatpush1.msra.mxu0 0.0
        %2804 = vmatprep.subr.mxu0 0.0
        %2805 = vmatpush1.msra.mxu0 0.0
        %2806 = vmatprep.subr.mxu0 0.0
        %2807 = vmatpush1.msra.mxu0 0.0
        %2808 = vmatprep.subr.mxu0 0.0
        %2809 = vmatpush1.msra.mxu0 0.0
        %2810 = vmatprep.subr.mxu0 0.0
        %2811 = vmatpush1.msra.mxu0 0.0
        %2812 = vmatprep.subr.mxu0 0.0
        %2813 = vmatpush1.msra.mxu0 0.0
        %2814 = vmatprep.subr.mxu0 0.0
        %2815 = vmatpush1.msra.mxu0 0.0
        %2816 = vmatprep.subr.mxu0 0.0
        %2817 = vmatpush1.msra.mxu0 0.0
        %2818 = vmatprep.subr.mxu0 0.0
        %2819 = vmatpush1.msra.mxu0 0.0
        %2820 = vmatprep.subr.mxu0 0.0
        %2821 = vmatpush1.msra.mxu0 0.0
        %2822 = vmatprep.subr.mxu0 0.0
        %2823 = vmatpush1.msra.mxu0 0.0
        %2824 = vmatprep.subr.mxu0 0.0
        %2825 = vmatpush1.msra.mxu0 0.0
        %2826 = vmatprep.subr.mxu0 0.0
        %2827 = vmatpush1.msra.mxu0 0.0
        %2828 = vmatprep.subr.mxu0 0.0
        %2829 = vmatpush1.msra.mxu0 0.0
        %2830 = vmatprep.subr.mxu0 0.0
        %2831 = vmatpush1.msra.mxu0 0.0
        %2832 = vmatprep.subr.mxu0 0.0
        %2833 = vmatpush1.msra.mxu0 0.0
        %2834 = vmatprep.subr.mxu0 0.0
        %2835 = vmatpush1.msra.mxu0 0.0
        %2836 = vmatprep.subr.mxu0 0.0
        %2837 = vmatpush1.msra.mxu0 0.0
        %2838 = vmatprep.subr.mxu0 0.0
        %2839 = vmatpush1.msra.mxu0 0.0
        %2840 = vmatprep.subr.mxu0 0.0
        %2841 = vmatpush1.msra.mxu0 0.0
        %2842 = vmatprep.mubr.f32.mxu0 0.0
        %2843 = vmatmul.mubr.f32.gmra.mrb[0].mxu0 %v2683
        %v2844 = vpop.f32.mrb[0].mxu0
        %v2845 = vadd.f32 0.0, %v2844
        %v2846 = vpop.f32.mrb[0].mxu0
        %2847 = vmatprep.mubr.f32.mxu0 0.0
        %2848 = vmatmul.mubr.f32.gmra.mrb[0].mxu0 %v2686
        %v2849 = vpop.f32.mrb[0].mxu0
        %v2850 = vadd.f32 0.0, %v2849
        %v2851 = vpop.f32.mrb[0].mxu0
        %2852 = vmatprep.mubr.f32.mxu0 0.0
        %2853 = vmatmul.mubr.f32.gmra.mrb[0].mxu0 %v2689
        %v2854 = vpop.f32.mrb[0].mxu0
        %v2855 = vadd.f32 0.0, %v2854
        %v2856 = vpop.f32.mrb[0].mxu0
        %2857 = vmatprep.mubr.f32.mxu0 0.0
        %2858 = vmatmul.mubr.f32.gmra.mrb[0].mxu0 %v2692
        %v2859 = vpop.f32.mrb[0].mxu0
        %v2860 = vadd.f32 0.0, %v2859
        %v2861 = vpop.f32.mrb[0].mxu0
        %2862 = vmatprep.mubr.f32.mxu0 0.0
        %2863 = vmatmul.mubr.f32.gmra.mrb[0].mxu0 %v2695
        %v2864 = vpop.f32.mrb[0].mxu0
        %v2865 = vadd.f32 0.0, %v2864
        %v2866 = vpop.f32.mrb[0].mxu0
        %2867 = vmatprep.mubr.f32.mxu0 0.0
        %2868 = vmatmul.mubr.f32.gmra.mrb[0].mxu0 %v2698
        %v2869 = vpop.f32.mrb[0].mxu0
        %v2870 = vadd.f32 0.0, %v2869
        %v2871 = vpop.f32.mrb[0].mxu0
        %2872 = vmatprep.mubr.f32.mxu0 0.0
        %2873 = vmatmul.mubr.f32.gmra.mrb[0].mxu0 %v2701
        %v2874 = vpop.f32.mrb[0].mxu0
        %v2875 = vadd.f32 0.0, %v2874
        %v2876 = vpop.f32.mrb[0].mxu0
        %2877 = vmatprep.mubr.f32.mxu0 0.0
        %2878 = vmatmul.mubr.f32.gmra.mrb[0].mxu0 %v2704
        %v2879 = vpop.f32.mrb[0].mxu0
        %v2880 = vadd.f32 0.0, %v2879
        %v2881 = vpop.f32.mrb[0].mxu0
        %2882 = vmatprep.mubr.f32.mxu0 0.0
        %2883 = vmatmul.mubr.f32.gmra.mrb[0].mxu0 %v2707
        %v2884 = vpop.f32.mrb[0].mxu0
        %v2885 = vadd.f32 0.0, %v2884
        %v2886 = vpop.f32.mrb[0].mxu0
        %2887 = vmatprep.mubr.f32.mxu0 0.0
        %2888 = vmatmul.mubr.f32.gmra.mrb[0].mxu0 %v2710
        %v2889 = vpop.f32.mrb[0].mxu0
        %v2890 = vadd.f32 0.0, %v2889
        %v2891 = vpop.f32.mrb[0].mxu0
        %2892 = vmatprep.mubr.f32.mxu0 0.0
        %2893 = vmatmul.mubr.f32.gmra.mrb[0].mxu0 %v2713
        %v2894 = vpop.f32.mrb[0].mxu0
        %v2895 = vadd.f32 0.0, %v2894
        %v2896 = vpop.f32.mrb[0].mxu0
        %2897 = vmatprep.mubr.f32.mxu0 0.0
        %2898 = vmatmul.mubr.f32.gmra.mrb[0].mxu0 %v2716
        %v2899 = vpop.f32.mrb[0].mxu0
        %v2900 = vadd.f32 0.0, %v2899
        %v2901 = vpop.f32.mrb[0].mxu0
        %2902 = vmatprep.mubr.f32.mxu0 0.0
        %2903 = vmatmul.mubr.f32.gmra.mrb[0].mxu0 %v2719
        %v2904 = vpop.f32.mrb[0].mxu0
        %v2905 = vadd.f32 0.0, %v2904
        %v2906 = vpop.f32.mrb[0].mxu0
        %2907 = vmatprep.mubr.f32.mxu0 0.0
        %2908 = vmatmul.mubr.f32.gmra.mrb[0].mxu0 %v2722
        %v2909 = vpop.f32.mrb[0].mxu0
        %v2910 = vadd.f32 0.0, %v2909
        %v2911 = vpop.f32.mrb[0].mxu0
        %2912 = vmatprep.mubr.f32.mxu0 0.0
        %2913 = vmatmul.mubr.f32.gmra.mrb[0].mxu0 %v2725
        %v2914 = vpop.f32.mrb[0].mxu0
        %v2915 = vadd.f32 0.0, %v2914
        %v2916 = vpop.f32.mrb[0].mxu0
        %2917 = vmatprep.mubr.f32.mxu0 0.0
        %2918 = vmatmul.mubr.f32.gmra.mrb[0].mxu0 %v2728
        %v2919 = vpop.f32.mrb[0].mxu0
        %v2920 = vadd.f32 0.0, %v2919
        %v2921 = vpop.f32.mrb[0].mxu0
        %2922 = vmatprep.mubr.f32.mxu0 0.0
        %2923 = vmatmul.mubr.f32.gmra.mrb[0].mxu0 %v2731
        %v2924 = vpop.f32.mrb[0].mxu0
        %v2925 = vadd.f32 0.0, %v2924
        %v2926 = vpop.f32.mrb[0].mxu0
        %2927 = vmatprep.mubr.f32.mxu0 0.0
        %2928 = vmatmul.mubr.f32.gmra.mrb[0].mxu0 %v2734
        %v2929 = vpop.f32.mrb[0].mxu0
        %v2930 = vadd.f32 0.0, %v2929
        %v2931 = vpop.f32.mrb[0].mxu0
        %2932 = vmatprep.mubr.f32.mxu0 0.0
        %2933 = vmatmul.mubr.f32.gmra.mrb[0].mxu0 %v2737
        %v2934 = vpop.f32.mrb[0].mxu0
        %v2935 = vadd.f32 0.0, %v2934
        %v2936 = vpop.f32.mrb[0].mxu0
        %2937 = vmatprep.mubr.f32.mxu0 0.0
        %2938 = vmatmul.mubr.f32.gmra.mrb[0].mxu0 %v2740
        %v2939 = vpop.f32.mrb[0].mxu0
        %v2940 = vadd.f32 0.0, %v2939
        %v2941 = vpop.f32.mrb[0].mxu0
        %2942 = vmatprep.mubr.f32.mxu0 0.0
        %2943 = vmatmul.mubr.f32.gmra.mrb[0].mxu0 %v2743
        %v2944 = vpop.f32.mrb[0].mxu0
        %v2945 = vadd.f32 0.0, %v2944
        %v2946 = vpop.f32.mrb[0].mxu0
        %2947 = vmatprep.mubr.f32.mxu0 0.0
        %2948 = vmatmul.mubr.f32.gmra.mrb[0].mxu0 %v2746
        %v2949 = vpop.f32.mrb[0].mxu0
        %v2950 = vadd.f32 0.0, %v2949
        %v2951 = vpop.f32.mrb[0].mxu0
        %2952 = vmatprep.mubr.f32.mxu0 0.0
        %2953 = vmatmul.mubr.f32.gmra.mrb[0].mxu0 %v2749
        %v2954 = vpop.f32.mrb[0].mxu0
        %v2955 = vadd.f32 0.0, %v2954
        %v2956 = vpop.f32.mrb[0].mxu0
        %2957 = vmatprep.mubr.f32.mxu0 0.0
        %2958 = vmatmul.mubr.f32.gmra.mrb[0].mxu0 %v2752
        %v2959 = vpop.f32.mrb[0].mxu0
        %v2960 = vadd.f32 0.0, %v2959
        %v2961 = vpop.f32.mrb[0].mxu0
        %2962 = vmatprep.mubr.f32.mxu0 0.0
        %2963 = vmatmul.mubr.f32.gmra.mrb[0].mxu0 %v2755
        %v2964 = vpop.f32.mrb[0].mxu0
        %v2965 = vadd.f32 0.0, %v2964
        %v2966 = vpop.f32.mrb[0].mxu0
        %2967 = vmatprep.mubr.f32.mxu0 0.0
        %2968 = vmatmul.mubr.f32.gmra.mrb[0].mxu0 %v2758
        %v2969 = vpop.f32.mrb[0].mxu0
        %v2970 = vadd.f32 0.0, %v2969
        %v2971 = vpop.f32.mrb[0].mxu0
        %2972 = vmatprep.mubr.f32.mxu0 0.0
        %2973 = vmatmul.mubr.f32.gmra.mrb[0].mxu0 %v2761
        %v2974 = vpop.f32.mrb[0].mxu0
        %v2975 = vadd.f32 0.0, %v2974
        %v2976 = vpop.f32.mrb[0].mxu0
        %2977 = vmatprep.mubr.f32.mxu0 0.0
        %2978 = vmatmul.mubr.f32.gmra.mrb[0].mxu0 %v2764
        %v2979 = vpop.f32.mrb[0].mxu0
        %v2980 = vadd.f32 0.0, %v2979
        %v2981 = vpop.f32.mrb[0].mxu0
        %2982 = vmatprep.mubr.f32.mxu0 0.0
        %2983 = vmatmul.mubr.f32.gmra.mrb[0].mxu0 %v2767
        %v2984 = vpop.f32.mrb[0].mxu0
        %v2985 = vadd.f32 0.0, %v2984
        %v2986 = vpop.f32.mrb[0].mxu0
        %2987 = vmatprep.mubr.f32.mxu0 0.0
        %2988 = vmatmul.mubr.f32.gmra.mrb[0].mxu0 %v2770
        %v2989 = vpop.f32.mrb[0].mxu0
        %v2990 = vadd.f32 0.0, %v2989
        %v2991 = vpop.f32.mrb[0].mxu0
        %2992 = vmatprep.mubr.f32.mxu0 0.0
        %2993 = vmatmul.mubr.f32.gmra.mrb[0].mxu0 %v2773
        %v2994 = vpop.f32.mrb[0].mxu0
        %v2995 = vadd.f32 0.0, %v2994
        %v2996 = vpop.f32.mrb[0].mxu0
        %2997 = vmatprep.mubr.f32.mxu0 0.0
        %2998 = vmatmul.mubr.f32.gmra.mrb[0].mxu0 %v2776
        %v2999 = vpop.f32.mrb[0].mxu0
        %v3000 = vadd.f32 0.0, %v2999
        %v3001 = vpop.f32.mrb[0].mxu0
        %3002 = vdwg.mxu0
        %v3003 = vadd.f32 %v2615, %v2845
        %v3004 = vadd.f32 %v2616, %v2850
        %v3005 = vadd.f32 %v2617, %v2855
        %v3006 = vadd.f32 %v2618, %v2860
        %v3007 = vadd.f32 %v2619, %v2865
        %v3008 = vadd.f32 %v2620, %v2870
        %v3009 = vadd.f32 %v2621, %v2875
        %v3010 = vadd.f32 %v2622, %v2880
        %v3011 = vadd.f32 %v2623, %v2885
        %v3012 = vadd.f32 %v2624, %v2890
        %v3013 = vadd.f32 %v2625, %v2895
        %v3014 = vadd.f32 %v2626, %v2900
        %v3015 = vadd.f32 %v2627, %v2905
        %v3016 = vadd.f32 %v2628, %v2910
        %v3017 = vadd.f32 %v2629, %v2915
        %v3018 = vadd.f32 %v2630, %v2920
        %v3019 = vadd.f32 %v2631, %v2925
        %v3020 = vadd.f32 %v2632, %v2930
        %v3021 = vadd.f32 %v2633, %v2935
        %v3022 = vadd.f32 %v2634, %v2940
        %v3023 = vadd.f32 %v2635, %v2945
        %v3024 = vadd.f32 %v2636, %v2950
        %v3025 = vadd.f32 %v2637, %v2955
        %v3026 = vadd.f32 %v2638, %v2960
        %v3027 = vadd.f32 %v2639, %v2965
        %v3028 = vadd.f32 %v2640, %v2970
        %v3029 = vadd.f32 %v2641, %v2975
        %v3030 = vadd.f32 %v2642, %v2980
        %v3031 = vadd.f32 %v2643, %v2985
        %v3032 = vadd.f32 %v2644, %v2990
        %v3033 = vadd.f32 %v2645, %v2995
        %v3034 = vadd.f32 %v2646, %v3000
        %v3035 = vld [vmem:[%s1055 + $0x2] sm:$0xff]
        %v3036 = vld [vmem:[%s1055 + $0xa] sm:$0xff]
        %v3037 = vld [vmem:[%s1055 + $0x1a] sm:$0xff]
        %v3038 = vld [vmem:[%s1055 + $0x22] sm:$0xff]
        %v3039 = vld [vmem:[%s1055 + $0x32] sm:$0xff]
        %v3040 = vld [vmem:[%s1055 + $0x3a] sm:$0xff]
        %v3041 = vld [vmem:[%s1055 + $0x4a] sm:$0xff]
        %v3042 = vld [vmem:[%s1055 + $0x52] sm:$0xff]
        %v3043 = vld [vmem:[%s1055 + $0x62] sm:$0xff]
        %v3044 = vld [vmem:[%s1055 + $0x6a] sm:$0xff]
        %v3045 = vld [vmem:[%s1055 + $0x7a] sm:$0xff]
        %v3046 = vld [vmem:[%s1055 + $0x82] sm:$0xff]
        %v3047 = vld [vmem:[%s1055 + $0x92] sm:$0xff]
        %v3048 = vld [vmem:[%s1055 + $0x9a] sm:$0xff]
        %v3049 = vld [vmem:[%s1055 + $0xaa] sm:$0xff]
        %v3050 = vld [vmem:[%s1055 + $0xb2] sm:$0xff]
        %v3051 = vld [vmem:[%s1055 + $0xc2] sm:$0xff]
        %v3052 = vld [vmem:[%s1055 + $0xca] sm:$0xff]
        %v3053 = vld [vmem:[%s1055 + $0xda] sm:$0xff]
        %v3054 = vld [vmem:[%s1055 + $0xe2] sm:$0xff]
        %v3055 = vld [vmem:[%s1055 + $0xf2] sm:$0xff]
        %v3056 = vld [vmem:[%s1055 + $0xfa] sm:$0xff]
        %v3057 = vld [vmem:[%s1055 + $0x10a] sm:$0xff]
        %v3058 = vld [vmem:[%s1055 + $0x112] sm:$0xff]
        %v3059 = vld [vmem:[%s1055 + $0x122] sm:$0xff]
        %v3060 = vld [vmem:[%s1055 + $0x12a] sm:$0xff]
        %v3061 = vld [vmem:[%s1055 + $0x13a] sm:$0xff]
        %v3062 = vld [vmem:[%s1055 + $0x142] sm:$0xff]
        %v3063 = vld [vmem:[%s1055 + $0x152] sm:$0xff]
        %v3064 = vld [vmem:[%s1055 + $0x15a] sm:$0xff]
        %v3065 = vld [vmem:[%s1055 + $0x16a] sm:$0xff]
        %v3066 = vld [vmem:[%s1055 + $0x172] sm:$0xff]
        %s3067 = scalar_lea.vmem %s6, 80
        %v3068 = vld [vmem:[%s3067] sm:$0xff]
        %v3069 = vld [vmem:[%s3067 + $0x8] sm:$0xff]
        %v3071 = vsel %vm492, %v3035, 0
        %v3074 = vsel %vm492, %v3036, 0
        %v3077 = vsel %vm492, %v3037, 0
        %v3080 = vsel %vm492, %v3038, 0
        %v3083 = vsel %vm492, %v3039, 0
        %v3086 = vsel %vm492, %v3040, 0
        %v3089 = vsel %vm492, %v3041, 0
        %v3092 = vsel %vm492, %v3042, 0
        %v3095 = vsel %vm492, %v3043, 0
        %v3098 = vsel %vm492, %v3044, 0
        %v3101 = vsel %vm492, %v3045, 0
        %v3104 = vsel %vm492, %v3046, 0
        %v3107 = vsel %vm492, %v3047, 0
        %v3110 = vsel %vm492, %v3048, 0
        %v3113 = vsel %vm492, %v3049, 0
        %v3116 = vsel %vm492, %v3050, 0
        %v3119 = vsel %vm492, %v3051, 0
        %v3122 = vsel %vm492, %v3052, 0
        %v3125 = vsel %vm492, %v3053, 0
        %v3128 = vsel %vm492, %v3054, 0
        %v3131 = vsel %vm492, %v3055, 0
        %v3134 = vsel %vm492, %v3056, 0
        %v3137 = vsel %vm492, %v3057, 0
        %v3140 = vsel %vm492, %v3058, 0
        %v3143 = vsel %vm492, %v3059, 0
        %v3146 = vsel %vm492, %v3060, 0
        %v3149 = vsel %vm492, %v3061, 0
        %v3152 = vsel %vm492, %v3062, 0
        %v3155 = vsel %vm492, %v3063, 0
        %v3158 = vsel %vm492, %v3064, 0
        %v3161 = vsel %vm492, %v3065, 0
        %v3164 = vsel %vm492, %v3066, 0
        %3166 = vmatprep.subr.mxu0 0.0
        %3167 = vmatpush1.msra.mxu0 %v3068
        %3168 = vmatprep.subr.mxu0 0.0
        %3169 = vmatpush1.msra.mxu0 %v3069
        %3170 = vmatprep.subr.mxu0 0.0
        %3171 = vmatpush1.msra.mxu0 0.0
        %3172 = vmatprep.subr.mxu0 0.0
        %3173 = vmatpush1.msra.mxu0 0.0
        %3174 = vmatprep.subr.mxu0 0.0
        %3175 = vmatpush1.msra.mxu0 0.0
        %3176 = vmatprep.subr.mxu0 0.0
        %3177 = vmatpush1.msra.mxu0 0.0
        %3178 = vmatprep.subr.mxu0 0.0
        %3179 = vmatpush1.msra.mxu0 0.0
        %3180 = vmatprep.subr.mxu0 0.0
        %3181 = vmatpush1.msra.mxu0 0.0
        %3182 = vmatprep.subr.mxu0 0.0
        %3183 = vmatpush1.msra.mxu0 0.0
        %3184 = vmatprep.subr.mxu0 0.0
        %3185 = vmatpush1.msra.mxu0 0.0
        %3186 = vmatprep.subr.mxu0 0.0
        %3187 = vmatpush1.msra.mxu0 0.0
        %3188 = vmatprep.subr.mxu0 0.0
        %3189 = vmatpush1.msra.mxu0 0.0
        %3190 = vmatprep.subr.mxu0 0.0
        %3191 = vmatpush1.msra.mxu0 0.0
        %3192 = vmatprep.subr.mxu0 0.0
        %3193 = vmatpush1.msra.mxu0 0.0
        %3194 = vmatprep.subr.mxu0 0.0
        %3195 = vmatpush1.msra.mxu0 0.0
        %3196 = vmatprep.subr.mxu0 0.0
        %3197 = vmatpush1.msra.mxu0 0.0
        %3198 = vmatprep.subr.mxu0 0.0
        %3199 = vmatpush1.msra.mxu0 0.0
        %3200 = vmatprep.subr.mxu0 0.0
        %3201 = vmatpush1.msra.mxu0 0.0
        %3202 = vmatprep.subr.mxu0 0.0
        %3203 = vmatpush1.msra.mxu0 0.0
        %3204 = vmatprep.subr.mxu0 0.0
        %3205 = vmatpush1.msra.mxu0 0.0
        %3206 = vmatprep.subr.mxu0 0.0
        %3207 = vmatpush1.msra.mxu0 0.0
        %3208 = vmatprep.subr.mxu0 0.0
        %3209 = vmatpush1.msra.mxu0 0.0
        %3210 = vmatprep.subr.mxu0 0.0
        %3211 = vmatpush1.msra.mxu0 0.0
        %3212 = vmatprep.subr.mxu0 0.0
        %3213 = vmatpush1.msra.mxu0 0.0
        %3214 = vmatprep.subr.mxu0 0.0
        %3215 = vmatpush1.msra.mxu0 0.0
        %3216 = vmatprep.subr.mxu0 0.0
        %3217 = vmatpush1.msra.mxu0 0.0
        %3218 = vmatprep.subr.mxu0 0.0
        %3219 = vmatpush1.msra.mxu0 0.0
        %3220 = vmatprep.subr.mxu0 0.0
        %3221 = vmatpush1.msra.mxu0 0.0
        %3222 = vmatprep.subr.mxu0 0.0
        %3223 = vmatpush1.msra.mxu0 0.0
        %3224 = vmatprep.subr.mxu0 0.0
        %3225 = vmatpush1.msra.mxu0 0.0
        %3226 = vmatprep.subr.mxu0 0.0
        %3227 = vmatpush1.msra.mxu0 0.0
        %3228 = vmatprep.subr.mxu0 0.0
        %3229 = vmatpush1.msra.mxu0 0.0
        %3230 = vmatprep.mubr.f32.mxu0 0.0
        %3231 = vmatmul.mubr.f32.gmra.mrb[0].mxu0 %v3071
        %v3232 = vpop.f32.mrb[0].mxu0
        %v3233 = vadd.f32 0.0, %v3232
        %v3234 = vpop.f32.mrb[0].mxu0
        %3235 = vmatprep.mubr.f32.mxu0 0.0
        %3236 = vmatmul.mubr.f32.gmra.mrb[0].mxu0 %v3074
        %v3237 = vpop.f32.mrb[0].mxu0
        %v3238 = vadd.f32 0.0, %v3237
        %v3239 = vpop.f32.mrb[0].mxu0
        %3240 = vmatprep.mubr.f32.mxu0 0.0
        %3241 = vmatmul.mubr.f32.gmra.mrb[0].mxu0 %v3077
        %v3242 = vpop.f32.mrb[0].mxu0
        %v3243 = vadd.f32 0.0, %v3242
        %v3244 = vpop.f32.mrb[0].mxu0
        %3245 = vmatprep.mubr.f32.mxu0 0.0
        %3246 = vmatmul.mubr.f32.gmra.mrb[0].mxu0 %v3080
        %v3247 = vpop.f32.mrb[0].mxu0
        %v3248 = vadd.f32 0.0, %v3247
        %v3249 = vpop.f32.mrb[0].mxu0
        %3250 = vmatprep.mubr.f32.mxu0 0.0
        %3251 = vmatmul.mubr.f32.gmra.mrb[0].mxu0 %v3083
        %v3252 = vpop.f32.mrb[0].mxu0
        %v3253 = vadd.f32 0.0, %v3252
        %v3254 = vpop.f32.mrb[0].mxu0
        %3255 = vmatprep.mubr.f32.mxu0 0.0
        %3256 = vmatmul.mubr.f32.gmra.mrb[0].mxu0 %v3086
        %v3257 = vpop.f32.mrb[0].mxu0
        %v3258 = vadd.f32 0.0, %v3257
        %v3259 = vpop.f32.mrb[0].mxu0
        %3260 = vmatprep.mubr.f32.mxu0 0.0
        %3261 = vmatmul.mubr.f32.gmra.mrb[0].mxu0 %v3089
        %v3262 = vpop.f32.mrb[0].mxu0
        %v3263 = vadd.f32 0.0, %v3262
        %v3264 = vpop.f32.mrb[0].mxu0
        %3265 = vmatprep.mubr.f32.mxu0 0.0
        %3266 = vmatmul.mubr.f32.gmra.mrb[0].mxu0 %v3092
        %v3267 = vpop.f32.mrb[0].mxu0
        %v3268 = vadd.f32 0.0, %v3267
        %v3269 = vpop.f32.mrb[0].mxu0
        %3270 = vmatprep.mubr.f32.mxu0 0.0
        %3271 = vmatmul.mubr.f32.gmra.mrb[0].mxu0 %v3095
        %v3272 = vpop.f32.mrb[0].mxu0
        %v3273 = vadd.f32 0.0, %v3272
        %v3274 = vpop.f32.mrb[0].mxu0
        %3275 = vmatprep.mubr.f32.mxu0 0.0
        %3276 = vmatmul.mubr.f32.gmra.mrb[0].mxu0 %v3098
        %v3277 = vpop.f32.mrb[0].mxu0
        %v3278 = vadd.f32 0.0, %v3277
        %v3279 = vpop.f32.mrb[0].mxu0
        %3280 = vmatprep.mubr.f32.mxu0 0.0
        %3281 = vmatmul.mubr.f32.gmra.mrb[0].mxu0 %v3101
        %v3282 = vpop.f32.mrb[0].mxu0
        %v3283 = vadd.f32 0.0, %v3282
        %v3284 = vpop.f32.mrb[0].mxu0
        %3285 = vmatprep.mubr.f32.mxu0 0.0
        %3286 = vmatmul.mubr.f32.gmra.mrb[0].mxu0 %v3104
        %v3287 = vpop.f32.mrb[0].mxu0
        %v3288 = vadd.f32 0.0, %v3287
        %v3289 = vpop.f32.mrb[0].mxu0
        %3290 = vmatprep.mubr.f32.mxu0 0.0
        %3291 = vmatmul.mubr.f32.gmra.mrb[0].mxu0 %v3107
        %v3292 = vpop.f32.mrb[0].mxu0
        %v3293 = vadd.f32 0.0, %v3292
        %v3294 = vpop.f32.mrb[0].mxu0
        %3295 = vmatprep.mubr.f32.mxu0 0.0
        %3296 = vmatmul.mubr.f32.gmra.mrb[0].mxu0 %v3110
        %v3297 = vpop.f32.mrb[0].mxu0
        %v3298 = vadd.f32 0.0, %v3297
        %v3299 = vpop.f32.mrb[0].mxu0
        %3300 = vmatprep.mubr.f32.mxu0 0.0
        %3301 = vmatmul.mubr.f32.gmra.mrb[0].mxu0 %v3113
        %v3302 = vpop.f32.mrb[0].mxu0
        %v3303 = vadd.f32 0.0, %v3302
        %v3304 = vpop.f32.mrb[0].mxu0
        %3305 = vmatprep.mubr.f32.mxu0 0.0
        %3306 = vmatmul.mubr.f32.gmra.mrb[0].mxu0 %v3116
        %v3307 = vpop.f32.mrb[0].mxu0
        %v3308 = vadd.f32 0.0, %v3307
        %v3309 = vpop.f32.mrb[0].mxu0
        %3310 = vmatprep.mubr.f32.mxu0 0.0
        %3311 = vmatmul.mubr.f32.gmra.mrb[0].mxu0 %v3119
        %v3312 = vpop.f32.mrb[0].mxu0
        %v3313 = vadd.f32 0.0, %v3312
        %v3314 = vpop.f32.mrb[0].mxu0
        %3315 = vmatprep.mubr.f32.mxu0 0.0
        %3316 = vmatmul.mubr.f32.gmra.mrb[0].mxu0 %v3122
        %v3317 = vpop.f32.mrb[0].mxu0
        %v3318 = vadd.f32 0.0, %v3317
        %v3319 = vpop.f32.mrb[0].mxu0
        %3320 = vmatprep.mubr.f32.mxu0 0.0
        %3321 = vmatmul.mubr.f32.gmra.mrb[0].mxu0 %v3125
        %v3322 = vpop.f32.mrb[0].mxu0
        %v3323 = vadd.f32 0.0, %v3322
        %v3324 = vpop.f32.mrb[0].mxu0
        %3325 = vmatprep.mubr.f32.mxu0 0.0
        %3326 = vmatmul.mubr.f32.gmra.mrb[0].mxu0 %v3128
        %v3327 = vpop.f32.mrb[0].mxu0
        %v3328 = vadd.f32 0.0, %v3327
        %v3329 = vpop.f32.mrb[0].mxu0
        %3330 = vmatprep.mubr.f32.mxu0 0.0
        %3331 = vmatmul.mubr.f32.gmra.mrb[0].mxu0 %v3131
        %v3332 = vpop.f32.mrb[0].mxu0
        %v3333 = vadd.f32 0.0, %v3332
        %v3334 = vpop.f32.mrb[0].mxu0
        %3335 = vmatprep.mubr.f32.mxu0 0.0
        %3336 = vmatmul.mubr.f32.gmra.mrb[0].mxu0 %v3134
        %v3337 = vpop.f32.mrb[0].mxu0
        %v3338 = vadd.f32 0.0, %v3337
        %v3339 = vpop.f32.mrb[0].mxu0
        %3340 = vmatprep.mubr.f32.mxu0 0.0
        %3341 = vmatmul.mubr.f32.gmra.mrb[0].mxu0 %v3137
        %v3342 = vpop.f32.mrb[0].mxu0
        %v3343 = vadd.f32 0.0, %v3342
        %v3344 = vpop.f32.mrb[0].mxu0
        %3345 = vmatprep.mubr.f32.mxu0 0.0
        %3346 = vmatmul.mubr.f32.gmra.mrb[0].mxu0 %v3140
        %v3347 = vpop.f32.mrb[0].mxu0
        %v3348 = vadd.f32 0.0, %v3347
        %v3349 = vpop.f32.mrb[0].mxu0
        %3350 = vmatprep.mubr.f32.mxu0 0.0
        %3351 = vmatmul.mubr.f32.gmra.mrb[0].mxu0 %v3143
        %v3352 = vpop.f32.mrb[0].mxu0
        %v3353 = vadd.f32 0.0, %v3352
        %v3354 = vpop.f32.mrb[0].mxu0
        %3355 = vmatprep.mubr.f32.mxu0 0.0
        %3356 = vmatmul.mubr.f32.gmra.mrb[0].mxu0 %v3146
        %v3357 = vpop.f32.mrb[0].mxu0
        %v3358 = vadd.f32 0.0, %v3357
        %v3359 = vpop.f32.mrb[0].mxu0
        %3360 = vmatprep.mubr.f32.mxu0 0.0
        %3361 = vmatmul.mubr.f32.gmra.mrb[0].mxu0 %v3149
        %v3362 = vpop.f32.mrb[0].mxu0
        %v3363 = vadd.f32 0.0, %v3362
        %v3364 = vpop.f32.mrb[0].mxu0
        %3365 = vmatprep.mubr.f32.mxu0 0.0
        %3366 = vmatmul.mubr.f32.gmra.mrb[0].mxu0 %v3152
        %v3367 = vpop.f32.mrb[0].mxu0
        %v3368 = vadd.f32 0.0, %v3367
        %v3369 = vpop.f32.mrb[0].mxu0
        %3370 = vmatprep.mubr.f32.mxu0 0.0
        %3371 = vmatmul.mubr.f32.gmra.mrb[0].mxu0 %v3155
        %v3372 = vpop.f32.mrb[0].mxu0
        %v3373 = vadd.f32 0.0, %v3372
        %v3374 = vpop.f32.mrb[0].mxu0
        %3375 = vmatprep.mubr.f32.mxu0 0.0
        %3376 = vmatmul.mubr.f32.gmra.mrb[0].mxu0 %v3158
        %v3377 = vpop.f32.mrb[0].mxu0
        %v3378 = vadd.f32 0.0, %v3377
        %v3379 = vpop.f32.mrb[0].mxu0
        %3380 = vmatprep.mubr.f32.mxu0 0.0
        %3381 = vmatmul.mubr.f32.gmra.mrb[0].mxu0 %v3161
        %v3382 = vpop.f32.mrb[0].mxu0
        %v3383 = vadd.f32 0.0, %v3382
        %v3384 = vpop.f32.mrb[0].mxu0
        %3385 = vmatprep.mubr.f32.mxu0 0.0
        %3386 = vmatmul.mubr.f32.gmra.mrb[0].mxu0 %v3164
        %v3387 = vpop.f32.mrb[0].mxu0
        %v3388 = vadd.f32 0.0, %v3387
        %v3389 = vpop.f32.mrb[0].mxu0
        %3390 = vdwg.mxu0
        %v3391 = vadd.f32 %v3003, %v3233
        %v3392 = vadd.f32 %v3004, %v3238
        %v3393 = vadd.f32 %v3005, %v3243
        %v3394 = vadd.f32 %v3006, %v3248
        %v3395 = vadd.f32 %v3007, %v3253
        %v3396 = vadd.f32 %v3008, %v3258
        %v3397 = vadd.f32 %v3009, %v3263
        %v3398 = vadd.f32 %v3010, %v3268
        %v3399 = vadd.f32 %v3011, %v3273
        %v3400 = vadd.f32 %v3012, %v3278
        %v3401 = vadd.f32 %v3013, %v3283
        %v3402 = vadd.f32 %v3014, %v3288
        %v3403 = vadd.f32 %v3015, %v3293
        %v3404 = vadd.f32 %v3016, %v3298
        %v3405 = vadd.f32 %v3017, %v3303
        %v3406 = vadd.f32 %v3018, %v3308
        %v3407 = vadd.f32 %v3019, %v3313
        %v3408 = vadd.f32 %v3020, %v3318
        %v3409 = vadd.f32 %v3021, %v3323
        %v3410 = vadd.f32 %v3022, %v3328
        %v3411 = vadd.f32 %v3023, %v3333
        %v3412 = vadd.f32 %v3024, %v3338
        %v3413 = vadd.f32 %v3025, %v3343
        %v3414 = vadd.f32 %v3026, %v3348
        %v3415 = vadd.f32 %v3027, %v3353
        %v3416 = vadd.f32 %v3028, %v3358
        %v3417 = vadd.f32 %v3029, %v3363
        %v3418 = vadd.f32 %v3030, %v3368
        %v3419 = vadd.f32 %v3031, %v3373
        %v3420 = vadd.f32 %v3032, %v3378
        %v3421 = vadd.f32 %v3033, %v3383
        %v3422 = vadd.f32 %v3034, %v3388
        %s3423 = scalar_lea.vmem [#allocation3], 48
        %v3424 = vld [vmem:[%s3423] sm:$0xff]
        %v3425 = vld [vmem:[%s3423 + $0x8] sm:$0xff]
        %v3426 = vld [vmem:[%s3423 + $0x18] sm:$0xff]
        %v3427 = vld [vmem:[%s3423 + $0x20] sm:$0xff]
        %v3428 = vld [vmem:[%s3423 + $0x30] sm:$0xff]
        %v3429 = vld [vmem:[%s3423 + $0x38] sm:$0xff]
        %v3430 = vld [vmem:[%s3423 + $0x48] sm:$0xff]
        %v3431 = vld [vmem:[%s3423 + $0x50] sm:$0xff]
        %v3432 = vld [vmem:[%s3423 + $0x60] sm:$0xff]
        %v3433 = vld [vmem:[%s3423 + $0x68] sm:$0xff]
        %v3434 = vld [vmem:[%s3423 + $0x78] sm:$0xff]
        %v3435 = vld [vmem:[%s3423 + $0x80] sm:$0xff]
        %v3436 = vld [vmem:[%s3423 + $0x90] sm:$0xff]
        %v3437 = vld [vmem:[%s3423 + $0x98] sm:$0xff]
        %v3438 = vld [vmem:[%s3423 + $0xa8] sm:$0xff]
        %v3439 = vld [vmem:[%s3423 + $0xb0] sm:$0xff]
        %v3440 = vld [vmem:[%s3423 + $0xc0] sm:$0xff]
        %v3441 = vld [vmem:[%s3423 + $0xc8] sm:$0xff]
        %v3442 = vld [vmem:[%s3423 + $0xd8] sm:$0xff]
        %v3443 = vld [vmem:[%s3423 + $0xe0] sm:$0xff]
        %v3444 = vld [vmem:[%s3423 + $0xf0] sm:$0xff]
        %v3445 = vld [vmem:[%s3423 + $0xf8] sm:$0xff]
        %v3446 = vld [vmem:[%s3423 + $0x108] sm:$0xff]
        %v3447 = vld [vmem:[%s3423 + $0x110] sm:$0xff]
        %v3448 = vld [vmem:[%s3423 + $0x120] sm:$0xff]
        %v3449 = vld [vmem:[%s3423 + $0x128] sm:$0xff]
        %v3450 = vld [vmem:[%s3423 + $0x138] sm:$0xff]
        %v3451 = vld [vmem:[%s3423 + $0x140] sm:$0xff]
        %v3452 = vld [vmem:[%s3423 + $0x150] sm:$0xff]
        %v3453 = vld [vmem:[%s3423 + $0x158] sm:$0xff]
        %v3454 = vld [vmem:[%s3423 + $0x168] sm:$0xff]
        %v3455 = vld [vmem:[%s3423 + $0x170] sm:$0xff]
        %s3456 = scalar_lea.vmem %s6, 96
        %v3457 = vld [vmem:[%s3456] sm:$0xff]
        %v3458 = vld [vmem:[%s3456 + $0x8] sm:$0xff]
        %v3460 = vsel %vm492, %v3424, 0
        %v3463 = vsel %vm492, %v3425, 0
        %v3466 = vsel %vm492, %v3426, 0
        %v3469 = vsel %vm492, %v3427, 0
        %v3472 = vsel %vm492, %v3428, 0
        %v3475 = vsel %vm492, %v3429, 0
        %v3478 = vsel %vm492, %v3430, 0
        %v3481 = vsel %vm492, %v3431, 0
        %v3484 = vsel %vm492, %v3432, 0
        %v3487 = vsel %vm492, %v3433, 0
        %v3490 = vsel %vm492, %v3434, 0
        %v3493 = vsel %vm492, %v3435, 0
        %v3496 = vsel %vm492, %v3436, 0
        %v3499 = vsel %vm492, %v3437, 0
        %v3502 = vsel %vm492, %v3438, 0
        %v3505 = vsel %vm492, %v3439, 0
        %v3508 = vsel %vm492, %v3440, 0
        %v3511 = vsel %vm492, %v3441, 0
        %v3514 = vsel %vm492, %v3442, 0
        %v3517 = vsel %vm492, %v3443, 0
        %v3520 = vsel %vm492, %v3444, 0
        %v3523 = vsel %vm492, %v3445, 0
        %v3526 = vsel %vm492, %v3446, 0
        %v3529 = vsel %vm492, %v3447, 0
        %v3532 = vsel %vm492, %v3448, 0
        %v3535 = vsel %vm492, %v3449, 0
        %v3538 = vsel %vm492, %v3450, 0
        %v3541 = vsel %vm492, %v3451, 0
        %v3544 = vsel %vm492, %v3452, 0
        %v3547 = vsel %vm492, %v3453, 0
        %v3550 = vsel %vm492, %v3454, 0
        %v3553 = vsel %vm492, %v3455, 0
        %3555 = vmatprep.subr.mxu0 0.0
        %3556 = vmatpush1.msra.mxu0 %v3457
        %3557 = vmatprep.subr.mxu0 0.0
        %3558 = vmatpush1.msra.mxu0 %v3458
        %3559 = vmatprep.subr.mxu0 0.0
        %3560 = vmatpush1.msra.mxu0 0.0
        %3561 = vmatprep.subr.mxu0 0.0
        %3562 = vmatpush1.msra.mxu0 0.0
        %3563 = vmatprep.subr.mxu0 0.0
        %3564 = vmatpush1.msra.mxu0 0.0
        %3565 = vmatprep.subr.mxu0 0.0
        %3566 = vmatpush1.msra.mxu0 0.0
        %3567 = vmatprep.subr.mxu0 0.0
        %3568 = vmatpush1.msra.mxu0 0.0
        %3569 = vmatprep.subr.mxu0 0.0
        %3570 = vmatpush1.msra.mxu0 0.0
        %3571 = vmatprep.subr.mxu0 0.0
        %3572 = vmatpush1.msra.mxu0 0.0
        %3573 = vmatprep.subr.mxu0 0.0
        %3574 = vmatpush1.msra.mxu0 0.0
        %3575 = vmatprep.subr.mxu0 0.0
        %3576 = vmatpush1.msra.mxu0 0.0
        %3577 = vmatprep.subr.mxu0 0.0
        %3578 = vmatpush1.msra.mxu0 0.0
        %3579 = vmatprep.subr.mxu0 0.0
        %3580 = vmatpush1.msra.mxu0 0.0
        %3581 = vmatprep.subr.mxu0 0.0
        %3582 = vmatpush1.msra.mxu0 0.0
        %3583 = vmatprep.subr.mxu0 0.0
        %3584 = vmatpush1.msra.mxu0 0.0
        %3585 = vmatprep.subr.mxu0 0.0
        %3586 = vmatpush1.msra.mxu0 0.0
        %3587 = vmatprep.subr.mxu0 0.0
        %3588 = vmatpush1.msra.mxu0 0.0
        %3589 = vmatprep.subr.mxu0 0.0
        %3590 = vmatpush1.msra.mxu0 0.0
        %3591 = vmatprep.subr.mxu0 0.0
        %3592 = vmatpush1.msra.mxu0 0.0
        %3593 = vmatprep.subr.mxu0 0.0
        %3594 = vmatpush1.msra.mxu0 0.0
        %3595 = vmatprep.subr.mxu0 0.0
        %3596 = vmatpush1.msra.mxu0 0.0
        %3597 = vmatprep.subr.mxu0 0.0
        %3598 = vmatpush1.msra.mxu0 0.0
        %3599 = vmatprep.subr.mxu0 0.0
        %3600 = vmatpush1.msra.mxu0 0.0
        %3601 = vmatprep.subr.mxu0 0.0
        %3602 = vmatpush1.msra.mxu0 0.0
        %3603 = vmatprep.subr.mxu0 0.0
        %3604 = vmatpush1.msra.mxu0 0.0
        %3605 = vmatprep.subr.mxu0 0.0
        %3606 = vmatpush1.msra.mxu0 0.0
        %3607 = vmatprep.subr.mxu0 0.0
        %3608 = vmatpush1.msra.mxu0 0.0
        %3609 = vmatprep.subr.mxu0 0.0
        %3610 = vmatpush1.msra.mxu0 0.0
        %3611 = vmatprep.subr.mxu0 0.0
        %3612 = vmatpush1.msra.mxu0 0.0
        %3613 = vmatprep.subr.mxu0 0.0
        %3614 = vmatpush1.msra.mxu0 0.0
        %3615 = vmatprep.subr.mxu0 0.0
        %3616 = vmatpush1.msra.mxu0 0.0
        %3617 = vmatprep.subr.mxu0 0.0
        %3618 = vmatpush1.msra.mxu0 0.0
        %3619 = vmatprep.mubr.f32.mxu0 0.0
        %3620 = vmatmul.mubr.f32.gmra.mrb[0].mxu0 %v3460
        %v3621 = vpop.f32.mrb[0].mxu0
        %v3622 = vadd.f32 0.0, %v3621
        %v3623 = vpop.f32.mrb[0].mxu0
        %3624 = vmatprep.mubr.f32.mxu0 0.0
        %3625 = vmatmul.mubr.f32.gmra.mrb[0].mxu0 %v3463
        %v3626 = vpop.f32.mrb[0].mxu0
        %v3627 = vadd.f32 0.0, %v3626
        %v3628 = vpop.f32.mrb[0].mxu0
        %3629 = vmatprep.mubr.f32.mxu0 0.0
        %3630 = vmatmul.mubr.f32.gmra.mrb[0].mxu0 %v3466
        %v3631 = vpop.f32.mrb[0].mxu0
        %v3632 = vadd.f32 0.0, %v3631
        %v3633 = vpop.f32.mrb[0].mxu0
        %3634 = vmatprep.mubr.f32.mxu0 0.0
        %3635 = vmatmul.mubr.f32.gmra.mrb[0].mxu0 %v3469
        %v3636 = vpop.f32.mrb[0].mxu0
        %v3637 = vadd.f32 0.0, %v3636
        %v3638 = vpop.f32.mrb[0].mxu0
        %3639 = vmatprep.mubr.f32.mxu0 0.0
        %3640 = vmatmul.mubr.f32.gmra.mrb[0].mxu0 %v3472
        %v3641 = vpop.f32.mrb[0].mxu0
        %v3642 = vadd.f32 0.0, %v3641
        %v3643 = vpop.f32.mrb[0].mxu0
        %3644 = vmatprep.mubr.f32.mxu0 0.0
        %3645 = vmatmul.mubr.f32.gmra.mrb[0].mxu0 %v3475
        %v3646 = vpop.f32.mrb[0].mxu0
        %v3647 = vadd.f32 0.0, %v3646
        %v3648 = vpop.f32.mrb[0].mxu0
        %3649 = vmatprep.mubr.f32.mxu0 0.0
        %3650 = vmatmul.mubr.f32.gmra.mrb[0].mxu0 %v3478
        %v3651 = vpop.f32.mrb[0].mxu0
        %v3652 = vadd.f32 0.0, %v3651
        %v3653 = vpop.f32.mrb[0].mxu0
        %3654 = vmatprep.mubr.f32.mxu0 0.0
        %3655 = vmatmul.mubr.f32.gmra.mrb[0].mxu0 %v3481
        %v3656 = vpop.f32.mrb[0].mxu0
        %v3657 = vadd.f32 0.0, %v3656
        %v3658 = vpop.f32.mrb[0].mxu0
        %3659 = vmatprep.mubr.f32.mxu0 0.0
        %3660 = vmatmul.mubr.f32.gmra.mrb[0].mxu0 %v3484
        %v3661 = vpop.f32.mrb[0].mxu0
        %v3662 = vadd.f32 0.0, %v3661
        %v3663 = vpop.f32.mrb[0].mxu0
        %3664 = vmatprep.mubr.f32.mxu0 0.0
        %3665 = vmatmul.mubr.f32.gmra.mrb[0].mxu0 %v3487
        %v3666 = vpop.f32.mrb[0].mxu0
        %v3667 = vadd.f32 0.0, %v3666
        %v3668 = vpop.f32.mrb[0].mxu0
        %3669 = vmatprep.mubr.f32.mxu0 0.0
        %3670 = vmatmul.mubr.f32.gmra.mrb[0].mxu0 %v3490
        %v3671 = vpop.f32.mrb[0].mxu0
        %v3672 = vadd.f32 0.0, %v3671
        %v3673 = vpop.f32.mrb[0].mxu0
        %3674 = vmatprep.mubr.f32.mxu0 0.0
        %3675 = vmatmul.mubr.f32.gmra.mrb[0].mxu0 %v3493
        %v3676 = vpop.f32.mrb[0].mxu0
        %v3677 = vadd.f32 0.0, %v3676
        %v3678 = vpop.f32.mrb[0].mxu0
        %3679 = vmatprep.mubr.f32.mxu0 0.0
        %3680 = vmatmul.mubr.f32.gmra.mrb[0].mxu0 %v3496
        %v3681 = vpop.f32.mrb[0].mxu0
        %v3682 = vadd.f32 0.0, %v3681
        %v3683 = vpop.f32.mrb[0].mxu0
        %3684 = vmatprep.mubr.f32.mxu0 0.0
        %3685 = vmatmul.mubr.f32.gmra.mrb[0].mxu0 %v3499
        %v3686 = vpop.f32.mrb[0].mxu0
        %v3687 = vadd.f32 0.0, %v3686
        %v3688 = vpop.f32.mrb[0].mxu0
        %3689 = vmatprep.mubr.f32.mxu0 0.0
        %3690 = vmatmul.mubr.f32.gmra.mrb[0].mxu0 %v3502
        %v3691 = vpop.f32.mrb[0].mxu0
        %v3692 = vadd.f32 0.0, %v3691
        %v3693 = vpop.f32.mrb[0].mxu0
        %3694 = vmatprep.mubr.f32.mxu0 0.0
        %3695 = vmatmul.mubr.f32.gmra.mrb[0].mxu0 %v3505
        %v3696 = vpop.f32.mrb[0].mxu0
        %v3697 = vadd.f32 0.0, %v3696
        %v3698 = vpop.f32.mrb[0].mxu0
        %3699 = vmatprep.mubr.f32.mxu0 0.0
        %3700 = vmatmul.mubr.f32.gmra.mrb[0].mxu0 %v3508
        %v3701 = vpop.f32.mrb[0].mxu0
        %v3702 = vadd.f32 0.0, %v3701
        %v3703 = vpop.f32.mrb[0].mxu0
        %3704 = vmatprep.mubr.f32.mxu0 0.0
        %3705 = vmatmul.mubr.f32.gmra.mrb[0].mxu0 %v3511
        %v3706 = vpop.f32.mrb[0].mxu0
        %v3707 = vadd.f32 0.0, %v3706
        %v3708 = vpop.f32.mrb[0].mxu0
        %3709 = vmatprep.mubr.f32.mxu0 0.0
        %3710 = vmatmul.mubr.f32.gmra.mrb[0].mxu0 %v3514
        %v3711 = vpop.f32.mrb[0].mxu0
        %v3712 = vadd.f32 0.0, %v3711
        %v3713 = vpop.f32.mrb[0].mxu0
        %3714 = vmatprep.mubr.f32.mxu0 0.0
        %3715 = vmatmul.mubr.f32.gmra.mrb[0].mxu0 %v3517
        %v3716 = vpop.f32.mrb[0].mxu0
        %v3717 = vadd.f32 0.0, %v3716
        %v3718 = vpop.f32.mrb[0].mxu0
        %3719 = vmatprep.mubr.f32.mxu0 0.0
        %3720 = vmatmul.mubr.f32.gmra.mrb[0].mxu0 %v3520
        %v3721 = vpop.f32.mrb[0].mxu0
        %v3722 = vadd.f32 0.0, %v3721
        %v3723 = vpop.f32.mrb[0].mxu0
        %3724 = vmatprep.mubr.f32.mxu0 0.0
        %3725 = vmatmul.mubr.f32.gmra.mrb[0].mxu0 %v3523
        %v3726 = vpop.f32.mrb[0].mxu0
        %v3727 = vadd.f32 0.0, %v3726
        %v3728 = vpop.f32.mrb[0].mxu0
        %3729 = vmatprep.mubr.f32.mxu0 0.0
        %3730 = vmatmul.mubr.f32.gmra.mrb[0].mxu0 %v3526
        %v3731 = vpop.f32.mrb[0].mxu0
        %v3732 = vadd.f32 0.0, %v3731
        %v3733 = vpop.f32.mrb[0].mxu0
        %3734 = vmatprep.mubr.f32.mxu0 0.0
        %3735 = vmatmul.mubr.f32.gmra.mrb[0].mxu0 %v3529
        %v3736 = vpop.f32.mrb[0].mxu0
        %v3737 = vadd.f32 0.0, %v3736
        %v3738 = vpop.f32.mrb[0].mxu0
        %3739 = vmatprep.mubr.f32.mxu0 0.0
        %3740 = vmatmul.mubr.f32.gmra.mrb[0].mxu0 %v3532
        %v3741 = vpop.f32.mrb[0].mxu0
        %v3742 = vadd.f32 0.0, %v3741
        %v3743 = vpop.f32.mrb[0].mxu0
        %3744 = vmatprep.mubr.f32.mxu0 0.0
        %3745 = vmatmul.mubr.f32.gmra.mrb[0].mxu0 %v3535
        %v3746 = vpop.f32.mrb[0].mxu0
        %v3747 = vadd.f32 0.0, %v3746
        %v3748 = vpop.f32.mrb[0].mxu0
        %3749 = vmatprep.mubr.f32.mxu0 0.0
        %3750 = vmatmul.mubr.f32.gmra.mrb[0].mxu0 %v3538
        %v3751 = vpop.f32.mrb[0].mxu0
        %v3752 = vadd.f32 0.0, %v3751
        %v3753 = vpop.f32.mrb[0].mxu0
        %3754 = vmatprep.mubr.f32.mxu0 0.0
        %3755 = vmatmul.mubr.f32.gmra.mrb[0].mxu0 %v3541
        %v3756 = vpop.f32.mrb[0].mxu0
        %v3757 = vadd.f32 0.0, %v3756
        %v3758 = vpop.f32.mrb[0].mxu0
        %3759 = vmatprep.mubr.f32.mxu0 0.0
        %3760 = vmatmul.mubr.f32.gmra.mrb[0].mxu0 %v3544
        %v3761 = vpop.f32.mrb[0].mxu0
        %v3762 = vadd.f32 0.0, %v3761
        %v3763 = vpop.f32.mrb[0].mxu0
        %3764 = vmatprep.mubr.f32.mxu0 0.0
        %3765 = vmatmul.mubr.f32.gmra.mrb[0].mxu0 %v3547
        %v3766 = vpop.f32.mrb[0].mxu0
        %v3767 = vadd.f32 0.0, %v3766
        %v3768 = vpop.f32.mrb[0].mxu0
        %3769 = vmatprep.mubr.f32.mxu0 0.0
        %3770 = vmatmul.mubr.f32.gmra.mrb[0].mxu0 %v3550
        %v3771 = vpop.f32.mrb[0].mxu0
        %v3772 = vadd.f32 0.0, %v3771
        %v3773 = vpop.f32.mrb[0].mxu0
        %3774 = vmatprep.mubr.f32.mxu0 0.0
        %3775 = vmatmul.mubr.f32.gmra.mrb[0].mxu0 %v3553
        %v3776 = vpop.f32.mrb[0].mxu0
        %v3777 = vadd.f32 0.0, %v3776
        %v3778 = vpop.f32.mrb[0].mxu0
        %3779 = vdwg.mxu0
        %v3780 = vadd.f32 %v3391, %v3622
        %v3781 = vadd.f32 %v3392, %v3627
        %v3782 = vadd.f32 %v3393, %v3632
        %v3783 = vadd.f32 %v3394, %v3637
        %v3784 = vadd.f32 %v3395, %v3642
        %v3785 = vadd.f32 %v3396, %v3647
        %v3786 = vadd.f32 %v3397, %v3652
        %v3787 = vadd.f32 %v3398, %v3657
        %v3788 = vadd.f32 %v3399, %v3662
        %v3789 = vadd.f32 %v3400, %v3667
        %v3790 = vadd.f32 %v3401, %v3672
        %v3791 = vadd.f32 %v3402, %v3677
        %v3792 = vadd.f32 %v3403, %v3682
        %v3793 = vadd.f32 %v3404, %v3687
        %v3794 = vadd.f32 %v3405, %v3692
        %v3795 = vadd.f32 %v3406, %v3697
        %v3796 = vadd.f32 %v3407, %v3702
        %v3797 = vadd.f32 %v3408, %v3707
        %v3798 = vadd.f32 %v3409, %v3712
        %v3799 = vadd.f32 %v3410, %v3717
        %v3800 = vadd.f32 %v3411, %v3722
        %v3801 = vadd.f32 %v3412, %v3727
        %v3802 = vadd.f32 %v3413, %v3732
        %v3803 = vadd.f32 %v3414, %v3737
        %v3804 = vadd.f32 %v3415, %v3742
        %v3805 = vadd.f32 %v3416, %v3747
        %v3806 = vadd.f32 %v3417, %v3752
        %v3807 = vadd.f32 %v3418, %v3757
        %v3808 = vadd.f32 %v3419, %v3762
        %v3809 = vadd.f32 %v3420, %v3767
        %v3810 = vadd.f32 %v3421, %v3772
        %v3811 = vadd.f32 %v3422, %v3777
        %v3812 = vld [vmem:[%s3423 + $0x1] sm:$0xff]
        %v3813 = vld [vmem:[%s3423 + $0x9] sm:$0xff]
        %v3814 = vld [vmem:[%s3423 + $0x19] sm:$0xff]
        %v3815 = vld [vmem:[%s3423 + $0x21] sm:$0xff]
        %v3816 = vld [vmem:[%s3423 + $0x31] sm:$0xff]
        %v3817 = vld [vmem:[%s3423 + $0x39] sm:$0xff]
        %v3818 = vld [vmem:[%s3423 + $0x49] sm:$0xff]
        %v3819 = vld [vmem:[%s3423 + $0x51] sm:$0xff]
        %v3820 = vld [vmem:[%s3423 + $0x61] sm:$0xff]
        %v3821 = vld [vmem:[%s3423 + $0x69] sm:$0xff]
        %v3822 = vld [vmem:[%s3423 + $0x79] sm:$0xff]
        %v3823 = vld [vmem:[%s3423 + $0x81] sm:$0xff]
        %v3824 = vld [vmem:[%s3423 + $0x91] sm:$0xff]
        %v3825 = vld [vmem:[%s3423 + $0x99] sm:$0xff]
        %v3826 = vld [vmem:[%s3423 + $0xa9] sm:$0xff]
        %v3827 = vld [vmem:[%s3423 + $0xb1] sm:$0xff]
        %v3828 = vld [vmem:[%s3423 + $0xc1] sm:$0xff]
        %v3829 = vld [vmem:[%s3423 + $0xc9] sm:$0xff]
        %v3830 = vld [vmem:[%s3423 + $0xd9] sm:$0xff]
        %v3831 = vld [vmem:[%s3423 + $0xe1] sm:$0xff]
        %v3832 = vld [vmem:[%s3423 + $0xf1] sm:$0xff]
        %v3833 = vld [vmem:[%s3423 + $0xf9] sm:$0xff]
        %v3834 = vld [vmem:[%s3423 + $0x109] sm:$0xff]
        %v3835 = vld [vmem:[%s3423 + $0x111] sm:$0xff]
        %v3836 = vld [vmem:[%s3423 + $0x121] sm:$0xff]
        %v3837 = vld [vmem:[%s3423 + $0x129] sm:$0xff]
        %v3838 = vld [vmem:[%s3423 + $0x139] sm:$0xff]
        %v3839 = vld [vmem:[%s3423 + $0x141] sm:$0xff]
        %v3840 = vld [vmem:[%s3423 + $0x151] sm:$0xff]
        %v3841 = vld [vmem:[%s3423 + $0x159] sm:$0xff]
        %v3842 = vld [vmem:[%s3423 + $0x169] sm:$0xff]
        %v3843 = vld [vmem:[%s3423 + $0x171] sm:$0xff]
        %s3844 = scalar_lea.vmem %s6, 112
        %v3845 = vld [vmem:[%s3844] sm:$0xff]
        %v3846 = vld [vmem:[%s3844 + $0x8] sm:$0xff]
        %v3848 = vsel %vm492, %v3812, 0
        %v3851 = vsel %vm492, %v3813, 0
        %v3854 = vsel %vm492, %v3814, 0
        %v3857 = vsel %vm492, %v3815, 0
        %v3860 = vsel %vm492, %v3816, 0
        %v3863 = vsel %vm492, %v3817, 0
        %v3866 = vsel %vm492, %v3818, 0
        %v3869 = vsel %vm492, %v3819, 0
        %v3872 = vsel %vm492, %v3820, 0
        %v3875 = vsel %vm492, %v3821, 0
        %v3878 = vsel %vm492, %v3822, 0
        %v3881 = vsel %vm492, %v3823, 0
        %v3884 = vsel %vm492, %v3824, 0
        %v3887 = vsel %vm492, %v3825, 0
        %v3890 = vsel %vm492, %v3826, 0
        %v3893 = vsel %vm492, %v3827, 0
        %v3896 = vsel %vm492, %v3828, 0
        %v3899 = vsel %vm492, %v3829, 0
        %v3902 = vsel %vm492, %v3830, 0
        %v3905 = vsel %vm492, %v3831, 0
        %v3908 = vsel %vm492, %v3832, 0
        %v3911 = vsel %vm492, %v3833, 0
        %v3914 = vsel %vm492, %v3834, 0
        %v3917 = vsel %vm492, %v3835, 0
        %v3920 = vsel %vm492, %v3836, 0
        %v3923 = vsel %vm492, %v3837, 0
        %v3926 = vsel %vm492, %v3838, 0
        %v3929 = vsel %vm492, %v3839, 0
        %v3932 = vsel %vm492, %v3840, 0
        %v3935 = vsel %vm492, %v3841, 0
        %v3938 = vsel %vm492, %v3842, 0
        %v3941 = vsel %vm492, %v3843, 0
        %3943 = vmatprep.subr.mxu0 0.0
        %3944 = vmatpush1.msra.mxu0 %v3845
        %3945 = vmatprep.subr.mxu0 0.0
        %3946 = vmatpush1.msra.mxu0 %v3846
        %3947 = vmatprep.subr.mxu0 0.0
        %3948 = vmatpush1.msra.mxu0 0.0
        %3949 = vmatprep.subr.mxu0 0.0
        %3950 = vmatpush1.msra.mxu0 0.0
        %3951 = vmatprep.subr.mxu0 0.0
        %3952 = vmatpush1.msra.mxu0 0.0
        %3953 = vmatprep.subr.mxu0 0.0
        %3954 = vmatpush1.msra.mxu0 0.0
        %3955 = vmatprep.subr.mxu0 0.0
        %3956 = vmatpush1.msra.mxu0 0.0
        %3957 = vmatprep.subr.mxu0 0.0
        %3958 = vmatpush1.msra.mxu0 0.0
        %3959 = vmatprep.subr.mxu0 0.0
        %3960 = vmatpush1.msra.mxu0 0.0
        %3961 = vmatprep.subr.mxu0 0.0
        %3962 = vmatpush1.msra.mxu0 0.0
        %3963 = vmatprep.subr.mxu0 0.0
        %3964 = vmatpush1.msra.mxu0 0.0
        %3965 = vmatprep.subr.mxu0 0.0
        %3966 = vmatpush1.msra.mxu0 0.0
        %3967 = vmatprep.subr.mxu0 0.0
        %3968 = vmatpush1.msra.mxu0 0.0
        %3969 = vmatprep.subr.mxu0 0.0
        %3970 = vmatpush1.msra.mxu0 0.0
        %3971 = vmatprep.subr.mxu0 0.0
        %3972 = vmatpush1.msra.mxu0 0.0
        %3973 = vmatprep.subr.mxu0 0.0
        %3974 = vmatpush1.msra.mxu0 0.0
        %3975 = vmatprep.subr.mxu0 0.0
        %3976 = vmatpush1.msra.mxu0 0.0
        %3977 = vmatprep.subr.mxu0 0.0
        %3978 = vmatpush1.msra.mxu0 0.0
        %3979 = vmatprep.subr.mxu0 0.0
        %3980 = vmatpush1.msra.mxu0 0.0
        %3981 = vmatprep.subr.mxu0 0.0
        %3982 = vmatpush1.msra.mxu0 0.0
        %3983 = vmatprep.subr.mxu0 0.0
        %3984 = vmatpush1.msra.mxu0 0.0
        %3985 = vmatprep.subr.mxu0 0.0
        %3986 = vmatpush1.msra.mxu0 0.0
        %3987 = vmatprep.subr.mxu0 0.0
        %3988 = vmatpush1.msra.mxu0 0.0
        %3989 = vmatprep.subr.mxu0 0.0
        %3990 = vmatpush1.msra.mxu0 0.0
        %3991 = vmatprep.subr.mxu0 0.0
        %3992 = vmatpush1.msra.mxu0 0.0
        %3993 = vmatprep.subr.mxu0 0.0
        %3994 = vmatpush1.msra.mxu0 0.0
        %3995 = vmatprep.subr.mxu0 0.0
        %3996 = vmatpush1.msra.mxu0 0.0
        %3997 = vmatprep.subr.mxu0 0.0
        %3998 = vmatpush1.msra.mxu0 0.0
        %3999 = vmatprep.subr.mxu0 0.0
        %4000 = vmatpush1.msra.mxu0 0.0
        %4001 = vmatprep.subr.mxu0 0.0
        %4002 = vmatpush1.msra.mxu0 0.0
        %4003 = vmatprep.subr.mxu0 0.0
        %4004 = vmatpush1.msra.mxu0 0.0
        %4005 = vmatprep.subr.mxu0 0.0
        %4006 = vmatpush1.msra.mxu0 0.0
        %4007 = vmatprep.mubr.f32.mxu0 0.0
        %4008 = vmatmul.mubr.f32.gmra.mrb[0].mxu0 %v3848
        %v4009 = vpop.f32.mrb[0].mxu0
        %v4010 = vadd.f32 0.0, %v4009
        %v4011 = vpop.f32.mrb[0].mxu0
        %4012 = vmatprep.mubr.f32.mxu0 0.0
        %4013 = vmatmul.mubr.f32.gmra.mrb[0].mxu0 %v3851
        %v4014 = vpop.f32.mrb[0].mxu0
        %v4015 = vadd.f32 0.0, %v4014
        %v4016 = vpop.f32.mrb[0].mxu0
        %4017 = vmatprep.mubr.f32.mxu0 0.0
        %4018 = vmatmul.mubr.f32.gmra.mrb[0].mxu0 %v3854
        %v4019 = vpop.f32.mrb[0].mxu0
        %v4020 = vadd.f32 0.0, %v4019
        %v4021 = vpop.f32.mrb[0].mxu0
        %4022 = vmatprep.mubr.f32.mxu0 0.0
        %4023 = vmatmul.mubr.f32.gmra.mrb[0].mxu0 %v3857
        %v4024 = vpop.f32.mrb[0].mxu0
        %v4025 = vadd.f32 0.0, %v4024
        %v4026 = vpop.f32.mrb[0].mxu0
        %4027 = vmatprep.mubr.f32.mxu0 0.0
        %4028 = vmatmul.mubr.f32.gmra.mrb[0].mxu0 %v3860
        %v4029 = vpop.f32.mrb[0].mxu0
        %v4030 = vadd.f32 0.0, %v4029
        %v4031 = vpop.f32.mrb[0].mxu0
        %4032 = vmatprep.mubr.f32.mxu0 0.0
        %4033 = vmatmul.mubr.f32.gmra.mrb[0].mxu0 %v3863
        %v4034 = vpop.f32.mrb[0].mxu0
        %v4035 = vadd.f32 0.0, %v4034
        %v4036 = vpop.f32.mrb[0].mxu0
        %4037 = vmatprep.mubr.f32.mxu0 0.0
        %4038 = vmatmul.mubr.f32.gmra.mrb[0].mxu0 %v3866
        %v4039 = vpop.f32.mrb[0].mxu0
        %v4040 = vadd.f32 0.0, %v4039
        %v4041 = vpop.f32.mrb[0].mxu0
        %4042 = vmatprep.mubr.f32.mxu0 0.0
        %4043 = vmatmul.mubr.f32.gmra.mrb[0].mxu0 %v3869
        %v4044 = vpop.f32.mrb[0].mxu0
        %v4045 = vadd.f32 0.0, %v4044
        %v4046 = vpop.f32.mrb[0].mxu0
        %4047 = vmatprep.mubr.f32.mxu0 0.0
        %4048 = vmatmul.mubr.f32.gmra.mrb[0].mxu0 %v3872
        %v4049 = vpop.f32.mrb[0].mxu0
        %v4050 = vadd.f32 0.0, %v4049
        %v4051 = vpop.f32.mrb[0].mxu0
        %4052 = vmatprep.mubr.f32.mxu0 0.0
        %4053 = vmatmul.mubr.f32.gmra.mrb[0].mxu0 %v3875
        %v4054 = vpop.f32.mrb[0].mxu0
        %v4055 = vadd.f32 0.0, %v4054
        %v4056 = vpop.f32.mrb[0].mxu0
        %4057 = vmatprep.mubr.f32.mxu0 0.0
        %4058 = vmatmul.mubr.f32.gmra.mrb[0].mxu0 %v3878
        %v4059 = vpop.f32.mrb[0].mxu0
        %v4060 = vadd.f32 0.0, %v4059
        %v4061 = vpop.f32.mrb[0].mxu0
        %4062 = vmatprep.mubr.f32.mxu0 0.0
        %4063 = vmatmul.mubr.f32.gmra.mrb[0].mxu0 %v3881
        %v4064 = vpop.f32.mrb[0].mxu0
        %v4065 = vadd.f32 0.0, %v4064
        %v4066 = vpop.f32.mrb[0].mxu0
        %4067 = vmatprep.mubr.f32.mxu0 0.0
        %4068 = vmatmul.mubr.f32.gmra.mrb[0].mxu0 %v3884
        %v4069 = vpop.f32.mrb[0].mxu0
        %v4070 = vadd.f32 0.0, %v4069
        %v4071 = vpop.f32.mrb[0].mxu0
        %4072 = vmatprep.mubr.f32.mxu0 0.0
        %4073 = vmatmul.mubr.f32.gmra.mrb[0].mxu0 %v3887
        %v4074 = vpop.f32.mrb[0].mxu0
        %v4075 = vadd.f32 0.0, %v4074
        %v4076 = vpop.f32.mrb[0].mxu0
        %4077 = vmatprep.mubr.f32.mxu0 0.0
        %4078 = vmatmul.mubr.f32.gmra.mrb[0].mxu0 %v3890
        %v4079 = vpop.f32.mrb[0].mxu0
        %v4080 = vadd.f32 0.0, %v4079
        %v4081 = vpop.f32.mrb[0].mxu0
        %4082 = vmatprep.mubr.f32.mxu0 0.0
        %4083 = vmatmul.mubr.f32.gmra.mrb[0].mxu0 %v3893
        %v4084 = vpop.f32.mrb[0].mxu0
        %v4085 = vadd.f32 0.0, %v4084
        %v4086 = vpop.f32.mrb[0].mxu0
        %4087 = vmatprep.mubr.f32.mxu0 0.0
        %4088 = vmatmul.mubr.f32.gmra.mrb[0].mxu0 %v3896
        %v4089 = vpop.f32.mrb[0].mxu0
        %v4090 = vadd.f32 0.0, %v4089
        %v4091 = vpop.f32.mrb[0].mxu0
        %4092 = vmatprep.mubr.f32.mxu0 0.0
        %4093 = vmatmul.mubr.f32.gmra.mrb[0].mxu0 %v3899
        %v4094 = vpop.f32.mrb[0].mxu0
        %v4095 = vadd.f32 0.0, %v4094
        %v4096 = vpop.f32.mrb[0].mxu0
        %4097 = vmatprep.mubr.f32.mxu0 0.0
        %4098 = vmatmul.mubr.f32.gmra.mrb[0].mxu0 %v3902
        %v4099 = vpop.f32.mrb[0].mxu0
        %v4100 = vadd.f32 0.0, %v4099
        %v4101 = vpop.f32.mrb[0].mxu0
        %4102 = vmatprep.mubr.f32.mxu0 0.0
        %4103 = vmatmul.mubr.f32.gmra.mrb[0].mxu0 %v3905
        %v4104 = vpop.f32.mrb[0].mxu0
        %v4105 = vadd.f32 0.0, %v4104
        %v4106 = vpop.f32.mrb[0].mxu0
        %4107 = vmatprep.mubr.f32.mxu0 0.0
        %4108 = vmatmul.mubr.f32.gmra.mrb[0].mxu0 %v3908
        %v4109 = vpop.f32.mrb[0].mxu0
        %v4110 = vadd.f32 0.0, %v4109
        %v4111 = vpop.f32.mrb[0].mxu0
        %4112 = vmatprep.mubr.f32.mxu0 0.0
        %4113 = vmatmul.mubr.f32.gmra.mrb[0].mxu0 %v3911
        %v4114 = vpop.f32.mrb[0].mxu0
        %v4115 = vadd.f32 0.0, %v4114
        %v4116 = vpop.f32.mrb[0].mxu0
        %4117 = vmatprep.mubr.f32.mxu0 0.0
        %4118 = vmatmul.mubr.f32.gmra.mrb[0].mxu0 %v3914
        %v4119 = vpop.f32.mrb[0].mxu0
        %v4120 = vadd.f32 0.0, %v4119
        %v4121 = vpop.f32.mrb[0].mxu0
        %4122 = vmatprep.mubr.f32.mxu0 0.0
        %4123 = vmatmul.mubr.f32.gmra.mrb[0].mxu0 %v3917
        %v4124 = vpop.f32.mrb[0].mxu0
        %v4125 = vadd.f32 0.0, %v4124
        %v4126 = vpop.f32.mrb[0].mxu0
        %4127 = vmatprep.mubr.f32.mxu0 0.0
        %4128 = vmatmul.mubr.f32.gmra.mrb[0].mxu0 %v3920
        %v4129 = vpop.f32.mrb[0].mxu0
        %v4130 = vadd.f32 0.0, %v4129
        %v4131 = vpop.f32.mrb[0].mxu0
        %4132 = vmatprep.mubr.f32.mxu0 0.0
        %4133 = vmatmul.mubr.f32.gmra.mrb[0].mxu0 %v3923
        %v4134 = vpop.f32.mrb[0].mxu0
        %v4135 = vadd.f32 0.0, %v4134
        %v4136 = vpop.f32.mrb[0].mxu0
        %4137 = vmatprep.mubr.f32.mxu0 0.0
        %4138 = vmatmul.mubr.f32.gmra.mrb[0].mxu0 %v3926
        %v4139 = vpop.f32.mrb[0].mxu0
        %v4140 = vadd.f32 0.0, %v4139
        %v4141 = vpop.f32.mrb[0].mxu0
        %4142 = vmatprep.mubr.f32.mxu0 0.0
        %4143 = vmatmul.mubr.f32.gmra.mrb[0].mxu0 %v3929
        %v4144 = vpop.f32.mrb[0].mxu0
        %v4145 = vadd.f32 0.0, %v4144
        %v4146 = vpop.f32.mrb[0].mxu0
        %4147 = vmatprep.mubr.f32.mxu0 0.0
        %4148 = vmatmul.mubr.f32.gmra.mrb[0].mxu0 %v3932
        %v4149 = vpop.f32.mrb[0].mxu0
        %v4150 = vadd.f32 0.0, %v4149
        %v4151 = vpop.f32.mrb[0].mxu0
        %4152 = vmatprep.mubr.f32.mxu0 0.0
        %4153 = vmatmul.mubr.f32.gmra.mrb[0].mxu0 %v3935
        %v4154 = vpop.f32.mrb[0].mxu0
        %v4155 = vadd.f32 0.0, %v4154
        %v4156 = vpop.f32.mrb[0].mxu0
        %4157 = vmatprep.mubr.f32.mxu0 0.0
        %4158 = vmatmul.mubr.f32.gmra.mrb[0].mxu0 %v3938
        %v4159 = vpop.f32.mrb[0].mxu0
        %v4160 = vadd.f32 0.0, %v4159
        %v4161 = vpop.f32.mrb[0].mxu0
        %4162 = vmatprep.mubr.f32.mxu0 0.0
        %4163 = vmatmul.mubr.f32.gmra.mrb[0].mxu0 %v3941
        %v4164 = vpop.f32.mrb[0].mxu0
        %v4165 = vadd.f32 0.0, %v4164
        %v4166 = vpop.f32.mrb[0].mxu0
        %4167 = vdwg.mxu0
        %v4168 = vadd.f32 %v3780, %v4010
        %v4169 = vadd.f32 %v3781, %v4015
        %v4170 = vadd.f32 %v3782, %v4020
        %v4171 = vadd.f32 %v3783, %v4025
        %v4172 = vadd.f32 %v3784, %v4030
        %v4173 = vadd.f32 %v3785, %v4035
        %v4174 = vadd.f32 %v3786, %v4040
        %v4175 = vadd.f32 %v3787, %v4045
        %v4176 = vadd.f32 %v3788, %v4050
        %v4177 = vadd.f32 %v3789, %v4055
        %v4178 = vadd.f32 %v3790, %v4060
        %v4179 = vadd.f32 %v3791, %v4065
        %v4180 = vadd.f32 %v3792, %v4070
        %v4181 = vadd.f32 %v3793, %v4075
        %v4182 = vadd.f32 %v3794, %v4080
        %v4183 = vadd.f32 %v3795, %v4085
        %v4184 = vadd.f32 %v3796, %v4090
        %v4185 = vadd.f32 %v3797, %v4095
        %v4186 = vadd.f32 %v3798, %v4100
        %v4187 = vadd.f32 %v3799, %v4105
        %v4188 = vadd.f32 %v3800, %v4110
        %v4189 = vadd.f32 %v3801, %v4115
        %v4190 = vadd.f32 %v3802, %v4120
        %v4191 = vadd.f32 %v3803, %v4125
        %v4192 = vadd.f32 %v3804, %v4130
        %v4193 = vadd.f32 %v3805, %v4135
        %v4194 = vadd.f32 %v3806, %v4140
        %v4195 = vadd.f32 %v3807, %v4145
        %v4196 = vadd.f32 %v3808, %v4150
        %v4197 = vadd.f32 %v3809, %v4155
        %v4198 = vadd.f32 %v3810, %v4160
        %v4199 = vadd.f32 %v3811, %v4165
        %v4200 = vld [vmem:[%s3423 + $0x2] sm:$0xff]
        %v4201 = vld [vmem:[%s3423 + $0xa] sm:$0xff]
        %v4202 = vld [vmem:[%s3423 + $0x1a] sm:$0xff]
        %v4203 = vld [vmem:[%s3423 + $0x22] sm:$0xff]
        %v4204 = vld [vmem:[%s3423 + $0x32] sm:$0xff]
        %v4205 = vld [vmem:[%s3423 + $0x3a] sm:$0xff]
        %v4206 = vld [vmem:[%s3423 + $0x4a] sm:$0xff]
        %v4207 = vld [vmem:[%s3423 + $0x52] sm:$0xff]
        %v4208 = vld [vmem:[%s3423 + $0x62] sm:$0xff]
        %v4209 = vld [vmem:[%s3423 + $0x6a] sm:$0xff]
        %v4210 = vld [vmem:[%s3423 + $0x7a] sm:$0xff]
        %v4211 = vld [vmem:[%s3423 + $0x82] sm:$0xff]
        %v4212 = vld [vmem:[%s3423 + $0x92] sm:$0xff]
        %v4213 = vld [vmem:[%s3423 + $0x9a] sm:$0xff]
        %v4214 = vld [vmem:[%s3423 + $0xaa] sm:$0xff]
        %v4215 = vld [vmem:[%s3423 + $0xb2] sm:$0xff]
        %v4216 = vld [vmem:[%s3423 + $0xc2] sm:$0xff]
        %v4217 = vld [vmem:[%s3423 + $0xca] sm:$0xff]
        %v4218 = vld [vmem:[%s3423 + $0xda] sm:$0xff]
        %v4219 = vld [vmem:[%s3423 + $0xe2] sm:$0xff]
        %v4220 = vld [vmem:[%s3423 + $0xf2] sm:$0xff]
        %v4221 = vld [vmem:[%s3423 + $0xfa] sm:$0xff]
        %v4222 = vld [vmem:[%s3423 + $0x10a] sm:$0xff]
        %v4223 = vld [vmem:[%s3423 + $0x112] sm:$0xff]
        %v4224 = vld [vmem:[%s3423 + $0x122] sm:$0xff]
        %v4225 = vld [vmem:[%s3423 + $0x12a] sm:$0xff]
        %v4226 = vld [vmem:[%s3423 + $0x13a] sm:$0xff]
        %v4227 = vld [vmem:[%s3423 + $0x142] sm:$0xff]
        %v4228 = vld [vmem:[%s3423 + $0x152] sm:$0xff]
        %v4229 = vld [vmem:[%s3423 + $0x15a] sm:$0xff]
        %v4230 = vld [vmem:[%s3423 + $0x16a] sm:$0xff]
        %v4231 = vld [vmem:[%s3423 + $0x172] sm:$0xff]
        %s4232 = scalar_lea.vmem %s6, 128
        %v4233 = vld [vmem:[%s4232] sm:$0xff]
        %v4234 = vld [vmem:[%s4232 + $0x8] sm:$0xff]
        %v4236 = vsel %vm492, %v4200, 0
        %v4239 = vsel %vm492, %v4201, 0
        %v4242 = vsel %vm492, %v4202, 0
        %v4245 = vsel %vm492, %v4203, 0
        %v4248 = vsel %vm492, %v4204, 0
        %v4251 = vsel %vm492, %v4205, 0
        %v4254 = vsel %vm492, %v4206, 0
        %v4257 = vsel %vm492, %v4207, 0
        %v4260 = vsel %vm492, %v4208, 0
        %v4263 = vsel %vm492, %v4209, 0
        %v4266 = vsel %vm492, %v4210, 0
        %v4269 = vsel %vm492, %v4211, 0
        %v4272 = vsel %vm492, %v4212, 0
        %v4275 = vsel %vm492, %v4213, 0
        %v4278 = vsel %vm492, %v4214, 0
        %v4281 = vsel %vm492, %v4215, 0
        %v4284 = vsel %vm492, %v4216, 0
        %v4287 = vsel %vm492, %v4217, 0
        %v4290 = vsel %vm492, %v4218, 0
        %v4293 = vsel %vm492, %v4219, 0
        %v4296 = vsel %vm492, %v4220, 0
        %v4299 = vsel %vm492, %v4221, 0
        %v4302 = vsel %vm492, %v4222, 0
        %v4305 = vsel %vm492, %v4223, 0
        %v4308 = vsel %vm492, %v4224, 0
        %v4311 = vsel %vm492, %v4225, 0
        %v4314 = vsel %vm492, %v4226, 0
        %v4317 = vsel %vm492, %v4227, 0
        %v4320 = vsel %vm492, %v4228, 0
        %v4323 = vsel %vm492, %v4229, 0
        %v4326 = vsel %vm492, %v4230, 0
        %v4329 = vsel %vm492, %v4231, 0
        %4331 = vmatprep.subr.mxu0 0.0
        %4332 = vmatpush1.msra.mxu0 %v4233
        %4333 = vmatprep.subr.mxu0 0.0
        %4334 = vmatpush1.msra.mxu0 %v4234
        %4335 = vmatprep.subr.mxu0 0.0
        %4336 = vmatpush1.msra.mxu0 0.0
        %4337 = vmatprep.subr.mxu0 0.0
        %4338 = vmatpush1.msra.mxu0 0.0
        %4339 = vmatprep.subr.mxu0 0.0
        %4340 = vmatpush1.msra.mxu0 0.0
        %4341 = vmatprep.subr.mxu0 0.0
        %4342 = vmatpush1.msra.mxu0 0.0
        %4343 = vmatprep.subr.mxu0 0.0
        %4344 = vmatpush1.msra.mxu0 0.0
        %4345 = vmatprep.subr.mxu0 0.0
        %4346 = vmatpush1.msra.mxu0 0.0
        %4347 = vmatprep.subr.mxu0 0.0
        %4348 = vmatpush1.msra.mxu0 0.0
        %4349 = vmatprep.subr.mxu0 0.0
        %4350 = vmatpush1.msra.mxu0 0.0
        %4351 = vmatprep.subr.mxu0 0.0
        %4352 = vmatpush1.msra.mxu0 0.0
        %4353 = vmatprep.subr.mxu0 0.0
        %4354 = vmatpush1.msra.mxu0 0.0
        %4355 = vmatprep.subr.mxu0 0.0
        %4356 = vmatpush1.msra.mxu0 0.0
        %4357 = vmatprep.subr.mxu0 0.0
        %4358 = vmatpush1.msra.mxu0 0.0
        %4359 = vmatprep.subr.mxu0 0.0
        %4360 = vmatpush1.msra.mxu0 0.0
        %4361 = vmatprep.subr.mxu0 0.0
        %4362 = vmatpush1.msra.mxu0 0.0
        %4363 = vmatprep.subr.mxu0 0.0
        %4364 = vmatpush1.msra.mxu0 0.0
        %4365 = vmatprep.subr.mxu0 0.0
        %4366 = vmatpush1.msra.mxu0 0.0
        %4367 = vmatprep.subr.mxu0 0.0
        %4368 = vmatpush1.msra.mxu0 0.0
        %4369 = vmatprep.subr.mxu0 0.0
        %4370 = vmatpush1.msra.mxu0 0.0
        %4371 = vmatprep.subr.mxu0 0.0
        %4372 = vmatpush1.msra.mxu0 0.0
        %4373 = vmatprep.subr.mxu0 0.0
        %4374 = vmatpush1.msra.mxu0 0.0
        %4375 = vmatprep.subr.mxu0 0.0
        %4376 = vmatpush1.msra.mxu0 0.0
        %4377 = vmatprep.subr.mxu0 0.0
        %4378 = vmatpush1.msra.mxu0 0.0
        %4379 = vmatprep.subr.mxu0 0.0
        %4380 = vmatpush1.msra.mxu0 0.0
        %4381 = vmatprep.subr.mxu0 0.0
        %4382 = vmatpush1.msra.mxu0 0.0
        %4383 = vmatprep.subr.mxu0 0.0
        %4384 = vmatpush1.msra.mxu0 0.0
        %4385 = vmatprep.subr.mxu0 0.0
        %4386 = vmatpush1.msra.mxu0 0.0
        %4387 = vmatprep.subr.mxu0 0.0
        %4388 = vmatpush1.msra.mxu0 0.0
        %4389 = vmatprep.subr.mxu0 0.0
        %4390 = vmatpush1.msra.mxu0 0.0
        %4391 = vmatprep.subr.mxu0 0.0
        %4392 = vmatpush1.msra.mxu0 0.0
        %4393 = vmatprep.subr.mxu0 0.0
        %4394 = vmatpush1.msra.mxu0 0.0
        %4395 = vmatprep.mubr.f32.mxu0 0.0
        %4396 = vmatmul.mubr.f32.gmra.mrb[0].mxu0 %v4236
        %v4397 = vpop.f32.mrb[0].mxu0
        %v4398 = vadd.f32 0.0, %v4397
        %v4399 = vpop.f32.mrb[0].mxu0
        %4400 = vmatprep.mubr.f32.mxu0 0.0
        %4401 = vmatmul.mubr.f32.gmra.mrb[0].mxu0 %v4239
        %v4402 = vpop.f32.mrb[0].mxu0
        %v4403 = vadd.f32 0.0, %v4402
        %v4404 = vpop.f32.mrb[0].mxu0
        %4405 = vmatprep.mubr.f32.mxu0 0.0
        %4406 = vmatmul.mubr.f32.gmra.mrb[0].mxu0 %v4242
        %v4407 = vpop.f32.mrb[0].mxu0
        %v4408 = vadd.f32 0.0, %v4407
        %v4409 = vpop.f32.mrb[0].mxu0
        %4410 = vmatprep.mubr.f32.mxu0 0.0
        %4411 = vmatmul.mubr.f32.gmra.mrb[0].mxu0 %v4245
        %v4412 = vpop.f32.mrb[0].mxu0
        %v4413 = vadd.f32 0.0, %v4412
        %v4414 = vpop.f32.mrb[0].mxu0
        %4415 = vmatprep.mubr.f32.mxu0 0.0
        %4416 = vmatmul.mubr.f32.gmra.mrb[0].mxu0 %v4248
        %v4417 = vpop.f32.mrb[0].mxu0
        %v4418 = vadd.f32 0.0, %v4417
        %v4419 = vpop.f32.mrb[0].mxu0
        %4420 = vmatprep.mubr.f32.mxu0 0.0
        %4421 = vmatmul.mubr.f32.gmra.mrb[0].mxu0 %v4251
        %v4422 = vpop.f32.mrb[0].mxu0
        %v4423 = vadd.f32 0.0, %v4422
        %v4424 = vpop.f32.mrb[0].mxu0
        %4425 = vmatprep.mubr.f32.mxu0 0.0
        %4426 = vmatmul.mubr.f32.gmra.mrb[0].mxu0 %v4254
        %v4427 = vpop.f32.mrb[0].mxu0
        %v4428 = vadd.f32 0.0, %v4427
        %v4429 = vpop.f32.mrb[0].mxu0
        %4430 = vmatprep.mubr.f32.mxu0 0.0
        %4431 = vmatmul.mubr.f32.gmra.mrb[0].mxu0 %v4257
        %v4432 = vpop.f32.mrb[0].mxu0
        %v4433 = vadd.f32 0.0, %v4432
        %v4434 = vpop.f32.mrb[0].mxu0
        %4435 = vmatprep.mubr.f32.mxu0 0.0
        %4436 = vmatmul.mubr.f32.gmra.mrb[0].mxu0 %v4260
        %v4437 = vpop.f32.mrb[0].mxu0
        %v4438 = vadd.f32 0.0, %v4437
        %v4439 = vpop.f32.mrb[0].mxu0
        %4440 = vmatprep.mubr.f32.mxu0 0.0
        %4441 = vmatmul.mubr.f32.gmra.mrb[0].mxu0 %v4263
        %v4442 = vpop.f32.mrb[0].mxu0
        %v4443 = vadd.f32 0.0, %v4442
        %v4444 = vpop.f32.mrb[0].mxu0
        %4445 = vmatprep.mubr.f32.mxu0 0.0
        %4446 = vmatmul.mubr.f32.gmra.mrb[0].mxu0 %v4266
        %v4447 = vpop.f32.mrb[0].mxu0
        %v4448 = vadd.f32 0.0, %v4447
        %v4449 = vpop.f32.mrb[0].mxu0
        %4450 = vmatprep.mubr.f32.mxu0 0.0
        %4451 = vmatmul.mubr.f32.gmra.mrb[0].mxu0 %v4269
        %v4452 = vpop.f32.mrb[0].mxu0
        %v4453 = vadd.f32 0.0, %v4452
        %v4454 = vpop.f32.mrb[0].mxu0
        %4455 = vmatprep.mubr.f32.mxu0 0.0
        %4456 = vmatmul.mubr.f32.gmra.mrb[0].mxu0 %v4272
        %v4457 = vpop.f32.mrb[0].mxu0
        %v4458 = vadd.f32 0.0, %v4457
        %v4459 = vpop.f32.mrb[0].mxu0
        %4460 = vmatprep.mubr.f32.mxu0 0.0
        %4461 = vmatmul.mubr.f32.gmra.mrb[0].mxu0 %v4275
        %v4462 = vpop.f32.mrb[0].mxu0
        %v4463 = vadd.f32 0.0, %v4462
        %v4464 = vpop.f32.mrb[0].mxu0
        %4465 = vmatprep.mubr.f32.mxu0 0.0
        %4466 = vmatmul.mubr.f32.gmra.mrb[0].mxu0 %v4278
        %v4467 = vpop.f32.mrb[0].mxu0
        %v4468 = vadd.f32 0.0, %v4467
        %v4469 = vpop.f32.mrb[0].mxu0
        %4470 = vmatprep.mubr.f32.mxu0 0.0
        %4471 = vmatmul.mubr.f32.gmra.mrb[0].mxu0 %v4281
        %v4472 = vpop.f32.mrb[0].mxu0
        %v4473 = vadd.f32 0.0, %v4472
        %v4474 = vpop.f32.mrb[0].mxu0
        %4475 = vmatprep.mubr.f32.mxu0 0.0
        %4476 = vmatmul.mubr.f32.gmra.mrb[0].mxu0 %v4284
        %v4477 = vpop.f32.mrb[0].mxu0
        %v4478 = vadd.f32 0.0, %v4477
        %v4479 = vpop.f32.mrb[0].mxu0
        %4480 = vmatprep.mubr.f32.mxu0 0.0
        %4481 = vmatmul.mubr.f32.gmra.mrb[0].mxu0 %v4287
        %v4482 = vpop.f32.mrb[0].mxu0
        %v4483 = vadd.f32 0.0, %v4482
        %v4484 = vpop.f32.mrb[0].mxu0
        %4485 = vmatprep.mubr.f32.mxu0 0.0
        %4486 = vmatmul.mubr.f32.gmra.mrb[0].mxu0 %v4290
        %v4487 = vpop.f32.mrb[0].mxu0
        %v4488 = vadd.f32 0.0, %v4487
        %v4489 = vpop.f32.mrb[0].mxu0
        %4490 = vmatprep.mubr.f32.mxu0 0.0
        %4491 = vmatmul.mubr.f32.gmra.mrb[0].mxu0 %v4293
        %v4492 = vpop.f32.mrb[0].mxu0
        %v4493 = vadd.f32 0.0, %v4492
        %v4494 = vpop.f32.mrb[0].mxu0
        %4495 = vmatprep.mubr.f32.mxu0 0.0
        %4496 = vmatmul.mubr.f32.gmra.mrb[0].mxu0 %v4296
        %v4497 = vpop.f32.mrb[0].mxu0
        %v4498 = vadd.f32 0.0, %v4497
        %v4499 = vpop.f32.mrb[0].mxu0
        %4500 = vmatprep.mubr.f32.mxu0 0.0
        %4501 = vmatmul.mubr.f32.gmra.mrb[0].mxu0 %v4299
        %v4502 = vpop.f32.mrb[0].mxu0
        %v4503 = vadd.f32 0.0, %v4502
        %v4504 = vpop.f32.mrb[0].mxu0
        %4505 = vmatprep.mubr.f32.mxu0 0.0
        %4506 = vmatmul.mubr.f32.gmra.mrb[0].mxu0 %v4302
        %v4507 = vpop.f32.mrb[0].mxu0
        %v4508 = vadd.f32 0.0, %v4507
        %v4509 = vpop.f32.mrb[0].mxu0
        %4510 = vmatprep.mubr.f32.mxu0 0.0
        %4511 = vmatmul.mubr.f32.gmra.mrb[0].mxu0 %v4305
        %v4512 = vpop.f32.mrb[0].mxu0
        %v4513 = vadd.f32 0.0, %v4512
        %v4514 = vpop.f32.mrb[0].mxu0
        %4515 = vmatprep.mubr.f32.mxu0 0.0
        %4516 = vmatmul.mubr.f32.gmra.mrb[0].mxu0 %v4308
        %v4517 = vpop.f32.mrb[0].mxu0
        %v4518 = vadd.f32 0.0, %v4517
        %v4519 = vpop.f32.mrb[0].mxu0
        %4520 = vmatprep.mubr.f32.mxu0 0.0
        %4521 = vmatmul.mubr.f32.gmra.mrb[0].mxu0 %v4311
        %v4522 = vpop.f32.mrb[0].mxu0
        %v4523 = vadd.f32 0.0, %v4522
        %v4524 = vpop.f32.mrb[0].mxu0
        %4525 = vmatprep.mubr.f32.mxu0 0.0
        %4526 = vmatmul.mubr.f32.gmra.mrb[0].mxu0 %v4314
        %v4527 = vpop.f32.mrb[0].mxu0
        %v4528 = vadd.f32 0.0, %v4527
        %v4529 = vpop.f32.mrb[0].mxu0
        %4530 = vmatprep.mubr.f32.mxu0 0.0
        %4531 = vmatmul.mubr.f32.gmra.mrb[0].mxu0 %v4317
        %v4532 = vpop.f32.mrb[0].mxu0
        %v4533 = vadd.f32 0.0, %v4532
        %v4534 = vpop.f32.mrb[0].mxu0
        %4535 = vmatprep.mubr.f32.mxu0 0.0
        %4536 = vmatmul.mubr.f32.gmra.mrb[0].mxu0 %v4320
        %v4537 = vpop.f32.mrb[0].mxu0
        %v4538 = vadd.f32 0.0, %v4537
        %v4539 = vpop.f32.mrb[0].mxu0
        %4540 = vmatprep.mubr.f32.mxu0 0.0
        %4541 = vmatmul.mubr.f32.gmra.mrb[0].mxu0 %v4323
        %v4542 = vpop.f32.mrb[0].mxu0
        %v4543 = vadd.f32 0.0, %v4542
        %v4544 = vpop.f32.mrb[0].mxu0
        %4545 = vmatprep.mubr.f32.mxu0 0.0
        %4546 = vmatmul.mubr.f32.gmra.mrb[0].mxu0 %v4326
        %v4547 = vpop.f32.mrb[0].mxu0
        %v4548 = vadd.f32 0.0, %v4547
        %v4549 = vpop.f32.mrb[0].mxu0
        %4550 = vmatprep.mubr.f32.mxu0 0.0
        %4551 = vmatmul.mubr.f32.gmra.mrb[0].mxu0 %v4329
        %v4552 = vpop.f32.mrb[0].mxu0
        %v4553 = vadd.f32 0.0, %v4552
        %v4554 = vpop.f32.mrb[0].mxu0
        %4555 = vdwg.mxu0
        %v4556 = vadd.f32 %v4168, %v4398
        %v4557 = vadd.f32 %v4169, %v4403
        %v4558 = vadd.f32 %v4170, %v4408
        %v4559 = vadd.f32 %v4171, %v4413
        %v4560 = vadd.f32 %v4172, %v4418
        %v4561 = vadd.f32 %v4173, %v4423
        %v4562 = vadd.f32 %v4174, %v4428
        %v4563 = vadd.f32 %v4175, %v4433
        %v4564 = vadd.f32 %v4176, %v4438
        %v4565 = vadd.f32 %v4177, %v4443
        %v4566 = vadd.f32 %v4178, %v4448
        %v4567 = vadd.f32 %v4179, %v4453
        %v4568 = vadd.f32 %v4180, %v4458
        %v4569 = vadd.f32 %v4181, %v4463
        %v4570 = vadd.f32 %v4182, %v4468
        %v4571 = vadd.f32 %v4183, %v4473
        %v4572 = vadd.f32 %v4184, %v4478
        %v4573 = vadd.f32 %v4185, %v4483
        %v4574 = vadd.f32 %v4186, %v4488
        %v4575 = vadd.f32 %v4187, %v4493
        %v4576 = vadd.f32 %v4188, %v4498
        %v4577 = vadd.f32 %v4189, %v4503
        %v4578 = vadd.f32 %v4190, %v4508
        %v4579 = vadd.f32 %v4191, %v4513
        %v4580 = vadd.f32 %v4192, %v4518
        %v4581 = vadd.f32 %v4193, %v4523
        %v4582 = vadd.f32 %v4194, %v4528
        %v4583 = vadd.f32 %v4195, %v4533
        %v4584 = vadd.f32 %v4196, %v4538
        %v4585 = vadd.f32 %v4197, %v4543
        %v4586 = vadd.f32 %v4198, %v4548
        %v4587 = vadd.f32 %v4199, %v4553
        %4588 = vst.msk [vmem:[%s390] sm:$0xff] %vm492, %v4556
        %4589 = vst.msk [vmem:[%s390 + $0x8] sm:$0xff] %vm492, %v4557
        %4590 = vst.msk [vmem:[%s390 + $0x10] sm:$0xff] %vm492, %v4558
        %4591 = vst.msk [vmem:[%s390 + $0x18] sm:$0xff] %vm492, %v4559
        %4592 = vst.msk [vmem:[%s390 + $0x20] sm:$0xff] %vm492, %v4560
        %4593 = vst.msk [vmem:[%s390 + $0x28] sm:$0xff] %vm492, %v4561
        %4594 = vst.msk [vmem:[%s390 + $0x30] sm:$0xff] %vm492, %v4562
        %4595 = vst.msk [vmem:[%s390 + $0x38] sm:$0xff] %vm492, %v4563
        %4596 = vst.msk [vmem:[%s390 + $0x40] sm:$0xff] %vm492, %v4564
        %4597 = vst.msk [vmem:[%s390 + $0x48] sm:$0xff] %vm492, %v4565
        %4598 = vst.msk [vmem:[%s390 + $0x50] sm:$0xff] %vm492, %v4566
        %4599 = vst.msk [vmem:[%s390 + $0x58] sm:$0xff] %vm492, %v4567
        %4600 = vst.msk [vmem:[%s390 + $0x60] sm:$0xff] %vm492, %v4568
        %4601 = vst.msk [vmem:[%s390 + $0x68] sm:$0xff] %vm492, %v4569
        %4602 = vst.msk [vmem:[%s390 + $0x70] sm:$0xff] %vm492, %v4570
        %4603 = vst.msk [vmem:[%s390 + $0x78] sm:$0xff] %vm492, %v4571
        %4604 = vst.msk [vmem:[%s390 + $0x80] sm:$0xff] %vm492, %v4572
        %4605 = vst.msk [vmem:[%s390 + $0x88] sm:$0xff] %vm492, %v4573
        %4606 = vst.msk [vmem:[%s390 + $0x90] sm:$0xff] %vm492, %v4574
        %4607 = vst.msk [vmem:[%s390 + $0x98] sm:$0xff] %vm492, %v4575
        %4608 = vst.msk [vmem:[%s390 + $0xa0] sm:$0xff] %vm492, %v4576
        %4609 = vst.msk [vmem:[%s390 + $0xa8] sm:$0xff] %vm492, %v4577
        %4610 = vst.msk [vmem:[%s390 + $0xb0] sm:$0xff] %vm492, %v4578
        %4611 = vst.msk [vmem:[%s390 + $0xb8] sm:$0xff] %vm492, %v4579
        %4612 = vst.msk [vmem:[%s390 + $0xc0] sm:$0xff] %vm492, %v4580
        %4613 = vst.msk [vmem:[%s390 + $0xc8] sm:$0xff] %vm492, %v4581
        %4614 = vst.msk [vmem:[%s390 + $0xd0] sm:$0xff] %vm492, %v4582
        %4615 = vst.msk [vmem:[%s390 + $0xd8] sm:$0xff] %vm492, %v4583
        %4616 = vst.msk [vmem:[%s390 + $0xe0] sm:$0xff] %vm492, %v4584
        %4617 = vst.msk [vmem:[%s390 + $0xe8] sm:$0xff] %vm492, %v4585
        %4618 = vst.msk [vmem:[%s390 + $0xf0] sm:$0xff] %vm492, %v4586
        %4619 = vst.msk [vmem:[%s390 + $0xf8] sm:$0xff] %vm492, %v4587
        %v4620 = vsel %vm492, %v4556, 0.0
        %v4621 = vsel %vm492, %v4557, 0.0
        %v4622 = vadd.f32 %v4620, %v4621
        %v4623 = vsel %vm492, %v4558, 0.0
        %v4624 = vadd.f32 %v4622, %v4623
        %v4625 = vsel %vm492, %v4559, 0.0
        %v4626 = vadd.f32 %v4624, %v4625
        %v4627 = vsel %vm492, %v4560, 0.0
        %v4628 = vadd.f32 %v4626, %v4627
        %v4629 = vsel %vm492, %v4561, 0.0
        %v4630 = vadd.f32 %v4628, %v4629
        %v4631 = vsel %vm492, %v4562, 0.0
        %v4632 = vadd.f32 %v4630, %v4631
        %v4633 = vsel %vm492, %v4563, 0.0
        %v4634 = vadd.f32 %v4632, %v4633
        %v4635 = vsel %vm492, %v4564, 0.0
        %v4636 = vadd.f32 %v4634, %v4635
        %v4637 = vsel %vm492, %v4565, 0.0
        %v4638 = vadd.f32 %v4636, %v4637
        %v4639 = vsel %vm492, %v4566, 0.0
        %v4640 = vadd.f32 %v4638, %v4639
        %v4641 = vsel %vm492, %v4567, 0.0
        %v4642 = vadd.f32 %v4640, %v4641
        %v4643 = vsel %vm492, %v4568, 0.0
        %v4644 = vadd.f32 %v4642, %v4643
        %v4645 = vsel %vm492, %v4569, 0.0
        %v4646 = vadd.f32 %v4644, %v4645
        %v4647 = vsel %vm492, %v4570, 0.0
        %v4648 = vadd.f32 %v4646, %v4647
        %v4649 = vsel %vm492, %v4571, 0.0
        %v4650 = vadd.f32 %v4648, %v4649
        %v4651 = vsel %vm492, %v4572, 0.0
        %v4652 = vadd.f32 %v4650, %v4651
        %v4653 = vsel %vm492, %v4573, 0.0
        %v4654 = vadd.f32 %v4652, %v4653
        %v4655 = vsel %vm492, %v4574, 0.0
        %v4656 = vadd.f32 %v4654, %v4655
        %v4657 = vsel %vm492, %v4575, 0.0
        %v4658 = vadd.f32 %v4656, %v4657
        %v4659 = vsel %vm492, %v4576, 0.0
        %v4660 = vadd.f32 %v4658, %v4659
        %v4661 = vsel %vm492, %v4577, 0.0
        %v4662 = vadd.f32 %v4660, %v4661
        %v4663 = vsel %vm492, %v4578, 0.0
        %v4664 = vadd.f32 %v4662, %v4663
        %v4665 = vsel %vm492, %v4579, 0.0
        %v4666 = vadd.f32 %v4664, %v4665
        %v4667 = vsel %vm492, %v4580, 0.0
        %v4668 = vadd.f32 %v4666, %v4667
        %v4669 = vsel %vm492, %v4581, 0.0
        %v4670 = vadd.f32 %v4668, %v4669
        %v4671 = vsel %vm492, %v4582, 0.0
        %v4672 = vadd.f32 %v4670, %v4671
        %v4673 = vsel %vm492, %v4583, 0.0
        %v4674 = vadd.f32 %v4672, %v4673
        %v4675 = vsel %vm492, %v4584, 0.0
        %v4676 = vadd.f32 %v4674, %v4675
        %v4677 = vsel %vm492, %v4585, 0.0
        %v4678 = vadd.f32 %v4676, %v4677
        %v4679 = vsel %vm492, %v4586, 0.0
        %v4680 = vadd.f32 %v4678, %v4679
        %v4681 = vsel %vm492, %v4587, 0.0
        %v4682 = vadd.f32 %v4680, %v4681
        %v4683 = vrot.slane %v4682, 4
        %v4684 = vadd.f32 %v4682, %v4683
        %v4685 = vrot.slane %v4684, 2
        %v4686 = vadd.f32 %v4684, %v4685
        %v4687 = vrot.slane %v4686, 1
        %v4688 = vadd.f32 %v4686, %v4687
        %v4689 = vmul.f32 %v4688, 0.00390625
        %v4690 = vsub.f32 %v4556, %v4689
        %v4691 = vsub.f32 %v4557, %v4689
        %v4692 = vsub.f32 %v4558, %v4689
        %v4693 = vsub.f32 %v4559, %v4689
        %v4694 = vsub.f32 %v4560, %v4689
        %v4695 = vsub.f32 %v4561, %v4689
        %v4696 = vsub.f32 %v4562, %v4689
        %v4697 = vsub.f32 %v4563, %v4689
        %v4698 = vsub.f32 %v4564, %v4689
        %v4699 = vsub.f32 %v4565, %v4689
        %v4700 = vsub.f32 %v4566, %v4689
        %v4701 = vsub.f32 %v4567, %v4689
        %v4702 = vsub.f32 %v4568, %v4689
        %v4703 = vsub.f32 %v4569, %v4689
        %v4704 = vsub.f32 %v4570, %v4689
        %v4705 = vsub.f32 %v4571, %v4689
        %v4706 = vsub.f32 %v4572, %v4689
        %v4707 = vsub.f32 %v4573, %v4689
        %v4708 = vsub.f32 %v4574, %v4689
        %v4709 = vsub.f32 %v4575, %v4689
        %v4710 = vsub.f32 %v4576, %v4689
        %v4711 = vsub.f32 %v4577, %v4689
        %v4712 = vsub.f32 %v4578, %v4689
        %v4713 = vsub.f32 %v4579, %v4689
        %v4714 = vsub.f32 %v4580, %v4689
        %v4715 = vsub.f32 %v4581, %v4689
        %v4716 = vsub.f32 %v4582, %v4689
        %v4717 = vsub.f32 %v4583, %v4689
        %v4718 = vsub.f32 %v4584, %v4689
        %v4719 = vsub.f32 %v4585, %v4689
        %v4720 = vsub.f32 %v4586, %v4689
        %v4721 = vsub.f32 %v4587, %v4689
        %4722 = vst.msk [vmem:[%s394] sm:$0x1] %vm501, %v4688
        %v4723 = vmul.f32 %v4690, %v4690
        %v4724 = vmul.f32 %v4691, %v4691
        %v4725 = vmul.f32 %v4692, %v4692
        %v4726 = vmul.f32 %v4693, %v4693
        %v4727 = vmul.f32 %v4694, %v4694
        %v4728 = vmul.f32 %v4695, %v4695
        %v4729 = vmul.f32 %v4696, %v4696
        %v4730 = vmul.f32 %v4697, %v4697
        %v4731 = vmul.f32 %v4698, %v4698
        %v4732 = vmul.f32 %v4699, %v4699
        %v4733 = vmul.f32 %v4700, %v4700
        %v4734 = vmul.f32 %v4701, %v4701
        %v4735 = vmul.f32 %v4702, %v4702
        %v4736 = vmul.f32 %v4703, %v4703
        %v4737 = vmul.f32 %v4704, %v4704
        %v4738 = vmul.f32 %v4705, %v4705
        %v4739 = vmul.f32 %v4706, %v4706
        %v4740 = vmul.f32 %v4707, %v4707
        %v4741 = vmul.f32 %v4708, %v4708
        %v4742 = vmul.f32 %v4709, %v4709
        %v4743 = vmul.f32 %v4710, %v4710
        %v4744 = vmul.f32 %v4711, %v4711
        %v4745 = vmul.f32 %v4712, %v4712
        %v4746 = vmul.f32 %v4713, %v4713
        %v4747 = vmul.f32 %v4714, %v4714
        %v4748 = vmul.f32 %v4715, %v4715
        %v4749 = vmul.f32 %v4716, %v4716
        %v4750 = vmul.f32 %v4717, %v4717
        %v4751 = vmul.f32 %v4718, %v4718
        %v4752 = vmul.f32 %v4719, %v4719
        %v4753 = vmul.f32 %v4720, %v4720
        %v4754 = vmul.f32 %v4721, %v4721
        %v4755 = vsel %vm492, %v4723, 0.0
        %v4756 = vsel %vm492, %v4724, 0.0
        %v4757 = vadd.f32 %v4755, %v4756
        %v4758 = vsel %vm492, %v4725, 0.0
        %v4759 = vadd.f32 %v4757, %v4758
        %v4760 = vsel %vm492, %v4726, 0.0
        %v4761 = vadd.f32 %v4759, %v4760
        %v4762 = vsel %vm492, %v4727, 0.0
        %v4763 = vadd.f32 %v4761, %v4762
        %v4764 = vsel %vm492, %v4728, 0.0
        %v4765 = vadd.f32 %v4763, %v4764
        %v4766 = vsel %vm492, %v4729, 0.0
        %v4767 = vadd.f32 %v4765, %v4766
        %v4768 = vsel %vm492, %v4730, 0.0
        %v4769 = vadd.f32 %v4767, %v4768
        %v4770 = vsel %vm492, %v4731, 0.0
        %v4771 = vadd.f32 %v4769, %v4770
        %v4772 = vsel %vm492, %v4732, 0.0
        %v4773 = vadd.f32 %v4771, %v4772
        %v4774 = vsel %vm492, %v4733, 0.0
        %v4775 = vadd.f32 %v4773, %v4774
        %v4776 = vsel %vm492, %v4734, 0.0
        %v4777 = vadd.f32 %v4775, %v4776
        %v4778 = vsel %vm492, %v4735, 0.0
        %v4779 = vadd.f32 %v4777, %v4778
        %v4780 = vsel %vm492, %v4736, 0.0
        %v4781 = vadd.f32 %v4779, %v4780
        %v4782 = vsel %vm492, %v4737, 0.0
        %v4783 = vadd.f32 %v4781, %v4782
        %v4784 = vsel %vm492, %v4738, 0.0
        %v4785 = vadd.f32 %v4783, %v4784
        %v4786 = vsel %vm492, %v4739, 0.0
        %v4787 = vadd.f32 %v4785, %v4786
        %v4788 = vsel %vm492, %v4740, 0.0
        %v4789 = vadd.f32 %v4787, %v4788
        %v4790 = vsel %vm492, %v4741, 0.0
        %v4791 = vadd.f32 %v4789, %v4790
        %v4792 = vsel %vm492, %v4742, 0.0
        %v4793 = vadd.f32 %v4791, %v4792
        %v4794 = vsel %vm492, %v4743, 0.0
        %v4795 = vadd.f32 %v4793, %v4794
        %v4796 = vsel %vm492, %v4744, 0.0
        %v4797 = vadd.f32 %v4795, %v4796
        %v4798 = vsel %vm492, %v4745, 0.0
        %v4799 = vadd.f32 %v4797, %v4798
        %v4800 = vsel %vm492, %v4746, 0.0
        %v4801 = vadd.f32 %v4799, %v4800
        %v4802 = vsel %vm492, %v4747, 0.0
        %v4803 = vadd.f32 %v4801, %v4802
        %v4804 = vsel %vm492, %v4748, 0.0
        %v4805 = vadd.f32 %v4803, %v4804
        %v4806 = vsel %vm492, %v4749, 0.0
        %v4807 = vadd.f32 %v4805, %v4806
        %v4808 = vsel %vm492, %v4750, 0.0
        %v4809 = vadd.f32 %v4807, %v4808
        %v4810 = vsel %vm492, %v4751, 0.0
        %v4811 = vadd.f32 %v4809, %v4810
        %v4812 = vsel %vm492, %v4752, 0.0
        %v4813 = vadd.f32 %v4811, %v4812
        %v4814 = vsel %vm492, %v4753, 0.0
        %v4815 = vadd.f32 %v4813, %v4814
        %v4816 = vsel %vm492, %v4754, 0.0
        %v4817 = vadd.f32 %v4815, %v4816
        %v4818 = vrot.slane %v4817, 4
        %v4819 = vadd.f32 %v4817, %v4818
        %v4820 = vrot.slane %v4819, 2
        %v4821 = vadd.f32 %v4819, %v4820
        %v4822 = vrot.slane %v4821, 1
        %v4823 = vadd.f32 %v4821, %v4822
        %4824 = vst.msk [vmem:[%s394 + $0x1] sm:$0x1] %vm501, %v4823
        %p4825 = scmp.lt.s32.totalorder %s23, 1
        %s4826 = scalar_select %p4825, %s23, 1
        %s4827 = smul.addr %s4826, 32
        %s4828 = smul.addr %s4827, 8
        %s4829 = scalar_lea.vmem %s8, %s4828
        %p4830 = scmp.lt.s32.totalorder %s23, 1
        %s4831 = scalar_select %p4830, %s23, 1
        %s4832 = smul.addr %s4831, 2
        %s4833 = scalar_lea.vmem %s9, %s4832
        // Predicated region
        $region75: #{up_conv.3} parent=51 // pred_check
          %p4834 = pneg %p219
        $region76: #{up_conv.3} parent=51 // pred_check_branch
          %4836 = sbr.rel (%p4834) target = $region78
        $region77: #{up_conv.3} parent=51 // pred_region
          _
        $region78: #{up_conv.3} parent=51 // pred_fallthru
          _
        // Predicated region
        $region79: #{up_conv.3} parent=51 // pred_check
          %p4837 = pneg %p245
        $region80: #{up_conv.3} parent=51 // pred_check_branch
          %4839 = sbr.rel (%p4837) target = $region82
        $region81: #{up_conv.3} parent=51 // pred_region
          _
        $region82: #{up_conv.3} parent=51 // pred_fallthru
          _
      $region52: #{up_conv.3} parent=5 // pred_fallthru
        _
      %p4840 = scmp.le.s32.totalorder 2, %s18
      // Predicated region
      $region83: #{up_conv.3} parent=5 // pred_check
        %p4841 = pneg %p4840
      $region84: #{up_conv.3} parent=5 // pred_check_branch
        %4843 = sbr.rel (%p4841) target = $region86
      $region85: #{up_conv.3} parent=5 // pred_region
        %s4844 = ssub.s32 %s18, 2
        // Predicated region
        $region87: #{up_conv.3} parent=85 // pred_check
          %p4845 = pneg %p225
        $region88: #{up_conv.3} parent=85 // pred_check_branch
          %4847 = sbr.rel (%p4845) target = $region90
        $region89: #{up_conv.3} parent=85 // pred_region
          %p4848 = scmp.lt.s32.totalorder %s24, 1
          %s4849 = scalar_select %p4848, %s24, 1
          %s4850 = smul.addr %s4849, 32
          %s4851 = smul.addr %s4850, 8
          %s4852 = scalar_lea.vmem %s8, %s4851
        $region90: #{up_conv.3} parent=85 // pred_fallthru
          _
        // Predicated region
        $region91: #{up_conv.3} parent=85 // pred_check
          %p4853 = pneg %p251
        $region92: #{up_conv.3} parent=85 // pred_check_branch
          %4855 = sbr.rel (%p4853) target = $region94
        $region93: #{up_conv.3} parent=85 // pred_region
          %p4856 = scmp.lt.s32.totalorder %s24, 1
          %s4857 = scalar_select %p4856, %s24, 1
          %s4858 = smul.addr %s4857, 2
          %s4859 = scalar_lea.vmem %s9, %s4858
        $region94: #{up_conv.3} parent=85 // pred_fallthru
          _
      $region86: #{up_conv.3} parent=5 // pred_fallthru
        _
    $region6: #{up_conv.3} parent=1 // loop_footer
      %s22 = sadd.s32 1, %s18
    $region7: #{up_conv.3} parent=1 // loop_footer_branch
      %17 = sbr.rel target = $region3
    $region8: #{up_conv.3} parent=1 // loop_exit
      _
    %4860 = vsyncpa [#allocation5], 1
    %s4861 = scalar_lea.sflag [#allocation5], 1
    %4862 = vsyncpa %s4861, 1
    %4863 = vsyncpa [#allocation7], 1

</llo_original>
